<compile_context>
chip_gen: v5e
topology: v5e:2x2
jax: 0.10.0
libtpu: 0.0.40
codegen_flags: <defaults>
</compile_context>

<pallas_src>
import functools

import numpy as np
import jax
import jax.numpy as jnp
from jax import lax
from jax.experimental import pallas as pl
from jax.experimental.pallas import tpu as pltpu

TOKEN_PAD_IX = 0
TOKEN_START_IX = 1
TOKEN_END_IX = 2

_NEG_INF = -1e30
_UNROLL_MAX_T = 16   # fully unroll the decode loop below this many steps


def _round_up(x, m):
    return (x + m - 1) // m * m


def _decoder_kernel(mean_enc_ref, w_init_ref, emb_proj_ref, enc_att_ref,
                    enc_ctx_ref, w_hh_ref, b_h_ref, w_voc_ref, b_voc_ref,
                    dl_in_ref,
                    scores_ref, alphas_ref, dl_out_ref,
                    *, num_regions):
    T, Bp, Vp = scores_ref.shape
    Pp = alphas_ref.shape[2]

    # ---- loop-invariant loads / constants (hoisted out of the T-step loop) ----
    enc_att = enc_att_ref[...]          # (Bp, Pp, H)   encoder @ W_att^T
    enc_ctx = enc_ctx_ref[...]          # (Bp, Pp, H)   encoder @ W_ctx
    emb_proj = emb_proj_ref[...]        # (Vp, H)       embeddings @ W_emb
    w_hh = w_hh_ref[...]                # (H, H)
    b_h = b_h_ref[...]                  # (1, H)
    w_voc = w_voc_ref[...]              # (H, Vp)
    b_voc = b_voc_ref[...]              # (1, Vp)  (-1e30 in padded vocab columns)

    iota_v = lax.broadcasted_iota(jnp.int32, (Bp, Vp), 1)
    region_ids = lax.broadcasted_iota(jnp.int32, (Bp, Pp), 1)
    att_mask = jnp.where(region_ids < num_regions, 0.0, _NEG_INF).astype(jnp.float32)

    # init_hidden_states: tanh(mean_over_regions(enc) @ W_init)
    h0 = jnp.tanh(jnp.dot(mean_enc_ref[...], w_init_ref[...],
                          preferred_element_type=jnp.float32))       # (Bp, H)
    prev0 = jnp.full((Bp, 1), TOKEN_START_IX, dtype=jnp.int32)
    dl0 = dl_in_ref[...]                                             # (Bp, 1) int32

    def step(t, carry):
        h, prev, dl = carry

        # eval mode: decode_lengths[prev == <end>] = min(decode_lengths, t)
        dl = jnp.where(prev == TOKEN_END_IX, jnp.minimum(dl, t), dl)
        incomplete = dl > t                                          # (Bp, 1) bool

        # embedding lookup fused with its projection: onehot @ (E @ W_emb)   (MXU)
        onehot = (iota_v == prev).astype(jnp.float32)                # (Bp, Vp)
        emb_h = jnp.dot(onehot, emb_proj,
                        preferred_element_type=jnp.float32)          # (Bp, H)

        # attention logits on the MXU (W_att folded into enc_att)
        e3 = jnp.einsum('bqh,bph->bqp', h[:, None, :], enc_att,
                        preferred_element_type=jnp.float32)          # (Bp, 1, Pp)
        e = jnp.sum(e3, axis=1) + att_mask                           # (Bp, Pp)
        e = e - jnp.max(e, axis=-1, keepdims=True)
        p_exp = jnp.exp(e)
        alpha = p_exp / jnp.sum(p_exp, axis=-1, keepdims=True)       # (Bp, Pp)

        # attention context already projected to hidden space (W_ctx folded)   (MXU)
        ctx3 = jnp.einsum('bqp,bph->bqh', alpha[:, None, :], enc_ctx,
                          preferred_element_type=jnp.float32)        # (Bp, 1, H)
        ctx_h = jnp.sum(ctx3, axis=1)                                # (Bp, H)

        # tanh-RNN cell
        h_new = jnp.tanh(emb_h + ctx_h
                         + jnp.dot(h, w_hh, preferred_element_type=jnp.float32)
                         + b_h)
        scores_t = jnp.dot(h_new, w_voc,
                           preferred_element_type=jnp.float32) + b_voc   # (Bp, Vp)

        # greedy next word: first-max argmax (padded vocab columns never win)
        mx = jnp.max(scores_t, axis=-1, keepdims=True)
        cand = jnp.where(scores_t == mx, iota_v, Vp)
        prev_new = jnp.min(cand, axis=-1, keepdims=True).astype(jnp.int32)

        # lane-dense stores (Vp, Pp multiples of 128); completed sequences keep zeros
        scores_ref[t] = jnp.where(incomplete, scores_t, 0.0)
        alphas_ref[t] = jnp.where(incomplete, alpha, 0.0)
        return h_new, prev_new, dl

    if T <= _UNROLL_MAX_T:
        # short, fixed trip count: full unroll gives the LLO scheduler visibility
        _, _, dl_final = lax.fori_loop(0, T, step, (h0, prev0, dl0), unroll=True)
    else:
        _, _, dl_final = lax.fori_loop(0, T, step, (h0, prev0, dl0))
    dl_out_ref[...] = dl_final


@functools.partial(jax.jit, static_argnames=("max_decode_len",))
def captioning_decoder_forward(encoder_output, params, decode_lengths, max_decode_len):
    """encoder_output: (B, P, D) f32 (already flattened like .view(B, -1, D));
    decode_lengths: (B, 1) int32.  Returns (scores (B,T,V), decode_lengths, extras)."""
    B, P, D = encoder_output.shape
    V, _E = params["embeddings"].shape
    H = params["w_hh"].shape[0]
    T = int(max_decode_len)

    f32 = jnp.float32
    Bp = _round_up(B, 8)       # sublane-dense batch
    Pp = _round_up(P, 128)     # lane-dense attention / alphas axis
    Vp = _round_up(V, 128)     # lane-dense vocab / scores axis

    enc = jnp.zeros((Bp, Pp, D), f32).at[:B, :P, :].set(encoder_output.astype(f32))

    # ---- loop-invariant prep, done once outside the serial T-step recurrence ----
    mean_enc = jnp.sum(enc, axis=1) * (1.0 / P)                              # (Bp, D)
    enc_att = jnp.einsum("bpd,hd->bph", enc, params["w_att"].astype(f32))    # (Bp,Pp,H)
    enc_ctx = jnp.einsum("bpd,dh->bph", enc, params["w_ctx"].astype(f32))    # (Bp,Pp,H)
    emb_proj = jnp.zeros((Vp, H), f32).at[:V].set(
        params["embeddings"].astype(f32) @ params["w_emb"].astype(f32))      # (Vp, H)
    w_voc = jnp.zeros((H, Vp), f32).at[:, :V].set(params["w_voc"].astype(f32))
    b_voc = jnp.full((1, Vp), _NEG_INF, f32).at[:, :V].set(params["b_voc"].astype(f32))
    dl_in = jnp.zeros((Bp, 1), jnp.int32).at[:B].set(decode_lengths.astype(jnp.int32))

    kernel = functools.partial(_decoder_kernel, num_regions=P)
    vmem = pltpu.MemorySpace.VMEM
    scores_p, alphas_p, dl_p = pl.pallas_call(
        kernel,
        out_shape=(
            jax.ShapeDtypeStruct((T, Bp, Vp), f32),
            jax.ShapeDtypeStruct((T, Bp, Pp), f32),
            jax.ShapeDtypeStruct((Bp, 1), jnp.int32),
        ),
        in_specs=[pl.BlockSpec(memory_space=vmem)] * 10,
        out_specs=(pl.BlockSpec(memory_space=vmem),) * 3,
    )(mean_enc, params["w_init"].astype(f32), emb_proj, enc_att, enc_ctx,
      params["w_hh"].astype(f32), params["b_h"].astype(f32), w_voc, b_voc, dl_in)

    scores = jnp.transpose(scores_p, (1, 0, 2))[:B, :, :V]   # (B, T, V) — PyTorch layout
    alphas = jnp.transpose(alphas_p, (1, 0, 2))[:B, :, :P]   # (B, T, P)
    decode_lengths_out = dl_p[:B]
    return scores, decode_lengths_out, {"alphas": alphas}


def _reference_forward(enc, params, dl_in, T):
    """Pure numpy replica of the original (un-fused) decoding semantics (verification)."""
    enc = np.asarray(enc, np.float32)
    p = {k: np.asarray(v, np.float32) for k, v in params.items()}
    B, P, D = enc.shape
    V = p["w_voc"].shape[1]
    h = np.tanh(enc.mean(axis=1) @ p["w_init"])
    prev = np.full((B,), TOKEN_START_IX, np.int32)
    dl = np.asarray(dl_in).reshape(B).astype(np.int64).copy()
    scores = np.zeros((B, T, V), np.float32)
    alphas = np.zeros((B, T, P), np.float32)
    for t in range(T):
        end = prev == TOKEN_END_IX
        dl[end] = np.minimum(dl[end], t)
        incomplete = dl > t
        if not incomplete.any():
            break
        emb = p["embeddings"][prev]
        query = h @ p["w_att"]
        e = (enc * query[:, None, :]).sum(-1)
        e = e - e.max(-1, keepdims=True)
        a = np.exp(e); a = a / a.sum(-1, keepdims=True)
        ctx = (a[:, :, None] * enc).sum(1)
        h = np.tanh(emb @ p["w_emb"] + ctx @ p["w_ctx"] + h @ p["w_hh"] + p["b_h"])
        sc = h @ p["w_voc"] + p["b_voc"]
        prev = sc.argmax(-1).astype(np.int32)
        scores[incomplete, t, :] = sc[incomplete]
        alphas[incomplete, t, :] = a[incomplete]
    return scores, dl, alphas


if __name__ == "__main__":
    # small deterministic config (batch already a multiple of 8 sublanes)
    B, P, D = 8, 16, 32        # batch, regions (4x4 spatial), encoder_output_dim
    E, H, V = 16, 32, 32       # embed_dim, hidden, vocab size (= len(word_map))
    T = 8                      # max(decode_lengths)

    key = jax.random.PRNGKey(0)
    ks = jax.random.split(key, 10)

    emb_table = jax.random.normal(ks[0], (V, E), jnp.float32) * 0.5
    emb_table = emb_table.at[TOKEN_PAD_IX].set(0.0)   # Embedding padding_idx behaviour

    params = {
        "embeddings": emb_table,
        "w_init": jax.random.normal(ks[1], (D, H), jnp.float32) / np.sqrt(D),
        "w_att":  jax.random.normal(ks[2], (H, D), jnp.float32) / np.sqrt(H),
        "w_emb":  jax.random.normal(ks[3], (E, H), jnp.float32) / np.sqrt(E),
        "w_ctx":  jax.random.normal(ks[4], (D, H), jnp.float32) / np.sqrt(D),
        "w_hh":   jax.random.normal(ks[5], (H, H), jnp.float32) / np.sqrt(H),
        "b_h":    jax.random.normal(ks[6], (1, H), jnp.float32) * 0.1,
        "w_voc":  jax.random.normal(ks[7], (H, V), jnp.float32) / np.sqrt(H),
        "b_voc":  jax.random.normal(ks[8], (1, V), jnp.float32) * 0.1,
    }

    # encoder features (already flattened B x P x D, matching .view(B, -1, D))
    encoder_output = jax.random.normal(ks[9], (B, P, D), jnp.float32)
    decode_lengths = jnp.array([[8], [6], [8], [3], [5], [8], [2], [7]], dtype=jnp.int32)

    scores, dl_out, extras = captioning_decoder_forward(
        encoder_output, params, decode_lengths, T)
    scores = jax.block_until_ready(scores)
    alphas = jax.block_until_ready(extras["alphas"])
    dl_out = jax.block_until_ready(dl_out)

    # verify against the pure-numpy reference of the original semantics
    ref_scores, ref_dl, ref_alphas = _reference_forward(
        encoder_output, params, decode_lengths, T)
    np.testing.assert_allclose(np.asarray(scores), ref_scores, rtol=2e-2, atol=2e-2)
    np.testing.assert_allclose(np.asarray(alphas), ref_alphas, rtol=2e-2, atol=2e-2)
    np.testing.assert_array_equal(np.asarray(dl_out).reshape(-1), ref_dl)

    print("KERNEL_OK")
</pallas_src>

<mosaic_0001>
module attributes {stable_mosaic.version = 11 : i64} {
  func.func @_decoder_kernel(%arg0: memref<8x32xf32, #tpu.memory_space<vmem>>, %arg1: memref<32x32xf32, #tpu.memory_space<vmem>>, %arg2: memref<128x32xf32, #tpu.memory_space<vmem>>, %arg3: memref<8x128x32xf32, #tpu.memory_space<vmem>>, %arg4: memref<8x128x32xf32, #tpu.memory_space<vmem>>, %arg5: memref<32x32xf32, #tpu.memory_space<vmem>>, %arg6: memref<1x32xf32, #tpu.memory_space<vmem>>, %arg7: memref<32x128xf32, #tpu.memory_space<vmem>>, %arg8: memref<1x128xf32, #tpu.memory_space<vmem>>, %arg9: memref<8x1xi32, #tpu.memory_space<vmem>>, %arg10: memref<8x8x128xf32, #tpu.memory_space<vmem>>, %arg11: memref<8x8x128xf32, #tpu.memory_space<vmem>>, %arg12: memref<8x1xi32, #tpu.memory_space<vmem>>) attributes {dimension_semantics = [], scalar_prefetch = 0 : i64, scratch_operands = 0 : i64, tpu.core_type = #tpu.core_type<tc>} {
    %c0 = arith.constant 0 : index
    %c0_0 = arith.constant 0 : index
    %c0_1 = arith.constant 0 : index
    %0 = vector.load %arg3[%c0, %c0_0, %c0_1] : memref<8x128x32xf32, #tpu.memory_space<vmem>>, vector<8x128x32xf32>
    %c0_2 = arith.constant 0 : index
    %c0_3 = arith.constant 0 : index
    %c0_4 = arith.constant 0 : index
    %1 = vector.load %arg4[%c0_2, %c0_3, %c0_4] : memref<8x128x32xf32, #tpu.memory_space<vmem>>, vector<8x128x32xf32>
    %c0_5 = arith.constant 0 : index
    %c0_6 = arith.constant 0 : index
    %2 = vector.load %arg2[%c0_5, %c0_6] : memref<128x32xf32, #tpu.memory_space<vmem>>, vector<128x32xf32>
    %c0_7 = arith.constant 0 : index
    %c0_8 = arith.constant 0 : index
    %3 = vector.load %arg5[%c0_7, %c0_8] : memref<32x32xf32, #tpu.memory_space<vmem>>, vector<32x32xf32>
    %c0_9 = arith.constant 0 : index
    %c0_10 = arith.constant 0 : index
    %4 = vector.load %arg6[%c0_9, %c0_10] : memref<1x32xf32, #tpu.memory_space<vmem>>, vector<1x32xf32>
    %c0_11 = arith.constant 0 : index
    %c0_12 = arith.constant 0 : index
    %5 = vector.load %arg7[%c0_11, %c0_12] : memref<32x128xf32, #tpu.memory_space<vmem>>, vector<32x128xf32>
    %c0_13 = arith.constant 0 : index
    %c0_14 = arith.constant 0 : index
    %6 = vector.load %arg8[%c0_13, %c0_14] : memref<1x128xf32, #tpu.memory_space<vmem>>, vector<1x128xf32>
    %7 = tpu.iota {dimensions = array<i32: 1>} : vector<8x128xi32>
    %8 = tpu.iota {dimensions = array<i32: 1>} : vector<8x128xi32>
    %c16_i32 = arith.constant 16 : i32
    %9 = vector.broadcast %c16_i32 : i32 to vector<8x128xi32>
    %10 = arith.cmpi slt, %8, %9 : vector<8x128xi32>
    %cst = arith.constant 0.000000e+00 : f32
    %cst_15 = arith.constant -1.000000e+30 : f32
    %11 = vector.broadcast %cst : f32 to vector<8x128xf32>
    %12 = vector.broadcast %cst_15 : f32 to vector<8x128xf32>
    %13 = arith.select %10, %11, %12 : vector<8x128xi1>, vector<8x128xf32>
    %c0_16 = arith.constant 0 : index
    %c0_17 = arith.constant 0 : index
    %14 = vector.load %arg0[%c0_16, %c0_17] : memref<8x32xf32, #tpu.memory_space<vmem>>, vector<8x32xf32>
    %c0_18 = arith.constant 0 : index
    %c0_19 = arith.constant 0 : index
    %15 = vector.load %arg1[%c0_18, %c0_19] : memref<32x32xf32, #tpu.memory_space<vmem>>, vector<32x32xf32>
    %cst_20 = arith.constant dense<0.000000e+00> : vector<8x32xf32>
    %16 = tpu.matmul %14, %15, %cst_20 {dimension_numbers = #tpu.dot_dimension_numbers<[1], [0], [0], [1], [0, 0, 1, 1], [], []>} : vector<8x32xf32>, vector<32x32xf32>, vector<8x32xf32> -> vector<8x32xf32>
    %17 = math.tanh %16 : vector<8x32xf32>
    %c1_i32 = arith.constant 1 : i32
    %18 = vector.broadcast %c1_i32 : i32 to vector<8x1xi32>
    %c0_21 = arith.constant 0 : index
    %c0_22 = arith.constant 0 : index
    %19 = vector.load %arg9[%c0_21, %c0_22] : memref<8x1xi32, #tpu.memory_space<vmem>>, vector<8x1xi32>
    %c0_i32 = arith.constant 0 : i32
    %c2_i32 = arith.constant 2 : i32
    %20 = vector.broadcast %c2_i32 : i32 to vector<8x1xi32>
    %21 = arith.cmpi eq, %18, %20 : vector<8x1xi32>
    %22 = vector.broadcast %c0_i32 : i32 to vector<8x1xi32>
    %23 = arith.minsi %19, %22 : vector<8x1xi32>
    %24 = arith.select %21, %23, %19 : vector<8x1xi1>, vector<8x1xi32>
    %25 = vector.broadcast %c0_i32 : i32 to vector<8x1xi32>
    %26 = arith.cmpi sgt, %24, %25 : vector<8x1xi32>
    %27 = vector.broadcast %18 : vector<8x1xi32> to vector<8x128xi32>
    %28 = arith.cmpi eq, %7, %27 : vector<8x128xi32>
    %29 = arith.extui %28 : vector<8x128xi1> to vector<8x128xi32>
    %30 = arith.sitofp %29 : vector<8x128xi32> to vector<8x128xf32>
    %cst_23 = arith.constant dense<0.000000e+00> : vector<8x32xf32>
    %31 = tpu.matmul %30, %2, %cst_23 {dimension_numbers = #tpu.dot_dimension_numbers<[1], [0], [0], [1], [0, 0, 1, 1], [], []>} : vector<8x128xf32>, vector<128x32xf32>, vector<8x32xf32> -> vector<8x32xf32>
    %32 = vector.shape_cast %17 : vector<8x32xf32> to vector<8x1x32xf32>
    "tpu.trace_start"() <{level = 10 : i32, message = "bqh,bph->bqp"}> : () -> ()
    %cst_24 = arith.constant dense<0.000000e+00> : vector<8x1x128xf32>
    %33 = tpu.matmul %32, %0, %cst_24 {dimension_numbers = #tpu.dot_dimension_numbers<[2], [2], [1], [1], [0, 0, 0, 1, 1, 1], [0], [0]>} : vector<8x1x32xf32>, vector<8x128x32xf32>, vector<8x1x128xf32> -> vector<8x1x128xf32>
    "tpu.trace_stop"() : () -> ()
    %cst_25 = arith.constant dense<0.000000e+00> : vector<8x128xf32>
    %34 = vector.multi_reduction <add>, %33, %cst_25 [1] : vector<8x1x128xf32> to vector<8x128xf32>
    %35 = arith.addf %34, %13 : vector<8x128xf32>
    %cst_26 = arith.constant dense<0xFF800000> : vector<8xf32>
    %36 = vector.multi_reduction <maximumf>, %35, %cst_26 [1] : vector<8x128xf32> to vector<8xf32>
    %37 = vector.shape_cast %36 : vector<8xf32> to vector<8x1xf32>
    %38 = vector.broadcast %37 : vector<8x1xf32> to vector<8x128xf32>
    %39 = arith.subf %35, %38 : vector<8x128xf32>
    %40 = math.exp %39 : vector<8x128xf32>
    %cst_27 = arith.constant dense<0.000000e+00> : vector<8xf32>
    %41 = vector.multi_reduction <add>, %40, %cst_27 [1] : vector<8x128xf32> to vector<8xf32>
    %42 = vector.shape_cast %41 : vector<8xf32> to vector<8x1xf32>
    %43 = vector.broadcast %42 : vector<8x1xf32> to vector<8x128xf32>
    %44 = arith.divf %40, %43 : vector<8x128xf32>
    %45 = vector.shape_cast %44 : vector<8x128xf32> to vector<8x1x128xf32>
    "tpu.trace_start"() <{level = 10 : i32, message = "bqp,bph->bqh"}> : () -> ()
    %cst_28 = arith.constant dense<0.000000e+00> : vector<8x1x32xf32>
    %46 = tpu.matmul %45, %1, %cst_28 {dimension_numbers = #tpu.dot_dimension_numbers<[2], [1], [1], [2], [0, 0, 0, 1, 1, 2], [0], [0]>} : vector<8x1x128xf32>, vector<8x128x32xf32>, vector<8x1x32xf32> -> vector<8x1x32xf32>
    "tpu.trace_stop"() : () -> ()
    %cst_29 = arith.constant dense<0.000000e+00> : vector<8x32xf32>
    %47 = vector.multi_reduction <add>, %46, %cst_29 [1] : vector<8x1x32xf32> to vector<8x32xf32>
    %48 = arith.addf %31, %47 : vector<8x32xf32>
    %cst_30 = arith.constant dense<0.000000e+00> : vector<8x32xf32>
    %49 = tpu.matmul %17, %3, %cst_30 {dimension_numbers = #tpu.dot_dimension_numbers<[1], [0], [0], [1], [0, 0, 1, 1], [], []>} : vector<8x32xf32>, vector<32x32xf32>, vector<8x32xf32> -> vector<8x32xf32>
    %50 = arith.addf %48, %49 : vector<8x32xf32>
    %51 = vector.broadcast %4 : vector<1x32xf32> to vector<8x32xf32>
    %52 = arith.addf %50, %51 : vector<8x32xf32>
    %53 = math.tanh %52 : vector<8x32xf32>
    %cst_31 = arith.constant dense<0.000000e+00> : vector<8x128xf32>
    %54 = tpu.matmul %53, %5, %cst_31 {dimension_numbers = #tpu.dot_dimension_numbers<[1], [0], [0], [1], [0, 0, 1, 1], [], []>} : vector<8x32xf32>, vector<32x128xf32>, vector<8x128xf32> -> vector<8x128xf32>
    %55 = vector.broadcast %6 : vector<1x128xf32> to vector<8x128xf32>
    %56 = arith.addf %54, %55 : vector<8x128xf32>
    %cst_32 = arith.constant dense<0xFF800000> : vector<8xf32>
    %57 = vector.multi_reduction <maximumf>, %56, %cst_32 [1] : vector<8x128xf32> to vector<8xf32>
    %58 = vector.shape_cast %57 : vector<8xf32> to vector<8x1xf32>
    %59 = vector.broadcast %58 : vector<8x1xf32> to vector<8x128xf32>
    %60 = arith.cmpf oeq, %56, %59 : vector<8x128xf32>
    %c128_i32 = arith.constant 128 : i32
    %61 = vector.broadcast %c128_i32 : i32 to vector<8x128xi32>
    %62 = arith.select %60, %7, %61 : vector<8x128xi1>, vector<8x128xi32>
    %cst_33 = arith.constant dense<2147483647> : vector<8xi32>
    %63 = vector.multi_reduction <minsi>, %62, %cst_33 [1] : vector<8x128xi32> to vector<8xi32>
    %64 = vector.shape_cast %63 : vector<8xi32> to vector<8x1xi32>
    %cst_34 = arith.constant 0.000000e+00 : f32
    %65 = vector.shape_cast %26 : vector<8x1xi1> to vector<8x1xi1>
    %66 = vector.broadcast %65 : vector<8x1xi1> to vector<8x128xi1>
    %67 = vector.broadcast %cst_34 : f32 to vector<8x128xf32>
    %68 = arith.select %66, %56, %67 : vector<8x128xi1>, vector<8x128xf32>
    %69 = arith.index_cast %c0_i32 : i32 to index
    %c0_35 = arith.constant 0 : index
    %c0_36 = arith.constant 0 : index
    %70 = vector.load %arg10[%69, %c0_35, %c0_36] : memref<8x8x128xf32, #tpu.memory_space<vmem>>, vector<1x8x128xf32>
    %71 = vector.shape_cast %70 : vector<1x8x128xf32> to vector<8x128xf32>
    %72 = vector.shape_cast %68 : vector<8x128xf32> to vector<1x8x128xf32>
    tpu.vector_store %arg10[%69, %c0_35, %c0_36], %72 {strides = array<i32>} : memref<8x8x128xf32, #tpu.memory_space<vmem>>, vector<1x8x128xf32>,
    %cst_37 = arith.constant 0.000000e+00 : f32
    %73 = vector.shape_cast %26 : vector<8x1xi1> to vector<8x1xi1>
    %74 = vector.broadcast %73 : vector<8x1xi1> to vector<8x128xi1>
    %75 = vector.broadcast %cst_37 : f32 to vector<8x128xf32>
    %76 = arith.select %74, %44, %75 : vector<8x128xi1>, vector<8x128xf32>
    %77 = arith.index_cast %c0_i32 : i32 to index
    %c0_38 = arith.constant 0 : index
    %c0_39 = arith.constant 0 : index
    %78 = vector.load %arg11[%77, %c0_38, %c0_39] : memref<8x8x128xf32, #tpu.memory_space<vmem>>, vector<1x8x128xf32>
    %79 = vector.shape_cast %78 : vector<1x8x128xf32> to vector<8x128xf32>
    %80 = vector.shape_cast %76 : vector<8x128xf32> to vector<1x8x128xf32>
    tpu.vector_store %arg11[%77, %c0_38, %c0_39], %80 {strides = array<i32>} : memref<8x8x128xf32, #tpu.memory_space<vmem>>, vector<1x8x128xf32>,
    %c1_i32_40 = arith.constant 1 : i32
    %c2_i32_41 = arith.constant 2 : i32
    %81 = vector.broadcast %c2_i32_41 : i32 to vector<8x1xi32>
    %82 = arith.cmpi eq, %64, %81 : vector<8x1xi32>
    %83 = vector.broadcast %c1_i32_40 : i32 to vector<8x1xi32>
    %84 = arith.minsi %24, %83 : vector<8x1xi32>
    %85 = arith.select %82, %84, %24 : vector<8x1xi1>, vector<8x1xi32>
    %86 = vector.broadcast %c1_i32_40 : i32 to vector<8x1xi32>
    %87 = arith.cmpi sgt, %85, %86 : vector<8x1xi32>
    %88 = vector.broadcast %64 : vector<8x1xi32> to vector<8x128xi32>
    %89 = arith.cmpi eq, %7, %88 : vector<8x128xi32>
    %90 = arith.extui %89 : vector<8x128xi1> to vector<8x128xi32>
    %91 = arith.sitofp %90 : vector<8x128xi32> to vector<8x128xf32>
    %cst_42 = arith.constant dense<0.000000e+00> : vector<8x32xf32>
    %92 = tpu.matmul %91, %2, %cst_42 {dimension_numbers = #tpu.dot_dimension_numbers<[1], [0], [0], [1], [0, 0, 1, 1], [], []>} : vector<8x128xf32>, vector<128x32xf32>, vector<8x32xf32> -> vector<8x32xf32>
    %93 = vector.shape_cast %53 : vector<8x32xf32> to vector<8x1x32xf32>
    "tpu.trace_start"() <{level = 10 : i32, message = "bqh,bph->bqp"}> : () -> ()
    %cst_43 = arith.constant dense<0.000000e+00> : vector<8x1x128xf32>
    %94 = tpu.matmul %93, %0, %cst_43 {dimension_numbers = #tpu.dot_dimension_numbers<[2], [2], [1], [1], [0, 0, 0, 1, 1, 1], [0], [0]>} : vector<8x1x32xf32>, vector<8x128x32xf32>, vector<8x1x128xf32> -> vector<8x1x128xf32>
    "tpu.trace_stop"() : () -> ()
    %cst_44 = arith.constant dense<0.000000e+00> : vector<8x128xf32>
    %95 = vector.multi_reduction <add>, %94, %cst_44 [1] : vector<8x1x128xf32> to vector<8x128xf32>
    %96 = arith.addf %95, %13 : vector<8x128xf32>
    %cst_45 = arith.constant dense<0xFF800000> : vector<8xf32>
    %97 = vector.multi_reduction <maximumf>, %96, %cst_45 [1] : vector<8x128xf32> to vector<8xf32>
    %98 = vector.shape_cast %97 : vector<8xf32> to vector<8x1xf32>
    %99 = vector.broadcast %98 : vector<8x1xf32> to vector<8x128xf32>
    %100 = arith.subf %96, %99 : vector<8x128xf32>
    %101 = math.exp %100 : vector<8x128xf32>
    %cst_46 = arith.constant dense<0.000000e+00> : vector<8xf32>
    %102 = vector.multi_reduction <add>, %101, %cst_46 [1] : vector<8x128xf32> to vector<8xf32>
    %103 = vector.shape_cast %102 : vector<8xf32> to vector<8x1xf32>
    %104 = vector.broadcast %103 : vector<8x1xf32> to vector<8x128xf32>
    %105 = arith.divf %101, %104 : vector<8x128xf32>
    %106 = vector.shape_cast %105 : vector<8x128xf32> to vector<8x1x128xf32>
    "tpu.trace_start"() <{level = 10 : i32, message = "bqp,bph->bqh"}> : () -> ()
    %cst_47 = arith.constant dense<0.000000e+00> : vector<8x1x32xf32>
    %107 = tpu.matmul %106, %1, %cst_47 {dimension_numbers = #tpu.dot_dimension_numbers<[2], [1], [1], [2], [0, 0, 0, 1, 1, 2], [0], [0]>} : vector<8x1x128xf32>, vector<8x128x32xf32>, vector<8x1x32xf32> -> vector<8x1x32xf32>
    "tpu.trace_stop"() : () -> ()
    %cst_48 = arith.constant dense<0.000000e+00> : vector<8x32xf32>
    %108 = vector.multi_reduction <add>, %107, %cst_48 [1] : vector<8x1x32xf32> to vector<8x32xf32>
    %109 = arith.addf %92, %108 : vector<8x32xf32>
    %cst_49 = arith.constant dense<0.000000e+00> : vector<8x32xf32>
    %110 = tpu.matmul %53, %3, %cst_49 {dimension_numbers = #tpu.dot_dimension_numbers<[1], [0], [0], [1], [0, 0, 1, 1], [], []>} : vector<8x32xf32>, vector<32x32xf32>, vector<8x32xf32> -> vector<8x32xf32>
    %111 = arith.addf %109, %110 : vector<8x32xf32>
    %112 = vector.broadcast %4 : vector<1x32xf32> to vector<8x32xf32>
    %113 = arith.addf %111, %112 : vector<8x32xf32>
    %114 = math.tanh %113 : vector<8x32xf32>
    %cst_50 = arith.constant dense<0.000000e+00> : vector<8x128xf32>
    %115 = tpu.matmul %114, %5, %cst_50 {dimension_numbers = #tpu.dot_dimension_numbers<[1], [0], [0], [1], [0, 0, 1, 1], [], []>} : vector<8x32xf32>, vector<32x128xf32>, vector<8x128xf32> -> vector<8x128xf32>
    %116 = vector.broadcast %6 : vector<1x128xf32> to vector<8x128xf32>
    %117 = arith.addf %115, %116 : vector<8x128xf32>
    %cst_51 = arith.constant dense<0xFF800000> : vector<8xf32>
    %118 = vector.multi_reduction <maximumf>, %117, %cst_51 [1] : vector<8x128xf32> to vector<8xf32>
    %119 = vector.shape_cast %118 : vector<8xf32> to vector<8x1xf32>
    %120 = vector.broadcast %119 : vector<8x1xf32> to vector<8x128xf32>
    %121 = arith.cmpf oeq, %117, %120 : vector<8x128xf32>
    %c128_i32_52 = arith.constant 128 : i32
    %122 = vector.broadcast %c128_i32_52 : i32 to vector<8x128xi32>
    %123 = arith.select %121, %7, %122 : vector<8x128xi1>, vector<8x128xi32>
    %cst_53 = arith.constant dense<2147483647> : vector<8xi32>
    %124 = vector.multi_reduction <minsi>, %123, %cst_53 [1] : vector<8x128xi32> to vector<8xi32>
    %125 = vector.shape_cast %124 : vector<8xi32> to vector<8x1xi32>
    %cst_54 = arith.constant 0.000000e+00 : f32
    %126 = vector.shape_cast %87 : vector<8x1xi1> to vector<8x1xi1>
    %127 = vector.broadcast %126 : vector<8x1xi1> to vector<8x128xi1>
    %128 = vector.broadcast %cst_54 : f32 to vector<8x128xf32>
    %129 = arith.select %127, %117, %128 : vector<8x128xi1>, vector<8x128xf32>
    %130 = arith.index_cast %c1_i32_40 : i32 to index
    %c0_55 = arith.constant 0 : index
    %c0_56 = arith.constant 0 : index
    %131 = vector.load %arg10[%130, %c0_55, %c0_56] : memref<8x8x128xf32, #tpu.memory_space<vmem>>, vector<1x8x128xf32>
    %132 = vector.shape_cast %131 : vector<1x8x128xf32> to vector<8x128xf32>
    %133 = vector.shape_cast %129 : vector<8x128xf32> to vector<1x8x128xf32>
    tpu.vector_store %arg10[%130, %c0_55, %c0_56], %133 {strides = array<i32>} : memref<8x8x128xf32, #tpu.memory_space<vmem>>, vector<1x8x128xf32>,
    %cst_57 = arith.constant 0.000000e+00 : f32
    %134 = vector.shape_cast %87 : vector<8x1xi1> to vector<8x1xi1>
    %135 = vector.broadcast %134 : vector<8x1xi1> to vector<8x128xi1>
    %136 = vector.broadcast %cst_57 : f32 to vector<8x128xf32>
    %137 = arith.select %135, %105, %136 : vector<8x128xi1>, vector<8x128xf32>
    %138 = arith.index_cast %c1_i32_40 : i32 to index
    %c0_58 = arith.constant 0 : index
    %c0_59 = arith.constant 0 : index
    %139 = vector.load %arg11[%138, %c0_58, %c0_59] : memref<8x8x128xf32, #tpu.memory_space<vmem>>, vector<1x8x128xf32>
    %140 = vector.shape_cast %139 : vector<1x8x128xf32> to vector<8x128xf32>
    %141 = vector.shape_cast %137 : vector<8x128xf32> to vector<1x8x128xf32>
    tpu.vector_store %arg11[%138, %c0_58, %c0_59], %141 {strides = array<i32>} : memref<8x8x128xf32, #tpu.memory_space<vmem>>, vector<1x8x128xf32>,
    %c2_i32_60 = arith.constant 2 : i32
    %c2_i32_61 = arith.constant 2 : i32
    %142 = vector.broadcast %c2_i32_61 : i32 to vector<8x1xi32>
    %143 = arith.cmpi eq, %125, %142 : vector<8x1xi32>
    %144 = vector.broadcast %c2_i32_60 : i32 to vector<8x1xi32>
    %145 = arith.minsi %85, %144 : vector<8x1xi32>
    %146 = arith.select %143, %145, %85 : vector<8x1xi1>, vector<8x1xi32>
    %147 = vector.broadcast %c2_i32_60 : i32 to vector<8x1xi32>
    %148 = arith.cmpi sgt, %146, %147 : vector<8x1xi32>
    %149 = vector.broadcast %125 : vector<8x1xi32> to vector<8x128xi32>
    %150 = arith.cmpi eq, %7, %149 : vector<8x128xi32>
    %151 = arith.extui %150 : vector<8x128xi1> to vector<8x128xi32>
    %152 = arith.sitofp %151 : vector<8x128xi32> to vector<8x128xf32>
    %cst_62 = arith.constant dense<0.000000e+00> : vector<8x32xf32>
    %153 = tpu.matmul %152, %2, %cst_62 {dimension_numbers = #tpu.dot_dimension_numbers<[1], [0], [0], [1], [0, 0, 1, 1], [], []>} : vector<8x128xf32>, vector<128x32xf32>, vector<8x32xf32> -> vector<8x32xf32>
    %154 = vector.shape_cast %114 : vector<8x32xf32> to vector<8x1x32xf32>
    "tpu.trace_start"() <{level = 10 : i32, message = "bqh,bph->bqp"}> : () -> ()
    %cst_63 = arith.constant dense<0.000000e+00> : vector<8x1x128xf32>
    %155 = tpu.matmul %154, %0, %cst_63 {dimension_numbers = #tpu.dot_dimension_numbers<[2], [2], [1], [1], [0, 0, 0, 1, 1, 1], [0], [0]>} : vector<8x1x32xf32>, vector<8x128x32xf32>, vector<8x1x128xf32> -> vector<8x1x128xf32>
    "tpu.trace_stop"() : () -> ()
    %cst_64 = arith.constant dense<0.000000e+00> : vector<8x128xf32>
    %156 = vector.multi_reduction <add>, %155, %cst_64 [1] : vector<8x1x128xf32> to vector<8x128xf32>
    %157 = arith.addf %156, %13 : vector<8x128xf32>
    %cst_65 = arith.constant dense<0xFF800000> : vector<8xf32>
    %158 = vector.multi_reduction <maximumf>, %157, %cst_65 [1] : vector<8x128xf32> to vector<8xf32>
    %159 = vector.shape_cast %158 : vector<8xf32> to vector<8x1xf32>
    %160 = vector.broadcast %159 : vector<8x1xf32> to vector<8x128xf32>
    %161 = arith.subf %157, %160 : vector<8x128xf32>
    %162 = math.exp %161 : vector<8x128xf32>
    %cst_66 = arith.constant dense<0.000000e+00> : vector<8xf32>
    %163 = vector.multi_reduction <add>, %162, %cst_66 [1] : vector<8x128xf32> to vector<8xf32>
    %164 = vector.shape_cast %163 : vector<8xf32> to vector<8x1xf32>
    %165 = vector.broadcast %164 : vector<8x1xf32> to vector<8x128xf32>
    %166 = arith.divf %162, %165 : vector<8x128xf32>
    %167 = vector.shape_cast %166 : vector<8x128xf32> to vector<8x1x128xf32>
    "tpu.trace_start"() <{level = 10 : i32, message = "bqp,bph->bqh"}> : () -> ()
    %cst_67 = arith.constant dense<0.000000e+00> : vector<8x1x32xf32>
    %168 = tpu.matmul %167, %1, %cst_67 {dimension_numbers = #tpu.dot_dimension_numbers<[2], [1], [1], [2], [0, 0, 0, 1, 1, 2], [0], [0]>} : vector<8x1x128xf32>, vector<8x128x32xf32>, vector<8x1x32xf32> -> vector<8x1x32xf32>
    "tpu.trace_stop"() : () -> ()
    %cst_68 = arith.constant dense<0.000000e+00> : vector<8x32xf32>
    %169 = vector.multi_reduction <add>, %168, %cst_68 [1] : vector<8x1x32xf32> to vector<8x32xf32>
    %170 = arith.addf %153, %169 : vector<8x32xf32>
    %cst_69 = arith.constant dense<0.000000e+00> : vector<8x32xf32>
    %171 = tpu.matmul %114, %3, %cst_69 {dimension_numbers = #tpu.dot_dimension_numbers<[1], [0], [0], [1], [0, 0, 1, 1], [], []>} : vector<8x32xf32>, vector<32x32xf32>, vector<8x32xf32> -> vector<8x32xf32>
    %172 = arith.addf %170, %171 : vector<8x32xf32>
    %173 = vector.broadcast %4 : vector<1x32xf32> to vector<8x32xf32>
    %174 = arith.addf %172, %173 : vector<8x32xf32>
    %175 = math.tanh %174 : vector<8x32xf32>
    %cst_70 = arith.constant dense<0.000000e+00> : vector<8x128xf32>
    %176 = tpu.matmul %175, %5, %cst_70 {dimension_numbers = #tpu.dot_dimension_numbers<[1], [0], [0], [1], [0, 0, 1, 1], [], []>} : vector<8x32xf32>, vector<32x128xf32>, vector<8x128xf32> -> vector<8x128xf32>
    %177 = vector.broadcast %6 : vector<1x128xf32> to vector<8x128xf32>
    %178 = arith.addf %176, %177 : vector<8x128xf32>
    %cst_71 = arith.constant dense<0xFF800000> : vector<8xf32>
    %179 = vector.multi_reduction <maximumf>, %178, %cst_71 [1] : vector<8x128xf32> to vector<8xf32>
    %180 = vector.shape_cast %179 : vector<8xf32> to vector<8x1xf32>
    %181 = vector.broadcast %180 : vector<8x1xf32> to vector<8x128xf32>
    %182 = arith.cmpf oeq, %178, %181 : vector<8x128xf32>
    %c128_i32_72 = arith.constant 128 : i32
    %183 = vector.broadcast %c128_i32_72 : i32 to vector<8x128xi32>
    %184 = arith.select %182, %7, %183 : vector<8x128xi1>, vector<8x128xi32>
    %cst_73 = arith.constant dense<2147483647> : vector<8xi32>
    %185 = vector.multi_reduction <minsi>, %184, %cst_73 [1] : vector<8x128xi32> to vector<8xi32>
    %186 = vector.shape_cast %185 : vector<8xi32> to vector<8x1xi32>
    %cst_74 = arith.constant 0.000000e+00 : f32
    %187 = vector.shape_cast %148 : vector<8x1xi1> to vector<8x1xi1>
    %188 = vector.broadcast %187 : vector<8x1xi1> to vector<8x128xi1>
    %189 = vector.broadcast %cst_74 : f32 to vector<8x128xf32>
    %190 = arith.select %188, %178, %189 : vector<8x128xi1>, vector<8x128xf32>
    %191 = arith.index_cast %c2_i32_60 : i32 to index
    %c0_75 = arith.constant 0 : index
    %c0_76 = arith.constant 0 : index
    %192 = vector.load %arg10[%191, %c0_75, %c0_76] : memref<8x8x128xf32, #tpu.memory_space<vmem>>, vector<1x8x128xf32>
    %193 = vector.shape_cast %192 : vector<1x8x128xf32> to vector<8x128xf32>
    %194 = vector.shape_cast %190 : vector<8x128xf32> to vector<1x8x128xf32>
    tpu.vector_store %arg10[%191, %c0_75, %c0_76], %194 {strides = array<i32>} : memref<8x8x128xf32, #tpu.memory_space<vmem>>, vector<1x8x128xf32>,
    %cst_77 = arith.constant 0.000000e+00 : f32
    %195 = vector.shape_cast %148 : vector<8x1xi1> to vector<8x1xi1>
    %196 = vector.broadcast %195 : vector<8x1xi1> to vector<8x128xi1>
    %197 = vector.broadcast %cst_77 : f32 to vector<8x128xf32>
    %198 = arith.select %196, %166, %197 : vector<8x128xi1>, vector<8x128xf32>
    %199 = arith.index_cast %c2_i32_60 : i32 to index
    %c0_78 = arith.constant 0 : index
    %c0_79 = arith.constant 0 : index
    %200 = vector.load %arg11[%199, %c0_78, %c0_79] : memref<8x8x128xf32, #tpu.memory_space<vmem>>, vector<1x8x128xf32>
    %201 = vector.shape_cast %200 : vector<1x8x128xf32> to vector<8x128xf32>
    %202 = vector.shape_cast %198 : vector<8x128xf32> to vector<1x8x128xf32>
    tpu.vector_store %arg11[%199, %c0_78, %c0_79], %202 {strides = array<i32>} : memref<8x8x128xf32, #tpu.memory_space<vmem>>, vector<1x8x128xf32>,
    %c3_i32 = arith.constant 3 : i32
    %c2_i32_80 = arith.constant 2 : i32
    %203 = vector.broadcast %c2_i32_80 : i32 to vector<8x1xi32>
    %204 = arith.cmpi eq, %186, %203 : vector<8x1xi32>
    %205 = vector.broadcast %c3_i32 : i32 to vector<8x1xi32>
    %206 = arith.minsi %146, %205 : vector<8x1xi32>
    %207 = arith.select %204, %206, %146 : vector<8x1xi1>, vector<8x1xi32>
    %208 = vector.broadcast %c3_i32 : i32 to vector<8x1xi32>
    %209 = arith.cmpi sgt, %207, %208 : vector<8x1xi32>
    %210 = vector.broadcast %186 : vector<8x1xi32> to vector<8x128xi32>
    %211 = arith.cmpi eq, %7, %210 : vector<8x128xi32>
    %212 = arith.extui %211 : vector<8x128xi1> to vector<8x128xi32>
    %213 = arith.sitofp %212 : vector<8x128xi32> to vector<8x128xf32>
    %cst_81 = arith.constant dense<0.000000e+00> : vector<8x32xf32>
    %214 = tpu.matmul %213, %2, %cst_81 {dimension_numbers = #tpu.dot_dimension_numbers<[1], [0], [0], [1], [0, 0, 1, 1], [], []>} : vector<8x128xf32>, vector<128x32xf32>, vector<8x32xf32> -> vector<8x32xf32>
    %215 = vector.shape_cast %175 : vector<8x32xf32> to vector<8x1x32xf32>
    "tpu.trace_start"() <{level = 10 : i32, message = "bqh,bph->bqp"}> : () -> ()
    %cst_82 = arith.constant dense<0.000000e+00> : vector<8x1x128xf32>
    %216 = tpu.matmul %215, %0, %cst_82 {dimension_numbers = #tpu.dot_dimension_numbers<[2], [2], [1], [1], [0, 0, 0, 1, 1, 1], [0], [0]>} : vector<8x1x32xf32>, vector<8x128x32xf32>, vector<8x1x128xf32> -> vector<8x1x128xf32>
    "tpu.trace_stop"() : () -> ()
    %cst_83 = arith.constant dense<0.000000e+00> : vector<8x128xf32>
    %217 = vector.multi_reduction <add>, %216, %cst_83 [1] : vector<8x1x128xf32> to vector<8x128xf32>
    %218 = arith.addf %217, %13 : vector<8x128xf32>
    %cst_84 = arith.constant dense<0xFF800000> : vector<8xf32>
    %219 = vector.multi_reduction <maximumf>, %218, %cst_84 [1] : vector<8x128xf32> to vector<8xf32>
    %220 = vector.shape_cast %219 : vector<8xf32> to vector<8x1xf32>
    %221 = vector.broadcast %220 : vector<8x1xf32> to vector<8x128xf32>
    %222 = arith.subf %218, %221 : vector<8x128xf32>
    %223 = math.exp %222 : vector<8x128xf32>
    %cst_85 = arith.constant dense<0.000000e+00> : vector<8xf32>
    %224 = vector.multi_reduction <add>, %223, %cst_85 [1] : vector<8x128xf32> to vector<8xf32>
    %225 = vector.shape_cast %224 : vector<8xf32> to vector<8x1xf32>
    %226 = vector.broadcast %225 : vector<8x1xf32> to vector<8x128xf32>
    %227 = arith.divf %223, %226 : vector<8x128xf32>
    %228 = vector.shape_cast %227 : vector<8x128xf32> to vector<8x1x128xf32>
    "tpu.trace_start"() <{level = 10 : i32, message = "bqp,bph->bqh"}> : () -> ()
    %cst_86 = arith.constant dense<0.000000e+00> : vector<8x1x32xf32>
    %229 = tpu.matmul %228, %1, %cst_86 {dimension_numbers = #tpu.dot_dimension_numbers<[2], [1], [1], [2], [0, 0, 0, 1, 1, 2], [0], [0]>} : vector<8x1x128xf32>, vector<8x128x32xf32>, vector<8x1x32xf32> -> vector<8x1x32xf32>
    "tpu.trace_stop"() : () -> ()
    %cst_87 = arith.constant dense<0.000000e+00> : vector<8x32xf32>
    %230 = vector.multi_reduction <add>, %229, %cst_87 [1] : vector<8x1x32xf32> to vector<8x32xf32>
    %231 = arith.addf %214, %230 : vector<8x32xf32>
    %cst_88 = arith.constant dense<0.000000e+00> : vector<8x32xf32>
    %232 = tpu.matmul %175, %3, %cst_88 {dimension_numbers = #tpu.dot_dimension_numbers<[1], [0], [0], [1], [0, 0, 1, 1], [], []>} : vector<8x32xf32>, vector<32x32xf32>, vector<8x32xf32> -> vector<8x32xf32>
    %233 = arith.addf %231, %232 : vector<8x32xf32>
    %234 = vector.broadcast %4 : vector<1x32xf32> to vector<8x32xf32>
    %235 = arith.addf %233, %234 : vector<8x32xf32>
    %236 = math.tanh %235 : vector<8x32xf32>
    %cst_89 = arith.constant dense<0.000000e+00> : vector<8x128xf32>
    %237 = tpu.matmul %236, %5, %cst_89 {dimension_numbers = #tpu.dot_dimension_numbers<[1], [0], [0], [1], [0, 0, 1, 1], [], []>} : vector<8x32xf32>, vector<32x128xf32>, vector<8x128xf32> -> vector<8x128xf32>
    %238 = vector.broadcast %6 : vector<1x128xf32> to vector<8x128xf32>
    %239 = arith.addf %237, %238 : vector<8x128xf32>
    %cst_90 = arith.constant dense<0xFF800000> : vector<8xf32>
    %240 = vector.multi_reduction <maximumf>, %239, %cst_90 [1] : vector<8x128xf32> to vector<8xf32>
    %241 = vector.shape_cast %240 : vector<8xf32> to vector<8x1xf32>
    %242 = vector.broadcast %241 : vector<8x1xf32> to vector<8x128xf32>
    %243 = arith.cmpf oeq, %239, %242 : vector<8x128xf32>
    %c128_i32_91 = arith.constant 128 : i32
    %244 = vector.broadcast %c128_i32_91 : i32 to vector<8x128xi32>
    %245 = arith.select %243, %7, %244 : vector<8x128xi1>, vector<8x128xi32>
    %cst_92 = arith.constant dense<2147483647> : vector<8xi32>
    %246 = vector.multi_reduction <minsi>, %245, %cst_92 [1] : vector<8x128xi32> to vector<8xi32>
    %247 = vector.shape_cast %246 : vector<8xi32> to vector<8x1xi32>
    %cst_93 = arith.constant 0.000000e+00 : f32
    %248 = vector.shape_cast %209 : vector<8x1xi1> to vector<8x1xi1>
    %249 = vector.broadcast %248 : vector<8x1xi1> to vector<8x128xi1>
    %250 = vector.broadcast %cst_93 : f32 to vector<8x128xf32>
    %251 = arith.select %249, %239, %250 : vector<8x128xi1>, vector<8x128xf32>
    %252 = arith.index_cast %c3_i32 : i32 to index
    %c0_94 = arith.constant 0 : index
    %c0_95 = arith.constant 0 : index
    %253 = vector.load %arg10[%252, %c0_94, %c0_95] : memref<8x8x128xf32, #tpu.memory_space<vmem>>, vector<1x8x128xf32>
    %254 = vector.shape_cast %253 : vector<1x8x128xf32> to vector<8x128xf32>
    %255 = vector.shape_cast %251 : vector<8x128xf32> to vector<1x8x128xf32>
    tpu.vector_store %arg10[%252, %c0_94, %c0_95], %255 {strides = array<i32>} : memref<8x8x128xf32, #tpu.memory_space<vmem>>, vector<1x8x128xf32>,
    %cst_96 = arith.constant 0.000000e+00 : f32
    %256 = vector.shape_cast %209 : vector<8x1xi1> to vector<8x1xi1>
    %257 = vector.broadcast %256 : vector<8x1xi1> to vector<8x128xi1>
    %258 = vector.broadcast %cst_96 : f32 to vector<8x128xf32>
    %259 = arith.select %257, %227, %258 : vector<8x128xi1>, vector<8x128xf32>
    %260 = arith.index_cast %c3_i32 : i32 to index
    %c0_97 = arith.constant 0 : index
    %c0_98 = arith.constant 0 : index
    %261 = vector.load %arg11[%260, %c0_97, %c0_98] : memref<8x8x128xf32, #tpu.memory_space<vmem>>, vector<1x8x128xf32>
    %262 = vector.shape_cast %261 : vector<1x8x128xf32> to vector<8x128xf32>
    %263 = vector.shape_cast %259 : vector<8x128xf32> to vector<1x8x128xf32>
    tpu.vector_store %arg11[%260, %c0_97, %c0_98], %263 {strides = array<i32>} : memref<8x8x128xf32, #tpu.memory_space<vmem>>, vector<1x8x128xf32>,
    %c4_i32 = arith.constant 4 : i32
    %c2_i32_99 = arith.constant 2 : i32
    %264 = vector.broadcast %c2_i32_99 : i32 to vector<8x1xi32>
    %265 = arith.cmpi eq, %247, %264 : vector<8x1xi32>
    %266 = vector.broadcast %c4_i32 : i32 to vector<8x1xi32>
    %267 = arith.minsi %207, %266 : vector<8x1xi32>
    %268 = arith.select %265, %267, %207 : vector<8x1xi1>, vector<8x1xi32>
    %269 = vector.broadcast %c4_i32 : i32 to vector<8x1xi32>
    %270 = arith.cmpi sgt, %268, %269 : vector<8x1xi32>
    %271 = vector.broadcast %247 : vector<8x1xi32> to vector<8x128xi32>
    %272 = arith.cmpi eq, %7, %271 : vector<8x128xi32>
    %273 = arith.extui %272 : vector<8x128xi1> to vector<8x128xi32>
    %274 = arith.sitofp %273 : vector<8x128xi32> to vector<8x128xf32>
    %cst_100 = arith.constant dense<0.000000e+00> : vector<8x32xf32>
    %275 = tpu.matmul %274, %2, %cst_100 {dimension_numbers = #tpu.dot_dimension_numbers<[1], [0], [0], [1], [0, 0, 1, 1], [], []>} : vector<8x128xf32>, vector<128x32xf32>, vector<8x32xf32> -> vector<8x32xf32>
    %276 = vector.shape_cast %236 : vector<8x32xf32> to vector<8x1x32xf32>
    "tpu.trace_start"() <{level = 10 : i32, message = "bqh,bph->bqp"}> : () -> ()
    %cst_101 = arith.constant dense<0.000000e+00> : vector<8x1x128xf32>
    %277 = tpu.matmul %276, %0, %cst_101 {dimension_numbers = #tpu.dot_dimension_numbers<[2], [2], [1], [1], [0, 0, 0, 1, 1, 1], [0], [0]>} : vector<8x1x32xf32>, vector<8x128x32xf32>, vector<8x1x128xf32> -> vector<8x1x128xf32>
    "tpu.trace_stop"() : () -> ()
    %cst_102 = arith.constant dense<0.000000e+00> : vector<8x128xf32>
    %278 = vector.multi_reduction <add>, %277, %cst_102 [1] : vector<8x1x128xf32> to vector<8x128xf32>
    %279 = arith.addf %278, %13 : vector<8x128xf32>
    %cst_103 = arith.constant dense<0xFF800000> : vector<8xf32>
    %280 = vector.multi_reduction <maximumf>, %279, %cst_103 [1] : vector<8x128xf32> to vector<8xf32>
    %281 = vector.shape_cast %280 : vector<8xf32> to vector<8x1xf32>
    %282 = vector.broadcast %281 : vector<8x1xf32> to vector<8x128xf32>
    %283 = arith.subf %279, %282 : vector<8x128xf32>
    %284 = math.exp %283 : vector<8x128xf32>
    %cst_104 = arith.constant dense<0.000000e+00> : vector<8xf32>
    %285 = vector.multi_reduction <add>, %284, %cst_104 [1] : vector<8x128xf32> to vector<8xf32>
    %286 = vector.shape_cast %285 : vector<8xf32> to vector<8x1xf32>
    %287 = vector.broadcast %286 : vector<8x1xf32> to vector<8x128xf32>
    %288 = arith.divf %284, %287 : vector<8x128xf32>
    %289 = vector.shape_cast %288 : vector<8x128xf32> to vector<8x1x128xf32>
    "tpu.trace_start"() <{level = 10 : i32, message = "bqp,bph->bqh"}> : () -> ()
    %cst_105 = arith.constant dense<0.000000e+00> : vector<8x1x32xf32>
    %290 = tpu.matmul %289, %1, %cst_105 {dimension_numbers = #tpu.dot_dimension_numbers<[2], [1], [1], [2], [0, 0, 0, 1, 1, 2], [0], [0]>} : vector<8x1x128xf32>, vector<8x128x32xf32>, vector<8x1x32xf32> -> vector<8x1x32xf32>
    "tpu.trace_stop"() : () -> ()
    %cst_106 = arith.constant dense<0.000000e+00> : vector<8x32xf32>
    %291 = vector.multi_reduction <add>, %290, %cst_106 [1] : vector<8x1x32xf32> to vector<8x32xf32>
    %292 = arith.addf %275, %291 : vector<8x32xf32>
    %cst_107 = arith.constant dense<0.000000e+00> : vector<8x32xf32>
    %293 = tpu.matmul %236, %3, %cst_107 {dimension_numbers = #tpu.dot_dimension_numbers<[1], [0], [0], [1], [0, 0, 1, 1], [], []>} : vector<8x32xf32>, vector<32x32xf32>, vector<8x32xf32> -> vector<8x32xf32>
    %294 = arith.addf %292, %293 : vector<8x32xf32>
    %295 = vector.broadcast %4 : vector<1x32xf32> to vector<8x32xf32>
    %296 = arith.addf %294, %295 : vector<8x32xf32>
    %297 = math.tanh %296 : vector<8x32xf32>
    %cst_108 = arith.constant dense<0.000000e+00> : vector<8x128xf32>
    %298 = tpu.matmul %297, %5, %cst_108 {dimension_numbers = #tpu.dot_dimension_numbers<[1], [0], [0], [1], [0, 0, 1, 1], [], []>} : vector<8x32xf32>, vector<32x128xf32>, vector<8x128xf32> -> vector<8x128xf32>
    %299 = vector.broadcast %6 : vector<1x128xf32> to vector<8x128xf32>
    %300 = arith.addf %298, %299 : vector<8x128xf32>
    %cst_109 = arith.constant dense<0xFF800000> : vector<8xf32>
    %301 = vector.multi_reduction <maximumf>, %300, %cst_109 [1] : vector<8x128xf32> to vector<8xf32>
    %302 = vector.shape_cast %301 : vector<8xf32> to vector<8x1xf32>
    %303 = vector.broadcast %302 : vector<8x1xf32> to vector<8x128xf32>
    %304 = arith.cmpf oeq, %300, %303 : vector<8x128xf32>
    %c128_i32_110 = arith.constant 128 : i32
    %305 = vector.broadcast %c128_i32_110 : i32 to vector<8x128xi32>
    %306 = arith.select %304, %7, %305 : vector<8x128xi1>, vector<8x128xi32>
    %cst_111 = arith.constant dense<2147483647> : vector<8xi32>
    %307 = vector.multi_reduction <minsi>, %306, %cst_111 [1] : vector<8x128xi32> to vector<8xi32>
    %308 = vector.shape_cast %307 : vector<8xi32> to vector<8x1xi32>
    %cst_112 = arith.constant 0.000000e+00 : f32
    %309 = vector.shape_cast %270 : vector<8x1xi1> to vector<8x1xi1>
    %310 = vector.broadcast %309 : vector<8x1xi1> to vector<8x128xi1>
    %311 = vector.broadcast %cst_112 : f32 to vector<8x128xf32>
    %312 = arith.select %310, %300, %311 : vector<8x128xi1>, vector<8x128xf32>
    %313 = arith.index_cast %c4_i32 : i32 to index
    %c0_113 = arith.constant 0 : index
    %c0_114 = arith.constant 0 : index
    %314 = vector.load %arg10[%313, %c0_113, %c0_114] : memref<8x8x128xf32, #tpu.memory_space<vmem>>, vector<1x8x128xf32>
    %315 = vector.shape_cast %314 : vector<1x8x128xf32> to vector<8x128xf32>
    %316 = vector.shape_cast %312 : vector<8x128xf32> to vector<1x8x128xf32>
    tpu.vector_store %arg10[%313, %c0_113, %c0_114], %316 {strides = array<i32>} : memref<8x8x128xf32, #tpu.memory_space<vmem>>, vector<1x8x128xf32>,
    %cst_115 = arith.constant 0.000000e+00 : f32
    %317 = vector.shape_cast %270 : vector<8x1xi1> to vector<8x1xi1>
    %318 = vector.broadcast %317 : vector<8x1xi1> to vector<8x128xi1>
    %319 = vector.broadcast %cst_115 : f32 to vector<8x128xf32>
    %320 = arith.select %318, %288, %319 : vector<8x128xi1>, vector<8x128xf32>
    %321 = arith.index_cast %c4_i32 : i32 to index
    %c0_116 = arith.constant 0 : index
    %c0_117 = arith.constant 0 : index
    %322 = vector.load %arg11[%321, %c0_116, %c0_117] : memref<8x8x128xf32, #tpu.memory_space<vmem>>, vector<1x8x128xf32>
    %323 = vector.shape_cast %322 : vector<1x8x128xf32> to vector<8x128xf32>
    %324 = vector.shape_cast %320 : vector<8x128xf32> to vector<1x8x128xf32>
    tpu.vector_store %arg11[%321, %c0_116, %c0_117], %324 {strides = array<i32>} : memref<8x8x128xf32, #tpu.memory_space<vmem>>, vector<1x8x128xf32>,
    %c5_i32 = arith.constant 5 : i32
    %c2_i32_118 = arith.constant 2 : i32
    %325 = vector.broadcast %c2_i32_118 : i32 to vector<8x1xi32>
    %326 = arith.cmpi eq, %308, %325 : vector<8x1xi32>
    %327 = vector.broadcast %c5_i32 : i32 to vector<8x1xi32>
    %328 = arith.minsi %268, %327 : vector<8x1xi32>
    %329 = arith.select %326, %328, %268 : vector<8x1xi1>, vector<8x1xi32>
    %330 = vector.broadcast %c5_i32 : i32 to vector<8x1xi32>
    %331 = arith.cmpi sgt, %329, %330 : vector<8x1xi32>
    %332 = vector.broadcast %308 : vector<8x1xi32> to vector<8x128xi32>
    %333 = arith.cmpi eq, %7, %332 : vector<8x128xi32>
    %334 = arith.extui %333 : vector<8x128xi1> to vector<8x128xi32>
    %335 = arith.sitofp %334 : vector<8x128xi32> to vector<8x128xf32>
    %cst_119 = arith.constant dense<0.000000e+00> : vector<8x32xf32>
    %336 = tpu.matmul %335, %2, %cst_119 {dimension_numbers = #tpu.dot_dimension_numbers<[1], [0], [0], [1], [0, 0, 1, 1], [], []>} : vector<8x128xf32>, vector<128x32xf32>, vector<8x32xf32> -> vector<8x32xf32>
    %337 = vector.shape_cast %297 : vector<8x32xf32> to vector<8x1x32xf32>
    "tpu.trace_start"() <{level = 10 : i32, message = "bqh,bph->bqp"}> : () -> ()
    %cst_120 = arith.constant dense<0.000000e+00> : vector<8x1x128xf32>
    %338 = tpu.matmul %337, %0, %cst_120 {dimension_numbers = #tpu.dot_dimension_numbers<[2], [2], [1], [1], [0, 0, 0, 1, 1, 1], [0], [0]>} : vector<8x1x32xf32>, vector<8x128x32xf32>, vector<8x1x128xf32> -> vector<8x1x128xf32>
    "tpu.trace_stop"() : () -> ()
    %cst_121 = arith.constant dense<0.000000e+00> : vector<8x128xf32>
    %339 = vector.multi_reduction <add>, %338, %cst_121 [1] : vector<8x1x128xf32> to vector<8x128xf32>
    %340 = arith.addf %339, %13 : vector<8x128xf32>
    %cst_122 = arith.constant dense<0xFF800000> : vector<8xf32>
    %341 = vector.multi_reduction <maximumf>, %340, %cst_122 [1] : vector<8x128xf32> to vector<8xf32>
    %342 = vector.shape_cast %341 : vector<8xf32> to vector<8x1xf32>
    %343 = vector.broadcast %342 : vector<8x1xf32> to vector<8x128xf32>
    %344 = arith.subf %340, %343 : vector<8x128xf32>
    %345 = math.exp %344 : vector<8x128xf32>
    %cst_123 = arith.constant dense<0.000000e+00> : vector<8xf32>
    %346 = vector.multi_reduction <add>, %345, %cst_123 [1] : vector<8x128xf32> to vector<8xf32>
    %347 = vector.shape_cast %346 : vector<8xf32> to vector<8x1xf32>
    %348 = vector.broadcast %347 : vector<8x1xf32> to vector<8x128xf32>
    %349 = arith.divf %345, %348 : vector<8x128xf32>
    %350 = vector.shape_cast %349 : vector<8x128xf32> to vector<8x1x128xf32>
    "tpu.trace_start"() <{level = 10 : i32, message = "bqp,bph->bqh"}> : () -> ()
    %cst_124 = arith.constant dense<0.000000e+00> : vector<8x1x32xf32>
    %351 = tpu.matmul %350, %1, %cst_124 {dimension_numbers = #tpu.dot_dimension_numbers<[2], [1], [1], [2], [0, 0, 0, 1, 1, 2], [0], [0]>} : vector<8x1x128xf32>, vector<8x128x32xf32>, vector<8x1x32xf32> -> vector<8x1x32xf32>
    "tpu.trace_stop"() : () -> ()
    %cst_125 = arith.constant dense<0.000000e+00> : vector<8x32xf32>
    %352 = vector.multi_reduction <add>, %351, %cst_125 [1] : vector<8x1x32xf32> to vector<8x32xf32>
    %353 = arith.addf %336, %352 : vector<8x32xf32>
    %cst_126 = arith.constant dense<0.000000e+00> : vector<8x32xf32>
    %354 = tpu.matmul %297, %3, %cst_126 {dimension_numbers = #tpu.dot_dimension_numbers<[1], [0], [0], [1], [0, 0, 1, 1], [], []>} : vector<8x32xf32>, vector<32x32xf32>, vector<8x32xf32> -> vector<8x32xf32>
    %355 = arith.addf %353, %354 : vector<8x32xf32>
    %356 = vector.broadcast %4 : vector<1x32xf32> to vector<8x32xf32>
    %357 = arith.addf %355, %356 : vector<8x32xf32>
    %358 = math.tanh %357 : vector<8x32xf32>
    %cst_127 = arith.constant dense<0.000000e+00> : vector<8x128xf32>
    %359 = tpu.matmul %358, %5, %cst_127 {dimension_numbers = #tpu.dot_dimension_numbers<[1], [0], [0], [1], [0, 0, 1, 1], [], []>} : vector<8x32xf32>, vector<32x128xf32>, vector<8x128xf32> -> vector<8x128xf32>
    %360 = vector.broadcast %6 : vector<1x128xf32> to vector<8x128xf32>
    %361 = arith.addf %359, %360 : vector<8x128xf32>
    %cst_128 = arith.constant dense<0xFF800000> : vector<8xf32>
    %362 = vector.multi_reduction <maximumf>, %361, %cst_128 [1] : vector<8x128xf32> to vector<8xf32>
    %363 = vector.shape_cast %362 : vector<8xf32> to vector<8x1xf32>
    %364 = vector.broadcast %363 : vector<8x1xf32> to vector<8x128xf32>
    %365 = arith.cmpf oeq, %361, %364 : vector<8x128xf32>
    %c128_i32_129 = arith.constant 128 : i32
    %366 = vector.broadcast %c128_i32_129 : i32 to vector<8x128xi32>
    %367 = arith.select %365, %7, %366 : vector<8x128xi1>, vector<8x128xi32>
    %cst_130 = arith.constant dense<2147483647> : vector<8xi32>
    %368 = vector.multi_reduction <minsi>, %367, %cst_130 [1] : vector<8x128xi32> to vector<8xi32>
    %369 = vector.shape_cast %368 : vector<8xi32> to vector<8x1xi32>
    %cst_131 = arith.constant 0.000000e+00 : f32
    %370 = vector.shape_cast %331 : vector<8x1xi1> to vector<8x1xi1>
    %371 = vector.broadcast %370 : vector<8x1xi1> to vector<8x128xi1>
    %372 = vector.broadcast %cst_131 : f32 to vector<8x128xf32>
    %373 = arith.select %371, %361, %372 : vector<8x128xi1>, vector<8x128xf32>
    %374 = arith.index_cast %c5_i32 : i32 to index
    %c0_132 = arith.constant 0 : index
    %c0_133 = arith.constant 0 : index
    %375 = vector.load %arg10[%374, %c0_132, %c0_133] : memref<8x8x128xf32, #tpu.memory_space<vmem>>, vector<1x8x128xf32>
    %376 = vector.shape_cast %375 : vector<1x8x128xf32> to vector<8x128xf32>
    %377 = vector.shape_cast %373 : vector<8x128xf32> to vector<1x8x128xf32>
    tpu.vector_store %arg10[%374, %c0_132, %c0_133], %377 {strides = array<i32>} : memref<8x8x128xf32, #tpu.memory_space<vmem>>, vector<1x8x128xf32>,
    %cst_134 = arith.constant 0.000000e+00 : f32
    %378 = vector.shape_cast %331 : vector<8x1xi1> to vector<8x1xi1>
    %379 = vector.broadcast %378 : vector<8x1xi1> to vector<8x128xi1>
    %380 = vector.broadcast %cst_134 : f32 to vector<8x128xf32>
    %381 = arith.select %379, %349, %380 : vector<8x128xi1>, vector<8x128xf32>
    %382 = arith.index_cast %c5_i32 : i32 to index
    %c0_135 = arith.constant 0 : index
    %c0_136 = arith.constant 0 : index
    %383 = vector.load %arg11[%382, %c0_135, %c0_136] : memref<8x8x128xf32, #tpu.memory_space<vmem>>, vector<1x8x128xf32>
    %384 = vector.shape_cast %383 : vector<1x8x128xf32> to vector<8x128xf32>
    %385 = vector.shape_cast %381 : vector<8x128xf32> to vector<1x8x128xf32>
    tpu.vector_store %arg11[%382, %c0_135, %c0_136], %385 {strides = array<i32>} : memref<8x8x128xf32, #tpu.memory_space<vmem>>, vector<1x8x128xf32>,
    %c6_i32 = arith.constant 6 : i32
    %c2_i32_137 = arith.constant 2 : i32
    %386 = vector.broadcast %c2_i32_137 : i32 to vector<8x1xi32>
    %387 = arith.cmpi eq, %369, %386 : vector<8x1xi32>
    %388 = vector.broadcast %c6_i32 : i32 to vector<8x1xi32>
    %389 = arith.minsi %329, %388 : vector<8x1xi32>
    %390 = arith.select %387, %389, %329 : vector<8x1xi1>, vector<8x1xi32>
    %391 = vector.broadcast %c6_i32 : i32 to vector<8x1xi32>
    %392 = arith.cmpi sgt, %390, %391 : vector<8x1xi32>
    %393 = vector.broadcast %369 : vector<8x1xi32> to vector<8x128xi32>
    %394 = arith.cmpi eq, %7, %393 : vector<8x128xi32>
    %395 = arith.extui %394 : vector<8x128xi1> to vector<8x128xi32>
    %396 = arith.sitofp %395 : vector<8x128xi32> to vector<8x128xf32>
    %cst_138 = arith.constant dense<0.000000e+00> : vector<8x32xf32>
    %397 = tpu.matmul %396, %2, %cst_138 {dimension_numbers = #tpu.dot_dimension_numbers<[1], [0], [0], [1], [0, 0, 1, 1], [], []>} : vector<8x128xf32>, vector<128x32xf32>, vector<8x32xf32> -> vector<8x32xf32>
    %398 = vector.shape_cast %358 : vector<8x32xf32> to vector<8x1x32xf32>
    "tpu.trace_start"() <{level = 10 : i32, message = "bqh,bph->bqp"}> : () -> ()
    %cst_139 = arith.constant dense<0.000000e+00> : vector<8x1x128xf32>
    %399 = tpu.matmul %398, %0, %cst_139 {dimension_numbers = #tpu.dot_dimension_numbers<[2], [2], [1], [1], [0, 0, 0, 1, 1, 1], [0], [0]>} : vector<8x1x32xf32>, vector<8x128x32xf32>, vector<8x1x128xf32> -> vector<8x1x128xf32>
    "tpu.trace_stop"() : () -> ()
    %cst_140 = arith.constant dense<0.000000e+00> : vector<8x128xf32>
    %400 = vector.multi_reduction <add>, %399, %cst_140 [1] : vector<8x1x128xf32> to vector<8x128xf32>
    %401 = arith.addf %400, %13 : vector<8x128xf32>
    %cst_141 = arith.constant dense<0xFF800000> : vector<8xf32>
    %402 = vector.multi_reduction <maximumf>, %401, %cst_141 [1] : vector<8x128xf32> to vector<8xf32>
    %403 = vector.shape_cast %402 : vector<8xf32> to vector<8x1xf32>
    %404 = vector.broadcast %403 : vector<8x1xf32> to vector<8x128xf32>
    %405 = arith.subf %401, %404 : vector<8x128xf32>
    %406 = math.exp %405 : vector<8x128xf32>
    %cst_142 = arith.constant dense<0.000000e+00> : vector<8xf32>
    %407 = vector.multi_reduction <add>, %406, %cst_142 [1] : vector<8x128xf32> to vector<8xf32>
    %408 = vector.shape_cast %407 : vector<8xf32> to vector<8x1xf32>
    %409 = vector.broadcast %408 : vector<8x1xf32> to vector<8x128xf32>
    %410 = arith.divf %406, %409 : vector<8x128xf32>
    %411 = vector.shape_cast %410 : vector<8x128xf32> to vector<8x1x128xf32>
    "tpu.trace_start"() <{level = 10 : i32, message = "bqp,bph->bqh"}> : () -> ()
    %cst_143 = arith.constant dense<0.000000e+00> : vector<8x1x32xf32>
    %412 = tpu.matmul %411, %1, %cst_143 {dimension_numbers = #tpu.dot_dimension_numbers<[2], [1], [1], [2], [0, 0, 0, 1, 1, 2], [0], [0]>} : vector<8x1x128xf32>, vector<8x128x32xf32>, vector<8x1x32xf32> -> vector<8x1x32xf32>
    "tpu.trace_stop"() : () -> ()
    %cst_144 = arith.constant dense<0.000000e+00> : vector<8x32xf32>
    %413 = vector.multi_reduction <add>, %412, %cst_144 [1] : vector<8x1x32xf32> to vector<8x32xf32>
    %414 = arith.addf %397, %413 : vector<8x32xf32>
    %cst_145 = arith.constant dense<0.000000e+00> : vector<8x32xf32>
    %415 = tpu.matmul %358, %3, %cst_145 {dimension_numbers = #tpu.dot_dimension_numbers<[1], [0], [0], [1], [0, 0, 1, 1], [], []>} : vector<8x32xf32>, vector<32x32xf32>, vector<8x32xf32> -> vector<8x32xf32>
    %416 = arith.addf %414, %415 : vector<8x32xf32>
    %417 = vector.broadcast %4 : vector<1x32xf32> to vector<8x32xf32>
    %418 = arith.addf %416, %417 : vector<8x32xf32>
    %419 = math.tanh %418 : vector<8x32xf32>
    %cst_146 = arith.constant dense<0.000000e+00> : vector<8x128xf32>
    %420 = tpu.matmul %419, %5, %cst_146 {dimension_numbers = #tpu.dot_dimension_numbers<[1], [0], [0], [1], [0, 0, 1, 1], [], []>} : vector<8x32xf32>, vector<32x128xf32>, vector<8x128xf32> -> vector<8x128xf32>
    %421 = vector.broadcast %6 : vector<1x128xf32> to vector<8x128xf32>
    %422 = arith.addf %420, %421 : vector<8x128xf32>
    %cst_147 = arith.constant dense<0xFF800000> : vector<8xf32>
    %423 = vector.multi_reduction <maximumf>, %422, %cst_147 [1] : vector<8x128xf32> to vector<8xf32>
    %424 = vector.shape_cast %423 : vector<8xf32> to vector<8x1xf32>
    %425 = vector.broadcast %424 : vector<8x1xf32> to vector<8x128xf32>
    %426 = arith.cmpf oeq, %422, %425 : vector<8x128xf32>
    %c128_i32_148 = arith.constant 128 : i32
    %427 = vector.broadcast %c128_i32_148 : i32 to vector<8x128xi32>
    %428 = arith.select %426, %7, %427 : vector<8x128xi1>, vector<8x128xi32>
    %cst_149 = arith.constant dense<2147483647> : vector<8xi32>
    %429 = vector.multi_reduction <minsi>, %428, %cst_149 [1] : vector<8x128xi32> to vector<8xi32>
    %430 = vector.shape_cast %429 : vector<8xi32> to vector<8x1xi32>
    %cst_150 = arith.constant 0.000000e+00 : f32
    %431 = vector.shape_cast %392 : vector<8x1xi1> to vector<8x1xi1>
    %432 = vector.broadcast %431 : vector<8x1xi1> to vector<8x128xi1>
    %433 = vector.broadcast %cst_150 : f32 to vector<8x128xf32>
    %434 = arith.select %432, %422, %433 : vector<8x128xi1>, vector<8x128xf32>
    %435 = arith.index_cast %c6_i32 : i32 to index
    %c0_151 = arith.constant 0 : index
    %c0_152 = arith.constant 0 : index
    %436 = vector.load %arg10[%435, %c0_151, %c0_152] : memref<8x8x128xf32, #tpu.memory_space<vmem>>, vector<1x8x128xf32>
    %437 = vector.shape_cast %436 : vector<1x8x128xf32> to vector<8x128xf32>
    %438 = vector.shape_cast %434 : vector<8x128xf32> to vector<1x8x128xf32>
    tpu.vector_store %arg10[%435, %c0_151, %c0_152], %438 {strides = array<i32>} : memref<8x8x128xf32, #tpu.memory_space<vmem>>, vector<1x8x128xf32>,
    %cst_153 = arith.constant 0.000000e+00 : f32
    %439 = vector.shape_cast %392 : vector<8x1xi1> to vector<8x1xi1>
    %440 = vector.broadcast %439 : vector<8x1xi1> to vector<8x128xi1>
    %441 = vector.broadcast %cst_153 : f32 to vector<8x128xf32>
    %442 = arith.select %440, %410, %441 : vector<8x128xi1>, vector<8x128xf32>
    %443 = arith.index_cast %c6_i32 : i32 to index
    %c0_154 = arith.constant 0 : index
    %c0_155 = arith.constant 0 : index
    %444 = vector.load %arg11[%443, %c0_154, %c0_155] : memref<8x8x128xf32, #tpu.memory_space<vmem>>, vector<1x8x128xf32>
    %445 = vector.shape_cast %444 : vector<1x8x128xf32> to vector<8x128xf32>
    %446 = vector.shape_cast %442 : vector<8x128xf32> to vector<1x8x128xf32>
    tpu.vector_store %arg11[%443, %c0_154, %c0_155], %446 {strides = array<i32>} : memref<8x8x128xf32, #tpu.memory_space<vmem>>, vector<1x8x128xf32>,
    %c7_i32 = arith.constant 7 : i32
    %c2_i32_156 = arith.constant 2 : i32
    %447 = vector.broadcast %c2_i32_156 : i32 to vector<8x1xi32>
    %448 = arith.cmpi eq, %430, %447 : vector<8x1xi32>
    %449 = vector.broadcast %c7_i32 : i32 to vector<8x1xi32>
    %450 = arith.minsi %390, %449 : vector<8x1xi32>
    %451 = arith.select %448, %450, %390 : vector<8x1xi1>, vector<8x1xi32>
    %452 = vector.broadcast %c7_i32 : i32 to vector<8x1xi32>
    %453 = arith.cmpi sgt, %451, %452 : vector<8x1xi32>
    %454 = vector.broadcast %430 : vector<8x1xi32> to vector<8x128xi32>
    %455 = arith.cmpi eq, %7, %454 : vector<8x128xi32>
    %456 = arith.extui %455 : vector<8x128xi1> to vector<8x128xi32>
    %457 = arith.sitofp %456 : vector<8x128xi32> to vector<8x128xf32>
    %cst_157 = arith.constant dense<0.000000e+00> : vector<8x32xf32>
    %458 = tpu.matmul %457, %2, %cst_157 {dimension_numbers = #tpu.dot_dimension_numbers<[1], [0], [0], [1], [0, 0, 1, 1], [], []>} : vector<8x128xf32>, vector<128x32xf32>, vector<8x32xf32> -> vector<8x32xf32>
    %459 = vector.shape_cast %419 : vector<8x32xf32> to vector<8x1x32xf32>
    "tpu.trace_start"() <{level = 10 : i32, message = "bqh,bph->bqp"}> : () -> ()
    %cst_158 = arith.constant dense<0.000000e+00> : vector<8x1x128xf32>
    %460 = tpu.matmul %459, %0, %cst_158 {dimension_numbers = #tpu.dot_dimension_numbers<[2], [2], [1], [1], [0, 0, 0, 1, 1, 1], [0], [0]>} : vector<8x1x32xf32>, vector<8x128x32xf32>, vector<8x1x128xf32> -> vector<8x1x128xf32>
    "tpu.trace_stop"() : () -> ()
    %cst_159 = arith.constant dense<0.000000e+00> : vector<8x128xf32>
    %461 = vector.multi_reduction <add>, %460, %cst_159 [1] : vector<8x1x128xf32> to vector<8x128xf32>
    %462 = arith.addf %461, %13 : vector<8x128xf32>
    %cst_160 = arith.constant dense<0xFF800000> : vector<8xf32>
    %463 = vector.multi_reduction <maximumf>, %462, %cst_160 [1] : vector<8x128xf32> to vector<8xf32>
    %464 = vector.shape_cast %463 : vector<8xf32> to vector<8x1xf32>
    %465 = vector.broadcast %464 : vector<8x1xf32> to vector<8x128xf32>
    %466 = arith.subf %462, %465 : vector<8x128xf32>
    %467 = math.exp %466 : vector<8x128xf32>
    %cst_161 = arith.constant dense<0.000000e+00> : vector<8xf32>
    %468 = vector.multi_reduction <add>, %467, %cst_161 [1] : vector<8x128xf32> to vector<8xf32>
    %469 = vector.shape_cast %468 : vector<8xf32> to vector<8x1xf32>
    %470 = vector.broadcast %469 : vector<8x1xf32> to vector<8x128xf32>
    %471 = arith.divf %467, %470 : vector<8x128xf32>
    %472 = vector.shape_cast %471 : vector<8x128xf32> to vector<8x1x128xf32>
    "tpu.trace_start"() <{level = 10 : i32, message = "bqp,bph->bqh"}> : () -> ()
    %cst_162 = arith.constant dense<0.000000e+00> : vector<8x1x32xf32>
    %473 = tpu.matmul %472, %1, %cst_162 {dimension_numbers = #tpu.dot_dimension_numbers<[2], [1], [1], [2], [0, 0, 0, 1, 1, 2], [0], [0]>} : vector<8x1x128xf32>, vector<8x128x32xf32>, vector<8x1x32xf32> -> vector<8x1x32xf32>
    "tpu.trace_stop"() : () -> ()
    %cst_163 = arith.constant dense<0.000000e+00> : vector<8x32xf32>
    %474 = vector.multi_reduction <add>, %473, %cst_163 [1] : vector<8x1x32xf32> to vector<8x32xf32>
    %475 = arith.addf %458, %474 : vector<8x32xf32>
    %cst_164 = arith.constant dense<0.000000e+00> : vector<8x32xf32>
    %476 = tpu.matmul %419, %3, %cst_164 {dimension_numbers = #tpu.dot_dimension_numbers<[1], [0], [0], [1], [0, 0, 1, 1], [], []>} : vector<8x32xf32>, vector<32x32xf32>, vector<8x32xf32> -> vector<8x32xf32>
    %477 = arith.addf %475, %476 : vector<8x32xf32>
    %478 = vector.broadcast %4 : vector<1x32xf32> to vector<8x32xf32>
    %479 = arith.addf %477, %478 : vector<8x32xf32>
    %480 = math.tanh %479 : vector<8x32xf32>
    %cst_165 = arith.constant dense<0.000000e+00> : vector<8x128xf32>
    %481 = tpu.matmul %480, %5, %cst_165 {dimension_numbers = #tpu.dot_dimension_numbers<[1], [0], [0], [1], [0, 0, 1, 1], [], []>} : vector<8x32xf32>, vector<32x128xf32>, vector<8x128xf32> -> vector<8x128xf32>
    %482 = vector.broadcast %6 : vector<1x128xf32> to vector<8x128xf32>
    %483 = arith.addf %481, %482 : vector<8x128xf32>
    %cst_166 = arith.constant dense<0xFF800000> : vector<8xf32>
    %484 = vector.multi_reduction <maximumf>, %483, %cst_166 [1] : vector<8x128xf32> to vector<8xf32>
    %485 = vector.shape_cast %484 : vector<8xf32> to vector<8x1xf32>
    %486 = vector.broadcast %485 : vector<8x1xf32> to vector<8x128xf32>
    %487 = arith.cmpf oeq, %483, %486 : vector<8x128xf32>
    %c128_i32_167 = arith.constant 128 : i32
    %488 = vector.broadcast %c128_i32_167 : i32 to vector<8x128xi32>
    %489 = arith.select %487, %7, %488 : vector<8x128xi1>, vector<8x128xi32>
    %cst_168 = arith.constant dense<2147483647> : vector<8xi32>
    %490 = vector.multi_reduction <minsi>, %489, %cst_168 [1] : vector<8x128xi32> to vector<8xi32>
    %491 = vector.shape_cast %490 : vector<8xi32> to vector<8x1xi32>
    %cst_169 = arith.constant 0.000000e+00 : f32
    %492 = vector.shape_cast %453 : vector<8x1xi1> to vector<8x1xi1>
    %493 = vector.broadcast %492 : vector<8x1xi1> to vector<8x128xi1>
    %494 = vector.broadcast %cst_169 : f32 to vector<8x128xf32>
    %495 = arith.select %493, %483, %494 : vector<8x128xi1>, vector<8x128xf32>
    %496 = arith.index_cast %c7_i32 : i32 to index
    %c0_170 = arith.constant 0 : index
    %c0_171 = arith.constant 0 : index
    %497 = vector.load %arg10[%496, %c0_170, %c0_171] : memref<8x8x128xf32, #tpu.memory_space<vmem>>, vector<1x8x128xf32>
    %498 = vector.shape_cast %497 : vector<1x8x128xf32> to vector<8x128xf32>
    %499 = vector.shape_cast %495 : vector<8x128xf32> to vector<1x8x128xf32>
    tpu.vector_store %arg10[%496, %c0_170, %c0_171], %499 {strides = array<i32>} : memref<8x8x128xf32, #tpu.memory_space<vmem>>, vector<1x8x128xf32>,
    %cst_172 = arith.constant 0.000000e+00 : f32
    %500 = vector.shape_cast %453 : vector<8x1xi1> to vector<8x1xi1>
    %501 = vector.broadcast %500 : vector<8x1xi1> to vector<8x128xi1>
    %502 = vector.broadcast %cst_172 : f32 to vector<8x128xf32>
    %503 = arith.select %501, %471, %502 : vector<8x128xi1>, vector<8x128xf32>
    %504 = arith.index_cast %c7_i32 : i32 to index
    %c0_173 = arith.constant 0 : index
    %c0_174 = arith.constant 0 : index
    %505 = vector.load %arg11[%504, %c0_173, %c0_174] : memref<8x8x128xf32, #tpu.memory_space<vmem>>, vector<1x8x128xf32>
    %506 = vector.shape_cast %505 : vector<1x8x128xf32> to vector<8x128xf32>
    %507 = vector.shape_cast %503 : vector<8x128xf32> to vector<1x8x128xf32>
    tpu.vector_store %arg11[%504, %c0_173, %c0_174], %507 {strides = array<i32>} : memref<8x8x128xf32, #tpu.memory_space<vmem>>, vector<1x8x128xf32>,
    %c8_i32 = arith.constant 8 : i32
    %c0_175 = arith.constant 0 : index
    %c0_176 = arith.constant 0 : index
    %508 = vector.load %arg12[%c0_175, %c0_176] : memref<8x1xi32, #tpu.memory_space<vmem>>, vector<8x1xi32>
    tpu.vector_store %arg12[%c0_175, %c0_176], %451 {strides = array<i32>} : memref<8x1xi32, #tpu.memory_space<vmem>>, vector<8x1xi32>,
    return
  }
}

</mosaic_0001>

<llo_original>
// kernel: captioning_decoder_forward.1
$region0: #{captioning_decoder_forward.1}
  #allocation0 [shape = 'u32[]', space=smem, size = 0x4, offset = 0x4, fixed_abs, tag = 'smem constant byte address 0x4 - core index']
  #allocation1 [shape = 'u32[72,128]{1,0:T(1,128)}', space=vmem, size = 0x9000, scoped, tag = 'internal scratch']
  %s0 = inlined_call_operand.vmem [shape: f32[8,32], index: 0, kind: input, shape index: {}]
  %s1 = inlined_call_operand.vmem [shape: f32[32,32], index: 1, kind: input, shape index: {}]
  %s2 = inlined_call_operand.vmem [shape: f32[128,32], index: 2, kind: input, shape index: {}]
  %s3 = inlined_call_operand.vmem [shape: f32[8,128,32], index: 3, kind: input, shape index: {}]
  %s4 = inlined_call_operand.vmem [shape: f32[8,128,32], index: 4, kind: input, shape index: {}]
  %s5 = inlined_call_operand.vmem [shape: f32[32,32], index: 5, kind: input, shape index: {}]
  %s6 = inlined_call_operand.vmem [shape: f32[1,32], index: 6, kind: input, shape index: {}]
  %s7 = inlined_call_operand.vmem [shape: f32[32,128], index: 7, kind: input, shape index: {}]
  %s8 = inlined_call_operand.vmem [shape: f32[1,128], index: 8, kind: input, shape index: {}]
  %s9 = inlined_call_operand.vmem [shape: s32[8,1], index: 9, kind: input, shape index: {}]
  %s10 = inlined_call_operand.vmem [shape: f32[8,8,128], index: 10, kind: output, shape index: {0}]
  %s11 = inlined_call_operand.vmem [shape: f32[8,8,128], index: 11, kind: output, shape index: {1}]
  %s12 = inlined_call_operand.vmem [shape: s32[8,1], index: 12, kind: output, shape index: {2}]
  %13 = xla_tuple %s10, %s11, %s12
  %s14 = sld [smem:[#allocation0]]
  $region66: #{captioning_decoder_forward.1} parent=0
    _
  %s16 = ssub.s32 1, %s14
  %s17 = scalar_select 0, %s16, %s14
  // Predicated region
  $region2: #{captioning_decoder_forward.1} parent=0 // pred_check
    _
  $region3: #{captioning_decoder_forward.1} parent=0 // pred_check_branch
    %19 = sbr.rel (0) target = $region5
  $region4: #{captioning_decoder_forward.1} parent=0 // pred_region
    _
  $region5: #{captioning_decoder_forward.1} parent=0 // pred_fallthru
    _
  // Predicated region
  $region6: #{captioning_decoder_forward.1} parent=0 // pred_check
    _
  $region7: #{captioning_decoder_forward.1} parent=0 // pred_check_branch
    %21 = sbr.rel (0) target = $region9
  $region8: #{captioning_decoder_forward.1} parent=0 // pred_region
    _
  $region9: #{captioning_decoder_forward.1} parent=0 // pred_fallthru
    _
  // Predicated region
  $region10: #{captioning_decoder_forward.1} parent=0 // pred_check
    _
  $region11: #{captioning_decoder_forward.1} parent=0 // pred_check_branch
    %23 = sbr.rel (0) target = $region13
  $region12: #{captioning_decoder_forward.1} parent=0 // pred_region
    _
  $region13: #{captioning_decoder_forward.1} parent=0 // pred_fallthru
    _
  // Predicated region
  $region14: #{captioning_decoder_forward.1} parent=0 // pred_check
    _
  $region15: #{captioning_decoder_forward.1} parent=0 // pred_check_branch
    %25 = sbr.rel (0) target = $region17
  $region16: #{captioning_decoder_forward.1} parent=0 // pred_region
    _
  $region17: #{captioning_decoder_forward.1} parent=0 // pred_fallthru
    _
  // Predicated region
  $region18: #{captioning_decoder_forward.1} parent=0 // pred_check
    _
  $region19: #{captioning_decoder_forward.1} parent=0 // pred_check_branch
    %27 = sbr.rel (0) target = $region21
  $region20: #{captioning_decoder_forward.1} parent=0 // pred_region
    _
  $region21: #{captioning_decoder_forward.1} parent=0 // pred_fallthru
    _
  // Predicated region
  $region22: #{captioning_decoder_forward.1} parent=0 // pred_check
    _
  $region23: #{captioning_decoder_forward.1} parent=0 // pred_check_branch
    %29 = sbr.rel (0) target = $region25
  $region24: #{captioning_decoder_forward.1} parent=0 // pred_region
    _
  $region25: #{captioning_decoder_forward.1} parent=0 // pred_fallthru
    _
  // Predicated region
  $region26: #{captioning_decoder_forward.1} parent=0 // pred_check
    _
  $region27: #{captioning_decoder_forward.1} parent=0 // pred_check_branch
    %31 = sbr.rel (0) target = $region29
  $region28: #{captioning_decoder_forward.1} parent=0 // pred_region
    _
  $region29: #{captioning_decoder_forward.1} parent=0 // pred_fallthru
    _
  // Predicated region
  $region30: #{captioning_decoder_forward.1} parent=0 // pred_check
    _
  $region31: #{captioning_decoder_forward.1} parent=0 // pred_check_branch
    %33 = sbr.rel (0) target = $region33
  $region32: #{captioning_decoder_forward.1} parent=0 // pred_region
    _
  $region33: #{captioning_decoder_forward.1} parent=0 // pred_fallthru
    _
  // Predicated region
  $region34: #{captioning_decoder_forward.1} parent=0 // pred_check
    _
  $region35: #{captioning_decoder_forward.1} parent=0 // pred_check_branch
    %35 = sbr.rel (0) target = $region37
  $region36: #{captioning_decoder_forward.1} parent=0 // pred_region
    _
  $region37: #{captioning_decoder_forward.1} parent=0 // pred_fallthru
    _
  // Predicated region
  $region38: #{captioning_decoder_forward.1} parent=0 // pred_check
    _
  $region39: #{captioning_decoder_forward.1} parent=0 // pred_check_branch
    %37 = sbr.rel (0) target = $region41
  $region40: #{captioning_decoder_forward.1} parent=0 // pred_region
    _
  $region41: #{captioning_decoder_forward.1} parent=0 // pred_fallthru
    _
  %v38 = vld [vmem:[%s3] sm:$0xff]
  %v39 = vld [vmem:[%s3 + $0x8] sm:$0xff]
  %v40 = vld [vmem:[%s3 + $0x10] sm:$0xff]
  %v41 = vld [vmem:[%s3 + $0x18] sm:$0xff]
  %v42 = vld [vmem:[%s3 + $0x20] sm:$0xff]
  %v43 = vld [vmem:[%s3 + $0x28] sm:$0xff]
  %v44 = vld [vmem:[%s3 + $0x30] sm:$0xff]
  %v45 = vld [vmem:[%s3 + $0x38] sm:$0xff]
  %v46 = vld [vmem:[%s3 + $0x40] sm:$0xff]
  %v47 = vld [vmem:[%s3 + $0x48] sm:$0xff]
  %v48 = vld [vmem:[%s3 + $0x50] sm:$0xff]
  %v49 = vld [vmem:[%s3 + $0x58] sm:$0xff]
  %v50 = vld [vmem:[%s3 + $0x60] sm:$0xff]
  %v51 = vld [vmem:[%s3 + $0x68] sm:$0xff]
  %v52 = vld [vmem:[%s3 + $0x70] sm:$0xff]
  %v53 = vld [vmem:[%s3 + $0x78] sm:$0xff]
  %v54 = vld [vmem:[%s3 + $0x80] sm:$0xff]
  %v55 = vld [vmem:[%s3 + $0x88] sm:$0xff]
  %v56 = vld [vmem:[%s3 + $0x90] sm:$0xff]
  %v57 = vld [vmem:[%s3 + $0x98] sm:$0xff]
  %v58 = vld [vmem:[%s3 + $0xa0] sm:$0xff]
  %v59 = vld [vmem:[%s3 + $0xa8] sm:$0xff]
  %v60 = vld [vmem:[%s3 + $0xb0] sm:$0xff]
  %v61 = vld [vmem:[%s3 + $0xb8] sm:$0xff]
  %v62 = vld [vmem:[%s3 + $0xc0] sm:$0xff]
  %v63 = vld [vmem:[%s3 + $0xc8] sm:$0xff]
  %v64 = vld [vmem:[%s3 + $0xd0] sm:$0xff]
  %v65 = vld [vmem:[%s3 + $0xd8] sm:$0xff]
  %v66 = vld [vmem:[%s3 + $0xe0] sm:$0xff]
  %v67 = vld [vmem:[%s3 + $0xe8] sm:$0xff]
  %v68 = vld [vmem:[%s3 + $0xf0] sm:$0xff]
  %v69 = vld [vmem:[%s3 + $0xf8] sm:$0xff]
  %v70 = vld [vmem:[%s3 + $0x100] sm:$0xff]
  %v71 = vld [vmem:[%s3 + $0x108] sm:$0xff]
  %v72 = vld [vmem:[%s3 + $0x110] sm:$0xff]
  %v73 = vld [vmem:[%s3 + $0x118] sm:$0xff]
  %v74 = vld [vmem:[%s3 + $0x120] sm:$0xff]
  %v75 = vld [vmem:[%s3 + $0x128] sm:$0xff]
  %v76 = vld [vmem:[%s3 + $0x130] sm:$0xff]
  %v77 = vld [vmem:[%s3 + $0x138] sm:$0xff]
  %v78 = vld [vmem:[%s3 + $0x140] sm:$0xff]
  %v79 = vld [vmem:[%s3 + $0x148] sm:$0xff]
  %v80 = vld [vmem:[%s3 + $0x150] sm:$0xff]
  %v81 = vld [vmem:[%s3 + $0x158] sm:$0xff]
  %v82 = vld [vmem:[%s3 + $0x160] sm:$0xff]
  %v83 = vld [vmem:[%s3 + $0x168] sm:$0xff]
  %v84 = vld [vmem:[%s3 + $0x170] sm:$0xff]
  %v85 = vld [vmem:[%s3 + $0x178] sm:$0xff]
  %v86 = vld [vmem:[%s3 + $0x180] sm:$0xff]
  %v87 = vld [vmem:[%s3 + $0x188] sm:$0xff]
  %v88 = vld [vmem:[%s3 + $0x190] sm:$0xff]
  %v89 = vld [vmem:[%s3 + $0x198] sm:$0xff]
  %v90 = vld [vmem:[%s3 + $0x1a0] sm:$0xff]
  %v91 = vld [vmem:[%s3 + $0x1a8] sm:$0xff]
  %v92 = vld [vmem:[%s3 + $0x1b0] sm:$0xff]
  %v93 = vld [vmem:[%s3 + $0x1b8] sm:$0xff]
  %v94 = vld [vmem:[%s3 + $0x1c0] sm:$0xff]
  %v95 = vld [vmem:[%s3 + $0x1c8] sm:$0xff]
  %v96 = vld [vmem:[%s3 + $0x1d0] sm:$0xff]
  %v97 = vld [vmem:[%s3 + $0x1d8] sm:$0xff]
  %v98 = vld [vmem:[%s3 + $0x1e0] sm:$0xff]
  %v99 = vld [vmem:[%s3 + $0x1e8] sm:$0xff]
  %v100 = vld [vmem:[%s3 + $0x1f0] sm:$0xff]
  %v101 = vld [vmem:[%s3 + $0x1f8] sm:$0xff]
  %v102 = vld [vmem:[%s3 + $0x200] sm:$0xff]
  %v103 = vld [vmem:[%s3 + $0x208] sm:$0xff]
  %v104 = vld [vmem:[%s3 + $0x210] sm:$0xff]
  %v105 = vld [vmem:[%s3 + $0x218] sm:$0xff]
  %v106 = vld [vmem:[%s3 + $0x220] sm:$0xff]
  %v107 = vld [vmem:[%s3 + $0x228] sm:$0xff]
  %v108 = vld [vmem:[%s3 + $0x230] sm:$0xff]
  %v109 = vld [vmem:[%s3 + $0x238] sm:$0xff]
  %v110 = vld [vmem:[%s3 + $0x240] sm:$0xff]
  %v111 = vld [vmem:[%s3 + $0x248] sm:$0xff]
  %v112 = vld [vmem:[%s3 + $0x250] sm:$0xff]
  %v113 = vld [vmem:[%s3 + $0x258] sm:$0xff]
  %v114 = vld [vmem:[%s3 + $0x260] sm:$0xff]
  %v115 = vld [vmem:[%s3 + $0x268] sm:$0xff]
  %v116 = vld [vmem:[%s3 + $0x270] sm:$0xff]
  %v117 = vld [vmem:[%s3 + $0x278] sm:$0xff]
  %v118 = vld [vmem:[%s3 + $0x280] sm:$0xff]
  %v119 = vld [vmem:[%s3 + $0x288] sm:$0xff]
  %v120 = vld [vmem:[%s3 + $0x290] sm:$0xff]
  %v121 = vld [vmem:[%s3 + $0x298] sm:$0xff]
  %v122 = vld [vmem:[%s3 + $0x2a0] sm:$0xff]
  %v123 = vld [vmem:[%s3 + $0x2a8] sm:$0xff]
  %v124 = vld [vmem:[%s3 + $0x2b0] sm:$0xff]
  %v125 = vld [vmem:[%s3 + $0x2b8] sm:$0xff]
  %v126 = vld [vmem:[%s3 + $0x2c0] sm:$0xff]
  %v127 = vld [vmem:[%s3 + $0x2c8] sm:$0xff]
  %v128 = vld [vmem:[%s3 + $0x2d0] sm:$0xff]
  %v129 = vld [vmem:[%s3 + $0x2d8] sm:$0xff]
  %v130 = vld [vmem:[%s3 + $0x2e0] sm:$0xff]
  %v131 = vld [vmem:[%s3 + $0x2e8] sm:$0xff]
  %v132 = vld [vmem:[%s3 + $0x2f0] sm:$0xff]
  %v133 = vld [vmem:[%s3 + $0x2f8] sm:$0xff]
  %v134 = vld [vmem:[%s3 + $0x300] sm:$0xff]
  %v135 = vld [vmem:[%s3 + $0x308] sm:$0xff]
  %v136 = vld [vmem:[%s3 + $0x310] sm:$0xff]
  %v137 = vld [vmem:[%s3 + $0x318] sm:$0xff]
  %v138 = vld [vmem:[%s3 + $0x320] sm:$0xff]
  %v139 = vld [vmem:[%s3 + $0x328] sm:$0xff]
  %v140 = vld [vmem:[%s3 + $0x330] sm:$0xff]
  %v141 = vld [vmem:[%s3 + $0x338] sm:$0xff]
  %v142 = vld [vmem:[%s3 + $0x340] sm:$0xff]
  %v143 = vld [vmem:[%s3 + $0x348] sm:$0xff]
  %v144 = vld [vmem:[%s3 + $0x350] sm:$0xff]
  %v145 = vld [vmem:[%s3 + $0x358] sm:$0xff]
  %v146 = vld [vmem:[%s3 + $0x360] sm:$0xff]
  %v147 = vld [vmem:[%s3 + $0x368] sm:$0xff]
  %v148 = vld [vmem:[%s3 + $0x370] sm:$0xff]
  %v149 = vld [vmem:[%s3 + $0x378] sm:$0xff]
  %v150 = vld [vmem:[%s3 + $0x380] sm:$0xff]
  %v151 = vld [vmem:[%s3 + $0x388] sm:$0xff]
  %v152 = vld [vmem:[%s3 + $0x390] sm:$0xff]
  %v153 = vld [vmem:[%s3 + $0x398] sm:$0xff]
  %v154 = vld [vmem:[%s3 + $0x3a0] sm:$0xff]
  %v155 = vld [vmem:[%s3 + $0x3a8] sm:$0xff]
  %v156 = vld [vmem:[%s3 + $0x3b0] sm:$0xff]
  %v157 = vld [vmem:[%s3 + $0x3b8] sm:$0xff]
  %v158 = vld [vmem:[%s3 + $0x3c0] sm:$0xff]
  %v159 = vld [vmem:[%s3 + $0x3c8] sm:$0xff]
  %v160 = vld [vmem:[%s3 + $0x3d0] sm:$0xff]
  %v161 = vld [vmem:[%s3 + $0x3d8] sm:$0xff]
  %v162 = vld [vmem:[%s3 + $0x3e0] sm:$0xff]
  %v163 = vld [vmem:[%s3 + $0x3e8] sm:$0xff]
  %v164 = vld [vmem:[%s3 + $0x3f0] sm:$0xff]
  %v165 = vld [vmem:[%s3 + $0x3f8] sm:$0xff]
  %v166 = vld [vmem:[%s4] sm:$0xff]
  %v167 = vld [vmem:[%s4 + $0x8] sm:$0xff]
  %v168 = vld [vmem:[%s4 + $0x10] sm:$0xff]
  %v169 = vld [vmem:[%s4 + $0x18] sm:$0xff]
  %v170 = vld [vmem:[%s4 + $0x20] sm:$0xff]
  %v171 = vld [vmem:[%s4 + $0x28] sm:$0xff]
  %v172 = vld [vmem:[%s4 + $0x30] sm:$0xff]
  %v173 = vld [vmem:[%s4 + $0x38] sm:$0xff]
  %v174 = vld [vmem:[%s4 + $0x40] sm:$0xff]
  %v175 = vld [vmem:[%s4 + $0x48] sm:$0xff]
  %v176 = vld [vmem:[%s4 + $0x50] sm:$0xff]
  %v177 = vld [vmem:[%s4 + $0x58] sm:$0xff]
  %v178 = vld [vmem:[%s4 + $0x60] sm:$0xff]
  %v179 = vld [vmem:[%s4 + $0x68] sm:$0xff]
  %v180 = vld [vmem:[%s4 + $0x70] sm:$0xff]
  %v181 = vld [vmem:[%s4 + $0x78] sm:$0xff]
  %v182 = vld [vmem:[%s4 + $0x80] sm:$0xff]
  %v183 = vld [vmem:[%s4 + $0x88] sm:$0xff]
  %v184 = vld [vmem:[%s4 + $0x90] sm:$0xff]
  %v185 = vld [vmem:[%s4 + $0x98] sm:$0xff]
  %v186 = vld [vmem:[%s4 + $0xa0] sm:$0xff]
  %v187 = vld [vmem:[%s4 + $0xa8] sm:$0xff]
  %v188 = vld [vmem:[%s4 + $0xb0] sm:$0xff]
  %v189 = vld [vmem:[%s4 + $0xb8] sm:$0xff]
  %v190 = vld [vmem:[%s4 + $0xc0] sm:$0xff]
  %v191 = vld [vmem:[%s4 + $0xc8] sm:$0xff]
  %v192 = vld [vmem:[%s4 + $0xd0] sm:$0xff]
  %v193 = vld [vmem:[%s4 + $0xd8] sm:$0xff]
  %v194 = vld [vmem:[%s4 + $0xe0] sm:$0xff]
  %v195 = vld [vmem:[%s4 + $0xe8] sm:$0xff]
  %v196 = vld [vmem:[%s4 + $0xf0] sm:$0xff]
  %v197 = vld [vmem:[%s4 + $0xf8] sm:$0xff]
  %v198 = vld [vmem:[%s4 + $0x100] sm:$0xff]
  %v199 = vld [vmem:[%s4 + $0x108] sm:$0xff]
  %v200 = vld [vmem:[%s4 + $0x110] sm:$0xff]
  %v201 = vld [vmem:[%s4 + $0x118] sm:$0xff]
  %v202 = vld [vmem:[%s4 + $0x120] sm:$0xff]
  %v203 = vld [vmem:[%s4 + $0x128] sm:$0xff]
  %v204 = vld [vmem:[%s4 + $0x130] sm:$0xff]
  %v205 = vld [vmem:[%s4 + $0x138] sm:$0xff]
  %v206 = vld [vmem:[%s4 + $0x140] sm:$0xff]
  %v207 = vld [vmem:[%s4 + $0x148] sm:$0xff]
  %v208 = vld [vmem:[%s4 + $0x150] sm:$0xff]
  %v209 = vld [vmem:[%s4 + $0x158] sm:$0xff]
  %v210 = vld [vmem:[%s4 + $0x160] sm:$0xff]
  %v211 = vld [vmem:[%s4 + $0x168] sm:$0xff]
  %v212 = vld [vmem:[%s4 + $0x170] sm:$0xff]
  %v213 = vld [vmem:[%s4 + $0x178] sm:$0xff]
  %v214 = vld [vmem:[%s4 + $0x180] sm:$0xff]
  %v215 = vld [vmem:[%s4 + $0x188] sm:$0xff]
  %v216 = vld [vmem:[%s4 + $0x190] sm:$0xff]
  %v217 = vld [vmem:[%s4 + $0x198] sm:$0xff]
  %v218 = vld [vmem:[%s4 + $0x1a0] sm:$0xff]
  %v219 = vld [vmem:[%s4 + $0x1a8] sm:$0xff]
  %v220 = vld [vmem:[%s4 + $0x1b0] sm:$0xff]
  %v221 = vld [vmem:[%s4 + $0x1b8] sm:$0xff]
  %v222 = vld [vmem:[%s4 + $0x1c0] sm:$0xff]
  %v223 = vld [vmem:[%s4 + $0x1c8] sm:$0xff]
  %v224 = vld [vmem:[%s4 + $0x1d0] sm:$0xff]
  %v225 = vld [vmem:[%s4 + $0x1d8] sm:$0xff]
  %v226 = vld [vmem:[%s4 + $0x1e0] sm:$0xff]
  %v227 = vld [vmem:[%s4 + $0x1e8] sm:$0xff]
  %v228 = vld [vmem:[%s4 + $0x1f0] sm:$0xff]
  %v229 = vld [vmem:[%s4 + $0x1f8] sm:$0xff]
  %v230 = vld [vmem:[%s4 + $0x200] sm:$0xff]
  %v231 = vld [vmem:[%s4 + $0x208] sm:$0xff]
  %v232 = vld [vmem:[%s4 + $0x210] sm:$0xff]
  %v233 = vld [vmem:[%s4 + $0x218] sm:$0xff]
  %v234 = vld [vmem:[%s4 + $0x220] sm:$0xff]
  %v235 = vld [vmem:[%s4 + $0x228] sm:$0xff]
  %v236 = vld [vmem:[%s4 + $0x230] sm:$0xff]
  %v237 = vld [vmem:[%s4 + $0x238] sm:$0xff]
  %v238 = vld [vmem:[%s4 + $0x240] sm:$0xff]
  %v239 = vld [vmem:[%s4 + $0x248] sm:$0xff]
  %v240 = vld [vmem:[%s4 + $0x250] sm:$0xff]
  %v241 = vld [vmem:[%s4 + $0x258] sm:$0xff]
  %v242 = vld [vmem:[%s4 + $0x260] sm:$0xff]
  %v243 = vld [vmem:[%s4 + $0x268] sm:$0xff]
  %v244 = vld [vmem:[%s4 + $0x270] sm:$0xff]
  %v245 = vld [vmem:[%s4 + $0x278] sm:$0xff]
  %v246 = vld [vmem:[%s4 + $0x280] sm:$0xff]
  %v247 = vld [vmem:[%s4 + $0x288] sm:$0xff]
  %v248 = vld [vmem:[%s4 + $0x290] sm:$0xff]
  %v249 = vld [vmem:[%s4 + $0x298] sm:$0xff]
  %v250 = vld [vmem:[%s4 + $0x2a0] sm:$0xff]
  %v251 = vld [vmem:[%s4 + $0x2a8] sm:$0xff]
  %v252 = vld [vmem:[%s4 + $0x2b0] sm:$0xff]
  %v253 = vld [vmem:[%s4 + $0x2b8] sm:$0xff]
  %v254 = vld [vmem:[%s4 + $0x2c0] sm:$0xff]
  %v255 = vld [vmem:[%s4 + $0x2c8] sm:$0xff]
  %v256 = vld [vmem:[%s4 + $0x2d0] sm:$0xff]
  %v257 = vld [vmem:[%s4 + $0x2d8] sm:$0xff]
  %v258 = vld [vmem:[%s4 + $0x2e0] sm:$0xff]
  %v259 = vld [vmem:[%s4 + $0x2e8] sm:$0xff]
  %v260 = vld [vmem:[%s4 + $0x2f0] sm:$0xff]
  %v261 = vld [vmem:[%s4 + $0x2f8] sm:$0xff]
  %v262 = vld [vmem:[%s4 + $0x300] sm:$0xff]
  %v263 = vld [vmem:[%s4 + $0x308] sm:$0xff]
  %v264 = vld [vmem:[%s4 + $0x310] sm:$0xff]
  %v265 = vld [vmem:[%s4 + $0x318] sm:$0xff]
  %v266 = vld [vmem:[%s4 + $0x320] sm:$0xff]
  %v267 = vld [vmem:[%s4 + $0x328] sm:$0xff]
  %v268 = vld [vmem:[%s4 + $0x330] sm:$0xff]
  %v269 = vld [vmem:[%s4 + $0x338] sm:$0xff]
  %v270 = vld [vmem:[%s4 + $0x340] sm:$0xff]
  %v271 = vld [vmem:[%s4 + $0x348] sm:$0xff]
  %v272 = vld [vmem:[%s4 + $0x350] sm:$0xff]
  %v273 = vld [vmem:[%s4 + $0x358] sm:$0xff]
  %v274 = vld [vmem:[%s4 + $0x360] sm:$0xff]
  %v275 = vld [vmem:[%s4 + $0x368] sm:$0xff]
  %v276 = vld [vmem:[%s4 + $0x370] sm:$0xff]
  %v277 = vld [vmem:[%s4 + $0x378] sm:$0xff]
  %v278 = vld [vmem:[%s4 + $0x380] sm:$0xff]
  %v279 = vld [vmem:[%s4 + $0x388] sm:$0xff]
  %v280 = vld [vmem:[%s4 + $0x390] sm:$0xff]
  %v281 = vld [vmem:[%s4 + $0x398] sm:$0xff]
  %v282 = vld [vmem:[%s4 + $0x3a0] sm:$0xff]
  %v283 = vld [vmem:[%s4 + $0x3a8] sm:$0xff]
  %v284 = vld [vmem:[%s4 + $0x3b0] sm:$0xff]
  %v285 = vld [vmem:[%s4 + $0x3b8] sm:$0xff]
  %v286 = vld [vmem:[%s4 + $0x3c0] sm:$0xff]
  %v287 = vld [vmem:[%s4 + $0x3c8] sm:$0xff]
  %v288 = vld [vmem:[%s4 + $0x3d0] sm:$0xff]
  %v289 = vld [vmem:[%s4 + $0x3d8] sm:$0xff]
  %v290 = vld [vmem:[%s4 + $0x3e0] sm:$0xff]
  %v291 = vld [vmem:[%s4 + $0x3e8] sm:$0xff]
  %v292 = vld [vmem:[%s4 + $0x3f0] sm:$0xff]
  %v293 = vld [vmem:[%s4 + $0x3f8] sm:$0xff]
  %v294 = vld [vmem:[%s2] sm:$0xff]
  %v295 = vld [vmem:[%s2 + $0x8] sm:$0xff]
  %v296 = vld [vmem:[%s2 + $0x10] sm:$0xff]
  %v297 = vld [vmem:[%s2 + $0x18] sm:$0xff]
  %v298 = vld [vmem:[%s2 + $0x20] sm:$0xff]
  %v299 = vld [vmem:[%s2 + $0x28] sm:$0xff]
  %v300 = vld [vmem:[%s2 + $0x30] sm:$0xff]
  %v301 = vld [vmem:[%s2 + $0x38] sm:$0xff]
  %v302 = vld [vmem:[%s2 + $0x40] sm:$0xff]
  %v303 = vld [vmem:[%s2 + $0x48] sm:$0xff]
  %v304 = vld [vmem:[%s2 + $0x50] sm:$0xff]
  %v305 = vld [vmem:[%s2 + $0x58] sm:$0xff]
  %v306 = vld [vmem:[%s2 + $0x60] sm:$0xff]
  %v307 = vld [vmem:[%s2 + $0x68] sm:$0xff]
  %v308 = vld [vmem:[%s2 + $0x70] sm:$0xff]
  %v309 = vld [vmem:[%s2 + $0x78] sm:$0xff]
  %v310 = vld [vmem:[%s5] sm:$0xff]
  %v311 = vld [vmem:[%s5 + $0x8] sm:$0xff]
  %v312 = vld [vmem:[%s5 + $0x10] sm:$0xff]
  %v313 = vld [vmem:[%s5 + $0x18] sm:$0xff]
  %v314 = vld [vmem:[%s6] sm:$0x1]
  %v315 = vld [vmem:[%s7] sm:$0xff]
  %v316 = vld [vmem:[%s7 + $0x8] sm:$0xff]
  %v317 = vld [vmem:[%s7 + $0x10] sm:$0xff]
  %v318 = vld [vmem:[%s7 + $0x18] sm:$0xff]
  %v319 = vld [vmem:[%s8] sm:$0x1]
  %v320 = vlaneseq
  %v321 = vand.u32 %v320, 127
  %vm322 = vcmp.lt.s32.totalorder %v321, 16
  %v323 = vsel %vm322, 0.0, -1e+30
  %v324 = vld [vmem:[%s0] sm:$0xff]
  %v325 = vld [vmem:[%s1] sm:$0xff]
  %v326 = vld [vmem:[%s1 + $0x8] sm:$0xff]
  %v327 = vld [vmem:[%s1 + $0x10] sm:$0xff]
  %v328 = vld [vmem:[%s1 + $0x18] sm:$0xff]
  %vm329 = vcmask 261120
  %v331 = vsel %vm329, %v324, 0
  %333 = vmatpush.msra.mxu0 0.0
  %334 = vmatpush.msra.mxu0 0.0
  %335 = vmatpush.msra.mxu0 0.0
  %336 = vmatpush.msra.mxu0 0.0
  %337 = vmatpush.msra.mxu0 0.0
  %338 = vmatpush.msra.mxu0 0.0
  %339 = vmatpush.msra.mxu0 0.0
  %340 = vmatpush.msra.mxu0 0.0
  %341 = vmatpush.msra.mxu0 0.0
  %342 = vmatpush.msra.mxu0 0.0
  %343 = vmatpush.msra.mxu0 0.0
  %344 = vmatpush.msra.mxu0 0.0
  %345 = vmatpush.msra.mxu0 %v328
  %346 = vmatpush.msra.mxu0 %v327
  %347 = vmatpush.msra.mxu0 %v326
  %348 = vmatpush.msra.mxu0 %v325
  %349 = vmatmul.f32.gmra.mxu0 %v331
  %v350 = vpop.f32.mrf.mxu0
  %v351 = vadd.f32 0.0, %v350
  %352 = vdwg.mxu0
  %v353 = vtanh.pop %v351
  %v354 = vld [vmem:[%s9] sm:$0xff]
  %vm355 = vcmp.gt.s32.totalorder %v354, 0
  %vm356 = vcmp.eq.s32.totalorder %v321, 1
  %v357 = vsel %vm356, 1, 0
  %v358 = vcvt.s32.f32 %v357
  %v360 = vrot.slane %v353, 1
  %v361 = vrot.slane %v353, 2
  %v362 = vrot.slane %v353, 3
  %v363 = vrot.slane %v353, 4
  %v364 = vrot.slane %v353, 5
  %v365 = vrot.slane %v353, 6
  %v366 = vrot.slane %v353, 7
  %v367 = vsel %vm329, %v353, 0
  %v370 = vsel %vm329, %v38, 0
  %v373 = vsel %vm329, %v39, 0
  %v376 = vsel %vm329, %v40, 0
  %v379 = vsel %vm329, %v41, 0
  %v382 = vsel %vm329, %v42, 0
  %v385 = vsel %vm329, %v43, 0
  %v388 = vsel %vm329, %v44, 0
  %v391 = vsel %vm329, %v45, 0
  %v394 = vsel %vm329, %v46, 0
  %v397 = vsel %vm329, %v47, 0
  %v400 = vsel %vm329, %v48, 0
  %v403 = vsel %vm329, %v49, 0
  %v406 = vsel %vm329, %v50, 0
  %v409 = vsel %vm329, %v51, 0
  %v412 = vsel %vm329, %v52, 0
  %v415 = vsel %vm329, %v53, 0
  %417 = vmatpush.xpose.msra.mxu0 %v415
  %418 = vmatpush.xpose.msra.mxu0 %v412
  %419 = vmatpush.xpose.msra.mxu0 %v409
  %420 = vmatpush.xpose.msra.mxu0 %v406
  %421 = vmatpush.xpose.msra.mxu0 %v403
  %422 = vmatpush.xpose.msra.mxu0 %v400
  %423 = vmatpush.xpose.msra.mxu0 %v397
  %424 = vmatpush.xpose.msra.mxu0 %v394
  %425 = vmatpush.xpose.msra.mxu0 %v391
  %426 = vmatpush.xpose.msra.mxu0 %v388
  %427 = vmatpush.xpose.msra.mxu0 %v385
  %428 = vmatpush.xpose.msra.mxu0 %v382
  %429 = vmatpush.xpose.msra.mxu0 %v379
  %430 = vmatpush.xpose.msra.mxu0 %v376
  %431 = vmatpush.xpose.msra.mxu0 %v373
  %432 = vmatpush.xpose.msra.mxu0 %v370
  %433 = vmatmul.f32.gmra.mxu0 %v367
  %v434 = vpop.f32.mrf.mxu0
  %v435 = vadd.f32 0.0, %v434
  %436 = vdwg.mxu0
  %v437 = vsel %vm329, %v360, 0
  %v440 = vsel %vm329, %v54, 0
  %v443 = vsel %vm329, %v55, 0
  %v446 = vsel %vm329, %v56, 0
  %v449 = vsel %vm329, %v57, 0
  %v452 = vsel %vm329, %v58, 0
  %v455 = vsel %vm329, %v59, 0
  %v458 = vsel %vm329, %v60, 0
  %v461 = vsel %vm329, %v61, 0
  %v464 = vsel %vm329, %v62, 0
  %v467 = vsel %vm329, %v63, 0
  %v470 = vsel %vm329, %v64, 0
  %v473 = vsel %vm329, %v65, 0
  %v476 = vsel %vm329, %v66, 0
  %v479 = vsel %vm329, %v67, 0
  %v482 = vsel %vm329, %v68, 0
  %v485 = vsel %vm329, %v69, 0
  %487 = vmatpush.xpose.msra.mxu0 %v485
  %488 = vmatpush.xpose.msra.mxu0 %v482
  %489 = vmatpush.xpose.msra.mxu0 %v479
  %490 = vmatpush.xpose.msra.mxu0 %v476
  %491 = vmatpush.xpose.msra.mxu0 %v473
  %492 = vmatpush.xpose.msra.mxu0 %v470
  %493 = vmatpush.xpose.msra.mxu0 %v467
  %494 = vmatpush.xpose.msra.mxu0 %v464
  %495 = vmatpush.xpose.msra.mxu0 %v461
  %496 = vmatpush.xpose.msra.mxu0 %v458
  %497 = vmatpush.xpose.msra.mxu0 %v455
  %498 = vmatpush.xpose.msra.mxu0 %v452
  %499 = vmatpush.xpose.msra.mxu0 %v449
  %500 = vmatpush.xpose.msra.mxu0 %v446
  %501 = vmatpush.xpose.msra.mxu0 %v443
  %502 = vmatpush.xpose.msra.mxu0 %v440
  %503 = vmatmul.f32.gmra.mxu0 %v437
  %v504 = vpop.f32.mrf.mxu0
  %v505 = vadd.f32 0.0, %v504
  %506 = vdwg.mxu0
  %v507 = vsel %vm329, %v361, 0
  %v510 = vsel %vm329, %v70, 0
  %v513 = vsel %vm329, %v71, 0
  %v516 = vsel %vm329, %v72, 0
  %v519 = vsel %vm329, %v73, 0
  %v522 = vsel %vm329, %v74, 0
  %v525 = vsel %vm329, %v75, 0
  %v528 = vsel %vm329, %v76, 0
  %v531 = vsel %vm329, %v77, 0
  %v534 = vsel %vm329, %v78, 0
  %v537 = vsel %vm329, %v79, 0
  %v540 = vsel %vm329, %v80, 0
  %v543 = vsel %vm329, %v81, 0
  %v546 = vsel %vm329, %v82, 0
  %v549 = vsel %vm329, %v83, 0
  %v552 = vsel %vm329, %v84, 0
  %v555 = vsel %vm329, %v85, 0
  %557 = vmatpush.xpose.msra.mxu0 %v555
  %558 = vmatpush.xpose.msra.mxu0 %v552
  %559 = vmatpush.xpose.msra.mxu0 %v549
  %560 = vmatpush.xpose.msra.mxu0 %v546
  %561 = vmatpush.xpose.msra.mxu0 %v543
  %562 = vmatpush.xpose.msra.mxu0 %v540
  %563 = vmatpush.xpose.msra.mxu0 %v537
  %564 = vmatpush.xpose.msra.mxu0 %v534
  %565 = vmatpush.xpose.msra.mxu0 %v531
  %566 = vmatpush.xpose.msra.mxu0 %v528
  %567 = vmatpush.xpose.msra.mxu0 %v525
  %568 = vmatpush.xpose.msra.mxu0 %v522
  %569 = vmatpush.xpose.msra.mxu0 %v519
  %570 = vmatpush.xpose.msra.mxu0 %v516
  %571 = vmatpush.xpose.msra.mxu0 %v513
  %572 = vmatpush.xpose.msra.mxu0 %v510
  %573 = vmatmul.f32.gmra.mxu0 %v507
  %v574 = vpop.f32.mrf.mxu0
  %v575 = vadd.f32 0.0, %v574
  %576 = vdwg.mxu0
  %v577 = vsel %vm329, %v362, 0
  %v580 = vsel %vm329, %v86, 0
  %v583 = vsel %vm329, %v87, 0
  %v586 = vsel %vm329, %v88, 0
  %v589 = vsel %vm329, %v89, 0
  %v592 = vsel %vm329, %v90, 0
  %v595 = vsel %vm329, %v91, 0
  %v598 = vsel %vm329, %v92, 0
  %v601 = vsel %vm329, %v93, 0
  %v604 = vsel %vm329, %v94, 0
  %v607 = vsel %vm329, %v95, 0
  %v610 = vsel %vm329, %v96, 0
  %v613 = vsel %vm329, %v97, 0
  %v616 = vsel %vm329, %v98, 0
  %v619 = vsel %vm329, %v99, 0
  %v622 = vsel %vm329, %v100, 0
  %v625 = vsel %vm329, %v101, 0
  %627 = vmatpush.xpose.msra.mxu0 %v625
  %628 = vmatpush.xpose.msra.mxu0 %v622
  %629 = vmatpush.xpose.msra.mxu0 %v619
  %630 = vmatpush.xpose.msra.mxu0 %v616
  %631 = vmatpush.xpose.msra.mxu0 %v613
  %632 = vmatpush.xpose.msra.mxu0 %v610
  %633 = vmatpush.xpose.msra.mxu0 %v607
  %634 = vmatpush.xpose.msra.mxu0 %v604
  %635 = vmatpush.xpose.msra.mxu0 %v601
  %636 = vmatpush.xpose.msra.mxu0 %v598
  %637 = vmatpush.xpose.msra.mxu0 %v595
  %638 = vmatpush.xpose.msra.mxu0 %v592
  %639 = vmatpush.xpose.msra.mxu0 %v589
  %640 = vmatpush.xpose.msra.mxu0 %v586
  %641 = vmatpush.xpose.msra.mxu0 %v583
  %642 = vmatpush.xpose.msra.mxu0 %v580
  %643 = vmatmul.f32.gmra.mxu0 %v577
  %v644 = vpop.f32.mrf.mxu0
  %v645 = vadd.f32 0.0, %v644
  %646 = vdwg.mxu0
  %v647 = vsel %vm329, %v363, 0
  %v650 = vsel %vm329, %v102, 0
  %v653 = vsel %vm329, %v103, 0
  %v656 = vsel %vm329, %v104, 0
  %v659 = vsel %vm329, %v105, 0
  %v662 = vsel %vm329, %v106, 0
  %v665 = vsel %vm329, %v107, 0
  %v668 = vsel %vm329, %v108, 0
  %v671 = vsel %vm329, %v109, 0
  %v674 = vsel %vm329, %v110, 0
  %v677 = vsel %vm329, %v111, 0
  %v680 = vsel %vm329, %v112, 0
  %v683 = vsel %vm329, %v113, 0
  %v686 = vsel %vm329, %v114, 0
  %v689 = vsel %vm329, %v115, 0
  %v692 = vsel %vm329, %v116, 0
  %v695 = vsel %vm329, %v117, 0
  %697 = vmatpush.xpose.msra.mxu0 %v695
  %698 = vmatpush.xpose.msra.mxu0 %v692
  %699 = vmatpush.xpose.msra.mxu0 %v689
  %700 = vmatpush.xpose.msra.mxu0 %v686
  %701 = vmatpush.xpose.msra.mxu0 %v683
  %702 = vmatpush.xpose.msra.mxu0 %v680
  %703 = vmatpush.xpose.msra.mxu0 %v677
  %704 = vmatpush.xpose.msra.mxu0 %v674
  %705 = vmatpush.xpose.msra.mxu0 %v671
  %706 = vmatpush.xpose.msra.mxu0 %v668
  %707 = vmatpush.xpose.msra.mxu0 %v665
  %708 = vmatpush.xpose.msra.mxu0 %v662
  %709 = vmatpush.xpose.msra.mxu0 %v659
  %710 = vmatpush.xpose.msra.mxu0 %v656
  %711 = vmatpush.xpose.msra.mxu0 %v653
  %712 = vmatpush.xpose.msra.mxu0 %v650
  %713 = vmatmul.f32.gmra.mxu0 %v647
  %v714 = vpop.f32.mrf.mxu0
  %v715 = vadd.f32 0.0, %v714
  %716 = vdwg.mxu0
  %v717 = vsel %vm329, %v364, 0
  %v720 = vsel %vm329, %v118, 0
  %v723 = vsel %vm329, %v119, 0
  %v726 = vsel %vm329, %v120, 0
  %v729 = vsel %vm329, %v121, 0
  %v732 = vsel %vm329, %v122, 0
  %v735 = vsel %vm329, %v123, 0
  %v738 = vsel %vm329, %v124, 0
  %v741 = vsel %vm329, %v125, 0
  %v744 = vsel %vm329, %v126, 0
  %v747 = vsel %vm329, %v127, 0
  %v750 = vsel %vm329, %v128, 0
  %v753 = vsel %vm329, %v129, 0
  %v756 = vsel %vm329, %v130, 0
  %v759 = vsel %vm329, %v131, 0
  %v762 = vsel %vm329, %v132, 0
  %v765 = vsel %vm329, %v133, 0
  %767 = vmatpush.xpose.msra.mxu0 %v765
  %768 = vmatpush.xpose.msra.mxu0 %v762
  %769 = vmatpush.xpose.msra.mxu0 %v759
  %770 = vmatpush.xpose.msra.mxu0 %v756
  %771 = vmatpush.xpose.msra.mxu0 %v753
  %772 = vmatpush.xpose.msra.mxu0 %v750
  %773 = vmatpush.xpose.msra.mxu0 %v747
  %774 = vmatpush.xpose.msra.mxu0 %v744
  %775 = vmatpush.xpose.msra.mxu0 %v741
  %776 = vmatpush.xpose.msra.mxu0 %v738
  %777 = vmatpush.xpose.msra.mxu0 %v735
  %778 = vmatpush.xpose.msra.mxu0 %v732
  %779 = vmatpush.xpose.msra.mxu0 %v729
  %780 = vmatpush.xpose.msra.mxu0 %v726
  %781 = vmatpush.xpose.msra.mxu0 %v723
  %782 = vmatpush.xpose.msra.mxu0 %v720
  %783 = vmatmul.f32.gmra.mxu0 %v717
  %v784 = vpop.f32.mrf.mxu0
  %v785 = vadd.f32 0.0, %v784
  %786 = vdwg.mxu0
  %v787 = vsel %vm329, %v365, 0
  %v790 = vsel %vm329, %v134, 0
  %v793 = vsel %vm329, %v135, 0
  %v796 = vsel %vm329, %v136, 0
  %v799 = vsel %vm329, %v137, 0
  %v802 = vsel %vm329, %v138, 0
  %v805 = vsel %vm329, %v139, 0
  %v808 = vsel %vm329, %v140, 0
  %v811 = vsel %vm329, %v141, 0
  %v814 = vsel %vm329, %v142, 0
  %v817 = vsel %vm329, %v143, 0
  %v820 = vsel %vm329, %v144, 0
  %v823 = vsel %vm329, %v145, 0
  %v826 = vsel %vm329, %v146, 0
  %v829 = vsel %vm329, %v147, 0
  %v832 = vsel %vm329, %v148, 0
  %v835 = vsel %vm329, %v149, 0
  %837 = vmatpush.xpose.msra.mxu0 %v835
  %838 = vmatpush.xpose.msra.mxu0 %v832
  %839 = vmatpush.xpose.msra.mxu0 %v829
  %840 = vmatpush.xpose.msra.mxu0 %v826
  %841 = vmatpush.xpose.msra.mxu0 %v823
  %842 = vmatpush.xpose.msra.mxu0 %v820
  %843 = vmatpush.xpose.msra.mxu0 %v817
  %844 = vmatpush.xpose.msra.mxu0 %v814
  %845 = vmatpush.xpose.msra.mxu0 %v811
  %846 = vmatpush.xpose.msra.mxu0 %v808
  %847 = vmatpush.xpose.msra.mxu0 %v805
  %848 = vmatpush.xpose.msra.mxu0 %v802
  %849 = vmatpush.xpose.msra.mxu0 %v799
  %850 = vmatpush.xpose.msra.mxu0 %v796
  %851 = vmatpush.xpose.msra.mxu0 %v793
  %852 = vmatpush.xpose.msra.mxu0 %v790
  %853 = vmatmul.f32.gmra.mxu0 %v787
  %v854 = vpop.f32.mrf.mxu0
  %v855 = vadd.f32 0.0, %v854
  %856 = vdwg.mxu0
  %v857 = vsel %vm329, %v366, 0
  %v860 = vsel %vm329, %v150, 0
  %v863 = vsel %vm329, %v151, 0
  %v866 = vsel %vm329, %v152, 0
  %v869 = vsel %vm329, %v153, 0
  %v872 = vsel %vm329, %v154, 0
  %v875 = vsel %vm329, %v155, 0
  %v878 = vsel %vm329, %v156, 0
  %v881 = vsel %vm329, %v157, 0
  %v884 = vsel %vm329, %v158, 0
  %v887 = vsel %vm329, %v159, 0
  %v890 = vsel %vm329, %v160, 0
  %v893 = vsel %vm329, %v161, 0
  %v896 = vsel %vm329, %v162, 0
  %v899 = vsel %vm329, %v163, 0
  %v902 = vsel %vm329, %v164, 0
  %v905 = vsel %vm329, %v165, 0
  %907 = vmatpush.xpose.msra.mxu0 %v905
  %908 = vmatpush.xpose.msra.mxu0 %v902
  %909 = vmatpush.xpose.msra.mxu0 %v899
  %910 = vmatpush.xpose.msra.mxu0 %v896
  %911 = vmatpush.xpose.msra.mxu0 %v893
  %912 = vmatpush.xpose.msra.mxu0 %v890
  %913 = vmatpush.xpose.msra.mxu0 %v887
  %914 = vmatpush.xpose.msra.mxu0 %v884
  %915 = vmatpush.xpose.msra.mxu0 %v881
  %916 = vmatpush.xpose.msra.mxu0 %v878
  %917 = vmatpush.xpose.msra.mxu0 %v875
  %918 = vmatpush.xpose.msra.mxu0 %v872
  %919 = vmatpush.xpose.msra.mxu0 %v869
  %920 = vmatpush.xpose.msra.mxu0 %v866
  %921 = vmatpush.xpose.msra.mxu0 %v863
  %922 = vmatpush.xpose.msra.mxu0 %v860
  %923 = vmatmul.f32.gmra.mxu0 %v857
  %v924 = vpop.f32.mrf.mxu0
  %v925 = vadd.f32 0.0, %v924
  %926 = vdwg.mxu0
  %v927 = vadd.f32 %v435, 0.0
  %v928 = vadd.f32 %v505, 0.0
  %v929 = vadd.f32 %v575, 0.0
  %v930 = vadd.f32 %v645, 0.0
  %v931 = vadd.f32 %v715, 0.0
  %v932 = vadd.f32 %v785, 0.0
  %v933 = vadd.f32 %v855, 0.0
  %v934 = vadd.f32 %v925, 0.0
  %v935 = vadd.f32 %v927, %v323
  %v936 = vadd.f32 %v928, %v323
  %v937 = vadd.f32 %v929, %v323
  %v938 = vadd.f32 %v930, %v323
  %v939 = vadd.f32 %v931, %v323
  %v940 = vadd.f32 %v932, %v323
  %v941 = vadd.f32 %v933, %v323
  %v942 = vadd.f32 %v934, %v323
  %v951 = vrot.slane %v936, 7
  %vm952 = vcmask 1041409
  %v953 = vsel %vm952, %v951, %v935
  %v954 = vrot.slane %v937, 6
  %vm955 = vcmask 1042434
  %v956 = vsel %vm955, %v954, %v953
  %v957 = vrot.slane %v938, 5
  %vm958 = vcmask 1043459
  %v959 = vsel %vm958, %v957, %v956
  %v960 = vrot.slane %v939, 4
  %vm961 = vcmask 1044484
  %v962 = vsel %vm961, %v960, %v959
  %v963 = vrot.slane %v940, 3
  %vm964 = vcmask 1045509
  %v965 = vsel %vm964, %v963, %v962
  %v966 = vrot.slane %v941, 2
  %vm967 = vcmask 1046534
  %v968 = vsel %vm967, %v966, %v965
  %v969 = vrot.slane %v942, 1
  %vm970 = vcmask 1047559
  %v971 = vsel %vm970, %v969, %v968
  %973 = vmax.xlane.f32.xlu0 %v971
  %v974 = vpop.xlane.xlu0 %973
  %v976 = vrot.slane %v974, 1
  %v977 = vrot.slane %v974, 2
  %v978 = vrot.slane %v974, 3
  %v979 = vrot.slane %v974, 4
  %v980 = vrot.slane %v974, 5
  %v981 = vrot.slane %v974, 6
  %v982 = vrot.slane %v974, 7
  %v991 = vsub.f32 %v935, %v974
  %v992 = vsub.f32 %v936, %v976
  %v993 = vsub.f32 %v937, %v977
  %v994 = vsub.f32 %v938, %v978
  %v995 = vsub.f32 %v939, %v979
  %v996 = vsub.f32 %v940, %v980
  %v997 = vsub.f32 %v941, %v981
  %v998 = vsub.f32 %v942, %v982
  %v999 = vmul.f32 %v991, 1.442695
  %v1000 = vpow.pop %v999
  %v1001 = vmul.f32 %v992, 1.442695
  %v1002 = vpow.pop %v1001
  %v1003 = vmul.f32 %v993, 1.442695
  %v1004 = vpow.pop %v1003
  %v1005 = vmul.f32 %v994, 1.442695
  %v1006 = vpow.pop %v1005
  %v1007 = vmul.f32 %v995, 1.442695
  %v1008 = vpow.pop %v1007
  %v1009 = vmul.f32 %v996, 1.442695
  %v1010 = vpow.pop %v1009
  %v1011 = vmul.f32 %v997, 1.442695
  %v1012 = vpow.pop %v1011
  %v1013 = vmul.f32 %v998, 1.442695
  %v1014 = vpow.pop %v1013
  %v1023 = vrot.slane %v1002, 7
  %v1024 = vsel %vm952, %v1023, %v1000
  %v1025 = vrot.slane %v1004, 6
  %v1026 = vsel %vm955, %v1025, %v1024
  %v1027 = vrot.slane %v1006, 5
  %v1028 = vsel %vm958, %v1027, %v1026
  %v1029 = vrot.slane %v1008, 4
  %v1030 = vsel %vm961, %v1029, %v1028
  %v1031 = vrot.slane %v1010, 3
  %v1032 = vsel %vm964, %v1031, %v1030
  %v1033 = vrot.slane %v1012, 2
  %v1034 = vsel %vm967, %v1033, %v1032
  %v1035 = vrot.slane %v1014, 1
  %v1036 = vsel %vm970, %v1035, %v1034
  %1038 = vadd.xlane.f32.xlu0 %v1036
  %v1039 = vpop.xlane.xlu0 %1038
  %v1041 = vrot.slane %v1039, 1
  %v1042 = vrot.slane %v1039, 2
  %v1043 = vrot.slane %v1039, 3
  %v1044 = vrot.slane %v1039, 4
  %v1045 = vrot.slane %v1039, 5
  %v1046 = vrot.slane %v1039, 6
  %v1047 = vrot.slane %v1039, 7
  %v1056 = vrcp.pop %v1039
  %v1057 = vmul.f32 %v1039, %v1056
  %v1058 = vsub.f32 1.0, %v1057
  %v1059 = vmul.f32 %v1056, %v1058
  %v1060 = vadd.f32 %v1056, %v1059
  %vm1061 = vweird.f32 %v1039
  %vm1062 = vweird.f32 %v1056
  %vm1063 = vmor %vm1061, %vm1062
  %v1064 = vsel %vm1063, %v1056, %v1060
  %v1065 = vand.u32 2147483647, %v1039
  %vm1066 = vcmp.eq.f32.partialorder %v1065, 8.507059e+37
  %v1067 = vand.u32 %v1039, 2147483648
  %v1068 = vor.u32 1.1754944e-38, %v1067
  %v1069 = vsel %vm1066, %v1068, %v1064
  %v1070 = vmul.f32 %v1000, %v1069
  %v1071 = vrcp.pop %v1041
  %v1072 = vmul.f32 %v1041, %v1071
  %v1073 = vsub.f32 1.0, %v1072
  %v1074 = vmul.f32 %v1071, %v1073
  %v1075 = vadd.f32 %v1071, %v1074
  %vm1076 = vweird.f32 %v1041
  %vm1077 = vweird.f32 %v1071
  %vm1078 = vmor %vm1076, %vm1077
  %v1079 = vsel %vm1078, %v1071, %v1075
  %v1080 = vand.u32 2147483647, %v1041
  %vm1081 = vcmp.eq.f32.partialorder %v1080, 8.507059e+37
  %v1082 = vand.u32 %v1041, 2147483648
  %v1083 = vor.u32 1.1754944e-38, %v1082
  %v1084 = vsel %vm1081, %v1083, %v1079
  %v1085 = vmul.f32 %v1002, %v1084
  %v1086 = vrcp.pop %v1042
  %v1087 = vmul.f32 %v1042, %v1086
  %v1088 = vsub.f32 1.0, %v1087
  %v1089 = vmul.f32 %v1086, %v1088
  %v1090 = vadd.f32 %v1086, %v1089
  %vm1091 = vweird.f32 %v1042
  %vm1092 = vweird.f32 %v1086
  %vm1093 = vmor %vm1091, %vm1092
  %v1094 = vsel %vm1093, %v1086, %v1090
  %v1095 = vand.u32 2147483647, %v1042
  %vm1096 = vcmp.eq.f32.partialorder %v1095, 8.507059e+37
  %v1097 = vand.u32 %v1042, 2147483648
  %v1098 = vor.u32 1.1754944e-38, %v1097
  %v1099 = vsel %vm1096, %v1098, %v1094
  %v1100 = vmul.f32 %v1004, %v1099
  %v1101 = vrcp.pop %v1043
  %v1102 = vmul.f32 %v1043, %v1101
  %v1103 = vsub.f32 1.0, %v1102
  %v1104 = vmul.f32 %v1101, %v1103
  %v1105 = vadd.f32 %v1101, %v1104
  %vm1106 = vweird.f32 %v1043
  %vm1107 = vweird.f32 %v1101
  %vm1108 = vmor %vm1106, %vm1107
  %v1109 = vsel %vm1108, %v1101, %v1105
  %v1110 = vand.u32 2147483647, %v1043
  %vm1111 = vcmp.eq.f32.partialorder %v1110, 8.507059e+37
  %v1112 = vand.u32 %v1043, 2147483648
  %v1113 = vor.u32 1.1754944e-38, %v1112
  %v1114 = vsel %vm1111, %v1113, %v1109
  %v1115 = vmul.f32 %v1006, %v1114
  %v1116 = vrcp.pop %v1044
  %v1117 = vmul.f32 %v1044, %v1116
  %v1118 = vsub.f32 1.0, %v1117
  %v1119 = vmul.f32 %v1116, %v1118
  %v1120 = vadd.f32 %v1116, %v1119
  %vm1121 = vweird.f32 %v1044
  %vm1122 = vweird.f32 %v1116
  %vm1123 = vmor %vm1121, %vm1122
  %v1124 = vsel %vm1123, %v1116, %v1120
  %v1125 = vand.u32 2147483647, %v1044
  %vm1126 = vcmp.eq.f32.partialorder %v1125, 8.507059e+37
  %v1127 = vand.u32 %v1044, 2147483648
  %v1128 = vor.u32 1.1754944e-38, %v1127
  %v1129 = vsel %vm1126, %v1128, %v1124
  %v1130 = vmul.f32 %v1008, %v1129
  %v1131 = vrcp.pop %v1045
  %v1132 = vmul.f32 %v1045, %v1131
  %v1133 = vsub.f32 1.0, %v1132
  %v1134 = vmul.f32 %v1131, %v1133
  %v1135 = vadd.f32 %v1131, %v1134
  %vm1136 = vweird.f32 %v1045
  %vm1137 = vweird.f32 %v1131
  %vm1138 = vmor %vm1136, %vm1137
  %v1139 = vsel %vm1138, %v1131, %v1135
  %v1140 = vand.u32 2147483647, %v1045
  %vm1141 = vcmp.eq.f32.partialorder %v1140, 8.507059e+37
  %v1142 = vand.u32 %v1045, 2147483648
  %v1143 = vor.u32 1.1754944e-38, %v1142
  %v1144 = vsel %vm1141, %v1143, %v1139
  %v1145 = vmul.f32 %v1010, %v1144
  %v1146 = vrcp.pop %v1046
  %v1147 = vmul.f32 %v1046, %v1146
  %v1148 = vsub.f32 1.0, %v1147
  %v1149 = vmul.f32 %v1146, %v1148
  %v1150 = vadd.f32 %v1146, %v1149
  %vm1151 = vweird.f32 %v1046
  %vm1152 = vweird.f32 %v1146
  %vm1153 = vmor %vm1151, %vm1152
  %v1154 = vsel %vm1153, %v1146, %v1150
  %v1155 = vand.u32 2147483647, %v1046
  %vm1156 = vcmp.eq.f32.partialorder %v1155, 8.507059e+37
  %v1157 = vand.u32 %v1046, 2147483648
  %v1158 = vor.u32 1.1754944e-38, %v1157
  %v1159 = vsel %vm1156, %v1158, %v1154
  %v1160 = vmul.f32 %v1012, %v1159
  %v1161 = vrcp.pop %v1047
  %v1162 = vmul.f32 %v1047, %v1161
  %v1163 = vsub.f32 1.0, %v1162
  %v1164 = vmul.f32 %v1161, %v1163
  %v1165 = vadd.f32 %v1161, %v1164
  %vm1166 = vweird.f32 %v1047
  %vm1167 = vweird.f32 %v1161
  %vm1168 = vmor %vm1166, %vm1167
  %v1169 = vsel %vm1168, %v1161, %v1165
  %v1170 = vand.u32 2147483647, %v1047
  %vm1171 = vcmp.eq.f32.partialorder %v1170, 8.507059e+37
  %v1172 = vand.u32 %v1047, 2147483648
  %v1173 = vor.u32 1.1754944e-38, %v1172
  %v1174 = vsel %vm1171, %v1173, %v1169
  %v1175 = vmul.f32 %v1014, %v1174
  %1176 = vmatpush.msra.mxu0 %v181
  %1177 = vmatpush.msra.mxu0 %v180
  %1178 = vmatpush.msra.mxu0 %v179
  %1179 = vmatpush.msra.mxu0 %v178
  %1180 = vmatpush.msra.mxu0 %v177
  %1181 = vmatpush.msra.mxu0 %v176
  %1182 = vmatpush.msra.mxu0 %v175
  %1183 = vmatpush.msra.mxu0 %v174
  %1184 = vmatpush.msra.mxu0 %v173
  %1185 = vmatpush.msra.mxu0 %v172
  %1186 = vmatpush.msra.mxu0 %v171
  %1187 = vmatpush.msra.mxu0 %v170
  %1188 = vmatpush.msra.mxu0 %v169
  %1189 = vmatpush.msra.mxu0 %v168
  %1190 = vmatpush.msra.mxu0 %v167
  %1191 = vmatpush.msra.mxu0 %v166
  %1192 = vmatmul.f32.gmra.mxu0 %v1070
  %v1193 = vpop.f32.mrf.mxu0
  %v1194 = vadd.f32 0.0, %v1193
  %1195 = vdwg.mxu0
  %1196 = vmatpush.msra.mxu0 %v197
  %1197 = vmatpush.msra.mxu0 %v196
  %1198 = vmatpush.msra.mxu0 %v195
  %1199 = vmatpush.msra.mxu0 %v194
  %1200 = vmatpush.msra.mxu0 %v193
  %1201 = vmatpush.msra.mxu0 %v192
  %1202 = vmatpush.msra.mxu0 %v191
  %1203 = vmatpush.msra.mxu0 %v190
  %1204 = vmatpush.msra.mxu0 %v189
  %1205 = vmatpush.msra.mxu0 %v188
  %1206 = vmatpush.msra.mxu0 %v187
  %1207 = vmatpush.msra.mxu0 %v186
  %1208 = vmatpush.msra.mxu0 %v185
  %1209 = vmatpush.msra.mxu0 %v184
  %1210 = vmatpush.msra.mxu0 %v183
  %1211 = vmatpush.msra.mxu0 %v182
  %1212 = vmatmul.f32.gmra.mxu0 %v1085
  %v1213 = vpop.f32.mrf.mxu0
  %v1214 = vadd.f32 0.0, %v1213
  %1215 = vdwg.mxu0
  %1216 = vmatpush.msra.mxu0 %v213
  %1217 = vmatpush.msra.mxu0 %v212
  %1218 = vmatpush.msra.mxu0 %v211
  %1219 = vmatpush.msra.mxu0 %v210
  %1220 = vmatpush.msra.mxu0 %v209
  %1221 = vmatpush.msra.mxu0 %v208
  %1222 = vmatpush.msra.mxu0 %v207
  %1223 = vmatpush.msra.mxu0 %v206
  %1224 = vmatpush.msra.mxu0 %v205
  %1225 = vmatpush.msra.mxu0 %v204
  %1226 = vmatpush.msra.mxu0 %v203
  %1227 = vmatpush.msra.mxu0 %v202
  %1228 = vmatpush.msra.mxu0 %v201
  %1229 = vmatpush.msra.mxu0 %v200
  %1230 = vmatpush.msra.mxu0 %v199
  %1231 = vmatpush.msra.mxu0 %v198
  %1232 = vmatmul.f32.gmra.mxu0 %v1100
  %v1233 = vpop.f32.mrf.mxu0
  %v1234 = vadd.f32 0.0, %v1233
  %1235 = vdwg.mxu0
  %1236 = vmatpush.msra.mxu0 %v229
  %1237 = vmatpush.msra.mxu0 %v228
  %1238 = vmatpush.msra.mxu0 %v227
  %1239 = vmatpush.msra.mxu0 %v226
  %1240 = vmatpush.msra.mxu0 %v225
  %1241 = vmatpush.msra.mxu0 %v224
  %1242 = vmatpush.msra.mxu0 %v223
  %1243 = vmatpush.msra.mxu0 %v222
  %1244 = vmatpush.msra.mxu0 %v221
  %1245 = vmatpush.msra.mxu0 %v220
  %1246 = vmatpush.msra.mxu0 %v219
  %1247 = vmatpush.msra.mxu0 %v218
  %1248 = vmatpush.msra.mxu0 %v217
  %1249 = vmatpush.msra.mxu0 %v216
  %1250 = vmatpush.msra.mxu0 %v215
  %1251 = vmatpush.msra.mxu0 %v214
  %1252 = vmatmul.f32.gmra.mxu0 %v1115
  %v1253 = vpop.f32.mrf.mxu0
  %v1254 = vadd.f32 0.0, %v1253
  %1255 = vdwg.mxu0
  %1256 = vmatpush.msra.mxu0 %v245
  %1257 = vmatpush.msra.mxu0 %v244
  %1258 = vmatpush.msra.mxu0 %v243
  %1259 = vmatpush.msra.mxu0 %v242
  %1260 = vmatpush.msra.mxu0 %v241
  %1261 = vmatpush.msra.mxu0 %v240
  %1262 = vmatpush.msra.mxu0 %v239
  %1263 = vmatpush.msra.mxu0 %v238
  %1264 = vmatpush.msra.mxu0 %v237
  %1265 = vmatpush.msra.mxu0 %v236
  %1266 = vmatpush.msra.mxu0 %v235
  %1267 = vmatpush.msra.mxu0 %v234
  %1268 = vmatpush.msra.mxu0 %v233
  %1269 = vmatpush.msra.mxu0 %v232
  %1270 = vmatpush.msra.mxu0 %v231
  %1271 = vmatpush.msra.mxu0 %v230
  %1272 = vmatmul.f32.gmra.mxu0 %v1130
  %v1273 = vpop.f32.mrf.mxu0
  %v1274 = vadd.f32 0.0, %v1273
  %1275 = vdwg.mxu0
  %1276 = vmatpush.msra.mxu0 %v261
  %1277 = vmatpush.msra.mxu0 %v260
  %1278 = vmatpush.msra.mxu0 %v259
  %1279 = vmatpush.msra.mxu0 %v258
  %1280 = vmatpush.msra.mxu0 %v257
  %1281 = vmatpush.msra.mxu0 %v256
  %1282 = vmatpush.msra.mxu0 %v255
  %1283 = vmatpush.msra.mxu0 %v254
  %1284 = vmatpush.msra.mxu0 %v253
  %1285 = vmatpush.msra.mxu0 %v252
  %1286 = vmatpush.msra.mxu0 %v251
  %1287 = vmatpush.msra.mxu0 %v250
  %1288 = vmatpush.msra.mxu0 %v249
  %1289 = vmatpush.msra.mxu0 %v248
  %1290 = vmatpush.msra.mxu0 %v247
  %1291 = vmatpush.msra.mxu0 %v246
  %1292 = vmatmul.f32.gmra.mxu0 %v1145
  %v1293 = vpop.f32.mrf.mxu0
  %v1294 = vadd.f32 0.0, %v1293
  %1295 = vdwg.mxu0
  %1296 = vmatpush.msra.mxu0 %v277
  %1297 = vmatpush.msra.mxu0 %v276
  %1298 = vmatpush.msra.mxu0 %v275
  %1299 = vmatpush.msra.mxu0 %v274
  %1300 = vmatpush.msra.mxu0 %v273
  %1301 = vmatpush.msra.mxu0 %v272
  %1302 = vmatpush.msra.mxu0 %v271
  %1303 = vmatpush.msra.mxu0 %v270
  %1304 = vmatpush.msra.mxu0 %v269
  %1305 = vmatpush.msra.mxu0 %v268
  %1306 = vmatpush.msra.mxu0 %v267
  %1307 = vmatpush.msra.mxu0 %v266
  %1308 = vmatpush.msra.mxu0 %v265
  %1309 = vmatpush.msra.mxu0 %v264
  %1310 = vmatpush.msra.mxu0 %v263
  %1311 = vmatpush.msra.mxu0 %v262
  %1312 = vmatmul.f32.gmra.mxu0 %v1160
  %v1313 = vpop.f32.mrf.mxu0
  %v1314 = vadd.f32 0.0, %v1313
  %1315 = vdwg.mxu0
  %1316 = vmatpush.msra.mxu0 %v293
  %1317 = vmatpush.msra.mxu0 %v292
  %1318 = vmatpush.msra.mxu0 %v291
  %1319 = vmatpush.msra.mxu0 %v290
  %1320 = vmatpush.msra.mxu0 %v289
  %1321 = vmatpush.msra.mxu0 %v288
  %1322 = vmatpush.msra.mxu0 %v287
  %1323 = vmatpush.msra.mxu0 %v286
  %1324 = vmatpush.msra.mxu0 %v285
  %1325 = vmatpush.msra.mxu0 %v284
  %1326 = vmatpush.msra.mxu0 %v283
  %1327 = vmatpush.msra.mxu0 %v282
  %1328 = vmatpush.msra.mxu0 %v281
  %1329 = vmatpush.msra.mxu0 %v280
  %1330 = vmatpush.msra.mxu0 %v279
  %1331 = vmatpush.msra.mxu0 %v278
  %1332 = vmatmul.f32.gmra.mxu0 %v1175
  %v1333 = vpop.f32.mrf.mxu0
  %v1334 = vadd.f32 0.0, %v1333
  %1335 = vdwg.mxu0
  %v1336 = vadd.f32 %v1194, 0.0
  %v1337 = vadd.f32 %v1214, 0.0
  %v1338 = vadd.f32 %v1234, 0.0
  %v1339 = vadd.f32 %v1254, 0.0
  %v1340 = vadd.f32 %v1274, 0.0
  %v1341 = vadd.f32 %v1294, 0.0
  %v1342 = vadd.f32 %v1314, 0.0
  %v1343 = vadd.f32 %v1334, 0.0
  %v1352 = vrot.slane %v1337, 7
  %v1353 = vsel %vm952, %v1352, %v1336
  %v1354 = vrot.slane %v1338, 6
  %v1355 = vsel %vm955, %v1354, %v1353
  %v1356 = vrot.slane %v1339, 5
  %v1357 = vsel %vm958, %v1356, %v1355
  %v1358 = vrot.slane %v1340, 4
  %v1359 = vsel %vm961, %v1358, %v1357
  %v1360 = vrot.slane %v1341, 3
  %v1361 = vsel %vm964, %v1360, %v1359
  %v1362 = vrot.slane %v1342, 2
  %v1363 = vsel %vm967, %v1362, %v1361
  %v1364 = vrot.slane %v1343, 1
  %v1365 = vsel %vm970, %v1364, %v1363
  %1367 = vmatpush.msra.mxu0 %v309
  %1368 = vmatpush.msra.mxu0 %v308
  %1369 = vmatpush.msra.mxu0 %v307
  %1370 = vmatpush.msra.mxu0 %v306
  %1371 = vmatpush.msra.mxu0 %v305
  %1372 = vmatpush.msra.mxu0 %v304
  %1373 = vmatpush.msra.mxu0 %v303
  %1374 = vmatpush.msra.mxu0 %v302
  %1375 = vmatpush.msra.mxu0 %v301
  %1376 = vmatpush.msra.mxu0 %v300
  %1377 = vmatpush.msra.mxu0 %v299
  %1378 = vmatpush.msra.mxu0 %v298
  %1379 = vmatpush.msra.mxu0 %v297
  %1380 = vmatpush.msra.mxu0 %v296
  %1381 = vmatpush.msra.mxu0 %v295
  %1382 = vmatpush.msra.mxu0 %v294
  %1383 = vmatmul.f32.gmra.mxu0 %v358
  %v1384 = vpop.f32.mrf.mxu0
  %v1385 = vadd.f32 %v1365, %v1384
  %1386 = vdwg.mxu0
  %1387 = vmatpush.msra.mxu0 0.0
  %1388 = vmatpush.msra.mxu0 0.0
  %1389 = vmatpush.msra.mxu0 0.0
  %1390 = vmatpush.msra.mxu0 0.0
  %1391 = vmatpush.msra.mxu0 0.0
  %1392 = vmatpush.msra.mxu0 0.0
  %1393 = vmatpush.msra.mxu0 0.0
  %1394 = vmatpush.msra.mxu0 0.0
  %1395 = vmatpush.msra.mxu0 0.0
  %1396 = vmatpush.msra.mxu0 0.0
  %1397 = vmatpush.msra.mxu0 0.0
  %1398 = vmatpush.msra.mxu0 0.0
  %1399 = vmatpush.msra.mxu0 %v313
  %1400 = vmatpush.msra.mxu0 %v312
  %1401 = vmatpush.msra.mxu0 %v311
  %1402 = vmatpush.msra.mxu0 %v310
  %1403 = vmatmul.f32.gmra.mxu0 %v367
  %v1404 = vpop.f32.mrf.mxu0
  %v1405 = vadd.f32 0.0, %v1404
  %1406 = vdwg.mxu0
  %v1407 = vadd.f32 %v1385, %v1405
  %v1409 = vperm.slane %v314, 0
  %v1411 = vadd.f32 %v1407, %v1409
  %v1412 = vtanh.pop %v1411
  %v1414 = vperm.slane %v319, 0
  %v1417 = vsel %vm329, %v1412, 0
  %1419 = vmatpush.msra.mxu0 0.0
  %1420 = vmatpush.msra.mxu0 0.0
  %1421 = vmatpush.msra.mxu0 0.0
  %1422 = vmatpush.msra.mxu0 0.0
  %1423 = vmatpush.msra.mxu0 0.0
  %1424 = vmatpush.msra.mxu0 0.0
  %1425 = vmatpush.msra.mxu0 0.0
  %1426 = vmatpush.msra.mxu0 0.0
  %1427 = vmatpush.msra.mxu0 0.0
  %1428 = vmatpush.msra.mxu0 0.0
  %1429 = vmatpush.msra.mxu0 0.0
  %1430 = vmatpush.msra.mxu0 0.0
  %1431 = vmatpush.msra.mxu0 %v318
  %1432 = vmatpush.msra.mxu0 %v317
  %1433 = vmatpush.msra.mxu0 %v316
  %1434 = vmatpush.msra.mxu0 %v315
  %1435 = vmatmul.f32.gmra.mxu0 %v1417
  %v1436 = vpop.f32.mrf.mxu0
  %v1437 = vadd.f32 %v1414, %v1436
  %1438 = vdwg.mxu0
  %1439 = vmax.xlane.f32.xlu0 %v1437
  %v1440 = vpop.xlane.xlu0 %1439
  %vm1441 = vcmp.eq.f32.partialorder %v1437, %v1440
  %v1442 = vsel %vm1441, %v321, 128
  %v1443 = vand.u32 %v1442, 65535
  %v1444 = vshra.s32 %v1442, 16
  %v1445 = vcvt.s32.f32 %v1443
  %v1446 = vcvt.s32.f32 %v1444
  %1447 = vmin.xlane.f32.xlu0 %v1446
  %v1448 = vpop.xlane.xlu0 %1447
  %vm1449 = vcmp.eq.f32.partialorder %v1446, %v1448
  %v1450 = vsel %vm1449, %v1445, inf
  %1451 = vmin.xlane.f32.xlu0 %v1450
  %v1452 = vpop.xlane.xlu0 %1451
  %v1453 = vcvt.f32.s32 %v1452
  %v1454 = vcvt.f32.s32 %v1448
  %v1455 = vshll.u32 %v1454, 16
  %v1456 = vadd.s32 %v1455, %v1453
  %v1457 = vsel %vm355, 1, 0
  %1458 = vset.pattern.permute.xlu0 0
  %1459 = vperm.xlu0 %1458, %v1457
  %v1460 = vpop.permute.xlu0 %1459
  %vm1461 = vcmp.eq.s32.totalorder %v1460, 1
  %v1462 = vsel %vm1461, %v1437, 0.0
  %1463 = vst [vmem:[%s10] sm:$0xff] %v1462
  %v1472 = vrot.slane %v1085, 7
  %v1473 = vsel %vm952, %v1472, %v1070
  %v1474 = vrot.slane %v1100, 6
  %v1475 = vsel %vm955, %v1474, %v1473
  %v1476 = vrot.slane %v1115, 5
  %v1477 = vsel %vm958, %v1476, %v1475
  %v1478 = vrot.slane %v1130, 4
  %v1479 = vsel %vm961, %v1478, %v1477
  %v1480 = vrot.slane %v1145, 3
  %v1481 = vsel %vm964, %v1480, %v1479
  %v1482 = vrot.slane %v1160, 2
  %v1483 = vsel %vm967, %v1482, %v1481
  %v1484 = vrot.slane %v1175, 1
  %v1485 = vsel %vm970, %v1484, %v1483
  %v1487 = vsel %vm1461, %v1485, 0.0
  %1488 = vst [vmem:[%s11] sm:$0xff] %v1487
  %vm1489 = vcmp.eq.s32.totalorder %v1456, 2
  %vm1490 = vcmp.lt.s32.totalorder %v354, 1
  %v1491 = vsel %vm1490, %v354, 1
  %v1492 = vsel %vm1489, %v1491, %v354
  %vm1493 = vcmp.gt.s32.totalorder %v1492, 1
  %vm1494 = vcmp.eq.s32.totalorder %v321, %v1456
  %v1495 = vsel %vm1494, 1, 0
  %v1496 = vcvt.s32.f32 %v1495
  %v1497 = vrot.slane %v1412, 1
  %v1498 = vrot.slane %v1412, 2
  %v1499 = vrot.slane %v1412, 3
  %v1500 = vrot.slane %v1412, 4
  %v1501 = vrot.slane %v1412, 5
  %v1502 = vrot.slane %v1412, 6
  %v1503 = vrot.slane %v1412, 7
  %1504 = vmatpush.xpose.msra.mxu0 %v415
  %1505 = vmatpush.xpose.msra.mxu0 %v412
  %1506 = vmatpush.xpose.msra.mxu0 %v409
  %1507 = vmatpush.xpose.msra.mxu0 %v406
  %1508 = vmatpush.xpose.msra.mxu0 %v403
  %1509 = vmatpush.xpose.msra.mxu0 %v400
  %1510 = vmatpush.xpose.msra.mxu0 %v397
  %1511 = vmatpush.xpose.msra.mxu0 %v394
  %1512 = vmatpush.xpose.msra.mxu0 %v391
  %1513 = vmatpush.xpose.msra.mxu0 %v388
  %1514 = vmatpush.xpose.msra.mxu0 %v385
  %1515 = vmatpush.xpose.msra.mxu0 %v382
  %1516 = vmatpush.xpose.msra.mxu0 %v379
  %1517 = vmatpush.xpose.msra.mxu0 %v376
  %1518 = vmatpush.xpose.msra.mxu0 %v373
  %1519 = vmatpush.xpose.msra.mxu0 %v370
  %1520 = vmatmul.f32.gmra.mxu0 %v1417
  %v1521 = vpop.f32.mrf.mxu0
  %v1522 = vadd.f32 0.0, %v1521
  %1523 = vdwg.mxu0
  %v1524 = vsel %vm329, %v1497, 0
  %1526 = vmatpush.xpose.msra.mxu0 %v485
  %1527 = vmatpush.xpose.msra.mxu0 %v482
  %1528 = vmatpush.xpose.msra.mxu0 %v479
  %1529 = vmatpush.xpose.msra.mxu0 %v476
  %1530 = vmatpush.xpose.msra.mxu0 %v473
  %1531 = vmatpush.xpose.msra.mxu0 %v470
  %1532 = vmatpush.xpose.msra.mxu0 %v467
  %1533 = vmatpush.xpose.msra.mxu0 %v464
  %1534 = vmatpush.xpose.msra.mxu0 %v461
  %1535 = vmatpush.xpose.msra.mxu0 %v458
  %1536 = vmatpush.xpose.msra.mxu0 %v455
  %1537 = vmatpush.xpose.msra.mxu0 %v452
  %1538 = vmatpush.xpose.msra.mxu0 %v449
  %1539 = vmatpush.xpose.msra.mxu0 %v446
  %1540 = vmatpush.xpose.msra.mxu0 %v443
  %1541 = vmatpush.xpose.msra.mxu0 %v440
  %1542 = vmatmul.f32.gmra.mxu0 %v1524
  %v1543 = vpop.f32.mrf.mxu0
  %v1544 = vadd.f32 0.0, %v1543
  %1545 = vdwg.mxu0
  %v1546 = vsel %vm329, %v1498, 0
  %1548 = vmatpush.xpose.msra.mxu0 %v555
  %1549 = vmatpush.xpose.msra.mxu0 %v552
  %1550 = vmatpush.xpose.msra.mxu0 %v549
  %1551 = vmatpush.xpose.msra.mxu0 %v546
  %1552 = vmatpush.xpose.msra.mxu0 %v543
  %1553 = vmatpush.xpose.msra.mxu0 %v540
  %1554 = vmatpush.xpose.msra.mxu0 %v537
  %1555 = vmatpush.xpose.msra.mxu0 %v534
  %1556 = vmatpush.xpose.msra.mxu0 %v531
  %1557 = vmatpush.xpose.msra.mxu0 %v528
  %1558 = vmatpush.xpose.msra.mxu0 %v525
  %1559 = vmatpush.xpose.msra.mxu0 %v522
  %1560 = vmatpush.xpose.msra.mxu0 %v519
  %1561 = vmatpush.xpose.msra.mxu0 %v516
  %1562 = vmatpush.xpose.msra.mxu0 %v513
  %1563 = vmatpush.xpose.msra.mxu0 %v510
  %1564 = vmatmul.f32.gmra.mxu0 %v1546
  %v1565 = vpop.f32.mrf.mxu0
  %v1566 = vadd.f32 0.0, %v1565
  %1567 = vdwg.mxu0
  %v1568 = vsel %vm329, %v1499, 0
  %1570 = vmatpush.xpose.msra.mxu0 %v625
  %1571 = vmatpush.xpose.msra.mxu0 %v622
  %1572 = vmatpush.xpose.msra.mxu0 %v619
  %1573 = vmatpush.xpose.msra.mxu0 %v616
  %1574 = vmatpush.xpose.msra.mxu0 %v613
  %1575 = vmatpush.xpose.msra.mxu0 %v610
  %1576 = vmatpush.xpose.msra.mxu0 %v607
  %1577 = vmatpush.xpose.msra.mxu0 %v604
  %1578 = vmatpush.xpose.msra.mxu0 %v601
  %1579 = vmatpush.xpose.msra.mxu0 %v598
  %1580 = vmatpush.xpose.msra.mxu0 %v595
  %1581 = vmatpush.xpose.msra.mxu0 %v592
  %1582 = vmatpush.xpose.msra.mxu0 %v589
  %1583 = vmatpush.xpose.msra.mxu0 %v586
  %1584 = vmatpush.xpose.msra.mxu0 %v583
  %1585 = vmatpush.xpose.msra.mxu0 %v580
  %1586 = vmatmul.f32.gmra.mxu0 %v1568
  %v1587 = vpop.f32.mrf.mxu0
  %v1588 = vadd.f32 0.0, %v1587
  %1589 = vdwg.mxu0
  %v1590 = vsel %vm329, %v1500, 0
  %1592 = vmatpush.xpose.msra.mxu0 %v695
  %1593 = vmatpush.xpose.msra.mxu0 %v692
  %1594 = vmatpush.xpose.msra.mxu0 %v689
  %1595 = vmatpush.xpose.msra.mxu0 %v686
  %1596 = vmatpush.xpose.msra.mxu0 %v683
  %1597 = vmatpush.xpose.msra.mxu0 %v680
  %1598 = vmatpush.xpose.msra.mxu0 %v677
  %1599 = vmatpush.xpose.msra.mxu0 %v674
  %1600 = vmatpush.xpose.msra.mxu0 %v671
  %1601 = vmatpush.xpose.msra.mxu0 %v668
  %1602 = vmatpush.xpose.msra.mxu0 %v665
  %1603 = vmatpush.xpose.msra.mxu0 %v662
  %1604 = vmatpush.xpose.msra.mxu0 %v659
  %1605 = vmatpush.xpose.msra.mxu0 %v656
  %1606 = vmatpush.xpose.msra.mxu0 %v653
  %1607 = vmatpush.xpose.msra.mxu0 %v650
  %1608 = vmatmul.f32.gmra.mxu0 %v1590
  %v1609 = vpop.f32.mrf.mxu0
  %v1610 = vadd.f32 0.0, %v1609
  %1611 = vdwg.mxu0
  %v1612 = vsel %vm329, %v1501, 0
  %1614 = vmatpush.xpose.msra.mxu0 %v765
  %1615 = vmatpush.xpose.msra.mxu0 %v762
  %1616 = vmatpush.xpose.msra.mxu0 %v759
  %1617 = vmatpush.xpose.msra.mxu0 %v756
  %1618 = vmatpush.xpose.msra.mxu0 %v753
  %1619 = vmatpush.xpose.msra.mxu0 %v750
  %1620 = vmatpush.xpose.msra.mxu0 %v747
  %1621 = vmatpush.xpose.msra.mxu0 %v744
  %1622 = vmatpush.xpose.msra.mxu0 %v741
  %1623 = vmatpush.xpose.msra.mxu0 %v738
  %1624 = vmatpush.xpose.msra.mxu0 %v735
  %1625 = vmatpush.xpose.msra.mxu0 %v732
  %1626 = vmatpush.xpose.msra.mxu0 %v729
  %1627 = vmatpush.xpose.msra.mxu0 %v726
  %1628 = vmatpush.xpose.msra.mxu0 %v723
  %1629 = vmatpush.xpose.msra.mxu0 %v720
  %1630 = vmatmul.f32.gmra.mxu0 %v1612
  %v1631 = vpop.f32.mrf.mxu0
  %v1632 = vadd.f32 0.0, %v1631
  %1633 = vdwg.mxu0
  %v1634 = vsel %vm329, %v1502, 0
  %1636 = vmatpush.xpose.msra.mxu0 %v835
  %1637 = vmatpush.xpose.msra.mxu0 %v832
  %1638 = vmatpush.xpose.msra.mxu0 %v829
  %1639 = vmatpush.xpose.msra.mxu0 %v826
  %1640 = vmatpush.xpose.msra.mxu0 %v823
  %1641 = vmatpush.xpose.msra.mxu0 %v820
  %1642 = vmatpush.xpose.msra.mxu0 %v817
  %1643 = vmatpush.xpose.msra.mxu0 %v814
  %1644 = vmatpush.xpose.msra.mxu0 %v811
  %1645 = vmatpush.xpose.msra.mxu0 %v808
  %1646 = vmatpush.xpose.msra.mxu0 %v805
  %1647 = vmatpush.xpose.msra.mxu0 %v802
  %1648 = vmatpush.xpose.msra.mxu0 %v799
  %1649 = vmatpush.xpose.msra.mxu0 %v796
  %1650 = vmatpush.xpose.msra.mxu0 %v793
  %1651 = vmatpush.xpose.msra.mxu0 %v790
  %1652 = vmatmul.f32.gmra.mxu0 %v1634
  %v1653 = vpop.f32.mrf.mxu0
  %v1654 = vadd.f32 0.0, %v1653
  %1655 = vdwg.mxu0
  %v1656 = vsel %vm329, %v1503, 0
  %1658 = vmatpush.xpose.msra.mxu0 %v905
  %1659 = vmatpush.xpose.msra.mxu0 %v902
  %1660 = vmatpush.xpose.msra.mxu0 %v899
  %1661 = vmatpush.xpose.msra.mxu0 %v896
  %1662 = vmatpush.xpose.msra.mxu0 %v893
  %1663 = vmatpush.xpose.msra.mxu0 %v890
  %1664 = vmatpush.xpose.msra.mxu0 %v887
  %1665 = vmatpush.xpose.msra.mxu0 %v884
  %1666 = vmatpush.xpose.msra.mxu0 %v881
  %1667 = vmatpush.xpose.msra.mxu0 %v878
  %1668 = vmatpush.xpose.msra.mxu0 %v875
  %1669 = vmatpush.xpose.msra.mxu0 %v872
  %1670 = vmatpush.xpose.msra.mxu0 %v869
  %1671 = vmatpush.xpose.msra.mxu0 %v866
  %1672 = vmatpush.xpose.msra.mxu0 %v863
  %1673 = vmatpush.xpose.msra.mxu0 %v860
  %1674 = vmatmul.f32.gmra.mxu0 %v1656
  %v1675 = vpop.f32.mrf.mxu0
  %v1676 = vadd.f32 0.0, %v1675
  %1677 = vdwg.mxu0
  %v1678 = vadd.f32 %v1522, 0.0
  %v1679 = vadd.f32 %v1544, 0.0
  %v1680 = vadd.f32 %v1566, 0.0
  %v1681 = vadd.f32 %v1588, 0.0
  %v1682 = vadd.f32 %v1610, 0.0
  %v1683 = vadd.f32 %v1632, 0.0
  %v1684 = vadd.f32 %v1654, 0.0
  %v1685 = vadd.f32 %v1676, 0.0
  %v1686 = vadd.f32 %v1678, %v323
  %v1687 = vadd.f32 %v1679, %v323
  %v1688 = vadd.f32 %v1680, %v323
  %v1689 = vadd.f32 %v1681, %v323
  %v1690 = vadd.f32 %v1682, %v323
  %v1691 = vadd.f32 %v1683, %v323
  %v1692 = vadd.f32 %v1684, %v323
  %v1693 = vadd.f32 %v1685, %v323
  %v1702 = vrot.slane %v1687, 7
  %v1703 = vsel %vm952, %v1702, %v1686
  %v1704 = vrot.slane %v1688, 6
  %v1705 = vsel %vm955, %v1704, %v1703
  %v1706 = vrot.slane %v1689, 5
  %v1707 = vsel %vm958, %v1706, %v1705
  %v1708 = vrot.slane %v1690, 4
  %v1709 = vsel %vm961, %v1708, %v1707
  %v1710 = vrot.slane %v1691, 3
  %v1711 = vsel %vm964, %v1710, %v1709
  %v1712 = vrot.slane %v1692, 2
  %v1713 = vsel %vm967, %v1712, %v1711
  %v1714 = vrot.slane %v1693, 1
  %v1715 = vsel %vm970, %v1714, %v1713
  %1717 = vmax.xlane.f32.xlu0 %v1715
  %v1718 = vpop.xlane.xlu0 %1717
  %v1720 = vrot.slane %v1718, 1
  %v1721 = vrot.slane %v1718, 2
  %v1722 = vrot.slane %v1718, 3
  %v1723 = vrot.slane %v1718, 4
  %v1724 = vrot.slane %v1718, 5
  %v1725 = vrot.slane %v1718, 6
  %v1726 = vrot.slane %v1718, 7
  %v1735 = vsub.f32 %v1686, %v1718
  %v1736 = vsub.f32 %v1687, %v1720
  %v1737 = vsub.f32 %v1688, %v1721
  %v1738 = vsub.f32 %v1689, %v1722
  %v1739 = vsub.f32 %v1690, %v1723
  %v1740 = vsub.f32 %v1691, %v1724
  %v1741 = vsub.f32 %v1692, %v1725
  %v1742 = vsub.f32 %v1693, %v1726
  %v1743 = vmul.f32 %v1735, 1.442695
  %v1744 = vpow.pop %v1743
  %v1745 = vmul.f32 %v1736, 1.442695
  %v1746 = vpow.pop %v1745
  %v1747 = vmul.f32 %v1737, 1.442695
  %v1748 = vpow.pop %v1747
  %v1749 = vmul.f32 %v1738, 1.442695
  %v1750 = vpow.pop %v1749
  %v1751 = vmul.f32 %v1739, 1.442695
  %v1752 = vpow.pop %v1751
  %v1753 = vmul.f32 %v1740, 1.442695
  %v1754 = vpow.pop %v1753
  %v1755 = vmul.f32 %v1741, 1.442695
  %v1756 = vpow.pop %v1755
  %v1757 = vmul.f32 %v1742, 1.442695
  %v1758 = vpow.pop %v1757
  %v1767 = vrot.slane %v1746, 7
  %v1768 = vsel %vm952, %v1767, %v1744
  %v1769 = vrot.slane %v1748, 6
  %v1770 = vsel %vm955, %v1769, %v1768
  %v1771 = vrot.slane %v1750, 5
  %v1772 = vsel %vm958, %v1771, %v1770
  %v1773 = vrot.slane %v1752, 4
  %v1774 = vsel %vm961, %v1773, %v1772
  %v1775 = vrot.slane %v1754, 3
  %v1776 = vsel %vm964, %v1775, %v1774
  %v1777 = vrot.slane %v1756, 2
  %v1778 = vsel %vm967, %v1777, %v1776
  %v1779 = vrot.slane %v1758, 1
  %v1780 = vsel %vm970, %v1779, %v1778
  %1782 = vadd.xlane.f32.xlu0 %v1780
  %v1783 = vpop.xlane.xlu0 %1782
  %v1785 = vrot.slane %v1783, 1
  %v1786 = vrot.slane %v1783, 2
  %v1787 = vrot.slane %v1783, 3
  %v1788 = vrot.slane %v1783, 4
  %v1789 = vrot.slane %v1783, 5
  %v1790 = vrot.slane %v1783, 6
  %v1791 = vrot.slane %v1783, 7
  %v1800 = vrcp.pop %v1783
  %v1801 = vmul.f32 %v1783, %v1800
  %v1802 = vsub.f32 1.0, %v1801
  %v1803 = vmul.f32 %v1800, %v1802
  %v1804 = vadd.f32 %v1800, %v1803
  %vm1805 = vweird.f32 %v1783
  %vm1806 = vweird.f32 %v1800
  %vm1807 = vmor %vm1805, %vm1806
  %v1808 = vsel %vm1807, %v1800, %v1804
  %v1809 = vand.u32 2147483647, %v1783
  %vm1810 = vcmp.eq.f32.partialorder %v1809, 8.507059e+37
  %v1811 = vand.u32 %v1783, 2147483648
  %v1812 = vor.u32 1.1754944e-38, %v1811
  %v1813 = vsel %vm1810, %v1812, %v1808
  %v1814 = vmul.f32 %v1744, %v1813
  %v1815 = vrcp.pop %v1785
  %v1816 = vmul.f32 %v1785, %v1815
  %v1817 = vsub.f32 1.0, %v1816
  %v1818 = vmul.f32 %v1815, %v1817
  %v1819 = vadd.f32 %v1815, %v1818
  %vm1820 = vweird.f32 %v1785
  %vm1821 = vweird.f32 %v1815
  %vm1822 = vmor %vm1820, %vm1821
  %v1823 = vsel %vm1822, %v1815, %v1819
  %v1824 = vand.u32 2147483647, %v1785
  %vm1825 = vcmp.eq.f32.partialorder %v1824, 8.507059e+37
  %v1826 = vand.u32 %v1785, 2147483648
  %v1827 = vor.u32 1.1754944e-38, %v1826
  %v1828 = vsel %vm1825, %v1827, %v1823
  %v1829 = vmul.f32 %v1746, %v1828
  %v1830 = vrcp.pop %v1786
  %v1831 = vmul.f32 %v1786, %v1830
  %v1832 = vsub.f32 1.0, %v1831
  %v1833 = vmul.f32 %v1830, %v1832
  %v1834 = vadd.f32 %v1830, %v1833
  %vm1835 = vweird.f32 %v1786
  %vm1836 = vweird.f32 %v1830
  %vm1837 = vmor %vm1835, %vm1836
  %v1838 = vsel %vm1837, %v1830, %v1834
  %v1839 = vand.u32 2147483647, %v1786
  %vm1840 = vcmp.eq.f32.partialorder %v1839, 8.507059e+37
  %v1841 = vand.u32 %v1786, 2147483648
  %v1842 = vor.u32 1.1754944e-38, %v1841
  %v1843 = vsel %vm1840, %v1842, %v1838
  %v1844 = vmul.f32 %v1748, %v1843
  %v1845 = vrcp.pop %v1787
  %v1846 = vmul.f32 %v1787, %v1845
  %v1847 = vsub.f32 1.0, %v1846
  %v1848 = vmul.f32 %v1845, %v1847
  %v1849 = vadd.f32 %v1845, %v1848
  %vm1850 = vweird.f32 %v1787
  %vm1851 = vweird.f32 %v1845
  %vm1852 = vmor %vm1850, %vm1851
  %v1853 = vsel %vm1852, %v1845, %v1849
  %v1854 = vand.u32 2147483647, %v1787
  %vm1855 = vcmp.eq.f32.partialorder %v1854, 8.507059e+37
  %v1856 = vand.u32 %v1787, 2147483648
  %v1857 = vor.u32 1.1754944e-38, %v1856
  %v1858 = vsel %vm1855, %v1857, %v1853
  %v1859 = vmul.f32 %v1750, %v1858
  %v1860 = vrcp.pop %v1788
  %v1861 = vmul.f32 %v1788, %v1860
  %v1862 = vsub.f32 1.0, %v1861
  %v1863 = vmul.f32 %v1860, %v1862
  %v1864 = vadd.f32 %v1860, %v1863
  %vm1865 = vweird.f32 %v1788
  %vm1866 = vweird.f32 %v1860
  %vm1867 = vmor %vm1865, %vm1866
  %v1868 = vsel %vm1867, %v1860, %v1864
  %v1869 = vand.u32 2147483647, %v1788
  %vm1870 = vcmp.eq.f32.partialorder %v1869, 8.507059e+37
  %v1871 = vand.u32 %v1788, 2147483648
  %v1872 = vor.u32 1.1754944e-38, %v1871
  %v1873 = vsel %vm1870, %v1872, %v1868
  %v1874 = vmul.f32 %v1752, %v1873
  %v1875 = vrcp.pop %v1789
  %v1876 = vmul.f32 %v1789, %v1875
  %v1877 = vsub.f32 1.0, %v1876
  %v1878 = vmul.f32 %v1875, %v1877
  %v1879 = vadd.f32 %v1875, %v1878
  %vm1880 = vweird.f32 %v1789
  %vm1881 = vweird.f32 %v1875
  %vm1882 = vmor %vm1880, %vm1881
  %v1883 = vsel %vm1882, %v1875, %v1879
  %v1884 = vand.u32 2147483647, %v1789
  %vm1885 = vcmp.eq.f32.partialorder %v1884, 8.507059e+37
  %v1886 = vand.u32 %v1789, 2147483648
  %v1887 = vor.u32 1.1754944e-38, %v1886
  %v1888 = vsel %vm1885, %v1887, %v1883
  %v1889 = vmul.f32 %v1754, %v1888
  %v1890 = vrcp.pop %v1790
  %v1891 = vmul.f32 %v1790, %v1890
  %v1892 = vsub.f32 1.0, %v1891
  %v1893 = vmul.f32 %v1890, %v1892
  %v1894 = vadd.f32 %v1890, %v1893
  %vm1895 = vweird.f32 %v1790
  %vm1896 = vweird.f32 %v1890
  %vm1897 = vmor %vm1895, %vm1896
  %v1898 = vsel %vm1897, %v1890, %v1894
  %v1899 = vand.u32 2147483647, %v1790
  %vm1900 = vcmp.eq.f32.partialorder %v1899, 8.507059e+37
  %v1901 = vand.u32 %v1790, 2147483648
  %v1902 = vor.u32 1.1754944e-38, %v1901
  %v1903 = vsel %vm1900, %v1902, %v1898
  %v1904 = vmul.f32 %v1756, %v1903
  %v1905 = vrcp.pop %v1791
  %v1906 = vmul.f32 %v1791, %v1905
  %v1907 = vsub.f32 1.0, %v1906
  %v1908 = vmul.f32 %v1905, %v1907
  %v1909 = vadd.f32 %v1905, %v1908
  %vm1910 = vweird.f32 %v1791
  %vm1911 = vweird.f32 %v1905
  %vm1912 = vmor %vm1910, %vm1911
  %v1913 = vsel %vm1912, %v1905, %v1909
  %v1914 = vand.u32 2147483647, %v1791
  %vm1915 = vcmp.eq.f32.partialorder %v1914, 8.507059e+37
  %v1916 = vand.u32 %v1791, 2147483648
  %v1917 = vor.u32 1.1754944e-38, %v1916
  %v1918 = vsel %vm1915, %v1917, %v1913
  %v1919 = vmul.f32 %v1758, %v1918
  %1920 = vmatpush.msra.mxu0 %v181
  %1921 = vmatpush.msra.mxu0 %v180
  %1922 = vmatpush.msra.mxu0 %v179
  %1923 = vmatpush.msra.mxu0 %v178
  %1924 = vmatpush.msra.mxu0 %v177
  %1925 = vmatpush.msra.mxu0 %v176
  %1926 = vmatpush.msra.mxu0 %v175
  %1927 = vmatpush.msra.mxu0 %v174
  %1928 = vmatpush.msra.mxu0 %v173
  %1929 = vmatpush.msra.mxu0 %v172
  %1930 = vmatpush.msra.mxu0 %v171
  %1931 = vmatpush.msra.mxu0 %v170
  %1932 = vmatpush.msra.mxu0 %v169
  %1933 = vmatpush.msra.mxu0 %v168
  %1934 = vmatpush.msra.mxu0 %v167
  %1935 = vmatpush.msra.mxu0 %v166
  %1936 = vmatmul.f32.gmra.mxu0 %v1814
  %v1937 = vpop.f32.mrf.mxu0
  %v1938 = vadd.f32 0.0, %v1937
  %1939 = vdwg.mxu0
  %1940 = vmatpush.msra.mxu0 %v197
  %1941 = vmatpush.msra.mxu0 %v196
  %1942 = vmatpush.msra.mxu0 %v195
  %1943 = vmatpush.msra.mxu0 %v194
  %1944 = vmatpush.msra.mxu0 %v193
  %1945 = vmatpush.msra.mxu0 %v192
  %1946 = vmatpush.msra.mxu0 %v191
  %1947 = vmatpush.msra.mxu0 %v190
  %1948 = vmatpush.msra.mxu0 %v189
  %1949 = vmatpush.msra.mxu0 %v188
  %1950 = vmatpush.msra.mxu0 %v187
  %1951 = vmatpush.msra.mxu0 %v186
  %1952 = vmatpush.msra.mxu0 %v185
  %1953 = vmatpush.msra.mxu0 %v184
  %1954 = vmatpush.msra.mxu0 %v183
  %1955 = vmatpush.msra.mxu0 %v182
  %1956 = vmatmul.f32.gmra.mxu0 %v1829
  %v1957 = vpop.f32.mrf.mxu0
  %v1958 = vadd.f32 0.0, %v1957
  %1959 = vdwg.mxu0
  %1960 = vmatpush.msra.mxu0 %v213
  %1961 = vmatpush.msra.mxu0 %v212
  %1962 = vmatpush.msra.mxu0 %v211
  %1963 = vmatpush.msra.mxu0 %v210
  %1964 = vmatpush.msra.mxu0 %v209
  %1965 = vmatpush.msra.mxu0 %v208
  %1966 = vmatpush.msra.mxu0 %v207
  %1967 = vmatpush.msra.mxu0 %v206
  %1968 = vmatpush.msra.mxu0 %v205
  %1969 = vmatpush.msra.mxu0 %v204
  %1970 = vmatpush.msra.mxu0 %v203
  %1971 = vmatpush.msra.mxu0 %v202
  %1972 = vmatpush.msra.mxu0 %v201
  %1973 = vmatpush.msra.mxu0 %v200
  %1974 = vmatpush.msra.mxu0 %v199
  %1975 = vmatpush.msra.mxu0 %v198
  %1976 = vmatmul.f32.gmra.mxu0 %v1844
  %v1977 = vpop.f32.mrf.mxu0
  %v1978 = vadd.f32 0.0, %v1977
  %1979 = vdwg.mxu0
  %1980 = vmatpush.msra.mxu0 %v229
  %1981 = vmatpush.msra.mxu0 %v228
  %1982 = vmatpush.msra.mxu0 %v227
  %1983 = vmatpush.msra.mxu0 %v226
  %1984 = vmatpush.msra.mxu0 %v225
  %1985 = vmatpush.msra.mxu0 %v224
  %1986 = vmatpush.msra.mxu0 %v223
  %1987 = vmatpush.msra.mxu0 %v222
  %1988 = vmatpush.msra.mxu0 %v221
  %1989 = vmatpush.msra.mxu0 %v220
  %1990 = vmatpush.msra.mxu0 %v219
  %1991 = vmatpush.msra.mxu0 %v218
  %1992 = vmatpush.msra.mxu0 %v217
  %1993 = vmatpush.msra.mxu0 %v216
  %1994 = vmatpush.msra.mxu0 %v215
  %1995 = vmatpush.msra.mxu0 %v214
  %1996 = vmatmul.f32.gmra.mxu0 %v1859
  %v1997 = vpop.f32.mrf.mxu0
  %v1998 = vadd.f32 0.0, %v1997
  %1999 = vdwg.mxu0
  %2000 = vmatpush.msra.mxu0 %v245
  %2001 = vmatpush.msra.mxu0 %v244
  %2002 = vmatpush.msra.mxu0 %v243
  %2003 = vmatpush.msra.mxu0 %v242
  %2004 = vmatpush.msra.mxu0 %v241
  %2005 = vmatpush.msra.mxu0 %v240
  %2006 = vmatpush.msra.mxu0 %v239
  %2007 = vmatpush.msra.mxu0 %v238
  %2008 = vmatpush.msra.mxu0 %v237
  %2009 = vmatpush.msra.mxu0 %v236
  %2010 = vmatpush.msra.mxu0 %v235
  %2011 = vmatpush.msra.mxu0 %v234
  %2012 = vmatpush.msra.mxu0 %v233
  %2013 = vmatpush.msra.mxu0 %v232
  %2014 = vmatpush.msra.mxu0 %v231
  %2015 = vmatpush.msra.mxu0 %v230
  %2016 = vmatmul.f32.gmra.mxu0 %v1874
  %v2017 = vpop.f32.mrf.mxu0
  %v2018 = vadd.f32 0.0, %v2017
  %2019 = vdwg.mxu0
  %2020 = vmatpush.msra.mxu0 %v261
  %2021 = vmatpush.msra.mxu0 %v260
  %2022 = vmatpush.msra.mxu0 %v259
  %2023 = vmatpush.msra.mxu0 %v258
  %2024 = vmatpush.msra.mxu0 %v257
  %2025 = vmatpush.msra.mxu0 %v256
  %2026 = vmatpush.msra.mxu0 %v255
  %2027 = vmatpush.msra.mxu0 %v254
  %2028 = vmatpush.msra.mxu0 %v253
  %2029 = vmatpush.msra.mxu0 %v252
  %2030 = vmatpush.msra.mxu0 %v251
  %2031 = vmatpush.msra.mxu0 %v250
  %2032 = vmatpush.msra.mxu0 %v249
  %2033 = vmatpush.msra.mxu0 %v248
  %2034 = vmatpush.msra.mxu0 %v247
  %2035 = vmatpush.msra.mxu0 %v246
  %2036 = vmatmul.f32.gmra.mxu0 %v1889
  %v2037 = vpop.f32.mrf.mxu0
  %v2038 = vadd.f32 0.0, %v2037
  %2039 = vdwg.mxu0
  %2040 = vmatpush.msra.mxu0 %v277
  %2041 = vmatpush.msra.mxu0 %v276
  %2042 = vmatpush.msra.mxu0 %v275
  %2043 = vmatpush.msra.mxu0 %v274
  %2044 = vmatpush.msra.mxu0 %v273
  %2045 = vmatpush.msra.mxu0 %v272
  %2046 = vmatpush.msra.mxu0 %v271
  %2047 = vmatpush.msra.mxu0 %v270
  %2048 = vmatpush.msra.mxu0 %v269
  %2049 = vmatpush.msra.mxu0 %v268
  %2050 = vmatpush.msra.mxu0 %v267
  %2051 = vmatpush.msra.mxu0 %v266
  %2052 = vmatpush.msra.mxu0 %v265
  %2053 = vmatpush.msra.mxu0 %v264
  %2054 = vmatpush.msra.mxu0 %v263
  %2055 = vmatpush.msra.mxu0 %v262
  %2056 = vmatmul.f32.gmra.mxu0 %v1904
  %v2057 = vpop.f32.mrf.mxu0
  %v2058 = vadd.f32 0.0, %v2057
  %2059 = vdwg.mxu0
  %2060 = vmatpush.msra.mxu0 %v293
  %2061 = vmatpush.msra.mxu0 %v292
  %2062 = vmatpush.msra.mxu0 %v291
  %2063 = vmatpush.msra.mxu0 %v290
  %2064 = vmatpush.msra.mxu0 %v289
  %2065 = vmatpush.msra.mxu0 %v288
  %2066 = vmatpush.msra.mxu0 %v287
  %2067 = vmatpush.msra.mxu0 %v286
  %2068 = vmatpush.msra.mxu0 %v285
  %2069 = vmatpush.msra.mxu0 %v284
  %2070 = vmatpush.msra.mxu0 %v283
  %2071 = vmatpush.msra.mxu0 %v282
  %2072 = vmatpush.msra.mxu0 %v281
  %2073 = vmatpush.msra.mxu0 %v280
  %2074 = vmatpush.msra.mxu0 %v279
  %2075 = vmatpush.msra.mxu0 %v278
  %2076 = vmatmul.f32.gmra.mxu0 %v1919
  %v2077 = vpop.f32.mrf.mxu0
  %v2078 = vadd.f32 0.0, %v2077
  %2079 = vdwg.mxu0
  %v2080 = vadd.f32 %v1938, 0.0
  %v2081 = vadd.f32 %v1958, 0.0
  %v2082 = vadd.f32 %v1978, 0.0
  %v2083 = vadd.f32 %v1998, 0.0
  %v2084 = vadd.f32 %v2018, 0.0
  %v2085 = vadd.f32 %v2038, 0.0
  %v2086 = vadd.f32 %v2058, 0.0
  %v2087 = vadd.f32 %v2078, 0.0
  %v2096 = vrot.slane %v2081, 7
  %v2097 = vsel %vm952, %v2096, %v2080
  %v2098 = vrot.slane %v2082, 6
  %v2099 = vsel %vm955, %v2098, %v2097
  %v2100 = vrot.slane %v2083, 5
  %v2101 = vsel %vm958, %v2100, %v2099
  %v2102 = vrot.slane %v2084, 4
  %v2103 = vsel %vm961, %v2102, %v2101
  %v2104 = vrot.slane %v2085, 3
  %v2105 = vsel %vm964, %v2104, %v2103
  %v2106 = vrot.slane %v2086, 2
  %v2107 = vsel %vm967, %v2106, %v2105
  %v2108 = vrot.slane %v2087, 1
  %v2109 = vsel %vm970, %v2108, %v2107
  %2111 = vmatpush.msra.mxu0 %v309
  %2112 = vmatpush.msra.mxu0 %v308
  %2113 = vmatpush.msra.mxu0 %v307
  %2114 = vmatpush.msra.mxu0 %v306
  %2115 = vmatpush.msra.mxu0 %v305
  %2116 = vmatpush.msra.mxu0 %v304
  %2117 = vmatpush.msra.mxu0 %v303
  %2118 = vmatpush.msra.mxu0 %v302
  %2119 = vmatpush.msra.mxu0 %v301
  %2120 = vmatpush.msra.mxu0 %v300
  %2121 = vmatpush.msra.mxu0 %v299
  %2122 = vmatpush.msra.mxu0 %v298
  %2123 = vmatpush.msra.mxu0 %v297
  %2124 = vmatpush.msra.mxu0 %v296
  %2125 = vmatpush.msra.mxu0 %v295
  %2126 = vmatpush.msra.mxu0 %v294
  %2127 = vmatmul.f32.gmra.mxu0 %v1496
  %v2128 = vpop.f32.mrf.mxu0
  %v2129 = vadd.f32 %v2109, %v2128
  %2130 = vdwg.mxu0
  %2131 = vmatpush.msra.mxu0 0.0
  %2132 = vmatpush.msra.mxu0 0.0
  %2133 = vmatpush.msra.mxu0 0.0
  %2134 = vmatpush.msra.mxu0 0.0
  %2135 = vmatpush.msra.mxu0 0.0
  %2136 = vmatpush.msra.mxu0 0.0
  %2137 = vmatpush.msra.mxu0 0.0
  %2138 = vmatpush.msra.mxu0 0.0
  %2139 = vmatpush.msra.mxu0 0.0
  %2140 = vmatpush.msra.mxu0 0.0
  %2141 = vmatpush.msra.mxu0 0.0
  %2142 = vmatpush.msra.mxu0 0.0
  %2143 = vmatpush.msra.mxu0 %v313
  %2144 = vmatpush.msra.mxu0 %v312
  %2145 = vmatpush.msra.mxu0 %v311
  %2146 = vmatpush.msra.mxu0 %v310
  %2147 = vmatmul.f32.gmra.mxu0 %v1417
  %v2148 = vpop.f32.mrf.mxu0
  %v2149 = vadd.f32 0.0, %v2148
  %2150 = vdwg.mxu0
  %v2151 = vadd.f32 %v2129, %v2149
  %v2152 = vadd.f32 %v2151, %v1409
  %v2153 = vtanh.pop %v2152
  %v2155 = vsel %vm329, %v2153, 0
  %2157 = vmatpush.msra.mxu0 0.0
  %2158 = vmatpush.msra.mxu0 0.0
  %2159 = vmatpush.msra.mxu0 0.0
  %2160 = vmatpush.msra.mxu0 0.0
  %2161 = vmatpush.msra.mxu0 0.0
  %2162 = vmatpush.msra.mxu0 0.0
  %2163 = vmatpush.msra.mxu0 0.0
  %2164 = vmatpush.msra.mxu0 0.0
  %2165 = vmatpush.msra.mxu0 0.0
  %2166 = vmatpush.msra.mxu0 0.0
  %2167 = vmatpush.msra.mxu0 0.0
  %2168 = vmatpush.msra.mxu0 0.0
  %2169 = vmatpush.msra.mxu0 %v318
  %2170 = vmatpush.msra.mxu0 %v317
  %2171 = vmatpush.msra.mxu0 %v316
  %2172 = vmatpush.msra.mxu0 %v315
  %2173 = vmatmul.f32.gmra.mxu0 %v2155
  %v2174 = vpop.f32.mrf.mxu0
  %v2175 = vadd.f32 %v1414, %v2174
  %2176 = vdwg.mxu0
  %2177 = vmax.xlane.f32.xlu0 %v2175
  %v2178 = vpop.xlane.xlu0 %2177
  %vm2179 = vcmp.eq.f32.partialorder %v2175, %v2178
  %v2180 = vsel %vm2179, %v321, 128
  %v2181 = vand.u32 %v2180, 65535
  %v2182 = vshra.s32 %v2180, 16
  %v2183 = vcvt.s32.f32 %v2181
  %v2184 = vcvt.s32.f32 %v2182
  %2185 = vmin.xlane.f32.xlu0 %v2184
  %v2186 = vpop.xlane.xlu0 %2185
  %vm2187 = vcmp.eq.f32.partialorder %v2184, %v2186
  %v2188 = vsel %vm2187, %v2183, inf
  %2189 = vmin.xlane.f32.xlu0 %v2188
  %v2190 = vpop.xlane.xlu0 %2189
  %v2191 = vcvt.f32.s32 %v2190
  %v2192 = vcvt.f32.s32 %v2186
  %v2193 = vshll.u32 %v2192, 16
  %v2194 = vadd.s32 %v2193, %v2191
  %v2195 = vsel %vm1493, 1, 0
  %2196 = vset.pattern.permute.xlu0 0
  %2197 = vperm.xlu0 %2196, %v2195
  %v2198 = vpop.permute.xlu0 %2197
  %vm2199 = vcmp.eq.s32.totalorder %v2198, 1
  %v2200 = vsel %vm2199, %v2175, 0.0
  %s2201 = scalar_lea.vmem %s10, 8
  %2202 = vst [vmem:[%s2201] sm:$0xff] %v2200
  %v2211 = vrot.slane %v1829, 7
  %v2212 = vsel %vm952, %v2211, %v1814
  %v2213 = vrot.slane %v1844, 6
  %v2214 = vsel %vm955, %v2213, %v2212
  %v2215 = vrot.slane %v1859, 5
  %v2216 = vsel %vm958, %v2215, %v2214
  %v2217 = vrot.slane %v1874, 4
  %v2218 = vsel %vm961, %v2217, %v2216
  %v2219 = vrot.slane %v1889, 3
  %v2220 = vsel %vm964, %v2219, %v2218
  %v2221 = vrot.slane %v1904, 2
  %v2222 = vsel %vm967, %v2221, %v2220
  %v2223 = vrot.slane %v1919, 1
  %v2224 = vsel %vm970, %v2223, %v2222
  %v2226 = vsel %vm2199, %v2224, 0.0
  %s2227 = scalar_lea.vmem %s11, 8
  %2228 = vst [vmem:[%s2227] sm:$0xff] %v2226
  %vm2229 = vcmp.eq.s32.totalorder %v2194, 2
  %vm2230 = vcmp.lt.s32.totalorder %v1492, 2
  %v2231 = vsel %vm2230, %v1492, 2
  %v2232 = vsel %vm2229, %v2231, %v1492
  %vm2233 = vcmp.gt.s32.totalorder %v2232, 2
  %vm2234 = vcmp.eq.s32.totalorder %v321, %v2194
  %v2235 = vsel %vm2234, 1, 0
  %v2236 = vcvt.s32.f32 %v2235
  %v2237 = vrot.slane %v2153, 1
  %v2238 = vrot.slane %v2153, 2
  %v2239 = vrot.slane %v2153, 3
  %v2240 = vrot.slane %v2153, 4
  %v2241 = vrot.slane %v2153, 5
  %v2242 = vrot.slane %v2153, 6
  %v2243 = vrot.slane %v2153, 7
  %2244 = vmatpush.xpose.msra.mxu0 %v415
  %2245 = vmatpush.xpose.msra.mxu0 %v412
  %2246 = vmatpush.xpose.msra.mxu0 %v409
  %2247 = vmatpush.xpose.msra.mxu0 %v406
  %2248 = vmatpush.xpose.msra.mxu0 %v403
  %2249 = vmatpush.xpose.msra.mxu0 %v400
  %2250 = vmatpush.xpose.msra.mxu0 %v397
  %2251 = vmatpush.xpose.msra.mxu0 %v394
  %2252 = vmatpush.xpose.msra.mxu0 %v391
  %2253 = vmatpush.xpose.msra.mxu0 %v388
  %2254 = vmatpush.xpose.msra.mxu0 %v385
  %2255 = vmatpush.xpose.msra.mxu0 %v382
  %2256 = vmatpush.xpose.msra.mxu0 %v379
  %2257 = vmatpush.xpose.msra.mxu0 %v376
  %2258 = vmatpush.xpose.msra.mxu0 %v373
  %2259 = vmatpush.xpose.msra.mxu0 %v370
  %2260 = vmatmul.f32.gmra.mxu0 %v2155
  %v2261 = vpop.f32.mrf.mxu0
  %v2262 = vadd.f32 0.0, %v2261
  %2263 = vdwg.mxu0
  %v2264 = vsel %vm329, %v2237, 0
  %2266 = vmatpush.xpose.msra.mxu0 %v485
  %2267 = vmatpush.xpose.msra.mxu0 %v482
  %2268 = vmatpush.xpose.msra.mxu0 %v479
  %2269 = vmatpush.xpose.msra.mxu0 %v476
  %2270 = vmatpush.xpose.msra.mxu0 %v473
  %2271 = vmatpush.xpose.msra.mxu0 %v470
  %2272 = vmatpush.xpose.msra.mxu0 %v467
  %2273 = vmatpush.xpose.msra.mxu0 %v464
  %2274 = vmatpush.xpose.msra.mxu0 %v461
  %2275 = vmatpush.xpose.msra.mxu0 %v458
  %2276 = vmatpush.xpose.msra.mxu0 %v455
  %2277 = vmatpush.xpose.msra.mxu0 %v452
  %2278 = vmatpush.xpose.msra.mxu0 %v449
  %2279 = vmatpush.xpose.msra.mxu0 %v446
  %2280 = vmatpush.xpose.msra.mxu0 %v443
  %2281 = vmatpush.xpose.msra.mxu0 %v440
  %2282 = vmatmul.f32.gmra.mxu0 %v2264
  %v2283 = vpop.f32.mrf.mxu0
  %v2284 = vadd.f32 0.0, %v2283
  %2285 = vdwg.mxu0
  %v2286 = vsel %vm329, %v2238, 0
  %2288 = vmatpush.xpose.msra.mxu0 %v555
  %2289 = vmatpush.xpose.msra.mxu0 %v552
  %2290 = vmatpush.xpose.msra.mxu0 %v549
  %2291 = vmatpush.xpose.msra.mxu0 %v546
  %2292 = vmatpush.xpose.msra.mxu0 %v543
  %2293 = vmatpush.xpose.msra.mxu0 %v540
  %2294 = vmatpush.xpose.msra.mxu0 %v537
  %2295 = vmatpush.xpose.msra.mxu0 %v534
  %2296 = vmatpush.xpose.msra.mxu0 %v531
  %2297 = vmatpush.xpose.msra.mxu0 %v528
  %2298 = vmatpush.xpose.msra.mxu0 %v525
  %2299 = vmatpush.xpose.msra.mxu0 %v522
  %2300 = vmatpush.xpose.msra.mxu0 %v519
  %2301 = vmatpush.xpose.msra.mxu0 %v516
  %2302 = vmatpush.xpose.msra.mxu0 %v513
  %2303 = vmatpush.xpose.msra.mxu0 %v510
  %2304 = vmatmul.f32.gmra.mxu0 %v2286
  %v2305 = vpop.f32.mrf.mxu0
  %v2306 = vadd.f32 0.0, %v2305
  %2307 = vdwg.mxu0
  %v2308 = vsel %vm329, %v2239, 0
  %2310 = vmatpush.xpose.msra.mxu0 %v625
  %2311 = vmatpush.xpose.msra.mxu0 %v622
  %2312 = vmatpush.xpose.msra.mxu0 %v619
  %2313 = vmatpush.xpose.msra.mxu0 %v616
  %2314 = vmatpush.xpose.msra.mxu0 %v613
  %2315 = vmatpush.xpose.msra.mxu0 %v610
  %2316 = vmatpush.xpose.msra.mxu0 %v607
  %2317 = vmatpush.xpose.msra.mxu0 %v604
  %2318 = vmatpush.xpose.msra.mxu0 %v601
  %2319 = vmatpush.xpose.msra.mxu0 %v598
  %2320 = vmatpush.xpose.msra.mxu0 %v595
  %2321 = vmatpush.xpose.msra.mxu0 %v592
  %2322 = vmatpush.xpose.msra.mxu0 %v589
  %2323 = vmatpush.xpose.msra.mxu0 %v586
  %2324 = vmatpush.xpose.msra.mxu0 %v583
  %2325 = vmatpush.xpose.msra.mxu0 %v580
  %2326 = vmatmul.f32.gmra.mxu0 %v2308
  %v2327 = vpop.f32.mrf.mxu0
  %v2328 = vadd.f32 0.0, %v2327
  %2329 = vdwg.mxu0
  %v2330 = vsel %vm329, %v2240, 0
  %2332 = vmatpush.xpose.msra.mxu0 %v695
  %2333 = vmatpush.xpose.msra.mxu0 %v692
  %2334 = vmatpush.xpose.msra.mxu0 %v689
  %2335 = vmatpush.xpose.msra.mxu0 %v686
  %2336 = vmatpush.xpose.msra.mxu0 %v683
  %2337 = vmatpush.xpose.msra.mxu0 %v680
  %2338 = vmatpush.xpose.msra.mxu0 %v677
  %2339 = vmatpush.xpose.msra.mxu0 %v674
  %2340 = vmatpush.xpose.msra.mxu0 %v671
  %2341 = vmatpush.xpose.msra.mxu0 %v668
  %2342 = vmatpush.xpose.msra.mxu0 %v665
  %2343 = vmatpush.xpose.msra.mxu0 %v662
  %2344 = vmatpush.xpose.msra.mxu0 %v659
  %2345 = vmatpush.xpose.msra.mxu0 %v656
  %2346 = vmatpush.xpose.msra.mxu0 %v653
  %2347 = vmatpush.xpose.msra.mxu0 %v650
  %2348 = vmatmul.f32.gmra.mxu0 %v2330
  %v2349 = vpop.f32.mrf.mxu0
  %v2350 = vadd.f32 0.0, %v2349
  %2351 = vdwg.mxu0
  %v2352 = vsel %vm329, %v2241, 0
  %2354 = vmatpush.xpose.msra.mxu0 %v765
  %2355 = vmatpush.xpose.msra.mxu0 %v762
  %2356 = vmatpush.xpose.msra.mxu0 %v759
  %2357 = vmatpush.xpose.msra.mxu0 %v756
  %2358 = vmatpush.xpose.msra.mxu0 %v753
  %2359 = vmatpush.xpose.msra.mxu0 %v750
  %2360 = vmatpush.xpose.msra.mxu0 %v747
  %2361 = vmatpush.xpose.msra.mxu0 %v744
  %2362 = vmatpush.xpose.msra.mxu0 %v741
  %2363 = vmatpush.xpose.msra.mxu0 %v738
  %2364 = vmatpush.xpose.msra.mxu0 %v735
  %2365 = vmatpush.xpose.msra.mxu0 %v732
  %2366 = vmatpush.xpose.msra.mxu0 %v729
  %2367 = vmatpush.xpose.msra.mxu0 %v726
  %2368 = vmatpush.xpose.msra.mxu0 %v723
  %2369 = vmatpush.xpose.msra.mxu0 %v720
  %2370 = vmatmul.f32.gmra.mxu0 %v2352
  %v2371 = vpop.f32.mrf.mxu0
  %v2372 = vadd.f32 0.0, %v2371
  %2373 = vdwg.mxu0
  %v2374 = vsel %vm329, %v2242, 0
  %2376 = vmatpush.xpose.msra.mxu0 %v835
  %2377 = vmatpush.xpose.msra.mxu0 %v832
  %2378 = vmatpush.xpose.msra.mxu0 %v829
  %2379 = vmatpush.xpose.msra.mxu0 %v826
  %2380 = vmatpush.xpose.msra.mxu0 %v823
  %2381 = vmatpush.xpose.msra.mxu0 %v820
  %2382 = vmatpush.xpose.msra.mxu0 %v817
  %2383 = vmatpush.xpose.msra.mxu0 %v814
  %2384 = vmatpush.xpose.msra.mxu0 %v811
  %2385 = vmatpush.xpose.msra.mxu0 %v808
  %2386 = vmatpush.xpose.msra.mxu0 %v805
  %2387 = vmatpush.xpose.msra.mxu0 %v802
  %2388 = vmatpush.xpose.msra.mxu0 %v799
  %2389 = vmatpush.xpose.msra.mxu0 %v796
  %2390 = vmatpush.xpose.msra.mxu0 %v793
  %2391 = vmatpush.xpose.msra.mxu0 %v790
  %2392 = vmatmul.f32.gmra.mxu0 %v2374
  %v2393 = vpop.f32.mrf.mxu0
  %v2394 = vadd.f32 0.0, %v2393
  %2395 = vdwg.mxu0
  %v2396 = vsel %vm329, %v2243, 0
  %2398 = vmatpush.xpose.msra.mxu0 %v905
  %2399 = vmatpush.xpose.msra.mxu0 %v902
  %2400 = vmatpush.xpose.msra.mxu0 %v899
  %2401 = vmatpush.xpose.msra.mxu0 %v896
  %2402 = vmatpush.xpose.msra.mxu0 %v893
  %2403 = vmatpush.xpose.msra.mxu0 %v890
  %2404 = vmatpush.xpose.msra.mxu0 %v887
  %2405 = vmatpush.xpose.msra.mxu0 %v884
  %2406 = vmatpush.xpose.msra.mxu0 %v881
  %2407 = vmatpush.xpose.msra.mxu0 %v878
  %2408 = vmatpush.xpose.msra.mxu0 %v875
  %2409 = vmatpush.xpose.msra.mxu0 %v872
  %2410 = vmatpush.xpose.msra.mxu0 %v869
  %2411 = vmatpush.xpose.msra.mxu0 %v866
  %2412 = vmatpush.xpose.msra.mxu0 %v863
  %2413 = vmatpush.xpose.msra.mxu0 %v860
  %2414 = vmatmul.f32.gmra.mxu0 %v2396
  %v2415 = vpop.f32.mrf.mxu0
  %v2416 = vadd.f32 0.0, %v2415
  %2417 = vdwg.mxu0
  %v2418 = vadd.f32 %v2262, 0.0
  %v2419 = vadd.f32 %v2284, 0.0
  %v2420 = vadd.f32 %v2306, 0.0
  %v2421 = vadd.f32 %v2328, 0.0
  %v2422 = vadd.f32 %v2350, 0.0
  %v2423 = vadd.f32 %v2372, 0.0
  %v2424 = vadd.f32 %v2394, 0.0
  %v2425 = vadd.f32 %v2416, 0.0
  %v2426 = vadd.f32 %v2418, %v323
  %v2427 = vadd.f32 %v2419, %v323
  %v2428 = vadd.f32 %v2420, %v323
  %v2429 = vadd.f32 %v2421, %v323
  %v2430 = vadd.f32 %v2422, %v323
  %v2431 = vadd.f32 %v2423, %v323
  %v2432 = vadd.f32 %v2424, %v323
  %v2433 = vadd.f32 %v2425, %v323
  %v2442 = vrot.slane %v2427, 7
  %v2443 = vsel %vm952, %v2442, %v2426
  %v2444 = vrot.slane %v2428, 6
  %v2445 = vsel %vm955, %v2444, %v2443
  %v2446 = vrot.slane %v2429, 5
  %v2447 = vsel %vm958, %v2446, %v2445
  %v2448 = vrot.slane %v2430, 4
  %v2449 = vsel %vm961, %v2448, %v2447
  %v2450 = vrot.slane %v2431, 3
  %v2451 = vsel %vm964, %v2450, %v2449
  %v2452 = vrot.slane %v2432, 2
  %v2453 = vsel %vm967, %v2452, %v2451
  %v2454 = vrot.slane %v2433, 1
  %v2455 = vsel %vm970, %v2454, %v2453
  %2457 = vmax.xlane.f32.xlu0 %v2455
  %v2458 = vpop.xlane.xlu0 %2457
  %v2460 = vrot.slane %v2458, 1
  %v2461 = vrot.slane %v2458, 2
  %v2462 = vrot.slane %v2458, 3
  %v2463 = vrot.slane %v2458, 4
  %v2464 = vrot.slane %v2458, 5
  %v2465 = vrot.slane %v2458, 6
  %v2466 = vrot.slane %v2458, 7
  %v2475 = vsub.f32 %v2426, %v2458
  %v2476 = vsub.f32 %v2427, %v2460
  %v2477 = vsub.f32 %v2428, %v2461
  %v2478 = vsub.f32 %v2429, %v2462
  %v2479 = vsub.f32 %v2430, %v2463
  %v2480 = vsub.f32 %v2431, %v2464
  %v2481 = vsub.f32 %v2432, %v2465
  %v2482 = vsub.f32 %v2433, %v2466
  %v2483 = vmul.f32 %v2475, 1.442695
  %v2484 = vpow.pop %v2483
  %v2485 = vmul.f32 %v2476, 1.442695
  %v2486 = vpow.pop %v2485
  %v2487 = vmul.f32 %v2477, 1.442695
  %v2488 = vpow.pop %v2487
  %v2489 = vmul.f32 %v2478, 1.442695
  %v2490 = vpow.pop %v2489
  %v2491 = vmul.f32 %v2479, 1.442695
  %v2492 = vpow.pop %v2491
  %v2493 = vmul.f32 %v2480, 1.442695
  %v2494 = vpow.pop %v2493
  %v2495 = vmul.f32 %v2481, 1.442695
  %v2496 = vpow.pop %v2495
  %v2497 = vmul.f32 %v2482, 1.442695
  %v2498 = vpow.pop %v2497
  %v2507 = vrot.slane %v2486, 7
  %v2508 = vsel %vm952, %v2507, %v2484
  %v2509 = vrot.slane %v2488, 6
  %v2510 = vsel %vm955, %v2509, %v2508
  %v2511 = vrot.slane %v2490, 5
  %v2512 = vsel %vm958, %v2511, %v2510
  %v2513 = vrot.slane %v2492, 4
  %v2514 = vsel %vm961, %v2513, %v2512
  %v2515 = vrot.slane %v2494, 3
  %v2516 = vsel %vm964, %v2515, %v2514
  %v2517 = vrot.slane %v2496, 2
  %v2518 = vsel %vm967, %v2517, %v2516
  %v2519 = vrot.slane %v2498, 1
  %v2520 = vsel %vm970, %v2519, %v2518
  %2522 = vadd.xlane.f32.xlu0 %v2520
  %v2523 = vpop.xlane.xlu0 %2522
  %v2525 = vrot.slane %v2523, 1
  %v2526 = vrot.slane %v2523, 2
  %v2527 = vrot.slane %v2523, 3
  %v2528 = vrot.slane %v2523, 4
  %v2529 = vrot.slane %v2523, 5
  %v2530 = vrot.slane %v2523, 6
  %v2531 = vrot.slane %v2523, 7
  %v2540 = vrcp.pop %v2523
  %v2541 = vmul.f32 %v2523, %v2540
  %v2542 = vsub.f32 1.0, %v2541
  %v2543 = vmul.f32 %v2540, %v2542
  %v2544 = vadd.f32 %v2540, %v2543
  %vm2545 = vweird.f32 %v2523
  %vm2546 = vweird.f32 %v2540
  %vm2547 = vmor %vm2545, %vm2546
  %v2548 = vsel %vm2547, %v2540, %v2544
  %v2549 = vand.u32 2147483647, %v2523
  %vm2550 = vcmp.eq.f32.partialorder %v2549, 8.507059e+37
  %v2551 = vand.u32 %v2523, 2147483648
  %v2552 = vor.u32 1.1754944e-38, %v2551
  %v2553 = vsel %vm2550, %v2552, %v2548
  %v2554 = vmul.f32 %v2484, %v2553
  %v2555 = vrcp.pop %v2525
  %v2556 = vmul.f32 %v2525, %v2555
  %v2557 = vsub.f32 1.0, %v2556
  %v2558 = vmul.f32 %v2555, %v2557
  %v2559 = vadd.f32 %v2555, %v2558
  %vm2560 = vweird.f32 %v2525
  %vm2561 = vweird.f32 %v2555
  %vm2562 = vmor %vm2560, %vm2561
  %v2563 = vsel %vm2562, %v2555, %v2559
  %v2564 = vand.u32 2147483647, %v2525
  %vm2565 = vcmp.eq.f32.partialorder %v2564, 8.507059e+37
  %v2566 = vand.u32 %v2525, 2147483648
  %v2567 = vor.u32 1.1754944e-38, %v2566
  %v2568 = vsel %vm2565, %v2567, %v2563
  %v2569 = vmul.f32 %v2486, %v2568
  %v2570 = vrcp.pop %v2526
  %v2571 = vmul.f32 %v2526, %v2570
  %v2572 = vsub.f32 1.0, %v2571
  %v2573 = vmul.f32 %v2570, %v2572
  %v2574 = vadd.f32 %v2570, %v2573
  %vm2575 = vweird.f32 %v2526
  %vm2576 = vweird.f32 %v2570
  %vm2577 = vmor %vm2575, %vm2576
  %v2578 = vsel %vm2577, %v2570, %v2574
  %v2579 = vand.u32 2147483647, %v2526
  %vm2580 = vcmp.eq.f32.partialorder %v2579, 8.507059e+37
  %v2581 = vand.u32 %v2526, 2147483648
  %v2582 = vor.u32 1.1754944e-38, %v2581
  %v2583 = vsel %vm2580, %v2582, %v2578
  %v2584 = vmul.f32 %v2488, %v2583
  %v2585 = vrcp.pop %v2527
  %v2586 = vmul.f32 %v2527, %v2585
  %v2587 = vsub.f32 1.0, %v2586
  %v2588 = vmul.f32 %v2585, %v2587
  %v2589 = vadd.f32 %v2585, %v2588
  %vm2590 = vweird.f32 %v2527
  %vm2591 = vweird.f32 %v2585
  %vm2592 = vmor %vm2590, %vm2591
  %v2593 = vsel %vm2592, %v2585, %v2589
  %v2594 = vand.u32 2147483647, %v2527
  %vm2595 = vcmp.eq.f32.partialorder %v2594, 8.507059e+37
  %v2596 = vand.u32 %v2527, 2147483648
  %v2597 = vor.u32 1.1754944e-38, %v2596
  %v2598 = vsel %vm2595, %v2597, %v2593
  %v2599 = vmul.f32 %v2490, %v2598
  %v2600 = vrcp.pop %v2528
  %v2601 = vmul.f32 %v2528, %v2600
  %v2602 = vsub.f32 1.0, %v2601
  %v2603 = vmul.f32 %v2600, %v2602
  %v2604 = vadd.f32 %v2600, %v2603
  %vm2605 = vweird.f32 %v2528
  %vm2606 = vweird.f32 %v2600
  %vm2607 = vmor %vm2605, %vm2606
  %v2608 = vsel %vm2607, %v2600, %v2604
  %v2609 = vand.u32 2147483647, %v2528
  %vm2610 = vcmp.eq.f32.partialorder %v2609, 8.507059e+37
  %v2611 = vand.u32 %v2528, 2147483648
  %v2612 = vor.u32 1.1754944e-38, %v2611
  %v2613 = vsel %vm2610, %v2612, %v2608
  %v2614 = vmul.f32 %v2492, %v2613
  %v2615 = vrcp.pop %v2529
  %v2616 = vmul.f32 %v2529, %v2615
  %v2617 = vsub.f32 1.0, %v2616
  %v2618 = vmul.f32 %v2615, %v2617
  %v2619 = vadd.f32 %v2615, %v2618
  %vm2620 = vweird.f32 %v2529
  %vm2621 = vweird.f32 %v2615
  %vm2622 = vmor %vm2620, %vm2621
  %v2623 = vsel %vm2622, %v2615, %v2619
  %v2624 = vand.u32 2147483647, %v2529
  %vm2625 = vcmp.eq.f32.partialorder %v2624, 8.507059e+37
  %v2626 = vand.u32 %v2529, 2147483648
  %v2627 = vor.u32 1.1754944e-38, %v2626
  %v2628 = vsel %vm2625, %v2627, %v2623
  %v2629 = vmul.f32 %v2494, %v2628
  %v2630 = vrcp.pop %v2530
  %v2631 = vmul.f32 %v2530, %v2630
  %v2632 = vsub.f32 1.0, %v2631
  %v2633 = vmul.f32 %v2630, %v2632
  %v2634 = vadd.f32 %v2630, %v2633
  %vm2635 = vweird.f32 %v2530
  %vm2636 = vweird.f32 %v2630
  %vm2637 = vmor %vm2635, %vm2636
  %v2638 = vsel %vm2637, %v2630, %v2634
  %v2639 = vand.u32 2147483647, %v2530
  %vm2640 = vcmp.eq.f32.partialorder %v2639, 8.507059e+37
  %v2641 = vand.u32 %v2530, 2147483648
  %v2642 = vor.u32 1.1754944e-38, %v2641
  %v2643 = vsel %vm2640, %v2642, %v2638
  %v2644 = vmul.f32 %v2496, %v2643
  %v2645 = vrcp.pop %v2531
  %v2646 = vmul.f32 %v2531, %v2645
  %v2647 = vsub.f32 1.0, %v2646
  %v2648 = vmul.f32 %v2645, %v2647
  %v2649 = vadd.f32 %v2645, %v2648
  %vm2650 = vweird.f32 %v2531
  %vm2651 = vweird.f32 %v2645
  %vm2652 = vmor %vm2650, %vm2651
  %v2653 = vsel %vm2652, %v2645, %v2649
  %v2654 = vand.u32 2147483647, %v2531
  %vm2655 = vcmp.eq.f32.partialorder %v2654, 8.507059e+37
  %v2656 = vand.u32 %v2531, 2147483648
  %v2657 = vor.u32 1.1754944e-38, %v2656
  %v2658 = vsel %vm2655, %v2657, %v2653
  %v2659 = vmul.f32 %v2498, %v2658
  %2660 = vmatpush.msra.mxu0 %v181
  %2661 = vmatpush.msra.mxu0 %v180
  %2662 = vmatpush.msra.mxu0 %v179
  %2663 = vmatpush.msra.mxu0 %v178
  %2664 = vmatpush.msra.mxu0 %v177
  %2665 = vmatpush.msra.mxu0 %v176
  %2666 = vmatpush.msra.mxu0 %v175
  %2667 = vmatpush.msra.mxu0 %v174
  %2668 = vmatpush.msra.mxu0 %v173
  %2669 = vmatpush.msra.mxu0 %v172
  %2670 = vmatpush.msra.mxu0 %v171
  %2671 = vmatpush.msra.mxu0 %v170
  %2672 = vmatpush.msra.mxu0 %v169
  %2673 = vmatpush.msra.mxu0 %v168
  %2674 = vmatpush.msra.mxu0 %v167
  %2675 = vmatpush.msra.mxu0 %v166
  %2676 = vmatmul.f32.gmra.mxu0 %v2554
  %v2677 = vpop.f32.mrf.mxu0
  %v2678 = vadd.f32 0.0, %v2677
  %2679 = vdwg.mxu0
  %2680 = vmatpush.msra.mxu0 %v197
  %2681 = vmatpush.msra.mxu0 %v196
  %2682 = vmatpush.msra.mxu0 %v195
  %2683 = vmatpush.msra.mxu0 %v194
  %2684 = vmatpush.msra.mxu0 %v193
  %2685 = vmatpush.msra.mxu0 %v192
  %2686 = vmatpush.msra.mxu0 %v191
  %2687 = vmatpush.msra.mxu0 %v190
  %2688 = vmatpush.msra.mxu0 %v189
  %2689 = vmatpush.msra.mxu0 %v188
  %2690 = vmatpush.msra.mxu0 %v187
  %2691 = vmatpush.msra.mxu0 %v186
  %2692 = vmatpush.msra.mxu0 %v185
  %2693 = vmatpush.msra.mxu0 %v184
  %2694 = vmatpush.msra.mxu0 %v183
  %2695 = vmatpush.msra.mxu0 %v182
  %2696 = vmatmul.f32.gmra.mxu0 %v2569
  %v2697 = vpop.f32.mrf.mxu0
  %v2698 = vadd.f32 0.0, %v2697
  %2699 = vdwg.mxu0
  %2700 = vmatpush.msra.mxu0 %v213
  %2701 = vmatpush.msra.mxu0 %v212
  %2702 = vmatpush.msra.mxu0 %v211
  %2703 = vmatpush.msra.mxu0 %v210
  %2704 = vmatpush.msra.mxu0 %v209
  %2705 = vmatpush.msra.mxu0 %v208
  %2706 = vmatpush.msra.mxu0 %v207
  %2707 = vmatpush.msra.mxu0 %v206
  %2708 = vmatpush.msra.mxu0 %v205
  %2709 = vmatpush.msra.mxu0 %v204
  %2710 = vmatpush.msra.mxu0 %v203
  %2711 = vmatpush.msra.mxu0 %v202
  %2712 = vmatpush.msra.mxu0 %v201
  %2713 = vmatpush.msra.mxu0 %v200
  %2714 = vmatpush.msra.mxu0 %v199
  %2715 = vmatpush.msra.mxu0 %v198
  %2716 = vmatmul.f32.gmra.mxu0 %v2584
  %v2717 = vpop.f32.mrf.mxu0
  %v2718 = vadd.f32 0.0, %v2717
  %2719 = vdwg.mxu0
  %2720 = vmatpush.msra.mxu0 %v229
  %2721 = vmatpush.msra.mxu0 %v228
  %2722 = vmatpush.msra.mxu0 %v227
  %2723 = vmatpush.msra.mxu0 %v226
  %2724 = vmatpush.msra.mxu0 %v225
  %2725 = vmatpush.msra.mxu0 %v224
  %2726 = vmatpush.msra.mxu0 %v223
  %2727 = vmatpush.msra.mxu0 %v222
  %2728 = vmatpush.msra.mxu0 %v221
  %2729 = vmatpush.msra.mxu0 %v220
  %2730 = vmatpush.msra.mxu0 %v219
  %2731 = vmatpush.msra.mxu0 %v218
  %2732 = vmatpush.msra.mxu0 %v217
  %2733 = vmatpush.msra.mxu0 %v216
  %2734 = vmatpush.msra.mxu0 %v215
  %2735 = vmatpush.msra.mxu0 %v214
  %2736 = vmatmul.f32.gmra.mxu0 %v2599
  %v2737 = vpop.f32.mrf.mxu0
  %v2738 = vadd.f32 0.0, %v2737
  %2739 = vdwg.mxu0
  %2740 = vmatpush.msra.mxu0 %v245
  %2741 = vmatpush.msra.mxu0 %v244
  %2742 = vmatpush.msra.mxu0 %v243
  %2743 = vmatpush.msra.mxu0 %v242
  %2744 = vmatpush.msra.mxu0 %v241
  %2745 = vmatpush.msra.mxu0 %v240
  %2746 = vmatpush.msra.mxu0 %v239
  %2747 = vmatpush.msra.mxu0 %v238
  %2748 = vmatpush.msra.mxu0 %v237
  %2749 = vmatpush.msra.mxu0 %v236
  %2750 = vmatpush.msra.mxu0 %v235
  %2751 = vmatpush.msra.mxu0 %v234
  %2752 = vmatpush.msra.mxu0 %v233
  %2753 = vmatpush.msra.mxu0 %v232
  %2754 = vmatpush.msra.mxu0 %v231
  %2755 = vmatpush.msra.mxu0 %v230
  %2756 = vmatmul.f32.gmra.mxu0 %v2614
  %v2757 = vpop.f32.mrf.mxu0
  %v2758 = vadd.f32 0.0, %v2757
  %2759 = vdwg.mxu0
  %2760 = vmatpush.msra.mxu0 %v261
  %2761 = vmatpush.msra.mxu0 %v260
  %2762 = vmatpush.msra.mxu0 %v259
  %2763 = vmatpush.msra.mxu0 %v258
  %2764 = vmatpush.msra.mxu0 %v257
  %2765 = vmatpush.msra.mxu0 %v256
  %2766 = vmatpush.msra.mxu0 %v255
  %2767 = vmatpush.msra.mxu0 %v254
  %2768 = vmatpush.msra.mxu0 %v253
  %2769 = vmatpush.msra.mxu0 %v252
  %2770 = vmatpush.msra.mxu0 %v251
  %2771 = vmatpush.msra.mxu0 %v250
  %2772 = vmatpush.msra.mxu0 %v249
  %2773 = vmatpush.msra.mxu0 %v248
  %2774 = vmatpush.msra.mxu0 %v247
  %2775 = vmatpush.msra.mxu0 %v246
  %2776 = vmatmul.f32.gmra.mxu0 %v2629
  %v2777 = vpop.f32.mrf.mxu0
  %v2778 = vadd.f32 0.0, %v2777
  %2779 = vdwg.mxu0
  %2780 = vmatpush.msra.mxu0 %v277
  %2781 = vmatpush.msra.mxu0 %v276
  %2782 = vmatpush.msra.mxu0 %v275
  %2783 = vmatpush.msra.mxu0 %v274
  %2784 = vmatpush.msra.mxu0 %v273
  %2785 = vmatpush.msra.mxu0 %v272
  %2786 = vmatpush.msra.mxu0 %v271
  %2787 = vmatpush.msra.mxu0 %v270
  %2788 = vmatpush.msra.mxu0 %v269
  %2789 = vmatpush.msra.mxu0 %v268
  %2790 = vmatpush.msra.mxu0 %v267
  %2791 = vmatpush.msra.mxu0 %v266
  %2792 = vmatpush.msra.mxu0 %v265
  %2793 = vmatpush.msra.mxu0 %v264
  %2794 = vmatpush.msra.mxu0 %v263
  %2795 = vmatpush.msra.mxu0 %v262
  %2796 = vmatmul.f32.gmra.mxu0 %v2644
  %v2797 = vpop.f32.mrf.mxu0
  %v2798 = vadd.f32 0.0, %v2797
  %2799 = vdwg.mxu0
  %2800 = vmatpush.msra.mxu0 %v293
  %2801 = vmatpush.msra.mxu0 %v292
  %2802 = vmatpush.msra.mxu0 %v291
  %2803 = vmatpush.msra.mxu0 %v290
  %2804 = vmatpush.msra.mxu0 %v289
  %2805 = vmatpush.msra.mxu0 %v288
  %2806 = vmatpush.msra.mxu0 %v287
  %2807 = vmatpush.msra.mxu0 %v286
  %2808 = vmatpush.msra.mxu0 %v285
  %2809 = vmatpush.msra.mxu0 %v284
  %2810 = vmatpush.msra.mxu0 %v283
  %2811 = vmatpush.msra.mxu0 %v282
  %2812 = vmatpush.msra.mxu0 %v281
  %2813 = vmatpush.msra.mxu0 %v280
  %2814 = vmatpush.msra.mxu0 %v279
  %2815 = vmatpush.msra.mxu0 %v278
  %2816 = vmatmul.f32.gmra.mxu0 %v2659
  %v2817 = vpop.f32.mrf.mxu0
  %v2818 = vadd.f32 0.0, %v2817
  %2819 = vdwg.mxu0
  %v2820 = vadd.f32 %v2678, 0.0
  %v2821 = vadd.f32 %v2698, 0.0
  %v2822 = vadd.f32 %v2718, 0.0
  %v2823 = vadd.f32 %v2738, 0.0
  %v2824 = vadd.f32 %v2758, 0.0
  %v2825 = vadd.f32 %v2778, 0.0
  %v2826 = vadd.f32 %v2798, 0.0
  %v2827 = vadd.f32 %v2818, 0.0
  %v2836 = vrot.slane %v2821, 7
  %v2837 = vsel %vm952, %v2836, %v2820
  %v2838 = vrot.slane %v2822, 6
  %v2839 = vsel %vm955, %v2838, %v2837
  %v2840 = vrot.slane %v2823, 5
  %v2841 = vsel %vm958, %v2840, %v2839
  %v2842 = vrot.slane %v2824, 4
  %v2843 = vsel %vm961, %v2842, %v2841
  %v2844 = vrot.slane %v2825, 3
  %v2845 = vsel %vm964, %v2844, %v2843
  %v2846 = vrot.slane %v2826, 2
  %v2847 = vsel %vm967, %v2846, %v2845
  %v2848 = vrot.slane %v2827, 1
  %v2849 = vsel %vm970, %v2848, %v2847
  %2851 = vmatpush.msra.mxu0 %v309
  %2852 = vmatpush.msra.mxu0 %v308
  %2853 = vmatpush.msra.mxu0 %v307
  %2854 = vmatpush.msra.mxu0 %v306
  %2855 = vmatpush.msra.mxu0 %v305
  %2856 = vmatpush.msra.mxu0 %v304
  %2857 = vmatpush.msra.mxu0 %v303
  %2858 = vmatpush.msra.mxu0 %v302
  %2859 = vmatpush.msra.mxu0 %v301
  %2860 = vmatpush.msra.mxu0 %v300
  %2861 = vmatpush.msra.mxu0 %v299
  %2862 = vmatpush.msra.mxu0 %v298
  %2863 = vmatpush.msra.mxu0 %v297
  %2864 = vmatpush.msra.mxu0 %v296
  %2865 = vmatpush.msra.mxu0 %v295
  %2866 = vmatpush.msra.mxu0 %v294
  %2867 = vmatmul.f32.gmra.mxu0 %v2236
  %v2868 = vpop.f32.mrf.mxu0
  %v2869 = vadd.f32 %v2849, %v2868
  %2870 = vdwg.mxu0
  %2871 = vmatpush.msra.mxu0 0.0
  %2872 = vmatpush.msra.mxu0 0.0
  %2873 = vmatpush.msra.mxu0 0.0
  %2874 = vmatpush.msra.mxu0 0.0
  %2875 = vmatpush.msra.mxu0 0.0
  %2876 = vmatpush.msra.mxu0 0.0
  %2877 = vmatpush.msra.mxu0 0.0
  %2878 = vmatpush.msra.mxu0 0.0
  %2879 = vmatpush.msra.mxu0 0.0
  %2880 = vmatpush.msra.mxu0 0.0
  %2881 = vmatpush.msra.mxu0 0.0
  %2882 = vmatpush.msra.mxu0 0.0
  %2883 = vmatpush.msra.mxu0 %v313
  %2884 = vmatpush.msra.mxu0 %v312
  %2885 = vmatpush.msra.mxu0 %v311
  %2886 = vmatpush.msra.mxu0 %v310
  %2887 = vmatmul.f32.gmra.mxu0 %v2155
  %v2888 = vpop.f32.mrf.mxu0
  %v2889 = vadd.f32 0.0, %v2888
  %2890 = vdwg.mxu0
  %v2891 = vadd.f32 %v2869, %v2889
  %v2892 = vadd.f32 %v2891, %v1409
  %v2893 = vtanh.pop %v2892
  %v2895 = vsel %vm329, %v2893, 0
  %2897 = vmatpush.msra.mxu0 0.0
  %2898 = vmatpush.msra.mxu0 0.0
  %2899 = vmatpush.msra.mxu0 0.0
  %2900 = vmatpush.msra.mxu0 0.0
  %2901 = vmatpush.msra.mxu0 0.0
  %2902 = vmatpush.msra.mxu0 0.0
  %2903 = vmatpush.msra.mxu0 0.0
  %2904 = vmatpush.msra.mxu0 0.0
  %2905 = vmatpush.msra.mxu0 0.0
  %2906 = vmatpush.msra.mxu0 0.0
  %2907 = vmatpush.msra.mxu0 0.0
  %2908 = vmatpush.msra.mxu0 0.0
  %2909 = vmatpush.msra.mxu0 %v318
  %2910 = vmatpush.msra.mxu0 %v317
  %2911 = vmatpush.msra.mxu0 %v316
  %2912 = vmatpush.msra.mxu0 %v315
  %2913 = vmatmul.f32.gmra.mxu0 %v2895
  %v2914 = vpop.f32.mrf.mxu0
  %v2915 = vadd.f32 %v1414, %v2914
  %2916 = vdwg.mxu0
  %2917 = vmax.xlane.f32.xlu0 %v2915
  %v2918 = vpop.xlane.xlu0 %2917
  %vm2919 = vcmp.eq.f32.partialorder %v2915, %v2918
  %v2920 = vsel %vm2919, %v321, 128
  %v2921 = vand.u32 %v2920, 65535
  %v2922 = vshra.s32 %v2920, 16
  %v2923 = vcvt.s32.f32 %v2921
  %v2924 = vcvt.s32.f32 %v2922
  %2925 = vmin.xlane.f32.xlu0 %v2924
  %v2926 = vpop.xlane.xlu0 %2925
  %vm2927 = vcmp.eq.f32.partialorder %v2924, %v2926
  %v2928 = vsel %vm2927, %v2923, inf
  %2929 = vmin.xlane.f32.xlu0 %v2928
  %v2930 = vpop.xlane.xlu0 %2929
  %v2931 = vcvt.f32.s32 %v2930
  %v2932 = vcvt.f32.s32 %v2926
  %v2933 = vshll.u32 %v2932, 16
  %v2934 = vadd.s32 %v2933, %v2931
  %v2935 = vsel %vm2233, 1, 0
  %2936 = vset.pattern.permute.xlu0 0
  %2937 = vperm.xlu0 %2936, %v2935
  %v2938 = vpop.permute.xlu0 %2937
  %vm2939 = vcmp.eq.s32.totalorder %v2938, 1
  %v2940 = vsel %vm2939, %v2915, 0.0
  %s2941 = scalar_lea.vmem %s10, 16
  %2942 = vst [vmem:[%s2941] sm:$0xff] %v2940
  %v2951 = vrot.slane %v2569, 7
  %v2952 = vsel %vm952, %v2951, %v2554
  %v2953 = vrot.slane %v2584, 6
  %v2954 = vsel %vm955, %v2953, %v2952
  %v2955 = vrot.slane %v2599, 5
  %v2956 = vsel %vm958, %v2955, %v2954
  %v2957 = vrot.slane %v2614, 4
  %v2958 = vsel %vm961, %v2957, %v2956
  %v2959 = vrot.slane %v2629, 3
  %v2960 = vsel %vm964, %v2959, %v2958
  %v2961 = vrot.slane %v2644, 2
  %v2962 = vsel %vm967, %v2961, %v2960
  %v2963 = vrot.slane %v2659, 1
  %v2964 = vsel %vm970, %v2963, %v2962
  %v2966 = vsel %vm2939, %v2964, 0.0
  %s2967 = scalar_lea.vmem %s11, 16
  %2968 = vst [vmem:[%s2967] sm:$0xff] %v2966
  %vm2969 = vcmp.eq.s32.totalorder %v2934, 2
  %vm2970 = vcmp.lt.s32.totalorder %v2232, 3
  %v2971 = vsel %vm2970, %v2232, 3
  %v2972 = vsel %vm2969, %v2971, %v2232
  %vm2973 = vcmp.gt.s32.totalorder %v2972, 3
  %vm2974 = vcmp.eq.s32.totalorder %v321, %v2934
  %v2975 = vsel %vm2974, 1, 0
  %v2976 = vcvt.s32.f32 %v2975
  %v2977 = vrot.slane %v2893, 1
  %v2978 = vrot.slane %v2893, 2
  %v2979 = vrot.slane %v2893, 3
  %v2980 = vrot.slane %v2893, 4
  %v2981 = vrot.slane %v2893, 5
  %v2982 = vrot.slane %v2893, 6
  %v2983 = vrot.slane %v2893, 7
  %2984 = vmatpush.xpose.msra.mxu0 %v415
  %2985 = vmatpush.xpose.msra.mxu0 %v412
  %2986 = vmatpush.xpose.msra.mxu0 %v409
  %2987 = vmatpush.xpose.msra.mxu0 %v406
  %2988 = vmatpush.xpose.msra.mxu0 %v403
  %2989 = vmatpush.xpose.msra.mxu0 %v400
  %2990 = vmatpush.xpose.msra.mxu0 %v397
  %2991 = vmatpush.xpose.msra.mxu0 %v394
  %2992 = vmatpush.xpose.msra.mxu0 %v391
  %2993 = vmatpush.xpose.msra.mxu0 %v388
  %2994 = vmatpush.xpose.msra.mxu0 %v385
  %2995 = vmatpush.xpose.msra.mxu0 %v382
  %2996 = vmatpush.xpose.msra.mxu0 %v379
  %2997 = vmatpush.xpose.msra.mxu0 %v376
  %2998 = vmatpush.xpose.msra.mxu0 %v373
  %2999 = vmatpush.xpose.msra.mxu0 %v370
  %3000 = vmatmul.f32.gmra.mxu0 %v2895
  %v3001 = vpop.f32.mrf.mxu0
  %v3002 = vadd.f32 0.0, %v3001
  %3003 = vdwg.mxu0
  %v3004 = vsel %vm329, %v2977, 0
  %3006 = vmatpush.xpose.msra.mxu0 %v485
  %3007 = vmatpush.xpose.msra.mxu0 %v482
  %3008 = vmatpush.xpose.msra.mxu0 %v479
  %3009 = vmatpush.xpose.msra.mxu0 %v476
  %3010 = vmatpush.xpose.msra.mxu0 %v473
  %3011 = vmatpush.xpose.msra.mxu0 %v470
  %3012 = vmatpush.xpose.msra.mxu0 %v467
  %3013 = vmatpush.xpose.msra.mxu0 %v464
  %3014 = vmatpush.xpose.msra.mxu0 %v461
  %3015 = vmatpush.xpose.msra.mxu0 %v458
  %3016 = vmatpush.xpose.msra.mxu0 %v455
  %3017 = vmatpush.xpose.msra.mxu0 %v452
  %3018 = vmatpush.xpose.msra.mxu0 %v449
  %3019 = vmatpush.xpose.msra.mxu0 %v446
  %3020 = vmatpush.xpose.msra.mxu0 %v443
  %3021 = vmatpush.xpose.msra.mxu0 %v440
  %3022 = vmatmul.f32.gmra.mxu0 %v3004
  %v3023 = vpop.f32.mrf.mxu0
  %v3024 = vadd.f32 0.0, %v3023
  %3025 = vdwg.mxu0
  %v3026 = vsel %vm329, %v2978, 0
  %3028 = vmatpush.xpose.msra.mxu0 %v555
  %3029 = vmatpush.xpose.msra.mxu0 %v552
  %3030 = vmatpush.xpose.msra.mxu0 %v549
  %3031 = vmatpush.xpose.msra.mxu0 %v546
  %3032 = vmatpush.xpose.msra.mxu0 %v543
  %3033 = vmatpush.xpose.msra.mxu0 %v540
  %3034 = vmatpush.xpose.msra.mxu0 %v537
  %3035 = vmatpush.xpose.msra.mxu0 %v534
  %3036 = vmatpush.xpose.msra.mxu0 %v531
  %3037 = vmatpush.xpose.msra.mxu0 %v528
  %3038 = vmatpush.xpose.msra.mxu0 %v525
  %3039 = vmatpush.xpose.msra.mxu0 %v522
  %3040 = vmatpush.xpose.msra.mxu0 %v519
  %3041 = vmatpush.xpose.msra.mxu0 %v516
  %3042 = vmatpush.xpose.msra.mxu0 %v513
  %3043 = vmatpush.xpose.msra.mxu0 %v510
  %3044 = vmatmul.f32.gmra.mxu0 %v3026
  %v3045 = vpop.f32.mrf.mxu0
  %v3046 = vadd.f32 0.0, %v3045
  %3047 = vdwg.mxu0
  %v3048 = vsel %vm329, %v2979, 0
  %3050 = vmatpush.xpose.msra.mxu0 %v625
  %3051 = vmatpush.xpose.msra.mxu0 %v622
  %3052 = vmatpush.xpose.msra.mxu0 %v619
  %3053 = vmatpush.xpose.msra.mxu0 %v616
  %3054 = vmatpush.xpose.msra.mxu0 %v613
  %3055 = vmatpush.xpose.msra.mxu0 %v610
  %3056 = vmatpush.xpose.msra.mxu0 %v607
  %3057 = vmatpush.xpose.msra.mxu0 %v604
  %3058 = vmatpush.xpose.msra.mxu0 %v601
  %3059 = vmatpush.xpose.msra.mxu0 %v598
  %3060 = vmatpush.xpose.msra.mxu0 %v595
  %3061 = vmatpush.xpose.msra.mxu0 %v592
  %3062 = vmatpush.xpose.msra.mxu0 %v589
  %3063 = vmatpush.xpose.msra.mxu0 %v586
  %3064 = vmatpush.xpose.msra.mxu0 %v583
  %3065 = vmatpush.xpose.msra.mxu0 %v580
  %3066 = vmatmul.f32.gmra.mxu0 %v3048
  %v3067 = vpop.f32.mrf.mxu0
  %v3068 = vadd.f32 0.0, %v3067
  %3069 = vdwg.mxu0
  %v3070 = vsel %vm329, %v2980, 0
  %3072 = vmatpush.xpose.msra.mxu0 %v695
  %3073 = vmatpush.xpose.msra.mxu0 %v692
  %3074 = vmatpush.xpose.msra.mxu0 %v689
  %3075 = vmatpush.xpose.msra.mxu0 %v686
  %3076 = vmatpush.xpose.msra.mxu0 %v683
  %3077 = vmatpush.xpose.msra.mxu0 %v680
  %3078 = vmatpush.xpose.msra.mxu0 %v677
  %3079 = vmatpush.xpose.msra.mxu0 %v674
  %3080 = vmatpush.xpose.msra.mxu0 %v671
  %3081 = vmatpush.xpose.msra.mxu0 %v668
  %3082 = vmatpush.xpose.msra.mxu0 %v665
  %3083 = vmatpush.xpose.msra.mxu0 %v662
  %3084 = vmatpush.xpose.msra.mxu0 %v659
  %3085 = vmatpush.xpose.msra.mxu0 %v656
  %3086 = vmatpush.xpose.msra.mxu0 %v653
  %3087 = vmatpush.xpose.msra.mxu0 %v650
  %3088 = vmatmul.f32.gmra.mxu0 %v3070
  %v3089 = vpop.f32.mrf.mxu0
  %v3090 = vadd.f32 0.0, %v3089
  %3091 = vdwg.mxu0
  %v3092 = vsel %vm329, %v2981, 0
  %3094 = vmatpush.xpose.msra.mxu0 %v765
  %3095 = vmatpush.xpose.msra.mxu0 %v762
  %3096 = vmatpush.xpose.msra.mxu0 %v759
  %3097 = vmatpush.xpose.msra.mxu0 %v756
  %3098 = vmatpush.xpose.msra.mxu0 %v753
  %3099 = vmatpush.xpose.msra.mxu0 %v750
  %3100 = vmatpush.xpose.msra.mxu0 %v747
  %3101 = vmatpush.xpose.msra.mxu0 %v744
  %3102 = vmatpush.xpose.msra.mxu0 %v741
  %3103 = vmatpush.xpose.msra.mxu0 %v738
  %3104 = vmatpush.xpose.msra.mxu0 %v735
  %3105 = vmatpush.xpose.msra.mxu0 %v732
  %3106 = vmatpush.xpose.msra.mxu0 %v729
  %3107 = vmatpush.xpose.msra.mxu0 %v726
  %3108 = vmatpush.xpose.msra.mxu0 %v723
  %3109 = vmatpush.xpose.msra.mxu0 %v720
  %3110 = vmatmul.f32.gmra.mxu0 %v3092
  %v3111 = vpop.f32.mrf.mxu0
  %v3112 = vadd.f32 0.0, %v3111
  %3113 = vdwg.mxu0
  %v3114 = vsel %vm329, %v2982, 0
  %3116 = vmatpush.xpose.msra.mxu0 %v835
  %3117 = vmatpush.xpose.msra.mxu0 %v832
  %3118 = vmatpush.xpose.msra.mxu0 %v829
  %3119 = vmatpush.xpose.msra.mxu0 %v826
  %3120 = vmatpush.xpose.msra.mxu0 %v823
  %3121 = vmatpush.xpose.msra.mxu0 %v820
  %3122 = vmatpush.xpose.msra.mxu0 %v817
  %3123 = vmatpush.xpose.msra.mxu0 %v814
  %3124 = vmatpush.xpose.msra.mxu0 %v811
  %3125 = vmatpush.xpose.msra.mxu0 %v808
  %3126 = vmatpush.xpose.msra.mxu0 %v805
  %3127 = vmatpush.xpose.msra.mxu0 %v802
  %3128 = vmatpush.xpose.msra.mxu0 %v799
  %3129 = vmatpush.xpose.msra.mxu0 %v796
  %3130 = vmatpush.xpose.msra.mxu0 %v793
  %3131 = vmatpush.xpose.msra.mxu0 %v790
  %3132 = vmatmul.f32.gmra.mxu0 %v3114
  %v3133 = vpop.f32.mrf.mxu0
  %v3134 = vadd.f32 0.0, %v3133
  %3135 = vdwg.mxu0
  %v3136 = vsel %vm329, %v2983, 0
  %3138 = vmatpush.xpose.msra.mxu0 %v905
  %3139 = vmatpush.xpose.msra.mxu0 %v902
  %3140 = vmatpush.xpose.msra.mxu0 %v899
  %3141 = vmatpush.xpose.msra.mxu0 %v896
  %3142 = vmatpush.xpose.msra.mxu0 %v893
  %3143 = vmatpush.xpose.msra.mxu0 %v890
  %3144 = vmatpush.xpose.msra.mxu0 %v887
  %3145 = vmatpush.xpose.msra.mxu0 %v884
  %3146 = vmatpush.xpose.msra.mxu0 %v881
  %3147 = vmatpush.xpose.msra.mxu0 %v878
  %3148 = vmatpush.xpose.msra.mxu0 %v875
  %3149 = vmatpush.xpose.msra.mxu0 %v872
  %3150 = vmatpush.xpose.msra.mxu0 %v869
  %3151 = vmatpush.xpose.msra.mxu0 %v866
  %3152 = vmatpush.xpose.msra.mxu0 %v863
  %3153 = vmatpush.xpose.msra.mxu0 %v860
  %3154 = vmatmul.f32.gmra.mxu0 %v3136
  %v3155 = vpop.f32.mrf.mxu0
  %v3156 = vadd.f32 0.0, %v3155
  %3157 = vdwg.mxu0
  %v3158 = vadd.f32 %v3002, 0.0
  %v3159 = vadd.f32 %v3024, 0.0
  %v3160 = vadd.f32 %v3046, 0.0
  %v3161 = vadd.f32 %v3068, 0.0
  %v3162 = vadd.f32 %v3090, 0.0
  %v3163 = vadd.f32 %v3112, 0.0
  %v3164 = vadd.f32 %v3134, 0.0
  %v3165 = vadd.f32 %v3156, 0.0
  %v3166 = vadd.f32 %v3158, %v323
  %v3167 = vadd.f32 %v3159, %v323
  %v3168 = vadd.f32 %v3160, %v323
  %v3169 = vadd.f32 %v3161, %v323
  %v3170 = vadd.f32 %v3162, %v323
  %v3171 = vadd.f32 %v3163, %v323
  %v3172 = vadd.f32 %v3164, %v323
  %v3173 = vadd.f32 %v3165, %v323
  %v3182 = vrot.slane %v3167, 7
  %v3183 = vsel %vm952, %v3182, %v3166
  %v3184 = vrot.slane %v3168, 6
  %v3185 = vsel %vm955, %v3184, %v3183
  %v3186 = vrot.slane %v3169, 5
  %v3187 = vsel %vm958, %v3186, %v3185
  %v3188 = vrot.slane %v3170, 4
  %v3189 = vsel %vm961, %v3188, %v3187
  %v3190 = vrot.slane %v3171, 3
  %v3191 = vsel %vm964, %v3190, %v3189
  %v3192 = vrot.slane %v3172, 2
  %v3193 = vsel %vm967, %v3192, %v3191
  %v3194 = vrot.slane %v3173, 1
  %v3195 = vsel %vm970, %v3194, %v3193
  %3197 = vmax.xlane.f32.xlu0 %v3195
  %v3198 = vpop.xlane.xlu0 %3197
  %v3200 = vrot.slane %v3198, 1
  %v3201 = vrot.slane %v3198, 2
  %v3202 = vrot.slane %v3198, 3
  %v3203 = vrot.slane %v3198, 4
  %v3204 = vrot.slane %v3198, 5
  %v3205 = vrot.slane %v3198, 6
  %v3206 = vrot.slane %v3198, 7
  %v3215 = vsub.f32 %v3166, %v3198
  %v3216 = vsub.f32 %v3167, %v3200
  %v3217 = vsub.f32 %v3168, %v3201
  %v3218 = vsub.f32 %v3169, %v3202
  %v3219 = vsub.f32 %v3170, %v3203
  %v3220 = vsub.f32 %v3171, %v3204
  %v3221 = vsub.f32 %v3172, %v3205
  %v3222 = vsub.f32 %v3173, %v3206
  %v3223 = vmul.f32 %v3215, 1.442695
  %v3224 = vpow.pop %v3223
  %v3225 = vmul.f32 %v3216, 1.442695
  %v3226 = vpow.pop %v3225
  %v3227 = vmul.f32 %v3217, 1.442695
  %v3228 = vpow.pop %v3227
  %v3229 = vmul.f32 %v3218, 1.442695
  %v3230 = vpow.pop %v3229
  %v3231 = vmul.f32 %v3219, 1.442695
  %v3232 = vpow.pop %v3231
  %v3233 = vmul.f32 %v3220, 1.442695
  %v3234 = vpow.pop %v3233
  %v3235 = vmul.f32 %v3221, 1.442695
  %v3236 = vpow.pop %v3235
  %v3237 = vmul.f32 %v3222, 1.442695
  %v3238 = vpow.pop %v3237
  %v3247 = vrot.slane %v3226, 7
  %v3248 = vsel %vm952, %v3247, %v3224
  %v3249 = vrot.slane %v3228, 6
  %v3250 = vsel %vm955, %v3249, %v3248
  %v3251 = vrot.slane %v3230, 5
  %v3252 = vsel %vm958, %v3251, %v3250
  %v3253 = vrot.slane %v3232, 4
  %v3254 = vsel %vm961, %v3253, %v3252
  %v3255 = vrot.slane %v3234, 3
  %v3256 = vsel %vm964, %v3255, %v3254
  %v3257 = vrot.slane %v3236, 2
  %v3258 = vsel %vm967, %v3257, %v3256
  %v3259 = vrot.slane %v3238, 1
  %v3260 = vsel %vm970, %v3259, %v3258
  %3262 = vadd.xlane.f32.xlu0 %v3260
  %v3263 = vpop.xlane.xlu0 %3262
  %v3265 = vrot.slane %v3263, 1
  %v3266 = vrot.slane %v3263, 2
  %v3267 = vrot.slane %v3263, 3
  %v3268 = vrot.slane %v3263, 4
  %v3269 = vrot.slane %v3263, 5
  %v3270 = vrot.slane %v3263, 6
  %v3271 = vrot.slane %v3263, 7
  %v3280 = vrcp.pop %v3263
  %v3281 = vmul.f32 %v3263, %v3280
  %v3282 = vsub.f32 1.0, %v3281
  %v3283 = vmul.f32 %v3280, %v3282
  %v3284 = vadd.f32 %v3280, %v3283
  %vm3285 = vweird.f32 %v3263
  %vm3286 = vweird.f32 %v3280
  %vm3287 = vmor %vm3285, %vm3286
  %v3288 = vsel %vm3287, %v3280, %v3284
  %v3289 = vand.u32 2147483647, %v3263
  %vm3290 = vcmp.eq.f32.partialorder %v3289, 8.507059e+37
  %v3291 = vand.u32 %v3263, 2147483648
  %v3292 = vor.u32 1.1754944e-38, %v3291
  %v3293 = vsel %vm3290, %v3292, %v3288
  %v3294 = vmul.f32 %v3224, %v3293
  %v3295 = vrcp.pop %v3265
  %v3296 = vmul.f32 %v3265, %v3295
  %v3297 = vsub.f32 1.0, %v3296
  %v3298 = vmul.f32 %v3295, %v3297
  %v3299 = vadd.f32 %v3295, %v3298
  %vm3300 = vweird.f32 %v3265
  %vm3301 = vweird.f32 %v3295
  %vm3302 = vmor %vm3300, %vm3301
  %v3303 = vsel %vm3302, %v3295, %v3299
  %v3304 = vand.u32 2147483647, %v3265
  %vm3305 = vcmp.eq.f32.partialorder %v3304, 8.507059e+37
  %v3306 = vand.u32 %v3265, 2147483648
  %v3307 = vor.u32 1.1754944e-38, %v3306
  %v3308 = vsel %vm3305, %v3307, %v3303
  %v3309 = vmul.f32 %v3226, %v3308
  %v3310 = vrcp.pop %v3266
  %v3311 = vmul.f32 %v3266, %v3310
  %v3312 = vsub.f32 1.0, %v3311
  %v3313 = vmul.f32 %v3310, %v3312
  %v3314 = vadd.f32 %v3310, %v3313
  %vm3315 = vweird.f32 %v3266
  %vm3316 = vweird.f32 %v3310
  %vm3317 = vmor %vm3315, %vm3316
  %v3318 = vsel %vm3317, %v3310, %v3314
  %v3319 = vand.u32 2147483647, %v3266
  %vm3320 = vcmp.eq.f32.partialorder %v3319, 8.507059e+37
  %v3321 = vand.u32 %v3266, 2147483648
  %v3322 = vor.u32 1.1754944e-38, %v3321
  %v3323 = vsel %vm3320, %v3322, %v3318
  %v3324 = vmul.f32 %v3228, %v3323
  %v3325 = vrcp.pop %v3267
  %v3326 = vmul.f32 %v3267, %v3325
  %v3327 = vsub.f32 1.0, %v3326
  %v3328 = vmul.f32 %v3325, %v3327
  %v3329 = vadd.f32 %v3325, %v3328
  %vm3330 = vweird.f32 %v3267
  %vm3331 = vweird.f32 %v3325
  %vm3332 = vmor %vm3330, %vm3331
  %v3333 = vsel %vm3332, %v3325, %v3329
  %v3334 = vand.u32 2147483647, %v3267
  %vm3335 = vcmp.eq.f32.partialorder %v3334, 8.507059e+37
  %v3336 = vand.u32 %v3267, 2147483648
  %v3337 = vor.u32 1.1754944e-38, %v3336
  %v3338 = vsel %vm3335, %v3337, %v3333
  %v3339 = vmul.f32 %v3230, %v3338
  %v3340 = vrcp.pop %v3268
  %v3341 = vmul.f32 %v3268, %v3340
  %v3342 = vsub.f32 1.0, %v3341
  %v3343 = vmul.f32 %v3340, %v3342
  %v3344 = vadd.f32 %v3340, %v3343
  %vm3345 = vweird.f32 %v3268
  %vm3346 = vweird.f32 %v3340
  %vm3347 = vmor %vm3345, %vm3346
  %v3348 = vsel %vm3347, %v3340, %v3344
  %v3349 = vand.u32 2147483647, %v3268
  %vm3350 = vcmp.eq.f32.partialorder %v3349, 8.507059e+37
  %v3351 = vand.u32 %v3268, 2147483648
  %v3352 = vor.u32 1.1754944e-38, %v3351
  %v3353 = vsel %vm3350, %v3352, %v3348
  %v3354 = vmul.f32 %v3232, %v3353
  %v3355 = vrcp.pop %v3269
  %v3356 = vmul.f32 %v3269, %v3355
  %v3357 = vsub.f32 1.0, %v3356
  %v3358 = vmul.f32 %v3355, %v3357
  %v3359 = vadd.f32 %v3355, %v3358
  %vm3360 = vweird.f32 %v3269
  %vm3361 = vweird.f32 %v3355
  %vm3362 = vmor %vm3360, %vm3361
  %v3363 = vsel %vm3362, %v3355, %v3359
  %v3364 = vand.u32 2147483647, %v3269
  %vm3365 = vcmp.eq.f32.partialorder %v3364, 8.507059e+37
  %v3366 = vand.u32 %v3269, 2147483648
  %v3367 = vor.u32 1.1754944e-38, %v3366
  %v3368 = vsel %vm3365, %v3367, %v3363
  %v3369 = vmul.f32 %v3234, %v3368
  %v3370 = vrcp.pop %v3270
  %v3371 = vmul.f32 %v3270, %v3370
  %v3372 = vsub.f32 1.0, %v3371
  %v3373 = vmul.f32 %v3370, %v3372
  %v3374 = vadd.f32 %v3370, %v3373
  %vm3375 = vweird.f32 %v3270
  %vm3376 = vweird.f32 %v3370
  %vm3377 = vmor %vm3375, %vm3376
  %v3378 = vsel %vm3377, %v3370, %v3374
  %v3379 = vand.u32 2147483647, %v3270
  %vm3380 = vcmp.eq.f32.partialorder %v3379, 8.507059e+37
  %v3381 = vand.u32 %v3270, 2147483648
  %v3382 = vor.u32 1.1754944e-38, %v3381
  %v3383 = vsel %vm3380, %v3382, %v3378
  %v3384 = vmul.f32 %v3236, %v3383
  %v3385 = vrcp.pop %v3271
  %v3386 = vmul.f32 %v3271, %v3385
  %v3387 = vsub.f32 1.0, %v3386
  %v3388 = vmul.f32 %v3385, %v3387
  %v3389 = vadd.f32 %v3385, %v3388
  %vm3390 = vweird.f32 %v3271
  %vm3391 = vweird.f32 %v3385
  %vm3392 = vmor %vm3390, %vm3391
  %v3393 = vsel %vm3392, %v3385, %v3389
  %v3394 = vand.u32 2147483647, %v3271
  %vm3395 = vcmp.eq.f32.partialorder %v3394, 8.507059e+37
  %v3396 = vand.u32 %v3271, 2147483648
  %v3397 = vor.u32 1.1754944e-38, %v3396
  %v3398 = vsel %vm3395, %v3397, %v3393
  %v3399 = vmul.f32 %v3238, %v3398
  %3400 = vmatpush.msra.mxu0 %v181
  %3401 = vmatpush.msra.mxu0 %v180
  %3402 = vmatpush.msra.mxu0 %v179
  %3403 = vmatpush.msra.mxu0 %v178
  %3404 = vmatpush.msra.mxu0 %v177
  %3405 = vmatpush.msra.mxu0 %v176
  %3406 = vmatpush.msra.mxu0 %v175
  %3407 = vmatpush.msra.mxu0 %v174
  %3408 = vmatpush.msra.mxu0 %v173
  %3409 = vmatpush.msra.mxu0 %v172
  %3410 = vmatpush.msra.mxu0 %v171
  %3411 = vmatpush.msra.mxu0 %v170
  %3412 = vmatpush.msra.mxu0 %v169
  %3413 = vmatpush.msra.mxu0 %v168
  %3414 = vmatpush.msra.mxu0 %v167
  %3415 = vmatpush.msra.mxu0 %v166
  %3416 = vmatmul.f32.gmra.mxu0 %v3294
  %v3417 = vpop.f32.mrf.mxu0
  %v3418 = vadd.f32 0.0, %v3417
  %3419 = vdwg.mxu0
  %3420 = vmatpush.msra.mxu0 %v197
  %3421 = vmatpush.msra.mxu0 %v196
  %3422 = vmatpush.msra.mxu0 %v195
  %3423 = vmatpush.msra.mxu0 %v194
  %3424 = vmatpush.msra.mxu0 %v193
  %3425 = vmatpush.msra.mxu0 %v192
  %3426 = vmatpush.msra.mxu0 %v191
  %3427 = vmatpush.msra.mxu0 %v190
  %3428 = vmatpush.msra.mxu0 %v189
  %3429 = vmatpush.msra.mxu0 %v188
  %3430 = vmatpush.msra.mxu0 %v187
  %3431 = vmatpush.msra.mxu0 %v186
  %3432 = vmatpush.msra.mxu0 %v185
  %3433 = vmatpush.msra.mxu0 %v184
  %3434 = vmatpush.msra.mxu0 %v183
  %3435 = vmatpush.msra.mxu0 %v182
  %3436 = vmatmul.f32.gmra.mxu0 %v3309
  %v3437 = vpop.f32.mrf.mxu0
  %v3438 = vadd.f32 0.0, %v3437
  %3439 = vdwg.mxu0
  %3440 = vmatpush.msra.mxu0 %v213
  %3441 = vmatpush.msra.mxu0 %v212
  %3442 = vmatpush.msra.mxu0 %v211
  %3443 = vmatpush.msra.mxu0 %v210
  %3444 = vmatpush.msra.mxu0 %v209
  %3445 = vmatpush.msra.mxu0 %v208
  %3446 = vmatpush.msra.mxu0 %v207
  %3447 = vmatpush.msra.mxu0 %v206
  %3448 = vmatpush.msra.mxu0 %v205
  %3449 = vmatpush.msra.mxu0 %v204
  %3450 = vmatpush.msra.mxu0 %v203
  %3451 = vmatpush.msra.mxu0 %v202
  %3452 = vmatpush.msra.mxu0 %v201
  %3453 = vmatpush.msra.mxu0 %v200
  %3454 = vmatpush.msra.mxu0 %v199
  %3455 = vmatpush.msra.mxu0 %v198
  %3456 = vmatmul.f32.gmra.mxu0 %v3324
  %v3457 = vpop.f32.mrf.mxu0
  %v3458 = vadd.f32 0.0, %v3457
  %3459 = vdwg.mxu0
  %3460 = vmatpush.msra.mxu0 %v229
  %3461 = vmatpush.msra.mxu0 %v228
  %3462 = vmatpush.msra.mxu0 %v227
  %3463 = vmatpush.msra.mxu0 %v226
  %3464 = vmatpush.msra.mxu0 %v225
  %3465 = vmatpush.msra.mxu0 %v224
  %3466 = vmatpush.msra.mxu0 %v223
  %3467 = vmatpush.msra.mxu0 %v222
  %3468 = vmatpush.msra.mxu0 %v221
  %3469 = vmatpush.msra.mxu0 %v220
  %3470 = vmatpush.msra.mxu0 %v219
  %3471 = vmatpush.msra.mxu0 %v218
  %3472 = vmatpush.msra.mxu0 %v217
  %3473 = vmatpush.msra.mxu0 %v216
  %3474 = vmatpush.msra.mxu0 %v215
  %3475 = vmatpush.msra.mxu0 %v214
  %3476 = vmatmul.f32.gmra.mxu0 %v3339
  %v3477 = vpop.f32.mrf.mxu0
  %v3478 = vadd.f32 0.0, %v3477
  %3479 = vdwg.mxu0
  %3480 = vmatpush.msra.mxu0 %v245
  %3481 = vmatpush.msra.mxu0 %v244
  %3482 = vmatpush.msra.mxu0 %v243
  %3483 = vmatpush.msra.mxu0 %v242
  %3484 = vmatpush.msra.mxu0 %v241
  %3485 = vmatpush.msra.mxu0 %v240
  %3486 = vmatpush.msra.mxu0 %v239
  %3487 = vmatpush.msra.mxu0 %v238
  %3488 = vmatpush.msra.mxu0 %v237
  %3489 = vmatpush.msra.mxu0 %v236
  %3490 = vmatpush.msra.mxu0 %v235
  %3491 = vmatpush.msra.mxu0 %v234
  %3492 = vmatpush.msra.mxu0 %v233
  %3493 = vmatpush.msra.mxu0 %v232
  %3494 = vmatpush.msra.mxu0 %v231
  %3495 = vmatpush.msra.mxu0 %v230
  %3496 = vmatmul.f32.gmra.mxu0 %v3354
  %v3497 = vpop.f32.mrf.mxu0
  %v3498 = vadd.f32 0.0, %v3497
  %3499 = vdwg.mxu0
  %3500 = vmatpush.msra.mxu0 %v261
  %3501 = vmatpush.msra.mxu0 %v260
  %3502 = vmatpush.msra.mxu0 %v259
  %3503 = vmatpush.msra.mxu0 %v258
  %3504 = vmatpush.msra.mxu0 %v257
  %3505 = vmatpush.msra.mxu0 %v256
  %3506 = vmatpush.msra.mxu0 %v255
  %3507 = vmatpush.msra.mxu0 %v254
  %3508 = vmatpush.msra.mxu0 %v253
  %3509 = vmatpush.msra.mxu0 %v252
  %3510 = vmatpush.msra.mxu0 %v251
  %3511 = vmatpush.msra.mxu0 %v250
  %3512 = vmatpush.msra.mxu0 %v249
  %3513 = vmatpush.msra.mxu0 %v248
  %3514 = vmatpush.msra.mxu0 %v247
  %3515 = vmatpush.msra.mxu0 %v246
  %3516 = vmatmul.f32.gmra.mxu0 %v3369
  %v3517 = vpop.f32.mrf.mxu0
  %v3518 = vadd.f32 0.0, %v3517
  %3519 = vdwg.mxu0
  %3520 = vmatpush.msra.mxu0 %v277
  %3521 = vmatpush.msra.mxu0 %v276
  %3522 = vmatpush.msra.mxu0 %v275
  %3523 = vmatpush.msra.mxu0 %v274
  %3524 = vmatpush.msra.mxu0 %v273
  %3525 = vmatpush.msra.mxu0 %v272
  %3526 = vmatpush.msra.mxu0 %v271
  %3527 = vmatpush.msra.mxu0 %v270
  %3528 = vmatpush.msra.mxu0 %v269
  %3529 = vmatpush.msra.mxu0 %v268
  %3530 = vmatpush.msra.mxu0 %v267
  %3531 = vmatpush.msra.mxu0 %v266
  %3532 = vmatpush.msra.mxu0 %v265
  %3533 = vmatpush.msra.mxu0 %v264
  %3534 = vmatpush.msra.mxu0 %v263
  %3535 = vmatpush.msra.mxu0 %v262
  %3536 = vmatmul.f32.gmra.mxu0 %v3384
  %v3537 = vpop.f32.mrf.mxu0
  %v3538 = vadd.f32 0.0, %v3537
  %3539 = vdwg.mxu0
  %3540 = vmatpush.msra.mxu0 %v293
  %3541 = vmatpush.msra.mxu0 %v292
  %3542 = vmatpush.msra.mxu0 %v291
  %3543 = vmatpush.msra.mxu0 %v290
  %3544 = vmatpush.msra.mxu0 %v289
  %3545 = vmatpush.msra.mxu0 %v288
  %3546 = vmatpush.msra.mxu0 %v287
  %3547 = vmatpush.msra.mxu0 %v286
  %3548 = vmatpush.msra.mxu0 %v285
  %3549 = vmatpush.msra.mxu0 %v284
  %3550 = vmatpush.msra.mxu0 %v283
  %3551 = vmatpush.msra.mxu0 %v282
  %3552 = vmatpush.msra.mxu0 %v281
  %3553 = vmatpush.msra.mxu0 %v280
  %3554 = vmatpush.msra.mxu0 %v279
  %3555 = vmatpush.msra.mxu0 %v278
  %3556 = vmatmul.f32.gmra.mxu0 %v3399
  %v3557 = vpop.f32.mrf.mxu0
  %v3558 = vadd.f32 0.0, %v3557
  %3559 = vdwg.mxu0
  %v3560 = vadd.f32 %v3418, 0.0
  %v3561 = vadd.f32 %v3438, 0.0
  %v3562 = vadd.f32 %v3458, 0.0
  %v3563 = vadd.f32 %v3478, 0.0
  %v3564 = vadd.f32 %v3498, 0.0
  %v3565 = vadd.f32 %v3518, 0.0
  %v3566 = vadd.f32 %v3538, 0.0
  %v3567 = vadd.f32 %v3558, 0.0
  %v3576 = vrot.slane %v3561, 7
  %v3577 = vsel %vm952, %v3576, %v3560
  %v3578 = vrot.slane %v3562, 6
  %v3579 = vsel %vm955, %v3578, %v3577
  %v3580 = vrot.slane %v3563, 5
  %v3581 = vsel %vm958, %v3580, %v3579
  %v3582 = vrot.slane %v3564, 4
  %v3583 = vsel %vm961, %v3582, %v3581
  %v3584 = vrot.slane %v3565, 3
  %v3585 = vsel %vm964, %v3584, %v3583
  %v3586 = vrot.slane %v3566, 2
  %v3587 = vsel %vm967, %v3586, %v3585
  %v3588 = vrot.slane %v3567, 1
  %v3589 = vsel %vm970, %v3588, %v3587
  %3591 = vmatpush.msra.mxu0 %v309
  %3592 = vmatpush.msra.mxu0 %v308
  %3593 = vmatpush.msra.mxu0 %v307
  %3594 = vmatpush.msra.mxu0 %v306
  %3595 = vmatpush.msra.mxu0 %v305
  %3596 = vmatpush.msra.mxu0 %v304
  %3597 = vmatpush.msra.mxu0 %v303
  %3598 = vmatpush.msra.mxu0 %v302
  %3599 = vmatpush.msra.mxu0 %v301
  %3600 = vmatpush.msra.mxu0 %v300
  %3601 = vmatpush.msra.mxu0 %v299
  %3602 = vmatpush.msra.mxu0 %v298
  %3603 = vmatpush.msra.mxu0 %v297
  %3604 = vmatpush.msra.mxu0 %v296
  %3605 = vmatpush.msra.mxu0 %v295
  %3606 = vmatpush.msra.mxu0 %v294
  %3607 = vmatmul.f32.gmra.mxu0 %v2976
  %v3608 = vpop.f32.mrf.mxu0
  %v3609 = vadd.f32 %v3589, %v3608
  %3610 = vdwg.mxu0
  %3611 = vmatpush.msra.mxu0 0.0
  %3612 = vmatpush.msra.mxu0 0.0
  %3613 = vmatpush.msra.mxu0 0.0
  %3614 = vmatpush.msra.mxu0 0.0
  %3615 = vmatpush.msra.mxu0 0.0
  %3616 = vmatpush.msra.mxu0 0.0
  %3617 = vmatpush.msra.mxu0 0.0
  %3618 = vmatpush.msra.mxu0 0.0
  %3619 = vmatpush.msra.mxu0 0.0
  %3620 = vmatpush.msra.mxu0 0.0
  %3621 = vmatpush.msra.mxu0 0.0
  %3622 = vmatpush.msra.mxu0 0.0
  %3623 = vmatpush.msra.mxu0 %v313
  %3624 = vmatpush.msra.mxu0 %v312
  %3625 = vmatpush.msra.mxu0 %v311
  %3626 = vmatpush.msra.mxu0 %v310
  %3627 = vmatmul.f32.gmra.mxu0 %v2895
  %v3628 = vpop.f32.mrf.mxu0
  %v3629 = vadd.f32 0.0, %v3628
  %3630 = vdwg.mxu0
  %v3631 = vadd.f32 %v3609, %v3629
  %v3632 = vadd.f32 %v3631, %v1409
  %v3633 = vtanh.pop %v3632
  %v3635 = vsel %vm329, %v3633, 0
  %3637 = vmatpush.msra.mxu0 0.0
  %3638 = vmatpush.msra.mxu0 0.0
  %3639 = vmatpush.msra.mxu0 0.0
  %3640 = vmatpush.msra.mxu0 0.0
  %3641 = vmatpush.msra.mxu0 0.0
  %3642 = vmatpush.msra.mxu0 0.0
  %3643 = vmatpush.msra.mxu0 0.0
  %3644 = vmatpush.msra.mxu0 0.0
  %3645 = vmatpush.msra.mxu0 0.0
  %3646 = vmatpush.msra.mxu0 0.0
  %3647 = vmatpush.msra.mxu0 0.0
  %3648 = vmatpush.msra.mxu0 0.0
  %3649 = vmatpush.msra.mxu0 %v318
  %3650 = vmatpush.msra.mxu0 %v317
  %3651 = vmatpush.msra.mxu0 %v316
  %3652 = vmatpush.msra.mxu0 %v315
  %3653 = vmatmul.f32.gmra.mxu0 %v3635
  %v3654 = vpop.f32.mrf.mxu0
  %v3655 = vadd.f32 %v1414, %v3654
  %3656 = vdwg.mxu0
  %3657 = vmax.xlane.f32.xlu0 %v3655
  %v3658 = vpop.xlane.xlu0 %3657
  %vm3659 = vcmp.eq.f32.partialorder %v3655, %v3658
  %v3660 = vsel %vm3659, %v321, 128
  %v3661 = vand.u32 %v3660, 65535
  %v3662 = vshra.s32 %v3660, 16
  %v3663 = vcvt.s32.f32 %v3661
  %v3664 = vcvt.s32.f32 %v3662
  %3665 = vmin.xlane.f32.xlu0 %v3664
  %v3666 = vpop.xlane.xlu0 %3665
  %vm3667 = vcmp.eq.f32.partialorder %v3664, %v3666
  %v3668 = vsel %vm3667, %v3663, inf
  %3669 = vmin.xlane.f32.xlu0 %v3668
  %v3670 = vpop.xlane.xlu0 %3669
  %v3671 = vcvt.f32.s32 %v3670
  %v3672 = vcvt.f32.s32 %v3666
  %v3673 = vshll.u32 %v3672, 16
  %v3674 = vadd.s32 %v3673, %v3671
  %v3675 = vsel %vm2973, 1, 0
  %3676 = vset.pattern.permute.xlu0 0
  %3677 = vperm.xlu0 %3676, %v3675
  %v3678 = vpop.permute.xlu0 %3677
  %vm3679 = vcmp.eq.s32.totalorder %v3678, 1
  %v3680 = vsel %vm3679, %v3655, 0.0
  %s3681 = scalar_lea.vmem %s10, 24
  %3682 = vst [vmem:[%s3681] sm:$0xff] %v3680
  %v3691 = vrot.slane %v3309, 7
  %v3692 = vsel %vm952, %v3691, %v3294
  %v3693 = vrot.slane %v3324, 6
  %v3694 = vsel %vm955, %v3693, %v3692
  %v3695 = vrot.slane %v3339, 5
  %v3696 = vsel %vm958, %v3695, %v3694
  %v3697 = vrot.slane %v3354, 4
  %v3698 = vsel %vm961, %v3697, %v3696
  %v3699 = vrot.slane %v3369, 3
  %v3700 = vsel %vm964, %v3699, %v3698
  %v3701 = vrot.slane %v3384, 2
  %v3702 = vsel %vm967, %v3701, %v3700
  %v3703 = vrot.slane %v3399, 1
  %v3704 = vsel %vm970, %v3703, %v3702
  %v3706 = vsel %vm3679, %v3704, 0.0
  %s3707 = scalar_lea.vmem %s11, 24
  %3708 = vst [vmem:[%s3707] sm:$0xff] %v3706
  %vm3709 = vcmp.eq.s32.totalorder %v3674, 2
  %vm3710 = vcmp.lt.s32.totalorder %v2972, 4
  %v3711 = vsel %vm3710, %v2972, 4
  %v3712 = vsel %vm3709, %v3711, %v2972
  %vm3713 = vcmp.gt.s32.totalorder %v3712, 4
  %vm3714 = vcmp.eq.s32.totalorder %v321, %v3674
  %v3715 = vsel %vm3714, 1, 0
  %v3716 = vcvt.s32.f32 %v3715
  %v3717 = vrot.slane %v3633, 1
  %v3718 = vrot.slane %v3633, 2
  %v3719 = vrot.slane %v3633, 3
  %v3720 = vrot.slane %v3633, 4
  %v3721 = vrot.slane %v3633, 5
  %v3722 = vrot.slane %v3633, 6
  %v3723 = vrot.slane %v3633, 7
  %3724 = vmatpush.xpose.msra.mxu0 %v415
  %3725 = vmatpush.xpose.msra.mxu0 %v412
  %3726 = vmatpush.xpose.msra.mxu0 %v409
  %3727 = vmatpush.xpose.msra.mxu0 %v406
  %3728 = vmatpush.xpose.msra.mxu0 %v403
  %3729 = vmatpush.xpose.msra.mxu0 %v400
  %3730 = vmatpush.xpose.msra.mxu0 %v397
  %3731 = vmatpush.xpose.msra.mxu0 %v394
  %3732 = vmatpush.xpose.msra.mxu0 %v391
  %3733 = vmatpush.xpose.msra.mxu0 %v388
  %3734 = vmatpush.xpose.msra.mxu0 %v385
  %3735 = vmatpush.xpose.msra.mxu0 %v382
  %3736 = vmatpush.xpose.msra.mxu0 %v379
  %3737 = vmatpush.xpose.msra.mxu0 %v376
  %3738 = vmatpush.xpose.msra.mxu0 %v373
  %3739 = vmatpush.xpose.msra.mxu0 %v370
  %3740 = vmatmul.f32.gmra.mxu0 %v3635
  %v3741 = vpop.f32.mrf.mxu0
  %v3742 = vadd.f32 0.0, %v3741
  %3743 = vdwg.mxu0
  %v3744 = vsel %vm329, %v3717, 0
  %3746 = vmatpush.xpose.msra.mxu0 %v485
  %3747 = vmatpush.xpose.msra.mxu0 %v482
  %3748 = vmatpush.xpose.msra.mxu0 %v479
  %3749 = vmatpush.xpose.msra.mxu0 %v476
  %3750 = vmatpush.xpose.msra.mxu0 %v473
  %3751 = vmatpush.xpose.msra.mxu0 %v470
  %3752 = vmatpush.xpose.msra.mxu0 %v467
  %3753 = vmatpush.xpose.msra.mxu0 %v464
  %3754 = vmatpush.xpose.msra.mxu0 %v461
  %3755 = vmatpush.xpose.msra.mxu0 %v458
  %3756 = vmatpush.xpose.msra.mxu0 %v455
  %3757 = vmatpush.xpose.msra.mxu0 %v452
  %3758 = vmatpush.xpose.msra.mxu0 %v449
  %3759 = vmatpush.xpose.msra.mxu0 %v446
  %3760 = vmatpush.xpose.msra.mxu0 %v443
  %3761 = vmatpush.xpose.msra.mxu0 %v440
  %3762 = vmatmul.f32.gmra.mxu0 %v3744
  %v3763 = vpop.f32.mrf.mxu0
  %v3764 = vadd.f32 0.0, %v3763
  %3765 = vdwg.mxu0
  %v3766 = vsel %vm329, %v3718, 0
  %3768 = vmatpush.xpose.msra.mxu0 %v555
  %3769 = vmatpush.xpose.msra.mxu0 %v552
  %3770 = vmatpush.xpose.msra.mxu0 %v549
  %3771 = vmatpush.xpose.msra.mxu0 %v546
  %3772 = vmatpush.xpose.msra.mxu0 %v543
  %3773 = vmatpush.xpose.msra.mxu0 %v540
  %3774 = vmatpush.xpose.msra.mxu0 %v537
  %3775 = vmatpush.xpose.msra.mxu0 %v534
  %3776 = vmatpush.xpose.msra.mxu0 %v531
  %3777 = vmatpush.xpose.msra.mxu0 %v528
  %3778 = vmatpush.xpose.msra.mxu0 %v525
  %3779 = vmatpush.xpose.msra.mxu0 %v522
  %3780 = vmatpush.xpose.msra.mxu0 %v519
  %3781 = vmatpush.xpose.msra.mxu0 %v516
  %3782 = vmatpush.xpose.msra.mxu0 %v513
  %3783 = vmatpush.xpose.msra.mxu0 %v510
  %3784 = vmatmul.f32.gmra.mxu0 %v3766
  %v3785 = vpop.f32.mrf.mxu0
  %v3786 = vadd.f32 0.0, %v3785
  %3787 = vdwg.mxu0
  %v3788 = vsel %vm329, %v3719, 0
  %3790 = vmatpush.xpose.msra.mxu0 %v625
  %3791 = vmatpush.xpose.msra.mxu0 %v622
  %3792 = vmatpush.xpose.msra.mxu0 %v619
  %3793 = vmatpush.xpose.msra.mxu0 %v616
  %3794 = vmatpush.xpose.msra.mxu0 %v613
  %3795 = vmatpush.xpose.msra.mxu0 %v610
  %3796 = vmatpush.xpose.msra.mxu0 %v607
  %3797 = vmatpush.xpose.msra.mxu0 %v604
  %3798 = vmatpush.xpose.msra.mxu0 %v601
  %3799 = vmatpush.xpose.msra.mxu0 %v598
  %3800 = vmatpush.xpose.msra.mxu0 %v595
  %3801 = vmatpush.xpose.msra.mxu0 %v592
  %3802 = vmatpush.xpose.msra.mxu0 %v589
  %3803 = vmatpush.xpose.msra.mxu0 %v586
  %3804 = vmatpush.xpose.msra.mxu0 %v583
  %3805 = vmatpush.xpose.msra.mxu0 %v580
  %3806 = vmatmul.f32.gmra.mxu0 %v3788
  %v3807 = vpop.f32.mrf.mxu0
  %v3808 = vadd.f32 0.0, %v3807
  %3809 = vdwg.mxu0
  %v3810 = vsel %vm329, %v3720, 0
  %3812 = vmatpush.xpose.msra.mxu0 %v695
  %3813 = vmatpush.xpose.msra.mxu0 %v692
  %3814 = vmatpush.xpose.msra.mxu0 %v689
  %3815 = vmatpush.xpose.msra.mxu0 %v686
  %3816 = vmatpush.xpose.msra.mxu0 %v683
  %3817 = vmatpush.xpose.msra.mxu0 %v680
  %3818 = vmatpush.xpose.msra.mxu0 %v677
  %3819 = vmatpush.xpose.msra.mxu0 %v674
  %3820 = vmatpush.xpose.msra.mxu0 %v671
  %3821 = vmatpush.xpose.msra.mxu0 %v668
  %3822 = vmatpush.xpose.msra.mxu0 %v665
  %3823 = vmatpush.xpose.msra.mxu0 %v662
  %3824 = vmatpush.xpose.msra.mxu0 %v659
  %3825 = vmatpush.xpose.msra.mxu0 %v656
  %3826 = vmatpush.xpose.msra.mxu0 %v653
  %3827 = vmatpush.xpose.msra.mxu0 %v650
  %3828 = vmatmul.f32.gmra.mxu0 %v3810
  %v3829 = vpop.f32.mrf.mxu0
  %v3830 = vadd.f32 0.0, %v3829
  %3831 = vdwg.mxu0
  %v3832 = vsel %vm329, %v3721, 0
  %3834 = vmatpush.xpose.msra.mxu0 %v765
  %3835 = vmatpush.xpose.msra.mxu0 %v762
  %3836 = vmatpush.xpose.msra.mxu0 %v759
  %3837 = vmatpush.xpose.msra.mxu0 %v756
  %3838 = vmatpush.xpose.msra.mxu0 %v753
  %3839 = vmatpush.xpose.msra.mxu0 %v750
  %3840 = vmatpush.xpose.msra.mxu0 %v747
  %3841 = vmatpush.xpose.msra.mxu0 %v744
  %3842 = vmatpush.xpose.msra.mxu0 %v741
  %3843 = vmatpush.xpose.msra.mxu0 %v738
  %3844 = vmatpush.xpose.msra.mxu0 %v735
  %3845 = vmatpush.xpose.msra.mxu0 %v732
  %3846 = vmatpush.xpose.msra.mxu0 %v729
  %3847 = vmatpush.xpose.msra.mxu0 %v726
  %3848 = vmatpush.xpose.msra.mxu0 %v723
  %3849 = vmatpush.xpose.msra.mxu0 %v720
  %3850 = vmatmul.f32.gmra.mxu0 %v3832
  %v3851 = vpop.f32.mrf.mxu0
  %v3852 = vadd.f32 0.0, %v3851
  %3853 = vdwg.mxu0
  %v3854 = vsel %vm329, %v3722, 0
  %3856 = vmatpush.xpose.msra.mxu0 %v835
  %3857 = vmatpush.xpose.msra.mxu0 %v832
  %3858 = vmatpush.xpose.msra.mxu0 %v829
  %3859 = vmatpush.xpose.msra.mxu0 %v826
  %3860 = vmatpush.xpose.msra.mxu0 %v823
  %3861 = vmatpush.xpose.msra.mxu0 %v820
  %3862 = vmatpush.xpose.msra.mxu0 %v817
  %3863 = vmatpush.xpose.msra.mxu0 %v814
  %3864 = vmatpush.xpose.msra.mxu0 %v811
  %3865 = vmatpush.xpose.msra.mxu0 %v808
  %3866 = vmatpush.xpose.msra.mxu0 %v805
  %3867 = vmatpush.xpose.msra.mxu0 %v802
  %3868 = vmatpush.xpose.msra.mxu0 %v799
  %3869 = vmatpush.xpose.msra.mxu0 %v796
  %3870 = vmatpush.xpose.msra.mxu0 %v793
  %3871 = vmatpush.xpose.msra.mxu0 %v790
  %3872 = vmatmul.f32.gmra.mxu0 %v3854
  %v3873 = vpop.f32.mrf.mxu0
  %v3874 = vadd.f32 0.0, %v3873
  %3875 = vdwg.mxu0
  %v3876 = vsel %vm329, %v3723, 0
  %3878 = vmatpush.xpose.msra.mxu0 %v905
  %3879 = vmatpush.xpose.msra.mxu0 %v902
  %3880 = vmatpush.xpose.msra.mxu0 %v899
  %3881 = vmatpush.xpose.msra.mxu0 %v896
  %3882 = vmatpush.xpose.msra.mxu0 %v893
  %3883 = vmatpush.xpose.msra.mxu0 %v890
  %3884 = vmatpush.xpose.msra.mxu0 %v887
  %3885 = vmatpush.xpose.msra.mxu0 %v884
  %3886 = vmatpush.xpose.msra.mxu0 %v881
  %3887 = vmatpush.xpose.msra.mxu0 %v878
  %3888 = vmatpush.xpose.msra.mxu0 %v875
  %3889 = vmatpush.xpose.msra.mxu0 %v872
  %3890 = vmatpush.xpose.msra.mxu0 %v869
  %3891 = vmatpush.xpose.msra.mxu0 %v866
  %3892 = vmatpush.xpose.msra.mxu0 %v863
  %3893 = vmatpush.xpose.msra.mxu0 %v860
  %3894 = vmatmul.f32.gmra.mxu0 %v3876
  %v3895 = vpop.f32.mrf.mxu0
  %v3896 = vadd.f32 0.0, %v3895
  %3897 = vdwg.mxu0
  %v3898 = vadd.f32 %v3742, 0.0
  %v3899 = vadd.f32 %v3764, 0.0
  %v3900 = vadd.f32 %v3786, 0.0
  %v3901 = vadd.f32 %v3808, 0.0
  %v3902 = vadd.f32 %v3830, 0.0
  %v3903 = vadd.f32 %v3852, 0.0
  %v3904 = vadd.f32 %v3874, 0.0
  %v3905 = vadd.f32 %v3896, 0.0
  %v3906 = vadd.f32 %v3898, %v323
  %v3907 = vadd.f32 %v3899, %v323
  %v3908 = vadd.f32 %v3900, %v323
  %v3909 = vadd.f32 %v3901, %v323
  %v3910 = vadd.f32 %v3902, %v323
  %v3911 = vadd.f32 %v3903, %v323
  %v3912 = vadd.f32 %v3904, %v323
  %v3913 = vadd.f32 %v3905, %v323
  %v3922 = vrot.slane %v3907, 7
  %v3923 = vsel %vm952, %v3922, %v3906
  %v3924 = vrot.slane %v3908, 6
  %v3925 = vsel %vm955, %v3924, %v3923
  %v3926 = vrot.slane %v3909, 5
  %v3927 = vsel %vm958, %v3926, %v3925
  %v3928 = vrot.slane %v3910, 4
  %v3929 = vsel %vm961, %v3928, %v3927
  %v3930 = vrot.slane %v3911, 3
  %v3931 = vsel %vm964, %v3930, %v3929
  %v3932 = vrot.slane %v3912, 2
  %v3933 = vsel %vm967, %v3932, %v3931
  %v3934 = vrot.slane %v3913, 1
  %v3935 = vsel %vm970, %v3934, %v3933
  %3937 = vmax.xlane.f32.xlu0 %v3935
  %v3938 = vpop.xlane.xlu0 %3937
  %v3940 = vrot.slane %v3938, 1
  %v3941 = vrot.slane %v3938, 2
  %v3942 = vrot.slane %v3938, 3
  %v3943 = vrot.slane %v3938, 4
  %v3944 = vrot.slane %v3938, 5
  %v3945 = vrot.slane %v3938, 6
  %v3946 = vrot.slane %v3938, 7
  %v3955 = vsub.f32 %v3906, %v3938
  %v3956 = vsub.f32 %v3907, %v3940
  %v3957 = vsub.f32 %v3908, %v3941
  %v3958 = vsub.f32 %v3909, %v3942
  %v3959 = vsub.f32 %v3910, %v3943
  %v3960 = vsub.f32 %v3911, %v3944
  %v3961 = vsub.f32 %v3912, %v3945
  %v3962 = vsub.f32 %v3913, %v3946
  %v3963 = vmul.f32 %v3955, 1.442695
  %v3964 = vpow.pop %v3963
  %v3965 = vmul.f32 %v3956, 1.442695
  %v3966 = vpow.pop %v3965
  %v3967 = vmul.f32 %v3957, 1.442695
  %v3968 = vpow.pop %v3967
  %v3969 = vmul.f32 %v3958, 1.442695
  %v3970 = vpow.pop %v3969
  %v3971 = vmul.f32 %v3959, 1.442695
  %v3972 = vpow.pop %v3971
  %v3973 = vmul.f32 %v3960, 1.442695
  %v3974 = vpow.pop %v3973
  %v3975 = vmul.f32 %v3961, 1.442695
  %v3976 = vpow.pop %v3975
  %v3977 = vmul.f32 %v3962, 1.442695
  %v3978 = vpow.pop %v3977
  %v3987 = vrot.slane %v3966, 7
  %v3988 = vsel %vm952, %v3987, %v3964
  %v3989 = vrot.slane %v3968, 6
  %v3990 = vsel %vm955, %v3989, %v3988
  %v3991 = vrot.slane %v3970, 5
  %v3992 = vsel %vm958, %v3991, %v3990
  %v3993 = vrot.slane %v3972, 4
  %v3994 = vsel %vm961, %v3993, %v3992
  %v3995 = vrot.slane %v3974, 3
  %v3996 = vsel %vm964, %v3995, %v3994
  %v3997 = vrot.slane %v3976, 2
  %v3998 = vsel %vm967, %v3997, %v3996
  %v3999 = vrot.slane %v3978, 1
  %v4000 = vsel %vm970, %v3999, %v3998
  %4002 = vadd.xlane.f32.xlu0 %v4000
  %v4003 = vpop.xlane.xlu0 %4002
  %v4005 = vrot.slane %v4003, 1
  %v4006 = vrot.slane %v4003, 2
  %v4007 = vrot.slane %v4003, 3
  %v4008 = vrot.slane %v4003, 4
  %v4009 = vrot.slane %v4003, 5
  %v4010 = vrot.slane %v4003, 6
  %v4011 = vrot.slane %v4003, 7
  %v4020 = vrcp.pop %v4003
  %v4021 = vmul.f32 %v4003, %v4020
  %v4022 = vsub.f32 1.0, %v4021
  %v4023 = vmul.f32 %v4020, %v4022
  %v4024 = vadd.f32 %v4020, %v4023
  %vm4025 = vweird.f32 %v4003
  %vm4026 = vweird.f32 %v4020
  %vm4027 = vmor %vm4025, %vm4026
  %v4028 = vsel %vm4027, %v4020, %v4024
  %v4029 = vand.u32 2147483647, %v4003
  %vm4030 = vcmp.eq.f32.partialorder %v4029, 8.507059e+37
  %v4031 = vand.u32 %v4003, 2147483648
  %v4032 = vor.u32 1.1754944e-38, %v4031
  %v4033 = vsel %vm4030, %v4032, %v4028
  %v4034 = vmul.f32 %v3964, %v4033
  %v4035 = vrcp.pop %v4005
  %v4036 = vmul.f32 %v4005, %v4035
  %v4037 = vsub.f32 1.0, %v4036
  %v4038 = vmul.f32 %v4035, %v4037
  %v4039 = vadd.f32 %v4035, %v4038
  %vm4040 = vweird.f32 %v4005
  %vm4041 = vweird.f32 %v4035
  %vm4042 = vmor %vm4040, %vm4041
  %v4043 = vsel %vm4042, %v4035, %v4039
  %v4044 = vand.u32 2147483647, %v4005
  %vm4045 = vcmp.eq.f32.partialorder %v4044, 8.507059e+37
  %v4046 = vand.u32 %v4005, 2147483648
  %v4047 = vor.u32 1.1754944e-38, %v4046
  %v4048 = vsel %vm4045, %v4047, %v4043
  %v4049 = vmul.f32 %v3966, %v4048
  %v4050 = vrcp.pop %v4006
  %v4051 = vmul.f32 %v4006, %v4050
  %v4052 = vsub.f32 1.0, %v4051
  %v4053 = vmul.f32 %v4050, %v4052
  %v4054 = vadd.f32 %v4050, %v4053
  %vm4055 = vweird.f32 %v4006
  %vm4056 = vweird.f32 %v4050
  %vm4057 = vmor %vm4055, %vm4056
  %v4058 = vsel %vm4057, %v4050, %v4054
  %v4059 = vand.u32 2147483647, %v4006
  %vm4060 = vcmp.eq.f32.partialorder %v4059, 8.507059e+37
  %v4061 = vand.u32 %v4006, 2147483648
  %v4062 = vor.u32 1.1754944e-38, %v4061
  %v4063 = vsel %vm4060, %v4062, %v4058
  %v4064 = vmul.f32 %v3968, %v4063
  %v4065 = vrcp.pop %v4007
  %v4066 = vmul.f32 %v4007, %v4065
  %v4067 = vsub.f32 1.0, %v4066
  %v4068 = vmul.f32 %v4065, %v4067
  %v4069 = vadd.f32 %v4065, %v4068
  %vm4070 = vweird.f32 %v4007
  %vm4071 = vweird.f32 %v4065
  %vm4072 = vmor %vm4070, %vm4071
  %v4073 = vsel %vm4072, %v4065, %v4069
  %v4074 = vand.u32 2147483647, %v4007
  %vm4075 = vcmp.eq.f32.partialorder %v4074, 8.507059e+37
  %v4076 = vand.u32 %v4007, 2147483648
  %v4077 = vor.u32 1.1754944e-38, %v4076
  %v4078 = vsel %vm4075, %v4077, %v4073
  %v4079 = vmul.f32 %v3970, %v4078
  %v4080 = vrcp.pop %v4008
  %v4081 = vmul.f32 %v4008, %v4080
  %v4082 = vsub.f32 1.0, %v4081
  %v4083 = vmul.f32 %v4080, %v4082
  %v4084 = vadd.f32 %v4080, %v4083
  %vm4085 = vweird.f32 %v4008
  %vm4086 = vweird.f32 %v4080
  %vm4087 = vmor %vm4085, %vm4086
  %v4088 = vsel %vm4087, %v4080, %v4084
  %v4089 = vand.u32 2147483647, %v4008
  %vm4090 = vcmp.eq.f32.partialorder %v4089, 8.507059e+37
  %v4091 = vand.u32 %v4008, 2147483648
  %v4092 = vor.u32 1.1754944e-38, %v4091
  %v4093 = vsel %vm4090, %v4092, %v4088
  %v4094 = vmul.f32 %v3972, %v4093
  %v4095 = vrcp.pop %v4009
  %v4096 = vmul.f32 %v4009, %v4095
  %v4097 = vsub.f32 1.0, %v4096
  %v4098 = vmul.f32 %v4095, %v4097
  %v4099 = vadd.f32 %v4095, %v4098
  %vm4100 = vweird.f32 %v4009
  %vm4101 = vweird.f32 %v4095
  %vm4102 = vmor %vm4100, %vm4101
  %v4103 = vsel %vm4102, %v4095, %v4099
  %v4104 = vand.u32 2147483647, %v4009
  %vm4105 = vcmp.eq.f32.partialorder %v4104, 8.507059e+37
  %v4106 = vand.u32 %v4009, 2147483648
  %v4107 = vor.u32 1.1754944e-38, %v4106
  %v4108 = vsel %vm4105, %v4107, %v4103
  %v4109 = vmul.f32 %v3974, %v4108
  %v4110 = vrcp.pop %v4010
  %v4111 = vmul.f32 %v4010, %v4110
  %v4112 = vsub.f32 1.0, %v4111
  %v4113 = vmul.f32 %v4110, %v4112
  %v4114 = vadd.f32 %v4110, %v4113
  %vm4115 = vweird.f32 %v4010
  %vm4116 = vweird.f32 %v4110
  %vm4117 = vmor %vm4115, %vm4116
  %v4118 = vsel %vm4117, %v4110, %v4114
  %v4119 = vand.u32 2147483647, %v4010
  %vm4120 = vcmp.eq.f32.partialorder %v4119, 8.507059e+37
  %v4121 = vand.u32 %v4010, 2147483648
  %v4122 = vor.u32 1.1754944e-38, %v4121
  %v4123 = vsel %vm4120, %v4122, %v4118
  %v4124 = vmul.f32 %v3976, %v4123
  %v4125 = vrcp.pop %v4011
  %v4126 = vmul.f32 %v4011, %v4125
  %v4127 = vsub.f32 1.0, %v4126
  %v4128 = vmul.f32 %v4125, %v4127
  %v4129 = vadd.f32 %v4125, %v4128
  %vm4130 = vweird.f32 %v4011
  %vm4131 = vweird.f32 %v4125
  %vm4132 = vmor %vm4130, %vm4131
  %v4133 = vsel %vm4132, %v4125, %v4129
  %v4134 = vand.u32 2147483647, %v4011
  %vm4135 = vcmp.eq.f32.partialorder %v4134, 8.507059e+37
  %v4136 = vand.u32 %v4011, 2147483648
  %v4137 = vor.u32 1.1754944e-38, %v4136
  %v4138 = vsel %vm4135, %v4137, %v4133
  %v4139 = vmul.f32 %v3978, %v4138
  %4140 = vmatpush.msra.mxu0 %v181
  %4141 = vmatpush.msra.mxu0 %v180
  %4142 = vmatpush.msra.mxu0 %v179
  %4143 = vmatpush.msra.mxu0 %v178
  %4144 = vmatpush.msra.mxu0 %v177
  %4145 = vmatpush.msra.mxu0 %v176
  %4146 = vmatpush.msra.mxu0 %v175
  %4147 = vmatpush.msra.mxu0 %v174
  %4148 = vmatpush.msra.mxu0 %v173
  %4149 = vmatpush.msra.mxu0 %v172
  %4150 = vmatpush.msra.mxu0 %v171
  %4151 = vmatpush.msra.mxu0 %v170
  %4152 = vmatpush.msra.mxu0 %v169
  %4153 = vmatpush.msra.mxu0 %v168
  %4154 = vmatpush.msra.mxu0 %v167
  %4155 = vmatpush.msra.mxu0 %v166
  %4156 = vmatmul.f32.gmra.mxu0 %v4034
  %v4157 = vpop.f32.mrf.mxu0
  %v4158 = vadd.f32 0.0, %v4157
  %4159 = vdwg.mxu0
  %4160 = vmatpush.msra.mxu0 %v197
  %4161 = vmatpush.msra.mxu0 %v196
  %4162 = vmatpush.msra.mxu0 %v195
  %4163 = vmatpush.msra.mxu0 %v194
  %4164 = vmatpush.msra.mxu0 %v193
  %4165 = vmatpush.msra.mxu0 %v192
  %4166 = vmatpush.msra.mxu0 %v191
  %4167 = vmatpush.msra.mxu0 %v190
  %4168 = vmatpush.msra.mxu0 %v189
  %4169 = vmatpush.msra.mxu0 %v188
  %4170 = vmatpush.msra.mxu0 %v187
  %4171 = vmatpush.msra.mxu0 %v186
  %4172 = vmatpush.msra.mxu0 %v185
  %4173 = vmatpush.msra.mxu0 %v184
  %4174 = vmatpush.msra.mxu0 %v183
  %4175 = vmatpush.msra.mxu0 %v182
  %4176 = vmatmul.f32.gmra.mxu0 %v4049
  %v4177 = vpop.f32.mrf.mxu0
  %v4178 = vadd.f32 0.0, %v4177
  %4179 = vdwg.mxu0
  %4180 = vmatpush.msra.mxu0 %v213
  %4181 = vmatpush.msra.mxu0 %v212
  %4182 = vmatpush.msra.mxu0 %v211
  %4183 = vmatpush.msra.mxu0 %v210
  %4184 = vmatpush.msra.mxu0 %v209
  %4185 = vmatpush.msra.mxu0 %v208
  %4186 = vmatpush.msra.mxu0 %v207
  %4187 = vmatpush.msra.mxu0 %v206
  %4188 = vmatpush.msra.mxu0 %v205
  %4189 = vmatpush.msra.mxu0 %v204
  %4190 = vmatpush.msra.mxu0 %v203
  %4191 = vmatpush.msra.mxu0 %v202
  %4192 = vmatpush.msra.mxu0 %v201
  %4193 = vmatpush.msra.mxu0 %v200
  %4194 = vmatpush.msra.mxu0 %v199
  %4195 = vmatpush.msra.mxu0 %v198
  %4196 = vmatmul.f32.gmra.mxu0 %v4064
  %v4197 = vpop.f32.mrf.mxu0
  %v4198 = vadd.f32 0.0, %v4197
  %4199 = vdwg.mxu0
  %4200 = vmatpush.msra.mxu0 %v229
  %4201 = vmatpush.msra.mxu0 %v228
  %4202 = vmatpush.msra.mxu0 %v227
  %4203 = vmatpush.msra.mxu0 %v226
  %4204 = vmatpush.msra.mxu0 %v225
  %4205 = vmatpush.msra.mxu0 %v224
  %4206 = vmatpush.msra.mxu0 %v223
  %4207 = vmatpush.msra.mxu0 %v222
  %4208 = vmatpush.msra.mxu0 %v221
  %4209 = vmatpush.msra.mxu0 %v220
  %4210 = vmatpush.msra.mxu0 %v219
  %4211 = vmatpush.msra.mxu0 %v218
  %4212 = vmatpush.msra.mxu0 %v217
  %4213 = vmatpush.msra.mxu0 %v216
  %4214 = vmatpush.msra.mxu0 %v215
  %4215 = vmatpush.msra.mxu0 %v214
  %4216 = vmatmul.f32.gmra.mxu0 %v4079
  %v4217 = vpop.f32.mrf.mxu0
  %v4218 = vadd.f32 0.0, %v4217
  %4219 = vdwg.mxu0
  %4220 = vmatpush.msra.mxu0 %v245
  %4221 = vmatpush.msra.mxu0 %v244
  %4222 = vmatpush.msra.mxu0 %v243
  %4223 = vmatpush.msra.mxu0 %v242
  %4224 = vmatpush.msra.mxu0 %v241
  %4225 = vmatpush.msra.mxu0 %v240
  %4226 = vmatpush.msra.mxu0 %v239
  %4227 = vmatpush.msra.mxu0 %v238
  %4228 = vmatpush.msra.mxu0 %v237
  %4229 = vmatpush.msra.mxu0 %v236
  %4230 = vmatpush.msra.mxu0 %v235
  %4231 = vmatpush.msra.mxu0 %v234
  %4232 = vmatpush.msra.mxu0 %v233
  %4233 = vmatpush.msra.mxu0 %v232
  %4234 = vmatpush.msra.mxu0 %v231
  %4235 = vmatpush.msra.mxu0 %v230
  %4236 = vmatmul.f32.gmra.mxu0 %v4094
  %v4237 = vpop.f32.mrf.mxu0
  %v4238 = vadd.f32 0.0, %v4237
  %4239 = vdwg.mxu0
  %4240 = vmatpush.msra.mxu0 %v261
  %4241 = vmatpush.msra.mxu0 %v260
  %4242 = vmatpush.msra.mxu0 %v259
  %4243 = vmatpush.msra.mxu0 %v258
  %4244 = vmatpush.msra.mxu0 %v257
  %4245 = vmatpush.msra.mxu0 %v256
  %4246 = vmatpush.msra.mxu0 %v255
  %4247 = vmatpush.msra.mxu0 %v254
  %4248 = vmatpush.msra.mxu0 %v253
  %4249 = vmatpush.msra.mxu0 %v252
  %4250 = vmatpush.msra.mxu0 %v251
  %4251 = vmatpush.msra.mxu0 %v250
  %4252 = vmatpush.msra.mxu0 %v249
  %4253 = vmatpush.msra.mxu0 %v248
  %4254 = vmatpush.msra.mxu0 %v247
  %4255 = vmatpush.msra.mxu0 %v246
  %4256 = vmatmul.f32.gmra.mxu0 %v4109
  %v4257 = vpop.f32.mrf.mxu0
  %v4258 = vadd.f32 0.0, %v4257
  %4259 = vdwg.mxu0
  %4260 = vmatpush.msra.mxu0 %v277
  %4261 = vmatpush.msra.mxu0 %v276
  %4262 = vmatpush.msra.mxu0 %v275
  %4263 = vmatpush.msra.mxu0 %v274
  %4264 = vmatpush.msra.mxu0 %v273
  %4265 = vmatpush.msra.mxu0 %v272
  %4266 = vmatpush.msra.mxu0 %v271
  %4267 = vmatpush.msra.mxu0 %v270
  %4268 = vmatpush.msra.mxu0 %v269
  %4269 = vmatpush.msra.mxu0 %v268
  %4270 = vmatpush.msra.mxu0 %v267
  %4271 = vmatpush.msra.mxu0 %v266
  %4272 = vmatpush.msra.mxu0 %v265
  %4273 = vmatpush.msra.mxu0 %v264
  %4274 = vmatpush.msra.mxu0 %v263
  %4275 = vmatpush.msra.mxu0 %v262
  %4276 = vmatmul.f32.gmra.mxu0 %v4124
  %v4277 = vpop.f32.mrf.mxu0
  %v4278 = vadd.f32 0.0, %v4277
  %4279 = vdwg.mxu0
  %4280 = vmatpush.msra.mxu0 %v293
  %4281 = vmatpush.msra.mxu0 %v292
  %4282 = vmatpush.msra.mxu0 %v291
  %4283 = vmatpush.msra.mxu0 %v290
  %4284 = vmatpush.msra.mxu0 %v289
  %4285 = vmatpush.msra.mxu0 %v288
  %4286 = vmatpush.msra.mxu0 %v287
  %4287 = vmatpush.msra.mxu0 %v286
  %4288 = vmatpush.msra.mxu0 %v285
  %4289 = vmatpush.msra.mxu0 %v284
  %4290 = vmatpush.msra.mxu0 %v283
  %4291 = vmatpush.msra.mxu0 %v282
  %4292 = vmatpush.msra.mxu0 %v281
  %4293 = vmatpush.msra.mxu0 %v280
  %4294 = vmatpush.msra.mxu0 %v279
  %4295 = vmatpush.msra.mxu0 %v278
  %4296 = vmatmul.f32.gmra.mxu0 %v4139
  %v4297 = vpop.f32.mrf.mxu0
  %v4298 = vadd.f32 0.0, %v4297
  %4299 = vdwg.mxu0
  %v4300 = vadd.f32 %v4158, 0.0
  %v4301 = vadd.f32 %v4178, 0.0
  %v4302 = vadd.f32 %v4198, 0.0
  %v4303 = vadd.f32 %v4218, 0.0
  %v4304 = vadd.f32 %v4238, 0.0
  %v4305 = vadd.f32 %v4258, 0.0
  %v4306 = vadd.f32 %v4278, 0.0
  %v4307 = vadd.f32 %v4298, 0.0
  %v4316 = vrot.slane %v4301, 7
  %v4317 = vsel %vm952, %v4316, %v4300
  %v4318 = vrot.slane %v4302, 6
  %v4319 = vsel %vm955, %v4318, %v4317
  %v4320 = vrot.slane %v4303, 5
  %v4321 = vsel %vm958, %v4320, %v4319
  %v4322 = vrot.slane %v4304, 4
  %v4323 = vsel %vm961, %v4322, %v4321
  %v4324 = vrot.slane %v4305, 3
  %v4325 = vsel %vm964, %v4324, %v4323
  %v4326 = vrot.slane %v4306, 2
  %v4327 = vsel %vm967, %v4326, %v4325
  %v4328 = vrot.slane %v4307, 1
  %v4329 = vsel %vm970, %v4328, %v4327
  %4331 = vmatpush.msra.mxu0 %v309
  %4332 = vmatpush.msra.mxu0 %v308
  %4333 = vmatpush.msra.mxu0 %v307
  %4334 = vmatpush.msra.mxu0 %v306
  %4335 = vmatpush.msra.mxu0 %v305
  %4336 = vmatpush.msra.mxu0 %v304
  %4337 = vmatpush.msra.mxu0 %v303
  %4338 = vmatpush.msra.mxu0 %v302
  %4339 = vmatpush.msra.mxu0 %v301
  %4340 = vmatpush.msra.mxu0 %v300
  %4341 = vmatpush.msra.mxu0 %v299
  %4342 = vmatpush.msra.mxu0 %v298
  %4343 = vmatpush.msra.mxu0 %v297
  %4344 = vmatpush.msra.mxu0 %v296
  %4345 = vmatpush.msra.mxu0 %v295
  %4346 = vmatpush.msra.mxu0 %v294
  %4347 = vmatmul.f32.gmra.mxu0 %v3716
  %v4348 = vpop.f32.mrf.mxu0
  %v4349 = vadd.f32 %v4329, %v4348
  %4350 = vdwg.mxu0
  %4351 = vmatpush.msra.mxu0 0.0
  %4352 = vmatpush.msra.mxu0 0.0
  %4353 = vmatpush.msra.mxu0 0.0
  %4354 = vmatpush.msra.mxu0 0.0
  %4355 = vmatpush.msra.mxu0 0.0
  %4356 = vmatpush.msra.mxu0 0.0
  %4357 = vmatpush.msra.mxu0 0.0
  %4358 = vmatpush.msra.mxu0 0.0
  %4359 = vmatpush.msra.mxu0 0.0
  %4360 = vmatpush.msra.mxu0 0.0
  %4361 = vmatpush.msra.mxu0 0.0
  %4362 = vmatpush.msra.mxu0 0.0
  %4363 = vmatpush.msra.mxu0 %v313
  %4364 = vmatpush.msra.mxu0 %v312
  %4365 = vmatpush.msra.mxu0 %v311
  %4366 = vmatpush.msra.mxu0 %v310
  %4367 = vmatmul.f32.gmra.mxu0 %v3635
  %v4368 = vpop.f32.mrf.mxu0
  %v4369 = vadd.f32 0.0, %v4368
  %4370 = vdwg.mxu0
  %v4371 = vadd.f32 %v4349, %v4369
  %v4372 = vadd.f32 %v4371, %v1409
  %v4373 = vtanh.pop %v4372
  %v4375 = vsel %vm329, %v4373, 0
  %4377 = vmatpush.msra.mxu0 0.0
  %4378 = vmatpush.msra.mxu0 0.0
  %4379 = vmatpush.msra.mxu0 0.0
  %4380 = vmatpush.msra.mxu0 0.0
  %4381 = vmatpush.msra.mxu0 0.0
  %4382 = vmatpush.msra.mxu0 0.0
  %4383 = vmatpush.msra.mxu0 0.0
  %4384 = vmatpush.msra.mxu0 0.0
  %4385 = vmatpush.msra.mxu0 0.0
  %4386 = vmatpush.msra.mxu0 0.0
  %4387 = vmatpush.msra.mxu0 0.0
  %4388 = vmatpush.msra.mxu0 0.0
  %4389 = vmatpush.msra.mxu0 %v318
  %4390 = vmatpush.msra.mxu0 %v317
  %4391 = vmatpush.msra.mxu0 %v316
  %4392 = vmatpush.msra.mxu0 %v315
  %4393 = vmatmul.f32.gmra.mxu0 %v4375
  %v4394 = vpop.f32.mrf.mxu0
  %v4395 = vadd.f32 %v1414, %v4394
  %4396 = vdwg.mxu0
  %4397 = vmax.xlane.f32.xlu0 %v4395
  %v4398 = vpop.xlane.xlu0 %4397
  %vm4399 = vcmp.eq.f32.partialorder %v4395, %v4398
  %v4400 = vsel %vm4399, %v321, 128
  %v4401 = vand.u32 %v4400, 65535
  %v4402 = vshra.s32 %v4400, 16
  %v4403 = vcvt.s32.f32 %v4401
  %v4404 = vcvt.s32.f32 %v4402
  %4405 = vmin.xlane.f32.xlu0 %v4404
  %v4406 = vpop.xlane.xlu0 %4405
  %vm4407 = vcmp.eq.f32.partialorder %v4404, %v4406
  %v4408 = vsel %vm4407, %v4403, inf
  %4409 = vmin.xlane.f32.xlu0 %v4408
  %v4410 = vpop.xlane.xlu0 %4409
  %v4411 = vcvt.f32.s32 %v4410
  %v4412 = vcvt.f32.s32 %v4406
  %v4413 = vshll.u32 %v4412, 16
  %v4414 = vadd.s32 %v4413, %v4411
  %v4415 = vsel %vm3713, 1, 0
  %4416 = vset.pattern.permute.xlu0 0
  %4417 = vperm.xlu0 %4416, %v4415
  %v4418 = vpop.permute.xlu0 %4417
  %vm4419 = vcmp.eq.s32.totalorder %v4418, 1
  %v4420 = vsel %vm4419, %v4395, 0.0
  %s4421 = scalar_lea.vmem %s10, 32
  %4422 = vst [vmem:[%s4421] sm:$0xff] %v4420
  %v4431 = vrot.slane %v4049, 7
  %v4432 = vsel %vm952, %v4431, %v4034
  %v4433 = vrot.slane %v4064, 6
  %v4434 = vsel %vm955, %v4433, %v4432
  %v4435 = vrot.slane %v4079, 5
  %v4436 = vsel %vm958, %v4435, %v4434
  %v4437 = vrot.slane %v4094, 4
  %v4438 = vsel %vm961, %v4437, %v4436
  %v4439 = vrot.slane %v4109, 3
  %v4440 = vsel %vm964, %v4439, %v4438
  %v4441 = vrot.slane %v4124, 2
  %v4442 = vsel %vm967, %v4441, %v4440
  %v4443 = vrot.slane %v4139, 1
  %v4444 = vsel %vm970, %v4443, %v4442
  %v4446 = vsel %vm4419, %v4444, 0.0
  %s4447 = scalar_lea.vmem %s11, 32
  %4448 = vst [vmem:[%s4447] sm:$0xff] %v4446
  %vm4449 = vcmp.eq.s32.totalorder %v4414, 2
  %vm4450 = vcmp.lt.s32.totalorder %v3712, 5
  %v4451 = vsel %vm4450, %v3712, 5
  %v4452 = vsel %vm4449, %v4451, %v3712
  %vm4453 = vcmp.gt.s32.totalorder %v4452, 5
  %vm4454 = vcmp.eq.s32.totalorder %v321, %v4414
  %v4455 = vsel %vm4454, 1, 0
  %v4456 = vcvt.s32.f32 %v4455
  %v4457 = vrot.slane %v4373, 1
  %v4458 = vrot.slane %v4373, 2
  %v4459 = vrot.slane %v4373, 3
  %v4460 = vrot.slane %v4373, 4
  %v4461 = vrot.slane %v4373, 5
  %v4462 = vrot.slane %v4373, 6
  %v4463 = vrot.slane %v4373, 7
  %4464 = vmatpush.xpose.msra.mxu0 %v415
  %4465 = vmatpush.xpose.msra.mxu0 %v412
  %4466 = vmatpush.xpose.msra.mxu0 %v409
  %4467 = vmatpush.xpose.msra.mxu0 %v406
  %4468 = vmatpush.xpose.msra.mxu0 %v403
  %4469 = vmatpush.xpose.msra.mxu0 %v400
  %4470 = vmatpush.xpose.msra.mxu0 %v397
  %4471 = vmatpush.xpose.msra.mxu0 %v394
  %4472 = vmatpush.xpose.msra.mxu0 %v391
  %4473 = vmatpush.xpose.msra.mxu0 %v388
  %4474 = vmatpush.xpose.msra.mxu0 %v385
  %4475 = vmatpush.xpose.msra.mxu0 %v382
  %4476 = vmatpush.xpose.msra.mxu0 %v379
  %4477 = vmatpush.xpose.msra.mxu0 %v376
  %4478 = vmatpush.xpose.msra.mxu0 %v373
  %4479 = vmatpush.xpose.msra.mxu0 %v370
  %4480 = vmatmul.f32.gmra.mxu0 %v4375
  %v4481 = vpop.f32.mrf.mxu0
  %v4482 = vadd.f32 0.0, %v4481
  %4483 = vdwg.mxu0
  %v4484 = vsel %vm329, %v4457, 0
  %4486 = vmatpush.xpose.msra.mxu0 %v485
  %4487 = vmatpush.xpose.msra.mxu0 %v482
  %4488 = vmatpush.xpose.msra.mxu0 %v479
  %4489 = vmatpush.xpose.msra.mxu0 %v476
  %4490 = vmatpush.xpose.msra.mxu0 %v473
  %4491 = vmatpush.xpose.msra.mxu0 %v470
  %4492 = vmatpush.xpose.msra.mxu0 %v467
  %4493 = vmatpush.xpose.msra.mxu0 %v464
  %4494 = vmatpush.xpose.msra.mxu0 %v461
  %4495 = vmatpush.xpose.msra.mxu0 %v458
  %4496 = vmatpush.xpose.msra.mxu0 %v455
  %4497 = vmatpush.xpose.msra.mxu0 %v452
  %4498 = vmatpush.xpose.msra.mxu0 %v449
  %4499 = vmatpush.xpose.msra.mxu0 %v446
  %4500 = vmatpush.xpose.msra.mxu0 %v443
  %4501 = vmatpush.xpose.msra.mxu0 %v440
  %4502 = vmatmul.f32.gmra.mxu0 %v4484
  %v4503 = vpop.f32.mrf.mxu0
  %v4504 = vadd.f32 0.0, %v4503
  %4505 = vdwg.mxu0
  %v4506 = vsel %vm329, %v4458, 0
  %4508 = vmatpush.xpose.msra.mxu0 %v555
  %4509 = vmatpush.xpose.msra.mxu0 %v552
  %4510 = vmatpush.xpose.msra.mxu0 %v549
  %4511 = vmatpush.xpose.msra.mxu0 %v546
  %4512 = vmatpush.xpose.msra.mxu0 %v543
  %4513 = vmatpush.xpose.msra.mxu0 %v540
  %4514 = vmatpush.xpose.msra.mxu0 %v537
  %4515 = vmatpush.xpose.msra.mxu0 %v534
  %4516 = vmatpush.xpose.msra.mxu0 %v531
  %4517 = vmatpush.xpose.msra.mxu0 %v528
  %4518 = vmatpush.xpose.msra.mxu0 %v525
  %4519 = vmatpush.xpose.msra.mxu0 %v522
  %4520 = vmatpush.xpose.msra.mxu0 %v519
  %4521 = vmatpush.xpose.msra.mxu0 %v516
  %4522 = vmatpush.xpose.msra.mxu0 %v513
  %4523 = vmatpush.xpose.msra.mxu0 %v510
  %4524 = vmatmul.f32.gmra.mxu0 %v4506
  %v4525 = vpop.f32.mrf.mxu0
  %v4526 = vadd.f32 0.0, %v4525
  %4527 = vdwg.mxu0
  %v4528 = vsel %vm329, %v4459, 0
  %4530 = vmatpush.xpose.msra.mxu0 %v625
  %4531 = vmatpush.xpose.msra.mxu0 %v622
  %4532 = vmatpush.xpose.msra.mxu0 %v619
  %4533 = vmatpush.xpose.msra.mxu0 %v616
  %4534 = vmatpush.xpose.msra.mxu0 %v613
  %4535 = vmatpush.xpose.msra.mxu0 %v610
  %4536 = vmatpush.xpose.msra.mxu0 %v607
  %4537 = vmatpush.xpose.msra.mxu0 %v604
  %4538 = vmatpush.xpose.msra.mxu0 %v601
  %4539 = vmatpush.xpose.msra.mxu0 %v598
  %4540 = vmatpush.xpose.msra.mxu0 %v595
  %4541 = vmatpush.xpose.msra.mxu0 %v592
  %4542 = vmatpush.xpose.msra.mxu0 %v589
  %4543 = vmatpush.xpose.msra.mxu0 %v586
  %4544 = vmatpush.xpose.msra.mxu0 %v583
  %4545 = vmatpush.xpose.msra.mxu0 %v580
  %4546 = vmatmul.f32.gmra.mxu0 %v4528
  %v4547 = vpop.f32.mrf.mxu0
  %v4548 = vadd.f32 0.0, %v4547
  %4549 = vdwg.mxu0
  %v4550 = vsel %vm329, %v4460, 0
  %4552 = vmatpush.xpose.msra.mxu0 %v695
  %4553 = vmatpush.xpose.msra.mxu0 %v692
  %4554 = vmatpush.xpose.msra.mxu0 %v689
  %4555 = vmatpush.xpose.msra.mxu0 %v686
  %4556 = vmatpush.xpose.msra.mxu0 %v683
  %4557 = vmatpush.xpose.msra.mxu0 %v680
  %4558 = vmatpush.xpose.msra.mxu0 %v677
  %4559 = vmatpush.xpose.msra.mxu0 %v674
  %4560 = vmatpush.xpose.msra.mxu0 %v671
  %4561 = vmatpush.xpose.msra.mxu0 %v668
  %4562 = vmatpush.xpose.msra.mxu0 %v665
  %4563 = vmatpush.xpose.msra.mxu0 %v662
  %4564 = vmatpush.xpose.msra.mxu0 %v659
  %4565 = vmatpush.xpose.msra.mxu0 %v656
  %4566 = vmatpush.xpose.msra.mxu0 %v653
  %4567 = vmatpush.xpose.msra.mxu0 %v650
  %4568 = vmatmul.f32.gmra.mxu0 %v4550
  %v4569 = vpop.f32.mrf.mxu0
  %v4570 = vadd.f32 0.0, %v4569
  %4571 = vdwg.mxu0
  %v4572 = vsel %vm329, %v4461, 0
  %4574 = vmatpush.xpose.msra.mxu0 %v765
  %4575 = vmatpush.xpose.msra.mxu0 %v762
  %4576 = vmatpush.xpose.msra.mxu0 %v759
  %4577 = vmatpush.xpose.msra.mxu0 %v756
  %4578 = vmatpush.xpose.msra.mxu0 %v753
  %4579 = vmatpush.xpose.msra.mxu0 %v750
  %4580 = vmatpush.xpose.msra.mxu0 %v747
  %4581 = vmatpush.xpose.msra.mxu0 %v744
  %4582 = vmatpush.xpose.msra.mxu0 %v741
  %4583 = vmatpush.xpose.msra.mxu0 %v738
  %4584 = vmatpush.xpose.msra.mxu0 %v735
  %4585 = vmatpush.xpose.msra.mxu0 %v732
  %4586 = vmatpush.xpose.msra.mxu0 %v729
  %4587 = vmatpush.xpose.msra.mxu0 %v726
  %4588 = vmatpush.xpose.msra.mxu0 %v723
  %4589 = vmatpush.xpose.msra.mxu0 %v720
  %4590 = vmatmul.f32.gmra.mxu0 %v4572
  %v4591 = vpop.f32.mrf.mxu0
  %v4592 = vadd.f32 0.0, %v4591
  %4593 = vdwg.mxu0
  %v4594 = vsel %vm329, %v4462, 0
  %4596 = vmatpush.xpose.msra.mxu0 %v835
  %4597 = vmatpush.xpose.msra.mxu0 %v832
  %4598 = vmatpush.xpose.msra.mxu0 %v829
  %4599 = vmatpush.xpose.msra.mxu0 %v826
  %4600 = vmatpush.xpose.msra.mxu0 %v823
  %4601 = vmatpush.xpose.msra.mxu0 %v820
  %4602 = vmatpush.xpose.msra.mxu0 %v817
  %4603 = vmatpush.xpose.msra.mxu0 %v814
  %4604 = vmatpush.xpose.msra.mxu0 %v811
  %4605 = vmatpush.xpose.msra.mxu0 %v808
  %4606 = vmatpush.xpose.msra.mxu0 %v805
  %4607 = vmatpush.xpose.msra.mxu0 %v802
  %4608 = vmatpush.xpose.msra.mxu0 %v799
  %4609 = vmatpush.xpose.msra.mxu0 %v796
  %4610 = vmatpush.xpose.msra.mxu0 %v793
  %4611 = vmatpush.xpose.msra.mxu0 %v790
  %4612 = vmatmul.f32.gmra.mxu0 %v4594
  %v4613 = vpop.f32.mrf.mxu0
  %v4614 = vadd.f32 0.0, %v4613
  %4615 = vdwg.mxu0
  %v4616 = vsel %vm329, %v4463, 0
  %4618 = vmatpush.xpose.msra.mxu0 %v905
  %4619 = vmatpush.xpose.msra.mxu0 %v902
  %4620 = vmatpush.xpose.msra.mxu0 %v899
  %4621 = vmatpush.xpose.msra.mxu0 %v896
  %4622 = vmatpush.xpose.msra.mxu0 %v893
  %4623 = vmatpush.xpose.msra.mxu0 %v890
  %4624 = vmatpush.xpose.msra.mxu0 %v887
  %4625 = vmatpush.xpose.msra.mxu0 %v884
  %4626 = vmatpush.xpose.msra.mxu0 %v881
  %4627 = vmatpush.xpose.msra.mxu0 %v878
  %4628 = vmatpush.xpose.msra.mxu0 %v875
  %4629 = vmatpush.xpose.msra.mxu0 %v872
  %4630 = vmatpush.xpose.msra.mxu0 %v869
  %4631 = vmatpush.xpose.msra.mxu0 %v866
  %4632 = vmatpush.xpose.msra.mxu0 %v863
  %4633 = vmatpush.xpose.msra.mxu0 %v860
  %4634 = vmatmul.f32.gmra.mxu0 %v4616
  %v4635 = vpop.f32.mrf.mxu0
  %v4636 = vadd.f32 0.0, %v4635
  %4637 = vdwg.mxu0
  %v4638 = vadd.f32 %v4482, 0.0
  %v4639 = vadd.f32 %v4504, 0.0
  %v4640 = vadd.f32 %v4526, 0.0
  %v4641 = vadd.f32 %v4548, 0.0
  %v4642 = vadd.f32 %v4570, 0.0
  %v4643 = vadd.f32 %v4592, 0.0
  %v4644 = vadd.f32 %v4614, 0.0
  %v4645 = vadd.f32 %v4636, 0.0
  %v4646 = vadd.f32 %v4638, %v323
  %v4647 = vadd.f32 %v4639, %v323
  %v4648 = vadd.f32 %v4640, %v323
  %v4649 = vadd.f32 %v4641, %v323
  %v4650 = vadd.f32 %v4642, %v323
  %v4651 = vadd.f32 %v4643, %v323
  %v4652 = vadd.f32 %v4644, %v323
  %v4653 = vadd.f32 %v4645, %v323
  %v4662 = vrot.slane %v4647, 7
  %v4663 = vsel %vm952, %v4662, %v4646
  %v4664 = vrot.slane %v4648, 6
  %v4665 = vsel %vm955, %v4664, %v4663
  %v4666 = vrot.slane %v4649, 5
  %v4667 = vsel %vm958, %v4666, %v4665
  %v4668 = vrot.slane %v4650, 4
  %v4669 = vsel %vm961, %v4668, %v4667
  %v4670 = vrot.slane %v4651, 3
  %v4671 = vsel %vm964, %v4670, %v4669
  %v4672 = vrot.slane %v4652, 2
  %v4673 = vsel %vm967, %v4672, %v4671
  %v4674 = vrot.slane %v4653, 1
  %v4675 = vsel %vm970, %v4674, %v4673
  %4677 = vmax.xlane.f32.xlu0 %v4675
  %v4678 = vpop.xlane.xlu0 %4677
  %v4680 = vrot.slane %v4678, 1
  %v4681 = vrot.slane %v4678, 2
  %v4682 = vrot.slane %v4678, 3
  %v4683 = vrot.slane %v4678, 4
  %v4684 = vrot.slane %v4678, 5
  %v4685 = vrot.slane %v4678, 6
  %v4686 = vrot.slane %v4678, 7
  %v4695 = vsub.f32 %v4646, %v4678
  %v4696 = vsub.f32 %v4647, %v4680
  %v4697 = vsub.f32 %v4648, %v4681
  %v4698 = vsub.f32 %v4649, %v4682
  %v4699 = vsub.f32 %v4650, %v4683
  %v4700 = vsub.f32 %v4651, %v4684
  %v4701 = vsub.f32 %v4652, %v4685
  %v4702 = vsub.f32 %v4653, %v4686
  %v4703 = vmul.f32 %v4695, 1.442695
  %v4704 = vpow.pop %v4703
  %v4705 = vmul.f32 %v4696, 1.442695
  %v4706 = vpow.pop %v4705
  %v4707 = vmul.f32 %v4697, 1.442695
  %v4708 = vpow.pop %v4707
  %v4709 = vmul.f32 %v4698, 1.442695
  %v4710 = vpow.pop %v4709
  %v4711 = vmul.f32 %v4699, 1.442695
  %v4712 = vpow.pop %v4711
  %v4713 = vmul.f32 %v4700, 1.442695
  %v4714 = vpow.pop %v4713
  %v4715 = vmul.f32 %v4701, 1.442695
  %v4716 = vpow.pop %v4715
  %v4717 = vmul.f32 %v4702, 1.442695
  %v4718 = vpow.pop %v4717
  %v4727 = vrot.slane %v4706, 7
  %v4728 = vsel %vm952, %v4727, %v4704
  %v4729 = vrot.slane %v4708, 6
  %v4730 = vsel %vm955, %v4729, %v4728
  %v4731 = vrot.slane %v4710, 5
  %v4732 = vsel %vm958, %v4731, %v4730
  %v4733 = vrot.slane %v4712, 4
  %v4734 = vsel %vm961, %v4733, %v4732
  %v4735 = vrot.slane %v4714, 3
  %v4736 = vsel %vm964, %v4735, %v4734
  %v4737 = vrot.slane %v4716, 2
  %v4738 = vsel %vm967, %v4737, %v4736
  %v4739 = vrot.slane %v4718, 1
  %v4740 = vsel %vm970, %v4739, %v4738
  %4742 = vadd.xlane.f32.xlu0 %v4740
  %v4743 = vpop.xlane.xlu0 %4742
  %v4745 = vrot.slane %v4743, 1
  %v4746 = vrot.slane %v4743, 2
  %v4747 = vrot.slane %v4743, 3
  %v4748 = vrot.slane %v4743, 4
  %v4749 = vrot.slane %v4743, 5
  %v4750 = vrot.slane %v4743, 6
  %v4751 = vrot.slane %v4743, 7
  %v4760 = vrcp.pop %v4743
  %v4761 = vmul.f32 %v4743, %v4760
  %v4762 = vsub.f32 1.0, %v4761
  %v4763 = vmul.f32 %v4760, %v4762
  %v4764 = vadd.f32 %v4760, %v4763
  %vm4765 = vweird.f32 %v4743
  %vm4766 = vweird.f32 %v4760
  %vm4767 = vmor %vm4765, %vm4766
  %v4768 = vsel %vm4767, %v4760, %v4764
  %v4769 = vand.u32 2147483647, %v4743
  %vm4770 = vcmp.eq.f32.partialorder %v4769, 8.507059e+37
  %v4771 = vand.u32 %v4743, 2147483648
  %v4772 = vor.u32 1.1754944e-38, %v4771
  %v4773 = vsel %vm4770, %v4772, %v4768
  %v4774 = vmul.f32 %v4704, %v4773
  %v4775 = vrcp.pop %v4745
  %v4776 = vmul.f32 %v4745, %v4775
  %v4777 = vsub.f32 1.0, %v4776
  %v4778 = vmul.f32 %v4775, %v4777
  %v4779 = vadd.f32 %v4775, %v4778
  %vm4780 = vweird.f32 %v4745
  %vm4781 = vweird.f32 %v4775
  %vm4782 = vmor %vm4780, %vm4781
  %v4783 = vsel %vm4782, %v4775, %v4779
  %v4784 = vand.u32 2147483647, %v4745
  %vm4785 = vcmp.eq.f32.partialorder %v4784, 8.507059e+37
  %v4786 = vand.u32 %v4745, 2147483648
  %v4787 = vor.u32 1.1754944e-38, %v4786
  %v4788 = vsel %vm4785, %v4787, %v4783
  %v4789 = vmul.f32 %v4706, %v4788
  %v4790 = vrcp.pop %v4746
  %v4791 = vmul.f32 %v4746, %v4790
  %v4792 = vsub.f32 1.0, %v4791
  %v4793 = vmul.f32 %v4790, %v4792
  %v4794 = vadd.f32 %v4790, %v4793
  %vm4795 = vweird.f32 %v4746
  %vm4796 = vweird.f32 %v4790
  %vm4797 = vmor %vm4795, %vm4796
  %v4798 = vsel %vm4797, %v4790, %v4794
  %v4799 = vand.u32 2147483647, %v4746
  %vm4800 = vcmp.eq.f32.partialorder %v4799, 8.507059e+37
  %v4801 = vand.u32 %v4746, 2147483648
  %v4802 = vor.u32 1.1754944e-38, %v4801
  %v4803 = vsel %vm4800, %v4802, %v4798
  %v4804 = vmul.f32 %v4708, %v4803
  %v4805 = vrcp.pop %v4747
  %v4806 = vmul.f32 %v4747, %v4805
  %v4807 = vsub.f32 1.0, %v4806
  %v4808 = vmul.f32 %v4805, %v4807
  %v4809 = vadd.f32 %v4805, %v4808
  %vm4810 = vweird.f32 %v4747
  %vm4811 = vweird.f32 %v4805
  %vm4812 = vmor %vm4810, %vm4811
  %v4813 = vsel %vm4812, %v4805, %v4809
  %v4814 = vand.u32 2147483647, %v4747
  %vm4815 = vcmp.eq.f32.partialorder %v4814, 8.507059e+37
  %v4816 = vand.u32 %v4747, 2147483648
  %v4817 = vor.u32 1.1754944e-38, %v4816
  %v4818 = vsel %vm4815, %v4817, %v4813
  %v4819 = vmul.f32 %v4710, %v4818
  %v4820 = vrcp.pop %v4748
  %v4821 = vmul.f32 %v4748, %v4820
  %v4822 = vsub.f32 1.0, %v4821
  %v4823 = vmul.f32 %v4820, %v4822
  %v4824 = vadd.f32 %v4820, %v4823
  %vm4825 = vweird.f32 %v4748
  %vm4826 = vweird.f32 %v4820
  %vm4827 = vmor %vm4825, %vm4826
  %v4828 = vsel %vm4827, %v4820, %v4824
  %v4829 = vand.u32 2147483647, %v4748
  %vm4830 = vcmp.eq.f32.partialorder %v4829, 8.507059e+37
  %v4831 = vand.u32 %v4748, 2147483648
  %v4832 = vor.u32 1.1754944e-38, %v4831
  %v4833 = vsel %vm4830, %v4832, %v4828
  %v4834 = vmul.f32 %v4712, %v4833
  %v4835 = vrcp.pop %v4749
  %v4836 = vmul.f32 %v4749, %v4835
  %v4837 = vsub.f32 1.0, %v4836
  %v4838 = vmul.f32 %v4835, %v4837
  %v4839 = vadd.f32 %v4835, %v4838
  %vm4840 = vweird.f32 %v4749
  %vm4841 = vweird.f32 %v4835
  %vm4842 = vmor %vm4840, %vm4841
  %v4843 = vsel %vm4842, %v4835, %v4839
  %v4844 = vand.u32 2147483647, %v4749
  %vm4845 = vcmp.eq.f32.partialorder %v4844, 8.507059e+37
  %v4846 = vand.u32 %v4749, 2147483648
  %v4847 = vor.u32 1.1754944e-38, %v4846
  %v4848 = vsel %vm4845, %v4847, %v4843
  %v4849 = vmul.f32 %v4714, %v4848
  %v4850 = vrcp.pop %v4750
  %v4851 = vmul.f32 %v4750, %v4850
  %v4852 = vsub.f32 1.0, %v4851
  %v4853 = vmul.f32 %v4850, %v4852
  %v4854 = vadd.f32 %v4850, %v4853
  %vm4855 = vweird.f32 %v4750
  %vm4856 = vweird.f32 %v4850
  %vm4857 = vmor %vm4855, %vm4856
  %v4858 = vsel %vm4857, %v4850, %v4854
  %v4859 = vand.u32 2147483647, %v4750
  %vm4860 = vcmp.eq.f32.partialorder %v4859, 8.507059e+37
  %v4861 = vand.u32 %v4750, 2147483648
  %v4862 = vor.u32 1.1754944e-38, %v4861
  %v4863 = vsel %vm4860, %v4862, %v4858
  %v4864 = vmul.f32 %v4716, %v4863
  %v4865 = vrcp.pop %v4751
  %v4866 = vmul.f32 %v4751, %v4865
  %v4867 = vsub.f32 1.0, %v4866
  %v4868 = vmul.f32 %v4865, %v4867
  %v4869 = vadd.f32 %v4865, %v4868
  %vm4870 = vweird.f32 %v4751
  %vm4871 = vweird.f32 %v4865
  %vm4872 = vmor %vm4870, %vm4871
  %v4873 = vsel %vm4872, %v4865, %v4869
  %v4874 = vand.u32 2147483647, %v4751
  %vm4875 = vcmp.eq.f32.partialorder %v4874, 8.507059e+37
  %v4876 = vand.u32 %v4751, 2147483648
  %v4877 = vor.u32 1.1754944e-38, %v4876
  %v4878 = vsel %vm4875, %v4877, %v4873
  %v4879 = vmul.f32 %v4718, %v4878
  %4880 = vmatpush.msra.mxu0 %v181
  %4881 = vmatpush.msra.mxu0 %v180
  %4882 = vmatpush.msra.mxu0 %v179
  %4883 = vmatpush.msra.mxu0 %v178
  %4884 = vmatpush.msra.mxu0 %v177
  %4885 = vmatpush.msra.mxu0 %v176
  %4886 = vmatpush.msra.mxu0 %v175
  %4887 = vmatpush.msra.mxu0 %v174
  %4888 = vmatpush.msra.mxu0 %v173
  %4889 = vmatpush.msra.mxu0 %v172
  %4890 = vmatpush.msra.mxu0 %v171
  %4891 = vmatpush.msra.mxu0 %v170
  %4892 = vmatpush.msra.mxu0 %v169
  %4893 = vmatpush.msra.mxu0 %v168
  %4894 = vmatpush.msra.mxu0 %v167
  %4895 = vmatpush.msra.mxu0 %v166
  %4896 = vmatmul.f32.gmra.mxu0 %v4774
  %v4897 = vpop.f32.mrf.mxu0
  %v4898 = vadd.f32 0.0, %v4897
  %4899 = vdwg.mxu0
  %4900 = vmatpush.msra.mxu0 %v197
  %4901 = vmatpush.msra.mxu0 %v196
  %4902 = vmatpush.msra.mxu0 %v195
  %4903 = vmatpush.msra.mxu0 %v194
  %4904 = vmatpush.msra.mxu0 %v193
  %4905 = vmatpush.msra.mxu0 %v192
  %4906 = vmatpush.msra.mxu0 %v191
  %4907 = vmatpush.msra.mxu0 %v190
  %4908 = vmatpush.msra.mxu0 %v189
  %4909 = vmatpush.msra.mxu0 %v188
  %4910 = vmatpush.msra.mxu0 %v187
  %4911 = vmatpush.msra.mxu0 %v186
  %4912 = vmatpush.msra.mxu0 %v185
  %4913 = vmatpush.msra.mxu0 %v184
  %4914 = vmatpush.msra.mxu0 %v183
  %4915 = vmatpush.msra.mxu0 %v182
  %4916 = vmatmul.f32.gmra.mxu0 %v4789
  %v4917 = vpop.f32.mrf.mxu0
  %v4918 = vadd.f32 0.0, %v4917
  %4919 = vdwg.mxu0
  %4920 = vmatpush.msra.mxu0 %v213
  %4921 = vmatpush.msra.mxu0 %v212
  %4922 = vmatpush.msra.mxu0 %v211
  %4923 = vmatpush.msra.mxu0 %v210
  %4924 = vmatpush.msra.mxu0 %v209
  %4925 = vmatpush.msra.mxu0 %v208
  %4926 = vmatpush.msra.mxu0 %v207
  %4927 = vmatpush.msra.mxu0 %v206
  %4928 = vmatpush.msra.mxu0 %v205
  %4929 = vmatpush.msra.mxu0 %v204
  %4930 = vmatpush.msra.mxu0 %v203
  %4931 = vmatpush.msra.mxu0 %v202
  %4932 = vmatpush.msra.mxu0 %v201
  %4933 = vmatpush.msra.mxu0 %v200
  %4934 = vmatpush.msra.mxu0 %v199
  %4935 = vmatpush.msra.mxu0 %v198
  %4936 = vmatmul.f32.gmra.mxu0 %v4804
  %v4937 = vpop.f32.mrf.mxu0
  %v4938 = vadd.f32 0.0, %v4937
  %4939 = vdwg.mxu0
  %4940 = vmatpush.msra.mxu0 %v229
  %4941 = vmatpush.msra.mxu0 %v228
  %4942 = vmatpush.msra.mxu0 %v227
  %4943 = vmatpush.msra.mxu0 %v226
  %4944 = vmatpush.msra.mxu0 %v225
  %4945 = vmatpush.msra.mxu0 %v224
  %4946 = vmatpush.msra.mxu0 %v223
  %4947 = vmatpush.msra.mxu0 %v222
  %4948 = vmatpush.msra.mxu0 %v221
  %4949 = vmatpush.msra.mxu0 %v220
  %4950 = vmatpush.msra.mxu0 %v219
  %4951 = vmatpush.msra.mxu0 %v218
  %4952 = vmatpush.msra.mxu0 %v217
  %4953 = vmatpush.msra.mxu0 %v216
  %4954 = vmatpush.msra.mxu0 %v215
  %4955 = vmatpush.msra.mxu0 %v214
  %4956 = vmatmul.f32.gmra.mxu0 %v4819
  %v4957 = vpop.f32.mrf.mxu0
  %v4958 = vadd.f32 0.0, %v4957
  %4959 = vdwg.mxu0
  %4960 = vmatpush.msra.mxu0 %v245
  %4961 = vmatpush.msra.mxu0 %v244
  %4962 = vmatpush.msra.mxu0 %v243
  %4963 = vmatpush.msra.mxu0 %v242
  %4964 = vmatpush.msra.mxu0 %v241
  %4965 = vmatpush.msra.mxu0 %v240
  %4966 = vmatpush.msra.mxu0 %v239
  %4967 = vmatpush.msra.mxu0 %v238
  %4968 = vmatpush.msra.mxu0 %v237
  %4969 = vmatpush.msra.mxu0 %v236
  %4970 = vmatpush.msra.mxu0 %v235
  %4971 = vmatpush.msra.mxu0 %v234
  %4972 = vmatpush.msra.mxu0 %v233
  %4973 = vmatpush.msra.mxu0 %v232
  %4974 = vmatpush.msra.mxu0 %v231
  %4975 = vmatpush.msra.mxu0 %v230
  %4976 = vmatmul.f32.gmra.mxu0 %v4834
  %v4977 = vpop.f32.mrf.mxu0
  %v4978 = vadd.f32 0.0, %v4977
  %4979 = vdwg.mxu0
  %4980 = vmatpush.msra.mxu0 %v261
  %4981 = vmatpush.msra.mxu0 %v260
  %4982 = vmatpush.msra.mxu0 %v259
  %4983 = vmatpush.msra.mxu0 %v258
  %4984 = vmatpush.msra.mxu0 %v257
  %4985 = vmatpush.msra.mxu0 %v256
  %4986 = vmatpush.msra.mxu0 %v255
  %4987 = vmatpush.msra.mxu0 %v254
  %4988 = vmatpush.msra.mxu0 %v253
  %4989 = vmatpush.msra.mxu0 %v252
  %4990 = vmatpush.msra.mxu0 %v251
  %4991 = vmatpush.msra.mxu0 %v250
  %4992 = vmatpush.msra.mxu0 %v249
  %4993 = vmatpush.msra.mxu0 %v248
  %4994 = vmatpush.msra.mxu0 %v247
  %4995 = vmatpush.msra.mxu0 %v246
  %4996 = vmatmul.f32.gmra.mxu0 %v4849
  %v4997 = vpop.f32.mrf.mxu0
  %v4998 = vadd.f32 0.0, %v4997
  %4999 = vdwg.mxu0
  %5000 = vmatpush.msra.mxu0 %v277
  %5001 = vmatpush.msra.mxu0 %v276
  %5002 = vmatpush.msra.mxu0 %v275
  %5003 = vmatpush.msra.mxu0 %v274
  %5004 = vmatpush.msra.mxu0 %v273
  %5005 = vmatpush.msra.mxu0 %v272
  %5006 = vmatpush.msra.mxu0 %v271
  %5007 = vmatpush.msra.mxu0 %v270
  %5008 = vmatpush.msra.mxu0 %v269
  %5009 = vmatpush.msra.mxu0 %v268
  %5010 = vmatpush.msra.mxu0 %v267
  %5011 = vmatpush.msra.mxu0 %v266
  %5012 = vmatpush.msra.mxu0 %v265
  %5013 = vmatpush.msra.mxu0 %v264
  %5014 = vmatpush.msra.mxu0 %v263
  %5015 = vmatpush.msra.mxu0 %v262
  %5016 = vmatmul.f32.gmra.mxu0 %v4864
  %v5017 = vpop.f32.mrf.mxu0
  %v5018 = vadd.f32 0.0, %v5017
  %5019 = vdwg.mxu0
  %5020 = vmatpush.msra.mxu0 %v293
  %5021 = vmatpush.msra.mxu0 %v292
  %5022 = vmatpush.msra.mxu0 %v291
  %5023 = vmatpush.msra.mxu0 %v290
  %5024 = vmatpush.msra.mxu0 %v289
  %5025 = vmatpush.msra.mxu0 %v288
  %5026 = vmatpush.msra.mxu0 %v287
  %5027 = vmatpush.msra.mxu0 %v286
  %5028 = vmatpush.msra.mxu0 %v285
  %5029 = vmatpush.msra.mxu0 %v284
  %5030 = vmatpush.msra.mxu0 %v283
  %5031 = vmatpush.msra.mxu0 %v282
  %5032 = vmatpush.msra.mxu0 %v281
  %5033 = vmatpush.msra.mxu0 %v280
  %5034 = vmatpush.msra.mxu0 %v279
  %5035 = vmatpush.msra.mxu0 %v278
  %5036 = vmatmul.f32.gmra.mxu0 %v4879
  %v5037 = vpop.f32.mrf.mxu0
  %v5038 = vadd.f32 0.0, %v5037
  %5039 = vdwg.mxu0
  %v5040 = vadd.f32 %v4898, 0.0
  %v5041 = vadd.f32 %v4918, 0.0
  %v5042 = vadd.f32 %v4938, 0.0
  %v5043 = vadd.f32 %v4958, 0.0
  %v5044 = vadd.f32 %v4978, 0.0
  %v5045 = vadd.f32 %v4998, 0.0
  %v5046 = vadd.f32 %v5018, 0.0
  %v5047 = vadd.f32 %v5038, 0.0
  %v5056 = vrot.slane %v5041, 7
  %v5057 = vsel %vm952, %v5056, %v5040
  %v5058 = vrot.slane %v5042, 6
  %v5059 = vsel %vm955, %v5058, %v5057
  %v5060 = vrot.slane %v5043, 5
  %v5061 = vsel %vm958, %v5060, %v5059
  %v5062 = vrot.slane %v5044, 4
  %v5063 = vsel %vm961, %v5062, %v5061
  %v5064 = vrot.slane %v5045, 3
  %v5065 = vsel %vm964, %v5064, %v5063
  %v5066 = vrot.slane %v5046, 2
  %v5067 = vsel %vm967, %v5066, %v5065
  %v5068 = vrot.slane %v5047, 1
  %v5069 = vsel %vm970, %v5068, %v5067
  %5071 = vmatpush.msra.mxu0 %v309
  %5072 = vmatpush.msra.mxu0 %v308
  %5073 = vmatpush.msra.mxu0 %v307
  %5074 = vmatpush.msra.mxu0 %v306
  %5075 = vmatpush.msra.mxu0 %v305
  %5076 = vmatpush.msra.mxu0 %v304
  %5077 = vmatpush.msra.mxu0 %v303
  %5078 = vmatpush.msra.mxu0 %v302
  %5079 = vmatpush.msra.mxu0 %v301
  %5080 = vmatpush.msra.mxu0 %v300
  %5081 = vmatpush.msra.mxu0 %v299
  %5082 = vmatpush.msra.mxu0 %v298
  %5083 = vmatpush.msra.mxu0 %v297
  %5084 = vmatpush.msra.mxu0 %v296
  %5085 = vmatpush.msra.mxu0 %v295
  %5086 = vmatpush.msra.mxu0 %v294
  %5087 = vmatmul.f32.gmra.mxu0 %v4456
  %v5088 = vpop.f32.mrf.mxu0
  %v5089 = vadd.f32 %v5069, %v5088
  %5090 = vdwg.mxu0
  %5091 = vmatpush.msra.mxu0 0.0
  %5092 = vmatpush.msra.mxu0 0.0
  %5093 = vmatpush.msra.mxu0 0.0
  %5094 = vmatpush.msra.mxu0 0.0
  %5095 = vmatpush.msra.mxu0 0.0
  %5096 = vmatpush.msra.mxu0 0.0
  %5097 = vmatpush.msra.mxu0 0.0
  %5098 = vmatpush.msra.mxu0 0.0
  %5099 = vmatpush.msra.mxu0 0.0
  %5100 = vmatpush.msra.mxu0 0.0
  %5101 = vmatpush.msra.mxu0 0.0
  %5102 = vmatpush.msra.mxu0 0.0
  %5103 = vmatpush.msra.mxu0 %v313
  %5104 = vmatpush.msra.mxu0 %v312
  %5105 = vmatpush.msra.mxu0 %v311
  %5106 = vmatpush.msra.mxu0 %v310
  %5107 = vmatmul.f32.gmra.mxu0 %v4375
  %v5108 = vpop.f32.mrf.mxu0
  %v5109 = vadd.f32 0.0, %v5108
  %5110 = vdwg.mxu0
  %v5111 = vadd.f32 %v5089, %v5109
  %v5112 = vadd.f32 %v5111, %v1409
  %v5113 = vtanh.pop %v5112
  %v5115 = vsel %vm329, %v5113, 0
  %5117 = vmatpush.msra.mxu0 0.0
  %5118 = vmatpush.msra.mxu0 0.0
  %5119 = vmatpush.msra.mxu0 0.0
  %5120 = vmatpush.msra.mxu0 0.0
  %5121 = vmatpush.msra.mxu0 0.0
  %5122 = vmatpush.msra.mxu0 0.0
  %5123 = vmatpush.msra.mxu0 0.0
  %5124 = vmatpush.msra.mxu0 0.0
  %5125 = vmatpush.msra.mxu0 0.0
  %5126 = vmatpush.msra.mxu0 0.0
  %5127 = vmatpush.msra.mxu0 0.0
  %5128 = vmatpush.msra.mxu0 0.0
  %5129 = vmatpush.msra.mxu0 %v318
  %5130 = vmatpush.msra.mxu0 %v317
  %5131 = vmatpush.msra.mxu0 %v316
  %5132 = vmatpush.msra.mxu0 %v315
  %5133 = vmatmul.f32.gmra.mxu0 %v5115
  %v5134 = vpop.f32.mrf.mxu0
  %v5135 = vadd.f32 %v1414, %v5134
  %5136 = vdwg.mxu0
  %5137 = vmax.xlane.f32.xlu0 %v5135
  %v5138 = vpop.xlane.xlu0 %5137
  %vm5139 = vcmp.eq.f32.partialorder %v5135, %v5138
  %v5140 = vsel %vm5139, %v321, 128
  %v5141 = vand.u32 %v5140, 65535
  %v5142 = vshra.s32 %v5140, 16
  %v5143 = vcvt.s32.f32 %v5141
  %v5144 = vcvt.s32.f32 %v5142
  %5145 = vmin.xlane.f32.xlu0 %v5144
  %v5146 = vpop.xlane.xlu0 %5145
  %vm5147 = vcmp.eq.f32.partialorder %v5144, %v5146
  %v5148 = vsel %vm5147, %v5143, inf
  %5149 = vmin.xlane.f32.xlu0 %v5148
  %v5150 = vpop.xlane.xlu0 %5149
  %v5151 = vcvt.f32.s32 %v5150
  %v5152 = vcvt.f32.s32 %v5146
  %v5153 = vshll.u32 %v5152, 16
  %v5154 = vadd.s32 %v5153, %v5151
  %v5155 = vsel %vm4453, 1, 0
  %5156 = vset.pattern.permute.xlu0 0
  %5157 = vperm.xlu0 %5156, %v5155
  %v5158 = vpop.permute.xlu0 %5157
  %vm5159 = vcmp.eq.s32.totalorder %v5158, 1
  %v5160 = vsel %vm5159, %v5135, 0.0
  %s5161 = scalar_lea.vmem %s10, 40
  %5162 = vst [vmem:[%s5161] sm:$0xff] %v5160
  %v5171 = vrot.slane %v4789, 7
  %v5172 = vsel %vm952, %v5171, %v4774
  %v5173 = vrot.slane %v4804, 6
  %v5174 = vsel %vm955, %v5173, %v5172
  %v5175 = vrot.slane %v4819, 5
  %v5176 = vsel %vm958, %v5175, %v5174
  %v5177 = vrot.slane %v4834, 4
  %v5178 = vsel %vm961, %v5177, %v5176
  %v5179 = vrot.slane %v4849, 3
  %v5180 = vsel %vm964, %v5179, %v5178
  %v5181 = vrot.slane %v4864, 2
  %v5182 = vsel %vm967, %v5181, %v5180
  %v5183 = vrot.slane %v4879, 1
  %v5184 = vsel %vm970, %v5183, %v5182
  %v5186 = vsel %vm5159, %v5184, 0.0
  %s5187 = scalar_lea.vmem %s11, 40
  %5188 = vst [vmem:[%s5187] sm:$0xff] %v5186
  %vm5189 = vcmp.eq.s32.totalorder %v5154, 2
  %vm5190 = vcmp.lt.s32.totalorder %v4452, 6
  %v5191 = vsel %vm5190, %v4452, 6
  %v5192 = vsel %vm5189, %v5191, %v4452
  %vm5193 = vcmp.gt.s32.totalorder %v5192, 6
  %vm5194 = vcmp.eq.s32.totalorder %v321, %v5154
  %v5195 = vsel %vm5194, 1, 0
  %v5196 = vcvt.s32.f32 %v5195
  %v5197 = vrot.slane %v5113, 1
  %v5198 = vrot.slane %v5113, 2
  %v5199 = vrot.slane %v5113, 3
  %v5200 = vrot.slane %v5113, 4
  %v5201 = vrot.slane %v5113, 5
  %v5202 = vrot.slane %v5113, 6
  %v5203 = vrot.slane %v5113, 7
  %5204 = vmatpush.xpose.msra.mxu0 %v415
  %5205 = vmatpush.xpose.msra.mxu0 %v412
  %5206 = vmatpush.xpose.msra.mxu0 %v409
  %5207 = vmatpush.xpose.msra.mxu0 %v406
  %5208 = vmatpush.xpose.msra.mxu0 %v403
  %5209 = vmatpush.xpose.msra.mxu0 %v400
  %5210 = vmatpush.xpose.msra.mxu0 %v397
  %5211 = vmatpush.xpose.msra.mxu0 %v394
  %5212 = vmatpush.xpose.msra.mxu0 %v391
  %5213 = vmatpush.xpose.msra.mxu0 %v388
  %5214 = vmatpush.xpose.msra.mxu0 %v385
  %5215 = vmatpush.xpose.msra.mxu0 %v382
  %5216 = vmatpush.xpose.msra.mxu0 %v379
  %5217 = vmatpush.xpose.msra.mxu0 %v376
  %5218 = vmatpush.xpose.msra.mxu0 %v373
  %5219 = vmatpush.xpose.msra.mxu0 %v370
  %5220 = vmatmul.f32.gmra.mxu0 %v5115
  %v5221 = vpop.f32.mrf.mxu0
  %v5222 = vadd.f32 0.0, %v5221
  %5223 = vdwg.mxu0
  %v5224 = vsel %vm329, %v5197, 0
  %5226 = vmatpush.xpose.msra.mxu0 %v485
  %5227 = vmatpush.xpose.msra.mxu0 %v482
  %5228 = vmatpush.xpose.msra.mxu0 %v479
  %5229 = vmatpush.xpose.msra.mxu0 %v476
  %5230 = vmatpush.xpose.msra.mxu0 %v473
  %5231 = vmatpush.xpose.msra.mxu0 %v470
  %5232 = vmatpush.xpose.msra.mxu0 %v467
  %5233 = vmatpush.xpose.msra.mxu0 %v464
  %5234 = vmatpush.xpose.msra.mxu0 %v461
  %5235 = vmatpush.xpose.msra.mxu0 %v458
  %5236 = vmatpush.xpose.msra.mxu0 %v455
  %5237 = vmatpush.xpose.msra.mxu0 %v452
  %5238 = vmatpush.xpose.msra.mxu0 %v449
  %5239 = vmatpush.xpose.msra.mxu0 %v446
  %5240 = vmatpush.xpose.msra.mxu0 %v443
  %5241 = vmatpush.xpose.msra.mxu0 %v440
  %5242 = vmatmul.f32.gmra.mxu0 %v5224
  %v5243 = vpop.f32.mrf.mxu0
  %v5244 = vadd.f32 0.0, %v5243
  %5245 = vdwg.mxu0
  %v5246 = vsel %vm329, %v5198, 0
  %5248 = vmatpush.xpose.msra.mxu0 %v555
  %5249 = vmatpush.xpose.msra.mxu0 %v552
  %5250 = vmatpush.xpose.msra.mxu0 %v549
  %5251 = vmatpush.xpose.msra.mxu0 %v546
  %5252 = vmatpush.xpose.msra.mxu0 %v543
  %5253 = vmatpush.xpose.msra.mxu0 %v540
  %5254 = vmatpush.xpose.msra.mxu0 %v537
  %5255 = vmatpush.xpose.msra.mxu0 %v534
  %5256 = vmatpush.xpose.msra.mxu0 %v531
  %5257 = vmatpush.xpose.msra.mxu0 %v528
  %5258 = vmatpush.xpose.msra.mxu0 %v525
  %5259 = vmatpush.xpose.msra.mxu0 %v522
  %5260 = vmatpush.xpose.msra.mxu0 %v519
  %5261 = vmatpush.xpose.msra.mxu0 %v516
  %5262 = vmatpush.xpose.msra.mxu0 %v513
  %5263 = vmatpush.xpose.msra.mxu0 %v510
  %5264 = vmatmul.f32.gmra.mxu0 %v5246
  %v5265 = vpop.f32.mrf.mxu0
  %v5266 = vadd.f32 0.0, %v5265
  %5267 = vdwg.mxu0
  %v5268 = vsel %vm329, %v5199, 0
  %5270 = vmatpush.xpose.msra.mxu0 %v625
  %5271 = vmatpush.xpose.msra.mxu0 %v622
  %5272 = vmatpush.xpose.msra.mxu0 %v619
  %5273 = vmatpush.xpose.msra.mxu0 %v616
  %5274 = vmatpush.xpose.msra.mxu0 %v613
  %5275 = vmatpush.xpose.msra.mxu0 %v610
  %5276 = vmatpush.xpose.msra.mxu0 %v607
  %5277 = vmatpush.xpose.msra.mxu0 %v604
  %5278 = vmatpush.xpose.msra.mxu0 %v601
  %5279 = vmatpush.xpose.msra.mxu0 %v598
  %5280 = vmatpush.xpose.msra.mxu0 %v595
  %5281 = vmatpush.xpose.msra.mxu0 %v592
  %5282 = vmatpush.xpose.msra.mxu0 %v589
  %5283 = vmatpush.xpose.msra.mxu0 %v586
  %5284 = vmatpush.xpose.msra.mxu0 %v583
  %5285 = vmatpush.xpose.msra.mxu0 %v580
  %5286 = vmatmul.f32.gmra.mxu0 %v5268
  %v5287 = vpop.f32.mrf.mxu0
  %v5288 = vadd.f32 0.0, %v5287
  %5289 = vdwg.mxu0
  %v5290 = vsel %vm329, %v5200, 0
  %5292 = vmatpush.xpose.msra.mxu0 %v695
  %5293 = vmatpush.xpose.msra.mxu0 %v692
  %5294 = vmatpush.xpose.msra.mxu0 %v689
  %5295 = vmatpush.xpose.msra.mxu0 %v686
  %5296 = vmatpush.xpose.msra.mxu0 %v683
  %5297 = vmatpush.xpose.msra.mxu0 %v680
  %5298 = vmatpush.xpose.msra.mxu0 %v677
  %5299 = vmatpush.xpose.msra.mxu0 %v674
  %5300 = vmatpush.xpose.msra.mxu0 %v671
  %5301 = vmatpush.xpose.msra.mxu0 %v668
  %5302 = vmatpush.xpose.msra.mxu0 %v665
  %5303 = vmatpush.xpose.msra.mxu0 %v662
  %5304 = vmatpush.xpose.msra.mxu0 %v659
  %5305 = vmatpush.xpose.msra.mxu0 %v656
  %5306 = vmatpush.xpose.msra.mxu0 %v653
  %5307 = vmatpush.xpose.msra.mxu0 %v650
  %5308 = vmatmul.f32.gmra.mxu0 %v5290
  %v5309 = vpop.f32.mrf.mxu0
  %v5310 = vadd.f32 0.0, %v5309
  %5311 = vdwg.mxu0
  %v5312 = vsel %vm329, %v5201, 0
  %5314 = vmatpush.xpose.msra.mxu0 %v765
  %5315 = vmatpush.xpose.msra.mxu0 %v762
  %5316 = vmatpush.xpose.msra.mxu0 %v759
  %5317 = vmatpush.xpose.msra.mxu0 %v756
  %5318 = vmatpush.xpose.msra.mxu0 %v753
  %5319 = vmatpush.xpose.msra.mxu0 %v750
  %5320 = vmatpush.xpose.msra.mxu0 %v747
  %5321 = vmatpush.xpose.msra.mxu0 %v744
  %5322 = vmatpush.xpose.msra.mxu0 %v741
  %5323 = vmatpush.xpose.msra.mxu0 %v738
  %5324 = vmatpush.xpose.msra.mxu0 %v735
  %5325 = vmatpush.xpose.msra.mxu0 %v732
  %5326 = vmatpush.xpose.msra.mxu0 %v729
  %5327 = vmatpush.xpose.msra.mxu0 %v726
  %5328 = vmatpush.xpose.msra.mxu0 %v723
  %5329 = vmatpush.xpose.msra.mxu0 %v720
  %5330 = vmatmul.f32.gmra.mxu0 %v5312
  %v5331 = vpop.f32.mrf.mxu0
  %v5332 = vadd.f32 0.0, %v5331
  %5333 = vdwg.mxu0
  %v5334 = vsel %vm329, %v5202, 0
  %5336 = vmatpush.xpose.msra.mxu0 %v835
  %5337 = vmatpush.xpose.msra.mxu0 %v832
  %5338 = vmatpush.xpose.msra.mxu0 %v829
  %5339 = vmatpush.xpose.msra.mxu0 %v826
  %5340 = vmatpush.xpose.msra.mxu0 %v823
  %5341 = vmatpush.xpose.msra.mxu0 %v820
  %5342 = vmatpush.xpose.msra.mxu0 %v817
  %5343 = vmatpush.xpose.msra.mxu0 %v814
  %5344 = vmatpush.xpose.msra.mxu0 %v811
  %5345 = vmatpush.xpose.msra.mxu0 %v808
  %5346 = vmatpush.xpose.msra.mxu0 %v805
  %5347 = vmatpush.xpose.msra.mxu0 %v802
  %5348 = vmatpush.xpose.msra.mxu0 %v799
  %5349 = vmatpush.xpose.msra.mxu0 %v796
  %5350 = vmatpush.xpose.msra.mxu0 %v793
  %5351 = vmatpush.xpose.msra.mxu0 %v790
  %5352 = vmatmul.f32.gmra.mxu0 %v5334
  %v5353 = vpop.f32.mrf.mxu0
  %v5354 = vadd.f32 0.0, %v5353
  %5355 = vdwg.mxu0
  %v5356 = vsel %vm329, %v5203, 0
  %5358 = vmatpush.xpose.msra.mxu0 %v905
  %5359 = vmatpush.xpose.msra.mxu0 %v902
  %5360 = vmatpush.xpose.msra.mxu0 %v899
  %5361 = vmatpush.xpose.msra.mxu0 %v896
  %5362 = vmatpush.xpose.msra.mxu0 %v893
  %5363 = vmatpush.xpose.msra.mxu0 %v890
  %5364 = vmatpush.xpose.msra.mxu0 %v887
  %5365 = vmatpush.xpose.msra.mxu0 %v884
  %5366 = vmatpush.xpose.msra.mxu0 %v881
  %5367 = vmatpush.xpose.msra.mxu0 %v878
  %5368 = vmatpush.xpose.msra.mxu0 %v875
  %5369 = vmatpush.xpose.msra.mxu0 %v872
  %5370 = vmatpush.xpose.msra.mxu0 %v869
  %5371 = vmatpush.xpose.msra.mxu0 %v866
  %5372 = vmatpush.xpose.msra.mxu0 %v863
  %5373 = vmatpush.xpose.msra.mxu0 %v860
  %5374 = vmatmul.f32.gmra.mxu0 %v5356
  %v5375 = vpop.f32.mrf.mxu0
  %v5376 = vadd.f32 0.0, %v5375
  %5377 = vdwg.mxu0
  %v5378 = vadd.f32 %v5222, 0.0
  %v5379 = vadd.f32 %v5244, 0.0
  %v5380 = vadd.f32 %v5266, 0.0
  %v5381 = vadd.f32 %v5288, 0.0
  %v5382 = vadd.f32 %v5310, 0.0
  %v5383 = vadd.f32 %v5332, 0.0
  %v5384 = vadd.f32 %v5354, 0.0
  %v5385 = vadd.f32 %v5376, 0.0
  %v5386 = vadd.f32 %v5378, %v323
  %v5387 = vadd.f32 %v5379, %v323
  %v5388 = vadd.f32 %v5380, %v323
  %v5389 = vadd.f32 %v5381, %v323
  %v5390 = vadd.f32 %v5382, %v323
  %v5391 = vadd.f32 %v5383, %v323
  %v5392 = vadd.f32 %v5384, %v323
  %v5393 = vadd.f32 %v5385, %v323
  %v5402 = vrot.slane %v5387, 7
  %v5403 = vsel %vm952, %v5402, %v5386
  %v5404 = vrot.slane %v5388, 6
  %v5405 = vsel %vm955, %v5404, %v5403
  %v5406 = vrot.slane %v5389, 5
  %v5407 = vsel %vm958, %v5406, %v5405
  %v5408 = vrot.slane %v5390, 4
  %v5409 = vsel %vm961, %v5408, %v5407
  %v5410 = vrot.slane %v5391, 3
  %v5411 = vsel %vm964, %v5410, %v5409
  %v5412 = vrot.slane %v5392, 2
  %v5413 = vsel %vm967, %v5412, %v5411
  %v5414 = vrot.slane %v5393, 1
  %v5415 = vsel %vm970, %v5414, %v5413
  %5417 = vmax.xlane.f32.xlu0 %v5415
  %v5418 = vpop.xlane.xlu0 %5417
  %v5420 = vrot.slane %v5418, 1
  %v5421 = vrot.slane %v5418, 2
  %v5422 = vrot.slane %v5418, 3
  %v5423 = vrot.slane %v5418, 4
  %v5424 = vrot.slane %v5418, 5
  %v5425 = vrot.slane %v5418, 6
  %v5426 = vrot.slane %v5418, 7
  %v5435 = vsub.f32 %v5386, %v5418
  %v5436 = vsub.f32 %v5387, %v5420
  %v5437 = vsub.f32 %v5388, %v5421
  %v5438 = vsub.f32 %v5389, %v5422
  %v5439 = vsub.f32 %v5390, %v5423
  %v5440 = vsub.f32 %v5391, %v5424
  %v5441 = vsub.f32 %v5392, %v5425
  %v5442 = vsub.f32 %v5393, %v5426
  %v5443 = vmul.f32 %v5435, 1.442695
  %v5444 = vpow.pop %v5443
  %v5445 = vmul.f32 %v5436, 1.442695
  %v5446 = vpow.pop %v5445
  %v5447 = vmul.f32 %v5437, 1.442695
  %v5448 = vpow.pop %v5447
  %v5449 = vmul.f32 %v5438, 1.442695
  %v5450 = vpow.pop %v5449
  %v5451 = vmul.f32 %v5439, 1.442695
  %v5452 = vpow.pop %v5451
  %v5453 = vmul.f32 %v5440, 1.442695
  %v5454 = vpow.pop %v5453
  %v5455 = vmul.f32 %v5441, 1.442695
  %v5456 = vpow.pop %v5455
  %v5457 = vmul.f32 %v5442, 1.442695
  %v5458 = vpow.pop %v5457
  %v5467 = vrot.slane %v5446, 7
  %v5468 = vsel %vm952, %v5467, %v5444
  %v5469 = vrot.slane %v5448, 6
  %v5470 = vsel %vm955, %v5469, %v5468
  %v5471 = vrot.slane %v5450, 5
  %v5472 = vsel %vm958, %v5471, %v5470
  %v5473 = vrot.slane %v5452, 4
  %v5474 = vsel %vm961, %v5473, %v5472
  %v5475 = vrot.slane %v5454, 3
  %v5476 = vsel %vm964, %v5475, %v5474
  %v5477 = vrot.slane %v5456, 2
  %v5478 = vsel %vm967, %v5477, %v5476
  %v5479 = vrot.slane %v5458, 1
  %v5480 = vsel %vm970, %v5479, %v5478
  %5482 = vadd.xlane.f32.xlu0 %v5480
  %v5483 = vpop.xlane.xlu0 %5482
  %v5485 = vrot.slane %v5483, 1
  %v5486 = vrot.slane %v5483, 2
  %v5487 = vrot.slane %v5483, 3
  %v5488 = vrot.slane %v5483, 4
  %v5489 = vrot.slane %v5483, 5
  %v5490 = vrot.slane %v5483, 6
  %v5491 = vrot.slane %v5483, 7
  %v5500 = vrcp.pop %v5483
  %v5501 = vmul.f32 %v5483, %v5500
  %v5502 = vsub.f32 1.0, %v5501
  %v5503 = vmul.f32 %v5500, %v5502
  %v5504 = vadd.f32 %v5500, %v5503
  %vm5505 = vweird.f32 %v5483
  %vm5506 = vweird.f32 %v5500
  %vm5507 = vmor %vm5505, %vm5506
  %v5508 = vsel %vm5507, %v5500, %v5504
  %v5509 = vand.u32 2147483647, %v5483
  %vm5510 = vcmp.eq.f32.partialorder %v5509, 8.507059e+37
  %v5511 = vand.u32 %v5483, 2147483648
  %v5512 = vor.u32 1.1754944e-38, %v5511
  %v5513 = vsel %vm5510, %v5512, %v5508
  %v5514 = vmul.f32 %v5444, %v5513
  %v5515 = vrcp.pop %v5485
  %v5516 = vmul.f32 %v5485, %v5515
  %v5517 = vsub.f32 1.0, %v5516
  %v5518 = vmul.f32 %v5515, %v5517
  %v5519 = vadd.f32 %v5515, %v5518
  %vm5520 = vweird.f32 %v5485
  %vm5521 = vweird.f32 %v5515
  %vm5522 = vmor %vm5520, %vm5521
  %v5523 = vsel %vm5522, %v5515, %v5519
  %v5524 = vand.u32 2147483647, %v5485
  %vm5525 = vcmp.eq.f32.partialorder %v5524, 8.507059e+37
  %v5526 = vand.u32 %v5485, 2147483648
  %v5527 = vor.u32 1.1754944e-38, %v5526
  %v5528 = vsel %vm5525, %v5527, %v5523
  %v5529 = vmul.f32 %v5446, %v5528
  %v5530 = vrcp.pop %v5486
  %v5531 = vmul.f32 %v5486, %v5530
  %v5532 = vsub.f32 1.0, %v5531
  %v5533 = vmul.f32 %v5530, %v5532
  %v5534 = vadd.f32 %v5530, %v5533
  %vm5535 = vweird.f32 %v5486
  %vm5536 = vweird.f32 %v5530
  %vm5537 = vmor %vm5535, %vm5536
  %v5538 = vsel %vm5537, %v5530, %v5534
  %v5539 = vand.u32 2147483647, %v5486
  %vm5540 = vcmp.eq.f32.partialorder %v5539, 8.507059e+37
  %v5541 = vand.u32 %v5486, 2147483648
  %v5542 = vor.u32 1.1754944e-38, %v5541
  %v5543 = vsel %vm5540, %v5542, %v5538
  %v5544 = vmul.f32 %v5448, %v5543
  %v5545 = vrcp.pop %v5487
  %v5546 = vmul.f32 %v5487, %v5545
  %v5547 = vsub.f32 1.0, %v5546
  %v5548 = vmul.f32 %v5545, %v5547
  %v5549 = vadd.f32 %v5545, %v5548
  %vm5550 = vweird.f32 %v5487
  %vm5551 = vweird.f32 %v5545
  %vm5552 = vmor %vm5550, %vm5551
  %v5553 = vsel %vm5552, %v5545, %v5549
  %v5554 = vand.u32 2147483647, %v5487
  %vm5555 = vcmp.eq.f32.partialorder %v5554, 8.507059e+37
  %v5556 = vand.u32 %v5487, 2147483648
  %v5557 = vor.u32 1.1754944e-38, %v5556
  %v5558 = vsel %vm5555, %v5557, %v5553
  %v5559 = vmul.f32 %v5450, %v5558
  %v5560 = vrcp.pop %v5488
  %v5561 = vmul.f32 %v5488, %v5560
  %v5562 = vsub.f32 1.0, %v5561
  %v5563 = vmul.f32 %v5560, %v5562
  %v5564 = vadd.f32 %v5560, %v5563
  %vm5565 = vweird.f32 %v5488
  %vm5566 = vweird.f32 %v5560
  %vm5567 = vmor %vm5565, %vm5566
  %v5568 = vsel %vm5567, %v5560, %v5564
  %v5569 = vand.u32 2147483647, %v5488
  %vm5570 = vcmp.eq.f32.partialorder %v5569, 8.507059e+37
  %v5571 = vand.u32 %v5488, 2147483648
  %v5572 = vor.u32 1.1754944e-38, %v5571
  %v5573 = vsel %vm5570, %v5572, %v5568
  %v5574 = vmul.f32 %v5452, %v5573
  %v5575 = vrcp.pop %v5489
  %v5576 = vmul.f32 %v5489, %v5575
  %v5577 = vsub.f32 1.0, %v5576
  %v5578 = vmul.f32 %v5575, %v5577
  %v5579 = vadd.f32 %v5575, %v5578
  %vm5580 = vweird.f32 %v5489
  %vm5581 = vweird.f32 %v5575
  %vm5582 = vmor %vm5580, %vm5581
  %v5583 = vsel %vm5582, %v5575, %v5579
  %v5584 = vand.u32 2147483647, %v5489
  %vm5585 = vcmp.eq.f32.partialorder %v5584, 8.507059e+37
  %v5586 = vand.u32 %v5489, 2147483648
  %v5587 = vor.u32 1.1754944e-38, %v5586
  %v5588 = vsel %vm5585, %v5587, %v5583
  %v5589 = vmul.f32 %v5454, %v5588
  %v5590 = vrcp.pop %v5490
  %v5591 = vmul.f32 %v5490, %v5590
  %v5592 = vsub.f32 1.0, %v5591
  %v5593 = vmul.f32 %v5590, %v5592
  %v5594 = vadd.f32 %v5590, %v5593
  %vm5595 = vweird.f32 %v5490
  %vm5596 = vweird.f32 %v5590
  %vm5597 = vmor %vm5595, %vm5596
  %v5598 = vsel %vm5597, %v5590, %v5594
  %v5599 = vand.u32 2147483647, %v5490
  %vm5600 = vcmp.eq.f32.partialorder %v5599, 8.507059e+37
  %v5601 = vand.u32 %v5490, 2147483648
  %v5602 = vor.u32 1.1754944e-38, %v5601
  %v5603 = vsel %vm5600, %v5602, %v5598
  %v5604 = vmul.f32 %v5456, %v5603
  %v5605 = vrcp.pop %v5491
  %v5606 = vmul.f32 %v5491, %v5605
  %v5607 = vsub.f32 1.0, %v5606
  %v5608 = vmul.f32 %v5605, %v5607
  %v5609 = vadd.f32 %v5605, %v5608
  %vm5610 = vweird.f32 %v5491
  %vm5611 = vweird.f32 %v5605
  %vm5612 = vmor %vm5610, %vm5611
  %v5613 = vsel %vm5612, %v5605, %v5609
  %v5614 = vand.u32 2147483647, %v5491
  %vm5615 = vcmp.eq.f32.partialorder %v5614, 8.507059e+37
  %v5616 = vand.u32 %v5491, 2147483648
  %v5617 = vor.u32 1.1754944e-38, %v5616
  %v5618 = vsel %vm5615, %v5617, %v5613
  %v5619 = vmul.f32 %v5458, %v5618
  %5620 = vmatpush.msra.mxu0 %v181
  %5621 = vmatpush.msra.mxu0 %v180
  %5622 = vmatpush.msra.mxu0 %v179
  %5623 = vmatpush.msra.mxu0 %v178
  %5624 = vmatpush.msra.mxu0 %v177
  %5625 = vmatpush.msra.mxu0 %v176
  %5626 = vmatpush.msra.mxu0 %v175
  %5627 = vmatpush.msra.mxu0 %v174
  %5628 = vmatpush.msra.mxu0 %v173
  %5629 = vmatpush.msra.mxu0 %v172
  %5630 = vmatpush.msra.mxu0 %v171
  %5631 = vmatpush.msra.mxu0 %v170
  %5632 = vmatpush.msra.mxu0 %v169
  %5633 = vmatpush.msra.mxu0 %v168
  %5634 = vmatpush.msra.mxu0 %v167
  %5635 = vmatpush.msra.mxu0 %v166
  %5636 = vmatmul.f32.gmra.mxu0 %v5514
  %v5637 = vpop.f32.mrf.mxu0
  %v5638 = vadd.f32 0.0, %v5637
  %5639 = vdwg.mxu0
  %5640 = vmatpush.msra.mxu0 %v197
  %5641 = vmatpush.msra.mxu0 %v196
  %5642 = vmatpush.msra.mxu0 %v195
  %5643 = vmatpush.msra.mxu0 %v194
  %5644 = vmatpush.msra.mxu0 %v193
  %5645 = vmatpush.msra.mxu0 %v192
  %5646 = vmatpush.msra.mxu0 %v191
  %5647 = vmatpush.msra.mxu0 %v190
  %5648 = vmatpush.msra.mxu0 %v189
  %5649 = vmatpush.msra.mxu0 %v188
  %5650 = vmatpush.msra.mxu0 %v187
  %5651 = vmatpush.msra.mxu0 %v186
  %5652 = vmatpush.msra.mxu0 %v185
  %5653 = vmatpush.msra.mxu0 %v184
  %5654 = vmatpush.msra.mxu0 %v183
  %5655 = vmatpush.msra.mxu0 %v182
  %5656 = vmatmul.f32.gmra.mxu0 %v5529
  %v5657 = vpop.f32.mrf.mxu0
  %v5658 = vadd.f32 0.0, %v5657
  %5659 = vdwg.mxu0
  %5660 = vmatpush.msra.mxu0 %v213
  %5661 = vmatpush.msra.mxu0 %v212
  %5662 = vmatpush.msra.mxu0 %v211
  %5663 = vmatpush.msra.mxu0 %v210
  %5664 = vmatpush.msra.mxu0 %v209
  %5665 = vmatpush.msra.mxu0 %v208
  %5666 = vmatpush.msra.mxu0 %v207
  %5667 = vmatpush.msra.mxu0 %v206
  %5668 = vmatpush.msra.mxu0 %v205
  %5669 = vmatpush.msra.mxu0 %v204
  %5670 = vmatpush.msra.mxu0 %v203
  %5671 = vmatpush.msra.mxu0 %v202
  %5672 = vmatpush.msra.mxu0 %v201
  %5673 = vmatpush.msra.mxu0 %v200
  %5674 = vmatpush.msra.mxu0 %v199
  %5675 = vmatpush.msra.mxu0 %v198
  %5676 = vmatmul.f32.gmra.mxu0 %v5544
  %v5677 = vpop.f32.mrf.mxu0
  %v5678 = vadd.f32 0.0, %v5677
  %5679 = vdwg.mxu0
  %5680 = vmatpush.msra.mxu0 %v229
  %5681 = vmatpush.msra.mxu0 %v228
  %5682 = vmatpush.msra.mxu0 %v227
  %5683 = vmatpush.msra.mxu0 %v226
  %5684 = vmatpush.msra.mxu0 %v225
  %5685 = vmatpush.msra.mxu0 %v224
  %5686 = vmatpush.msra.mxu0 %v223
  %5687 = vmatpush.msra.mxu0 %v222
  %5688 = vmatpush.msra.mxu0 %v221
  %5689 = vmatpush.msra.mxu0 %v220
  %5690 = vmatpush.msra.mxu0 %v219
  %5691 = vmatpush.msra.mxu0 %v218
  %5692 = vmatpush.msra.mxu0 %v217
  %5693 = vmatpush.msra.mxu0 %v216
  %5694 = vmatpush.msra.mxu0 %v215
  %5695 = vmatpush.msra.mxu0 %v214
  %5696 = vmatmul.f32.gmra.mxu0 %v5559
  %v5697 = vpop.f32.mrf.mxu0
  %v5698 = vadd.f32 0.0, %v5697
  %5699 = vdwg.mxu0
  %5700 = vmatpush.msra.mxu0 %v245
  %5701 = vmatpush.msra.mxu0 %v244
  %5702 = vmatpush.msra.mxu0 %v243
  %5703 = vmatpush.msra.mxu0 %v242
  %5704 = vmatpush.msra.mxu0 %v241
  %5705 = vmatpush.msra.mxu0 %v240
  %5706 = vmatpush.msra.mxu0 %v239
  %5707 = vmatpush.msra.mxu0 %v238
  %5708 = vmatpush.msra.mxu0 %v237
  %5709 = vmatpush.msra.mxu0 %v236
  %5710 = vmatpush.msra.mxu0 %v235
  %5711 = vmatpush.msra.mxu0 %v234
  %5712 = vmatpush.msra.mxu0 %v233
  %5713 = vmatpush.msra.mxu0 %v232
  %5714 = vmatpush.msra.mxu0 %v231
  %5715 = vmatpush.msra.mxu0 %v230
  %5716 = vmatmul.f32.gmra.mxu0 %v5574
  %v5717 = vpop.f32.mrf.mxu0
  %v5718 = vadd.f32 0.0, %v5717
  %5719 = vdwg.mxu0
  %5720 = vmatpush.msra.mxu0 %v261
  %5721 = vmatpush.msra.mxu0 %v260
  %5722 = vmatpush.msra.mxu0 %v259
  %5723 = vmatpush.msra.mxu0 %v258
  %5724 = vmatpush.msra.mxu0 %v257
  %5725 = vmatpush.msra.mxu0 %v256
  %5726 = vmatpush.msra.mxu0 %v255
  %5727 = vmatpush.msra.mxu0 %v254
  %5728 = vmatpush.msra.mxu0 %v253
  %5729 = vmatpush.msra.mxu0 %v252
  %5730 = vmatpush.msra.mxu0 %v251
  %5731 = vmatpush.msra.mxu0 %v250
  %5732 = vmatpush.msra.mxu0 %v249
  %5733 = vmatpush.msra.mxu0 %v248
  %5734 = vmatpush.msra.mxu0 %v247
  %5735 = vmatpush.msra.mxu0 %v246
  %5736 = vmatmul.f32.gmra.mxu0 %v5589
  %v5737 = vpop.f32.mrf.mxu0
  %v5738 = vadd.f32 0.0, %v5737
  %5739 = vdwg.mxu0
  %5740 = vmatpush.msra.mxu0 %v277
  %5741 = vmatpush.msra.mxu0 %v276
  %5742 = vmatpush.msra.mxu0 %v275
  %5743 = vmatpush.msra.mxu0 %v274
  %5744 = vmatpush.msra.mxu0 %v273
  %5745 = vmatpush.msra.mxu0 %v272
  %5746 = vmatpush.msra.mxu0 %v271
  %5747 = vmatpush.msra.mxu0 %v270
  %5748 = vmatpush.msra.mxu0 %v269
  %5749 = vmatpush.msra.mxu0 %v268
  %5750 = vmatpush.msra.mxu0 %v267
  %5751 = vmatpush.msra.mxu0 %v266
  %5752 = vmatpush.msra.mxu0 %v265
  %5753 = vmatpush.msra.mxu0 %v264
  %5754 = vmatpush.msra.mxu0 %v263
  %5755 = vmatpush.msra.mxu0 %v262
  %5756 = vmatmul.f32.gmra.mxu0 %v5604
  %v5757 = vpop.f32.mrf.mxu0
  %v5758 = vadd.f32 0.0, %v5757
  %5759 = vdwg.mxu0
  %5760 = vmatpush.msra.mxu0 %v293
  %5761 = vmatpush.msra.mxu0 %v292
  %5762 = vmatpush.msra.mxu0 %v291
  %5763 = vmatpush.msra.mxu0 %v290
  %5764 = vmatpush.msra.mxu0 %v289
  %5765 = vmatpush.msra.mxu0 %v288
  %5766 = vmatpush.msra.mxu0 %v287
  %5767 = vmatpush.msra.mxu0 %v286
  %5768 = vmatpush.msra.mxu0 %v285
  %5769 = vmatpush.msra.mxu0 %v284
  %5770 = vmatpush.msra.mxu0 %v283
  %5771 = vmatpush.msra.mxu0 %v282
  %5772 = vmatpush.msra.mxu0 %v281
  %5773 = vmatpush.msra.mxu0 %v280
  %5774 = vmatpush.msra.mxu0 %v279
  %5775 = vmatpush.msra.mxu0 %v278
  %5776 = vmatmul.f32.gmra.mxu0 %v5619
  %v5777 = vpop.f32.mrf.mxu0
  %v5778 = vadd.f32 0.0, %v5777
  %5779 = vdwg.mxu0
  %v5780 = vadd.f32 %v5638, 0.0
  %v5781 = vadd.f32 %v5658, 0.0
  %v5782 = vadd.f32 %v5678, 0.0
  %v5783 = vadd.f32 %v5698, 0.0
  %v5784 = vadd.f32 %v5718, 0.0
  %v5785 = vadd.f32 %v5738, 0.0
  %v5786 = vadd.f32 %v5758, 0.0
  %v5787 = vadd.f32 %v5778, 0.0
  %v5796 = vrot.slane %v5781, 7
  %v5797 = vsel %vm952, %v5796, %v5780
  %v5798 = vrot.slane %v5782, 6
  %v5799 = vsel %vm955, %v5798, %v5797
  %v5800 = vrot.slane %v5783, 5
  %v5801 = vsel %vm958, %v5800, %v5799
  %v5802 = vrot.slane %v5784, 4
  %v5803 = vsel %vm961, %v5802, %v5801
  %v5804 = vrot.slane %v5785, 3
  %v5805 = vsel %vm964, %v5804, %v5803
  %v5806 = vrot.slane %v5786, 2
  %v5807 = vsel %vm967, %v5806, %v5805
  %v5808 = vrot.slane %v5787, 1
  %v5809 = vsel %vm970, %v5808, %v5807
  %5811 = vmatpush.msra.mxu0 %v309
  %5812 = vmatpush.msra.mxu0 %v308
  %5813 = vmatpush.msra.mxu0 %v307
  %5814 = vmatpush.msra.mxu0 %v306
  %5815 = vmatpush.msra.mxu0 %v305
  %5816 = vmatpush.msra.mxu0 %v304
  %5817 = vmatpush.msra.mxu0 %v303
  %5818 = vmatpush.msra.mxu0 %v302
  %5819 = vmatpush.msra.mxu0 %v301
  %5820 = vmatpush.msra.mxu0 %v300
  %5821 = vmatpush.msra.mxu0 %v299
  %5822 = vmatpush.msra.mxu0 %v298
  %5823 = vmatpush.msra.mxu0 %v297
  %5824 = vmatpush.msra.mxu0 %v296
  %5825 = vmatpush.msra.mxu0 %v295
  %5826 = vmatpush.msra.mxu0 %v294
  %5827 = vmatmul.f32.gmra.mxu0 %v5196
  %v5828 = vpop.f32.mrf.mxu0
  %v5829 = vadd.f32 %v5809, %v5828
  %5830 = vdwg.mxu0
  %5831 = vmatpush.msra.mxu0 0.0
  %5832 = vmatpush.msra.mxu0 0.0
  %5833 = vmatpush.msra.mxu0 0.0
  %5834 = vmatpush.msra.mxu0 0.0
  %5835 = vmatpush.msra.mxu0 0.0
  %5836 = vmatpush.msra.mxu0 0.0
  %5837 = vmatpush.msra.mxu0 0.0
  %5838 = vmatpush.msra.mxu0 0.0
  %5839 = vmatpush.msra.mxu0 0.0
  %5840 = vmatpush.msra.mxu0 0.0
  %5841 = vmatpush.msra.mxu0 0.0
  %5842 = vmatpush.msra.mxu0 0.0
  %5843 = vmatpush.msra.mxu0 %v313
  %5844 = vmatpush.msra.mxu0 %v312
  %5845 = vmatpush.msra.mxu0 %v311
  %5846 = vmatpush.msra.mxu0 %v310
  %5847 = vmatmul.f32.gmra.mxu0 %v5115
  %v5848 = vpop.f32.mrf.mxu0
  %v5849 = vadd.f32 0.0, %v5848
  %5850 = vdwg.mxu0
  %v5851 = vadd.f32 %v5829, %v5849
  %v5852 = vadd.f32 %v5851, %v1409
  %v5853 = vtanh.pop %v5852
  %v5855 = vsel %vm329, %v5853, 0
  %5857 = vmatpush.msra.mxu0 0.0
  %5858 = vmatpush.msra.mxu0 0.0
  %5859 = vmatpush.msra.mxu0 0.0
  %5860 = vmatpush.msra.mxu0 0.0
  %5861 = vmatpush.msra.mxu0 0.0
  %5862 = vmatpush.msra.mxu0 0.0
  %5863 = vmatpush.msra.mxu0 0.0
  %5864 = vmatpush.msra.mxu0 0.0
  %5865 = vmatpush.msra.mxu0 0.0
  %5866 = vmatpush.msra.mxu0 0.0
  %5867 = vmatpush.msra.mxu0 0.0
  %5868 = vmatpush.msra.mxu0 0.0
  %5869 = vmatpush.msra.mxu0 %v318
  %5870 = vmatpush.msra.mxu0 %v317
  %5871 = vmatpush.msra.mxu0 %v316
  %5872 = vmatpush.msra.mxu0 %v315
  %5873 = vmatmul.f32.gmra.mxu0 %v5855
  %v5874 = vpop.f32.mrf.mxu0
  %v5875 = vadd.f32 %v1414, %v5874
  %5876 = vdwg.mxu0
  %5877 = vmax.xlane.f32.xlu0 %v5875
  %v5878 = vpop.xlane.xlu0 %5877
  %vm5879 = vcmp.eq.f32.partialorder %v5875, %v5878
  %v5880 = vsel %vm5879, %v321, 128
  %v5881 = vand.u32 %v5880, 65535
  %v5882 = vshra.s32 %v5880, 16
  %v5883 = vcvt.s32.f32 %v5881
  %v5884 = vcvt.s32.f32 %v5882
  %5885 = vmin.xlane.f32.xlu0 %v5884
  %v5886 = vpop.xlane.xlu0 %5885
  %vm5887 = vcmp.eq.f32.partialorder %v5884, %v5886
  %v5888 = vsel %vm5887, %v5883, inf
  %5889 = vmin.xlane.f32.xlu0 %v5888
  %v5890 = vpop.xlane.xlu0 %5889
  %v5891 = vcvt.f32.s32 %v5890
  %v5892 = vcvt.f32.s32 %v5886
  %v5893 = vshll.u32 %v5892, 16
  %v5894 = vadd.s32 %v5893, %v5891
  %v5895 = vsel %vm5193, 1, 0
  %5896 = vset.pattern.permute.xlu0 0
  %5897 = vperm.xlu0 %5896, %v5895
  %v5898 = vpop.permute.xlu0 %5897
  %vm5899 = vcmp.eq.s32.totalorder %v5898, 1
  %v5900 = vsel %vm5899, %v5875, 0.0
  %s5901 = scalar_lea.vmem %s10, 48
  %5902 = vst [vmem:[%s5901] sm:$0xff] %v5900
  %v5911 = vrot.slane %v5529, 7
  %v5912 = vsel %vm952, %v5911, %v5514
  %v5913 = vrot.slane %v5544, 6
  %v5914 = vsel %vm955, %v5913, %v5912
  %v5915 = vrot.slane %v5559, 5
  %v5916 = vsel %vm958, %v5915, %v5914
  %v5917 = vrot.slane %v5574, 4
  %v5918 = vsel %vm961, %v5917, %v5916
  %v5919 = vrot.slane %v5589, 3
  %v5920 = vsel %vm964, %v5919, %v5918
  %v5921 = vrot.slane %v5604, 2
  %v5922 = vsel %vm967, %v5921, %v5920
  %v5923 = vrot.slane %v5619, 1
  %v5924 = vsel %vm970, %v5923, %v5922
  %v5926 = vsel %vm5899, %v5924, 0.0
  %s5927 = scalar_lea.vmem %s11, 48
  %5928 = vst [vmem:[%s5927] sm:$0xff] %v5926
  %vm5929 = vcmp.eq.s32.totalorder %v5894, 2
  %vm5930 = vcmp.lt.s32.totalorder %v5192, 7
  %v5931 = vsel %vm5930, %v5192, 7
  %v5932 = vsel %vm5929, %v5931, %v5192
  %vm5933 = vcmp.gt.s32.totalorder %v5932, 7
  %vm5934 = vcmp.eq.s32.totalorder %v321, %v5894
  %v5935 = vsel %vm5934, 1, 0
  %v5936 = vcvt.s32.f32 %v5935
  %v5937 = vrot.slane %v5853, 1
  %v5938 = vrot.slane %v5853, 2
  %v5939 = vrot.slane %v5853, 3
  %v5940 = vrot.slane %v5853, 4
  %v5941 = vrot.slane %v5853, 5
  %v5942 = vrot.slane %v5853, 6
  %v5943 = vrot.slane %v5853, 7
  %5944 = vmatpush.xpose.msra.mxu0 %v415
  %5945 = vmatpush.xpose.msra.mxu0 %v412
  %5946 = vmatpush.xpose.msra.mxu0 %v409
  %5947 = vmatpush.xpose.msra.mxu0 %v406
  %5948 = vmatpush.xpose.msra.mxu0 %v403
  %5949 = vmatpush.xpose.msra.mxu0 %v400
  %5950 = vmatpush.xpose.msra.mxu0 %v397
  %5951 = vmatpush.xpose.msra.mxu0 %v394
  %5952 = vmatpush.xpose.msra.mxu0 %v391
  %5953 = vmatpush.xpose.msra.mxu0 %v388
  %5954 = vmatpush.xpose.msra.mxu0 %v385
  %5955 = vmatpush.xpose.msra.mxu0 %v382
  %5956 = vmatpush.xpose.msra.mxu0 %v379
  %5957 = vmatpush.xpose.msra.mxu0 %v376
  %5958 = vmatpush.xpose.msra.mxu0 %v373
  %5959 = vmatpush.xpose.msra.mxu0 %v370
  %5960 = vmatmul.f32.gmra.mxu0 %v5855
  %v5961 = vpop.f32.mrf.mxu0
  %v5962 = vadd.f32 0.0, %v5961
  %5963 = vdwg.mxu0
  %v5964 = vsel %vm329, %v5937, 0
  %5966 = vmatpush.xpose.msra.mxu0 %v485
  %5967 = vmatpush.xpose.msra.mxu0 %v482
  %5968 = vmatpush.xpose.msra.mxu0 %v479
  %5969 = vmatpush.xpose.msra.mxu0 %v476
  %5970 = vmatpush.xpose.msra.mxu0 %v473
  %5971 = vmatpush.xpose.msra.mxu0 %v470
  %5972 = vmatpush.xpose.msra.mxu0 %v467
  %5973 = vmatpush.xpose.msra.mxu0 %v464
  %5974 = vmatpush.xpose.msra.mxu0 %v461
  %5975 = vmatpush.xpose.msra.mxu0 %v458
  %5976 = vmatpush.xpose.msra.mxu0 %v455
  %5977 = vmatpush.xpose.msra.mxu0 %v452
  %5978 = vmatpush.xpose.msra.mxu0 %v449
  %5979 = vmatpush.xpose.msra.mxu0 %v446
  %5980 = vmatpush.xpose.msra.mxu0 %v443
  %5981 = vmatpush.xpose.msra.mxu0 %v440
  %5982 = vmatmul.f32.gmra.mxu0 %v5964
  %v5983 = vpop.f32.mrf.mxu0
  %v5984 = vadd.f32 0.0, %v5983
  %5985 = vdwg.mxu0
  %v5986 = vsel %vm329, %v5938, 0
  %5988 = vmatpush.xpose.msra.mxu0 %v555
  %5989 = vmatpush.xpose.msra.mxu0 %v552
  %5990 = vmatpush.xpose.msra.mxu0 %v549
  %5991 = vmatpush.xpose.msra.mxu0 %v546
  %5992 = vmatpush.xpose.msra.mxu0 %v543
  %5993 = vmatpush.xpose.msra.mxu0 %v540
  %5994 = vmatpush.xpose.msra.mxu0 %v537
  %5995 = vmatpush.xpose.msra.mxu0 %v534
  %5996 = vmatpush.xpose.msra.mxu0 %v531
  %5997 = vmatpush.xpose.msra.mxu0 %v528
  %5998 = vmatpush.xpose.msra.mxu0 %v525
  %5999 = vmatpush.xpose.msra.mxu0 %v522
  %6000 = vmatpush.xpose.msra.mxu0 %v519
  %6001 = vmatpush.xpose.msra.mxu0 %v516
  %6002 = vmatpush.xpose.msra.mxu0 %v513
  %6003 = vmatpush.xpose.msra.mxu0 %v510
  %6004 = vmatmul.f32.gmra.mxu0 %v5986
  %v6005 = vpop.f32.mrf.mxu0
  %v6006 = vadd.f32 0.0, %v6005
  %6007 = vdwg.mxu0
  %v6008 = vsel %vm329, %v5939, 0
  %6010 = vmatpush.xpose.msra.mxu0 %v625
  %6011 = vmatpush.xpose.msra.mxu0 %v622
  %6012 = vmatpush.xpose.msra.mxu0 %v619
  %6013 = vmatpush.xpose.msra.mxu0 %v616
  %6014 = vmatpush.xpose.msra.mxu0 %v613
  %6015 = vmatpush.xpose.msra.mxu0 %v610
  %6016 = vmatpush.xpose.msra.mxu0 %v607
  %6017 = vmatpush.xpose.msra.mxu0 %v604
  %6018 = vmatpush.xpose.msra.mxu0 %v601
  %6019 = vmatpush.xpose.msra.mxu0 %v598
  %6020 = vmatpush.xpose.msra.mxu0 %v595
  %6021 = vmatpush.xpose.msra.mxu0 %v592
  %6022 = vmatpush.xpose.msra.mxu0 %v589
  %6023 = vmatpush.xpose.msra.mxu0 %v586
  %6024 = vmatpush.xpose.msra.mxu0 %v583
  %6025 = vmatpush.xpose.msra.mxu0 %v580
  %6026 = vmatmul.f32.gmra.mxu0 %v6008
  %v6027 = vpop.f32.mrf.mxu0
  %v6028 = vadd.f32 0.0, %v6027
  %6029 = vdwg.mxu0
  %v6030 = vsel %vm329, %v5940, 0
  %6032 = vmatpush.xpose.msra.mxu0 %v695
  %6033 = vmatpush.xpose.msra.mxu0 %v692
  %6034 = vmatpush.xpose.msra.mxu0 %v689
  %6035 = vmatpush.xpose.msra.mxu0 %v686
  %6036 = vmatpush.xpose.msra.mxu0 %v683
  %6037 = vmatpush.xpose.msra.mxu0 %v680
  %6038 = vmatpush.xpose.msra.mxu0 %v677
  %6039 = vmatpush.xpose.msra.mxu0 %v674
  %6040 = vmatpush.xpose.msra.mxu0 %v671
  %6041 = vmatpush.xpose.msra.mxu0 %v668
  %6042 = vmatpush.xpose.msra.mxu0 %v665
  %6043 = vmatpush.xpose.msra.mxu0 %v662
  %6044 = vmatpush.xpose.msra.mxu0 %v659
  %6045 = vmatpush.xpose.msra.mxu0 %v656
  %6046 = vmatpush.xpose.msra.mxu0 %v653
  %6047 = vmatpush.xpose.msra.mxu0 %v650
  %6048 = vmatmul.f32.gmra.mxu0 %v6030
  %v6049 = vpop.f32.mrf.mxu0
  %v6050 = vadd.f32 0.0, %v6049
  %6051 = vdwg.mxu0
  %v6052 = vsel %vm329, %v5941, 0
  %6054 = vmatpush.xpose.msra.mxu0 %v765
  %6055 = vmatpush.xpose.msra.mxu0 %v762
  %6056 = vmatpush.xpose.msra.mxu0 %v759
  %6057 = vmatpush.xpose.msra.mxu0 %v756
  %6058 = vmatpush.xpose.msra.mxu0 %v753
  %6059 = vmatpush.xpose.msra.mxu0 %v750
  %6060 = vmatpush.xpose.msra.mxu0 %v747
  %6061 = vmatpush.xpose.msra.mxu0 %v744
  %6062 = vmatpush.xpose.msra.mxu0 %v741
  %6063 = vmatpush.xpose.msra.mxu0 %v738
  %6064 = vmatpush.xpose.msra.mxu0 %v735
  %6065 = vmatpush.xpose.msra.mxu0 %v732
  %6066 = vmatpush.xpose.msra.mxu0 %v729
  %6067 = vmatpush.xpose.msra.mxu0 %v726
  %6068 = vmatpush.xpose.msra.mxu0 %v723
  %6069 = vmatpush.xpose.msra.mxu0 %v720
  %6070 = vmatmul.f32.gmra.mxu0 %v6052
  %v6071 = vpop.f32.mrf.mxu0
  %v6072 = vadd.f32 0.0, %v6071
  %6073 = vdwg.mxu0
  %v6074 = vsel %vm329, %v5942, 0
  %6076 = vmatpush.xpose.msra.mxu0 %v835
  %6077 = vmatpush.xpose.msra.mxu0 %v832
  %6078 = vmatpush.xpose.msra.mxu0 %v829
  %6079 = vmatpush.xpose.msra.mxu0 %v826
  %6080 = vmatpush.xpose.msra.mxu0 %v823
  %6081 = vmatpush.xpose.msra.mxu0 %v820
  %6082 = vmatpush.xpose.msra.mxu0 %v817
  %6083 = vmatpush.xpose.msra.mxu0 %v814
  %6084 = vmatpush.xpose.msra.mxu0 %v811
  %6085 = vmatpush.xpose.msra.mxu0 %v808
  %6086 = vmatpush.xpose.msra.mxu0 %v805
  %6087 = vmatpush.xpose.msra.mxu0 %v802
  %6088 = vmatpush.xpose.msra.mxu0 %v799
  %6089 = vmatpush.xpose.msra.mxu0 %v796
  %6090 = vmatpush.xpose.msra.mxu0 %v793
  %6091 = vmatpush.xpose.msra.mxu0 %v790
  %6092 = vmatmul.f32.gmra.mxu0 %v6074
  %v6093 = vpop.f32.mrf.mxu0
  %v6094 = vadd.f32 0.0, %v6093
  %6095 = vdwg.mxu0
  %v6096 = vsel %vm329, %v5943, 0
  %6098 = vmatpush.xpose.msra.mxu0 %v905
  %6099 = vmatpush.xpose.msra.mxu0 %v902
  %6100 = vmatpush.xpose.msra.mxu0 %v899
  %6101 = vmatpush.xpose.msra.mxu0 %v896
  %6102 = vmatpush.xpose.msra.mxu0 %v893
  %6103 = vmatpush.xpose.msra.mxu0 %v890
  %6104 = vmatpush.xpose.msra.mxu0 %v887
  %6105 = vmatpush.xpose.msra.mxu0 %v884
  %6106 = vmatpush.xpose.msra.mxu0 %v881
  %6107 = vmatpush.xpose.msra.mxu0 %v878
  %6108 = vmatpush.xpose.msra.mxu0 %v875
  %6109 = vmatpush.xpose.msra.mxu0 %v872
  %6110 = vmatpush.xpose.msra.mxu0 %v869
  %6111 = vmatpush.xpose.msra.mxu0 %v866
  %6112 = vmatpush.xpose.msra.mxu0 %v863
  %6113 = vmatpush.xpose.msra.mxu0 %v860
  %6114 = vmatmul.f32.gmra.mxu0 %v6096
  %v6115 = vpop.f32.mrf.mxu0
  %v6116 = vadd.f32 0.0, %v6115
  %6117 = vdwg.mxu0
  %v6118 = vadd.f32 %v5962, 0.0
  %v6119 = vadd.f32 %v5984, 0.0
  %v6120 = vadd.f32 %v6006, 0.0
  %v6121 = vadd.f32 %v6028, 0.0
  %v6122 = vadd.f32 %v6050, 0.0
  %v6123 = vadd.f32 %v6072, 0.0
  %v6124 = vadd.f32 %v6094, 0.0
  %v6125 = vadd.f32 %v6116, 0.0
  %v6126 = vadd.f32 %v6118, %v323
  %v6127 = vadd.f32 %v6119, %v323
  %v6128 = vadd.f32 %v6120, %v323
  %v6129 = vadd.f32 %v6121, %v323
  %v6130 = vadd.f32 %v6122, %v323
  %v6131 = vadd.f32 %v6123, %v323
  %v6132 = vadd.f32 %v6124, %v323
  %v6133 = vadd.f32 %v6125, %v323
  %v6142 = vrot.slane %v6127, 7
  %v6143 = vsel %vm952, %v6142, %v6126
  %v6144 = vrot.slane %v6128, 6
  %v6145 = vsel %vm955, %v6144, %v6143
  %v6146 = vrot.slane %v6129, 5
  %v6147 = vsel %vm958, %v6146, %v6145
  %v6148 = vrot.slane %v6130, 4
  %v6149 = vsel %vm961, %v6148, %v6147
  %v6150 = vrot.slane %v6131, 3
  %v6151 = vsel %vm964, %v6150, %v6149
  %v6152 = vrot.slane %v6132, 2
  %v6153 = vsel %vm967, %v6152, %v6151
  %v6154 = vrot.slane %v6133, 1
  %v6155 = vsel %vm970, %v6154, %v6153
  %6157 = vmax.xlane.f32.xlu0 %v6155
  %v6158 = vpop.xlane.xlu0 %6157
  %v6160 = vrot.slane %v6158, 1
  %v6161 = vrot.slane %v6158, 2
  %v6162 = vrot.slane %v6158, 3
  %v6163 = vrot.slane %v6158, 4
  %v6164 = vrot.slane %v6158, 5
  %v6165 = vrot.slane %v6158, 6
  %v6166 = vrot.slane %v6158, 7
  %v6175 = vsub.f32 %v6126, %v6158
  %v6176 = vsub.f32 %v6127, %v6160
  %v6177 = vsub.f32 %v6128, %v6161
  %v6178 = vsub.f32 %v6129, %v6162
  %v6179 = vsub.f32 %v6130, %v6163
  %v6180 = vsub.f32 %v6131, %v6164
  %v6181 = vsub.f32 %v6132, %v6165
  %v6182 = vsub.f32 %v6133, %v6166
  %v6183 = vmul.f32 %v6175, 1.442695
  %v6184 = vpow.pop %v6183
  %v6185 = vmul.f32 %v6176, 1.442695
  %v6186 = vpow.pop %v6185
  %v6187 = vmul.f32 %v6177, 1.442695
  %v6188 = vpow.pop %v6187
  %v6189 = vmul.f32 %v6178, 1.442695
  %v6190 = vpow.pop %v6189
  %v6191 = vmul.f32 %v6179, 1.442695
  %v6192 = vpow.pop %v6191
  %v6193 = vmul.f32 %v6180, 1.442695
  %v6194 = vpow.pop %v6193
  %v6195 = vmul.f32 %v6181, 1.442695
  %v6196 = vpow.pop %v6195
  %v6197 = vmul.f32 %v6182, 1.442695
  %v6198 = vpow.pop %v6197
  %v6207 = vrot.slane %v6186, 7
  %v6208 = vsel %vm952, %v6207, %v6184
  %v6209 = vrot.slane %v6188, 6
  %v6210 = vsel %vm955, %v6209, %v6208
  %v6211 = vrot.slane %v6190, 5
  %v6212 = vsel %vm958, %v6211, %v6210
  %v6213 = vrot.slane %v6192, 4
  %v6214 = vsel %vm961, %v6213, %v6212
  %v6215 = vrot.slane %v6194, 3
  %v6216 = vsel %vm964, %v6215, %v6214
  %v6217 = vrot.slane %v6196, 2
  %v6218 = vsel %vm967, %v6217, %v6216
  %v6219 = vrot.slane %v6198, 1
  %v6220 = vsel %vm970, %v6219, %v6218
  %6222 = vadd.xlane.f32.xlu0 %v6220
  %v6223 = vpop.xlane.xlu0 %6222
  %v6225 = vrot.slane %v6223, 1
  %v6226 = vrot.slane %v6223, 2
  %v6227 = vrot.slane %v6223, 3
  %v6228 = vrot.slane %v6223, 4
  %v6229 = vrot.slane %v6223, 5
  %v6230 = vrot.slane %v6223, 6
  %v6231 = vrot.slane %v6223, 7
  %v6240 = vrcp.pop %v6223
  %v6241 = vmul.f32 %v6223, %v6240
  %v6242 = vsub.f32 1.0, %v6241
  %v6243 = vmul.f32 %v6240, %v6242
  %v6244 = vadd.f32 %v6240, %v6243
  %vm6245 = vweird.f32 %v6223
  %vm6246 = vweird.f32 %v6240
  %vm6247 = vmor %vm6245, %vm6246
  %v6248 = vsel %vm6247, %v6240, %v6244
  %v6249 = vand.u32 2147483647, %v6223
  %vm6250 = vcmp.eq.f32.partialorder %v6249, 8.507059e+37
  %v6251 = vand.u32 %v6223, 2147483648
  %v6252 = vor.u32 1.1754944e-38, %v6251
  %v6253 = vsel %vm6250, %v6252, %v6248
  %v6254 = vmul.f32 %v6184, %v6253
  %v6255 = vrcp.pop %v6225
  %v6256 = vmul.f32 %v6225, %v6255
  %v6257 = vsub.f32 1.0, %v6256
  %v6258 = vmul.f32 %v6255, %v6257
  %v6259 = vadd.f32 %v6255, %v6258
  %vm6260 = vweird.f32 %v6225
  %vm6261 = vweird.f32 %v6255
  %vm6262 = vmor %vm6260, %vm6261
  %v6263 = vsel %vm6262, %v6255, %v6259
  %v6264 = vand.u32 2147483647, %v6225
  %vm6265 = vcmp.eq.f32.partialorder %v6264, 8.507059e+37
  %v6266 = vand.u32 %v6225, 2147483648
  %v6267 = vor.u32 1.1754944e-38, %v6266
  %v6268 = vsel %vm6265, %v6267, %v6263
  %v6269 = vmul.f32 %v6186, %v6268
  %v6270 = vrcp.pop %v6226
  %v6271 = vmul.f32 %v6226, %v6270
  %v6272 = vsub.f32 1.0, %v6271
  %v6273 = vmul.f32 %v6270, %v6272
  %v6274 = vadd.f32 %v6270, %v6273
  %vm6275 = vweird.f32 %v6226
  %vm6276 = vweird.f32 %v6270
  %vm6277 = vmor %vm6275, %vm6276
  %v6278 = vsel %vm6277, %v6270, %v6274
  %v6279 = vand.u32 2147483647, %v6226
  %vm6280 = vcmp.eq.f32.partialorder %v6279, 8.507059e+37
  %v6281 = vand.u32 %v6226, 2147483648
  %v6282 = vor.u32 1.1754944e-38, %v6281
  %v6283 = vsel %vm6280, %v6282, %v6278
  %v6284 = vmul.f32 %v6188, %v6283
  %v6285 = vrcp.pop %v6227
  %v6286 = vmul.f32 %v6227, %v6285
  %v6287 = vsub.f32 1.0, %v6286
  %v6288 = vmul.f32 %v6285, %v6287
  %v6289 = vadd.f32 %v6285, %v6288
  %vm6290 = vweird.f32 %v6227
  %vm6291 = vweird.f32 %v6285
  %vm6292 = vmor %vm6290, %vm6291
  %v6293 = vsel %vm6292, %v6285, %v6289
  %v6294 = vand.u32 2147483647, %v6227
  %vm6295 = vcmp.eq.f32.partialorder %v6294, 8.507059e+37
  %v6296 = vand.u32 %v6227, 2147483648
  %v6297 = vor.u32 1.1754944e-38, %v6296
  %v6298 = vsel %vm6295, %v6297, %v6293
  %v6299 = vmul.f32 %v6190, %v6298
  %v6300 = vrcp.pop %v6228
  %v6301 = vmul.f32 %v6228, %v6300
  %v6302 = vsub.f32 1.0, %v6301
  %v6303 = vmul.f32 %v6300, %v6302
  %v6304 = vadd.f32 %v6300, %v6303
  %vm6305 = vweird.f32 %v6228
  %vm6306 = vweird.f32 %v6300
  %vm6307 = vmor %vm6305, %vm6306
  %v6308 = vsel %vm6307, %v6300, %v6304
  %v6309 = vand.u32 2147483647, %v6228
  %vm6310 = vcmp.eq.f32.partialorder %v6309, 8.507059e+37
  %v6311 = vand.u32 %v6228, 2147483648
  %v6312 = vor.u32 1.1754944e-38, %v6311
  %v6313 = vsel %vm6310, %v6312, %v6308
  %v6314 = vmul.f32 %v6192, %v6313
  %v6315 = vrcp.pop %v6229
  %v6316 = vmul.f32 %v6229, %v6315
  %v6317 = vsub.f32 1.0, %v6316
  %v6318 = vmul.f32 %v6315, %v6317
  %v6319 = vadd.f32 %v6315, %v6318
  %vm6320 = vweird.f32 %v6229
  %vm6321 = vweird.f32 %v6315
  %vm6322 = vmor %vm6320, %vm6321
  %v6323 = vsel %vm6322, %v6315, %v6319
  %v6324 = vand.u32 2147483647, %v6229
  %vm6325 = vcmp.eq.f32.partialorder %v6324, 8.507059e+37
  %v6326 = vand.u32 %v6229, 2147483648
  %v6327 = vor.u32 1.1754944e-38, %v6326
  %v6328 = vsel %vm6325, %v6327, %v6323
  %v6329 = vmul.f32 %v6194, %v6328
  %v6330 = vrcp.pop %v6230
  %v6331 = vmul.f32 %v6230, %v6330
  %v6332 = vsub.f32 1.0, %v6331
  %v6333 = vmul.f32 %v6330, %v6332
  %v6334 = vadd.f32 %v6330, %v6333
  %vm6335 = vweird.f32 %v6230
  %vm6336 = vweird.f32 %v6330
  %vm6337 = vmor %vm6335, %vm6336
  %v6338 = vsel %vm6337, %v6330, %v6334
  %v6339 = vand.u32 2147483647, %v6230
  %vm6340 = vcmp.eq.f32.partialorder %v6339, 8.507059e+37
  %v6341 = vand.u32 %v6230, 2147483648
  %v6342 = vor.u32 1.1754944e-38, %v6341
  %v6343 = vsel %vm6340, %v6342, %v6338
  %v6344 = vmul.f32 %v6196, %v6343
  %v6345 = vrcp.pop %v6231
  %v6346 = vmul.f32 %v6231, %v6345
  %v6347 = vsub.f32 1.0, %v6346
  %v6348 = vmul.f32 %v6345, %v6347
  %v6349 = vadd.f32 %v6345, %v6348
  %vm6350 = vweird.f32 %v6231
  %vm6351 = vweird.f32 %v6345
  %vm6352 = vmor %vm6350, %vm6351
  %v6353 = vsel %vm6352, %v6345, %v6349
  %v6354 = vand.u32 2147483647, %v6231
  %vm6355 = vcmp.eq.f32.partialorder %v6354, 8.507059e+37
  %v6356 = vand.u32 %v6231, 2147483648
  %v6357 = vor.u32 1.1754944e-38, %v6356
  %v6358 = vsel %vm6355, %v6357, %v6353
  %v6359 = vmul.f32 %v6198, %v6358
  %6360 = vmatpush.msra.mxu0 %v181
  %6361 = vmatpush.msra.mxu0 %v180
  %6362 = vmatpush.msra.mxu0 %v179
  %6363 = vmatpush.msra.mxu0 %v178
  %6364 = vmatpush.msra.mxu0 %v177
  %6365 = vmatpush.msra.mxu0 %v176
  %6366 = vmatpush.msra.mxu0 %v175
  %6367 = vmatpush.msra.mxu0 %v174
  %6368 = vmatpush.msra.mxu0 %v173
  %6369 = vmatpush.msra.mxu0 %v172
  %6370 = vmatpush.msra.mxu0 %v171
  %6371 = vmatpush.msra.mxu0 %v170
  %6372 = vmatpush.msra.mxu0 %v169
  %6373 = vmatpush.msra.mxu0 %v168
  %6374 = vmatpush.msra.mxu0 %v167
  %6375 = vmatpush.msra.mxu0 %v166
  %6376 = vmatmul.f32.gmra.mxu0 %v6254
  %v6377 = vpop.f32.mrf.mxu0
  %v6378 = vadd.f32 0.0, %v6377
  %6379 = vdwg.mxu0
  %6380 = vmatpush.msra.mxu0 %v197
  %6381 = vmatpush.msra.mxu0 %v196
  %6382 = vmatpush.msra.mxu0 %v195
  %6383 = vmatpush.msra.mxu0 %v194
  %6384 = vmatpush.msra.mxu0 %v193
  %6385 = vmatpush.msra.mxu0 %v192
  %6386 = vmatpush.msra.mxu0 %v191
  %6387 = vmatpush.msra.mxu0 %v190
  %6388 = vmatpush.msra.mxu0 %v189
  %6389 = vmatpush.msra.mxu0 %v188
  %6390 = vmatpush.msra.mxu0 %v187
  %6391 = vmatpush.msra.mxu0 %v186
  %6392 = vmatpush.msra.mxu0 %v185
  %6393 = vmatpush.msra.mxu0 %v184
  %6394 = vmatpush.msra.mxu0 %v183
  %6395 = vmatpush.msra.mxu0 %v182
  %6396 = vmatmul.f32.gmra.mxu0 %v6269
  %v6397 = vpop.f32.mrf.mxu0
  %v6398 = vadd.f32 0.0, %v6397
  %6399 = vdwg.mxu0
  %6400 = vmatpush.msra.mxu0 %v213
  %6401 = vmatpush.msra.mxu0 %v212
  %6402 = vmatpush.msra.mxu0 %v211
  %6403 = vmatpush.msra.mxu0 %v210
  %6404 = vmatpush.msra.mxu0 %v209
  %6405 = vmatpush.msra.mxu0 %v208
  %6406 = vmatpush.msra.mxu0 %v207
  %6407 = vmatpush.msra.mxu0 %v206
  %6408 = vmatpush.msra.mxu0 %v205
  %6409 = vmatpush.msra.mxu0 %v204
  %6410 = vmatpush.msra.mxu0 %v203
  %6411 = vmatpush.msra.mxu0 %v202
  %6412 = vmatpush.msra.mxu0 %v201
  %6413 = vmatpush.msra.mxu0 %v200
  %6414 = vmatpush.msra.mxu0 %v199
  %6415 = vmatpush.msra.mxu0 %v198
  %6416 = vmatmul.f32.gmra.mxu0 %v6284
  %v6417 = vpop.f32.mrf.mxu0
  %v6418 = vadd.f32 0.0, %v6417
  %6419 = vdwg.mxu0
  %6420 = vmatpush.msra.mxu0 %v229
  %6421 = vmatpush.msra.mxu0 %v228
  %6422 = vmatpush.msra.mxu0 %v227
  %6423 = vmatpush.msra.mxu0 %v226
  %6424 = vmatpush.msra.mxu0 %v225
  %6425 = vmatpush.msra.mxu0 %v224
  %6426 = vmatpush.msra.mxu0 %v223
  %6427 = vmatpush.msra.mxu0 %v222
  %6428 = vmatpush.msra.mxu0 %v221
  %6429 = vmatpush.msra.mxu0 %v220
  %6430 = vmatpush.msra.mxu0 %v219
  %6431 = vmatpush.msra.mxu0 %v218
  %6432 = vmatpush.msra.mxu0 %v217
  %6433 = vmatpush.msra.mxu0 %v216
  %6434 = vmatpush.msra.mxu0 %v215
  %6435 = vmatpush.msra.mxu0 %v214
  %6436 = vmatmul.f32.gmra.mxu0 %v6299
  %v6437 = vpop.f32.mrf.mxu0
  %v6438 = vadd.f32 0.0, %v6437
  %6439 = vdwg.mxu0
  %6440 = vmatpush.msra.mxu0 %v245
  %6441 = vmatpush.msra.mxu0 %v244
  %6442 = vmatpush.msra.mxu0 %v243
  %6443 = vmatpush.msra.mxu0 %v242
  %6444 = vmatpush.msra.mxu0 %v241
  %6445 = vmatpush.msra.mxu0 %v240
  %6446 = vmatpush.msra.mxu0 %v239
  %6447 = vmatpush.msra.mxu0 %v238
  %6448 = vmatpush.msra.mxu0 %v237
  %6449 = vmatpush.msra.mxu0 %v236
  %6450 = vmatpush.msra.mxu0 %v235
  %6451 = vmatpush.msra.mxu0 %v234
  %6452 = vmatpush.msra.mxu0 %v233
  %6453 = vmatpush.msra.mxu0 %v232
  %6454 = vmatpush.msra.mxu0 %v231
  %6455 = vmatpush.msra.mxu0 %v230
  %6456 = vmatmul.f32.gmra.mxu0 %v6314
  %v6457 = vpop.f32.mrf.mxu0
  %v6458 = vadd.f32 0.0, %v6457
  %6459 = vdwg.mxu0
  %6460 = vmatpush.msra.mxu0 %v261
  %6461 = vmatpush.msra.mxu0 %v260
  %6462 = vmatpush.msra.mxu0 %v259
  %6463 = vmatpush.msra.mxu0 %v258
  %6464 = vmatpush.msra.mxu0 %v257
  %6465 = vmatpush.msra.mxu0 %v256
  %6466 = vmatpush.msra.mxu0 %v255
  %6467 = vmatpush.msra.mxu0 %v254
  %6468 = vmatpush.msra.mxu0 %v253
  %6469 = vmatpush.msra.mxu0 %v252
  %6470 = vmatpush.msra.mxu0 %v251
  %6471 = vmatpush.msra.mxu0 %v250
  %6472 = vmatpush.msra.mxu0 %v249
  %6473 = vmatpush.msra.mxu0 %v248
  %6474 = vmatpush.msra.mxu0 %v247
  %6475 = vmatpush.msra.mxu0 %v246
  %6476 = vmatmul.f32.gmra.mxu0 %v6329
  %v6477 = vpop.f32.mrf.mxu0
  %v6478 = vadd.f32 0.0, %v6477
  %6479 = vdwg.mxu0
  %6480 = vmatpush.msra.mxu0 %v277
  %6481 = vmatpush.msra.mxu0 %v276
  %6482 = vmatpush.msra.mxu0 %v275
  %6483 = vmatpush.msra.mxu0 %v274
  %6484 = vmatpush.msra.mxu0 %v273
  %6485 = vmatpush.msra.mxu0 %v272
  %6486 = vmatpush.msra.mxu0 %v271
  %6487 = vmatpush.msra.mxu0 %v270
  %6488 = vmatpush.msra.mxu0 %v269
  %6489 = vmatpush.msra.mxu0 %v268
  %6490 = vmatpush.msra.mxu0 %v267
  %6491 = vmatpush.msra.mxu0 %v266
  %6492 = vmatpush.msra.mxu0 %v265
  %6493 = vmatpush.msra.mxu0 %v264
  %6494 = vmatpush.msra.mxu0 %v263
  %6495 = vmatpush.msra.mxu0 %v262
  %6496 = vmatmul.f32.gmra.mxu0 %v6344
  %v6497 = vpop.f32.mrf.mxu0
  %v6498 = vadd.f32 0.0, %v6497
  %6499 = vdwg.mxu0
  %6500 = vmatpush.msra.mxu0 %v293
  %6501 = vmatpush.msra.mxu0 %v292
  %6502 = vmatpush.msra.mxu0 %v291
  %6503 = vmatpush.msra.mxu0 %v290
  %6504 = vmatpush.msra.mxu0 %v289
  %6505 = vmatpush.msra.mxu0 %v288
  %6506 = vmatpush.msra.mxu0 %v287
  %6507 = vmatpush.msra.mxu0 %v286
  %6508 = vmatpush.msra.mxu0 %v285
  %6509 = vmatpush.msra.mxu0 %v284
  %6510 = vmatpush.msra.mxu0 %v283
  %6511 = vmatpush.msra.mxu0 %v282
  %6512 = vmatpush.msra.mxu0 %v281
  %6513 = vmatpush.msra.mxu0 %v280
  %6514 = vmatpush.msra.mxu0 %v279
  %6515 = vmatpush.msra.mxu0 %v278
  %6516 = vmatmul.f32.gmra.mxu0 %v6359
  %v6517 = vpop.f32.mrf.mxu0
  %v6518 = vadd.f32 0.0, %v6517
  %6519 = vdwg.mxu0
  %v6520 = vadd.f32 %v6378, 0.0
  %v6521 = vadd.f32 %v6398, 0.0
  %v6522 = vadd.f32 %v6418, 0.0
  %v6523 = vadd.f32 %v6438, 0.0
  %v6524 = vadd.f32 %v6458, 0.0
  %v6525 = vadd.f32 %v6478, 0.0
  %v6526 = vadd.f32 %v6498, 0.0
  %v6527 = vadd.f32 %v6518, 0.0
  %v6536 = vrot.slane %v6521, 7
  %v6537 = vsel %vm952, %v6536, %v6520
  %v6538 = vrot.slane %v6522, 6
  %v6539 = vsel %vm955, %v6538, %v6537
  %v6540 = vrot.slane %v6523, 5
  %v6541 = vsel %vm958, %v6540, %v6539
  %v6542 = vrot.slane %v6524, 4
  %v6543 = vsel %vm961, %v6542, %v6541
  %v6544 = vrot.slane %v6525, 3
  %v6545 = vsel %vm964, %v6544, %v6543
  %v6546 = vrot.slane %v6526, 2
  %v6547 = vsel %vm967, %v6546, %v6545
  %v6548 = vrot.slane %v6527, 1
  %v6549 = vsel %vm970, %v6548, %v6547
  %6551 = vmatpush.msra.mxu0 %v309
  %6552 = vmatpush.msra.mxu0 %v308
  %6553 = vmatpush.msra.mxu0 %v307
  %6554 = vmatpush.msra.mxu0 %v306
  %6555 = vmatpush.msra.mxu0 %v305
  %6556 = vmatpush.msra.mxu0 %v304
  %6557 = vmatpush.msra.mxu0 %v303
  %6558 = vmatpush.msra.mxu0 %v302
  %6559 = vmatpush.msra.mxu0 %v301
  %6560 = vmatpush.msra.mxu0 %v300
  %6561 = vmatpush.msra.mxu0 %v299
  %6562 = vmatpush.msra.mxu0 %v298
  %6563 = vmatpush.msra.mxu0 %v297
  %6564 = vmatpush.msra.mxu0 %v296
  %6565 = vmatpush.msra.mxu0 %v295
  %6566 = vmatpush.msra.mxu0 %v294
  %6567 = vmatmul.f32.gmra.mxu0 %v5936
  %v6568 = vpop.f32.mrf.mxu0
  %v6569 = vadd.f32 %v6549, %v6568
  %6570 = vdwg.mxu0
  %6571 = vmatpush.msra.mxu0 0.0
  %6572 = vmatpush.msra.mxu0 0.0
  %6573 = vmatpush.msra.mxu0 0.0
  %6574 = vmatpush.msra.mxu0 0.0
  %6575 = vmatpush.msra.mxu0 0.0
  %6576 = vmatpush.msra.mxu0 0.0
  %6577 = vmatpush.msra.mxu0 0.0
  %6578 = vmatpush.msra.mxu0 0.0
  %6579 = vmatpush.msra.mxu0 0.0
  %6580 = vmatpush.msra.mxu0 0.0
  %6581 = vmatpush.msra.mxu0 0.0
  %6582 = vmatpush.msra.mxu0 0.0
  %6583 = vmatpush.msra.mxu0 %v313
  %6584 = vmatpush.msra.mxu0 %v312
  %6585 = vmatpush.msra.mxu0 %v311
  %6586 = vmatpush.msra.mxu0 %v310
  %6587 = vmatmul.f32.gmra.mxu0 %v5855
  %v6588 = vpop.f32.mrf.mxu0
  %v6589 = vadd.f32 0.0, %v6588
  %6590 = vdwg.mxu0
  %v6591 = vadd.f32 %v6569, %v6589
  %v6592 = vadd.f32 %v6591, %v1409
  %v6593 = vtanh.pop %v6592
  %v6595 = vsel %vm329, %v6593, 0
  %6597 = vmatpush.msra.mxu0 0.0
  %6598 = vmatpush.msra.mxu0 0.0
  %6599 = vmatpush.msra.mxu0 0.0
  %6600 = vmatpush.msra.mxu0 0.0
  %6601 = vmatpush.msra.mxu0 0.0
  %6602 = vmatpush.msra.mxu0 0.0
  %6603 = vmatpush.msra.mxu0 0.0
  %6604 = vmatpush.msra.mxu0 0.0
  %6605 = vmatpush.msra.mxu0 0.0
  %6606 = vmatpush.msra.mxu0 0.0
  %6607 = vmatpush.msra.mxu0 0.0
  %6608 = vmatpush.msra.mxu0 0.0
  %6609 = vmatpush.msra.mxu0 %v318
  %6610 = vmatpush.msra.mxu0 %v317
  %6611 = vmatpush.msra.mxu0 %v316
  %6612 = vmatpush.msra.mxu0 %v315
  %6613 = vmatmul.f32.gmra.mxu0 %v6595
  %v6614 = vpop.f32.mrf.mxu0
  %v6615 = vadd.f32 %v1414, %v6614
  %6616 = vdwg.mxu0
  %v6617 = vsel %vm5933, 1, 0
  %6618 = vset.pattern.permute.xlu0 0
  %6619 = vperm.xlu0 %6618, %v6617
  %v6620 = vpop.permute.xlu0 %6619
  %vm6621 = vcmp.eq.s32.totalorder %v6620, 1
  %v6622 = vsel %vm6621, %v6615, 0.0
  %s6623 = scalar_lea.vmem %s10, 56
  %6624 = vst [vmem:[%s6623] sm:$0xff] %v6622
  %v6633 = vrot.slane %v6269, 7
  %v6634 = vsel %vm952, %v6633, %v6254
  %v6635 = vrot.slane %v6284, 6
  %v6636 = vsel %vm955, %v6635, %v6634
  %v6637 = vrot.slane %v6299, 5
  %v6638 = vsel %vm958, %v6637, %v6636
  %v6639 = vrot.slane %v6314, 4
  %v6640 = vsel %vm961, %v6639, %v6638
  %v6641 = vrot.slane %v6329, 3
  %v6642 = vsel %vm964, %v6641, %v6640
  %v6643 = vrot.slane %v6344, 2
  %v6644 = vsel %vm967, %v6643, %v6642
  %v6645 = vrot.slane %v6359, 1
  %v6646 = vsel %vm970, %v6645, %v6644
  %v6648 = vsel %vm6621, %v6646, 0.0
  %s6649 = scalar_lea.vmem %s11, 56
  %6650 = vst [vmem:[%s6649] sm:$0xff] %v6648
  %vm6651 = vcmask 7168
  %6652 = vst.msk [vmem:[%s12] sm:$0xff] %vm6651, %v5932
  // Predicated region
  $region42: #{captioning_decoder_forward.1} parent=0 // pred_check
    _
  $region43: #{captioning_decoder_forward.1} parent=0 // pred_check_branch
    %6654 = sbr.rel (0) target = $region45
  $region44: #{captioning_decoder_forward.1} parent=0 // pred_region
    _
  $region45: #{captioning_decoder_forward.1} parent=0 // pred_fallthru
    _
  // Predicated region
  $region46: #{captioning_decoder_forward.1} parent=0 // pred_check
    _
  $region47: #{captioning_decoder_forward.1} parent=0 // pred_check_branch
    %6656 = sbr.rel (0) target = $region49
  $region48: #{captioning_decoder_forward.1} parent=0 // pred_region
    _
  $region49: #{captioning_decoder_forward.1} parent=0 // pred_fallthru
    _
  // Predicated region
  $region50: #{captioning_decoder_forward.1} parent=0 // pred_check
    _
  $region51: #{captioning_decoder_forward.1} parent=0 // pred_check_branch
    %6658 = sbr.rel (0) target = $region53
  $region52: #{captioning_decoder_forward.1} parent=0 // pred_region
    _
  $region53: #{captioning_decoder_forward.1} parent=0 // pred_fallthru
    _
  // Predicated region
  $region54: #{captioning_decoder_forward.1} parent=0 // pred_check
    _
  $region55: #{captioning_decoder_forward.1} parent=0 // pred_check_branch
    %6660 = sbr.rel (0) target = $region57
  $region56: #{captioning_decoder_forward.1} parent=0 // pred_region
    _
  $region57: #{captioning_decoder_forward.1} parent=0 // pred_fallthru
    _
  // Predicated region
  $region58: #{captioning_decoder_forward.1} parent=0 // pred_check
    _
  $region59: #{captioning_decoder_forward.1} parent=0 // pred_check_branch
    %6662 = sbr.rel (0) target = $region61
  $region60: #{captioning_decoder_forward.1} parent=0 // pred_region
    _
  $region61: #{captioning_decoder_forward.1} parent=0 // pred_fallthru
    _
  // Predicated region
  $region62: #{captioning_decoder_forward.1} parent=0 // pred_check
    _
  $region63: #{captioning_decoder_forward.1} parent=0 // pred_check_branch
    %6664 = sbr.rel (0) target = $region65
  $region64: #{captioning_decoder_forward.1} parent=0 // pred_region
    _
  $region65: #{captioning_decoder_forward.1} parent=0 // pred_fallthru
    _

</llo_original>
